<compile_context>
chip_gen: v7x
topology: tpu7x:2x2x1
jax: 0.10.0
libtpu: 0.0.40
codegen_flags: <defaults>
</compile_context>

<pallas_src>
import functools

import jax
import jax.numpy as jnp
from jax.experimental import pallas as pl
from jax.experimental.pallas import tpu as pltpu

EPS = 1e-5
LANES = 128


def _round_up(x, m):
    return (x + m - 1) // m * m


def _compiler_params():
    return pltpu.CompilerParams(
        dimension_semantics=("parallel",),
        vmem_limit_bytes=48 * 1024 * 1024)


# ---------------------------------------------------------------------------
# Pass A: conv1 (3x3, stride 1, pad 1) as one im2col GEMM per image,
#         plus per-image BN partial sums.
# ---------------------------------------------------------------------------
def _conv1_kernel(x_ref, w_ref, y_ref, stats_ref, patch, *, H, W, CP):
    # x_ref block: (1, H+2, W+2, CP) bf16 (already zero-padded in H, W, C)
    for kh in range(3):
        for kw in range(3):
            tap = kh * 3 + kw
            patch[:, tap * CP:(tap + 1) * CP] = (
                x_ref[0, kh:kh + H, kw:kw + W, :].reshape(H * W, CP))

    # single MXU GEMM: (H*W, 9*CP) @ (9*CP, CP), f32 accumulation
    acc = jnp.dot(patch[...], w_ref[...], preferred_element_type=jnp.float32)

    y_ref[0] = acc                                       # pre-BN conv output
    # per-image BN partials (row 0: sum, row 1: sum of squares)
    stats_ref[0] = jnp.zeros((8, CP), jnp.float32)
    stats_ref[0, 0:1, :] = jnp.sum(acc, axis=0, keepdims=True)
    stats_ref[0, 1:2, :] = jnp.sum(acc * acc, axis=0, keepdims=True)


# ---------------------------------------------------------------------------
# Pass B: bn1 scale/shift + ReLU applied on the fly, then conv2 + stats2.
# ---------------------------------------------------------------------------
def _bn1_conv2_kernel(y1_ref, scale_ref, shift_ref, w_ref, y2_ref, stats_ref,
                      abuf, patch, *, H, W, CP):
    # bn1 + relu on the raw conv1 output (f32 math), cast to bf16 for the MXU
    a = jnp.maximum(y1_ref[0] * scale_ref[...] + shift_ref[...], 0.0)
    a = a.reshape(H, W, CP).astype(abuf.dtype)

    # build the zero-padded activation buffer for conv2 (only borders zeroed;
    # re-zeroed every step so it stays correct under megacore grid sharding)
    zrow = jnp.zeros((1, W + 2, CP), abuf.dtype)
    zcol = jnp.zeros((H, 1, CP), abuf.dtype)
    abuf[0:1] = zrow
    abuf[H + 1:H + 2] = zrow
    abuf[1:H + 1, 0:1, :] = zcol
    abuf[1:H + 1, W + 1:W + 2, :] = zcol
    abuf[1:H + 1, 1:W + 1, :] = a

    for kh in range(3):
        for kw in range(3):
            tap = kh * 3 + kw
            patch[:, tap * CP:(tap + 1) * CP] = (
                abuf[kh:kh + H, kw:kw + W, :].reshape(H * W, CP))

    acc = jnp.dot(patch[...], w_ref[...], preferred_element_type=jnp.float32)

    y2_ref[0] = acc
    stats_ref[0] = jnp.zeros((8, CP), jnp.float32)
    stats_ref[0, 0:1, :] = jnp.sum(acc, axis=0, keepdims=True)
    stats_ref[0, 1:2, :] = jnp.sum(acc * acc, axis=0, keepdims=True)


# ---------------------------------------------------------------------------
# Pass C: bn2 scale/shift + residual add + ReLU (final f32 output).
# ---------------------------------------------------------------------------
def _bn_res_relu_kernel(y_ref, scale_ref, shift_ref, res_ref, out_ref):
    z = y_ref[0] * scale_ref[...] + shift_ref[...] + res_ref[0]
    out_ref[0] = jnp.maximum(z, 0.0)


# ---------------------------------------------------------------------------
# pallas_call wrappers
# ---------------------------------------------------------------------------
def _conv1_pass(x_pad, w2d, N, H, W, CP):
    kern = functools.partial(_conv1_kernel, H=H, W=W, CP=CP)
    return pl.pallas_call(
        kern,
        grid=(N,),
        in_specs=[pl.BlockSpec((1, H + 2, W + 2, CP), lambda n: (n, 0, 0, 0)),
                  pl.BlockSpec((9 * CP, CP), lambda n: (0, 0))],
        out_specs=(pl.BlockSpec((1, H * W, CP), lambda n: (n, 0, 0)),
                   pl.BlockSpec((1, 8, CP), lambda n: (n, 0, 0))),
        out_shape=(jax.ShapeDtypeStruct((N, H * W, CP), jnp.float32),
                   jax.ShapeDtypeStruct((N, 8, CP), jnp.float32)),
        scratch_shapes=[pltpu.VMEM((H * W, 9 * CP), jnp.bfloat16)],
        compiler_params=_compiler_params(),
    )(x_pad, w2d)


def _bn1_conv2_pass(y1, scale, shift, w2d, N, H, W, CP):
    kern = functools.partial(_bn1_conv2_kernel, H=H, W=W, CP=CP)
    return pl.pallas_call(
        kern,
        grid=(N,),
        in_specs=[pl.BlockSpec((1, H * W, CP), lambda n: (n, 0, 0)),
                  pl.BlockSpec((1, CP), lambda n: (0, 0)),
                  pl.BlockSpec((1, CP), lambda n: (0, 0)),
                  pl.BlockSpec((9 * CP, CP), lambda n: (0, 0))],
        out_specs=(pl.BlockSpec((1, H * W, CP), lambda n: (n, 0, 0)),
                   pl.BlockSpec((1, 8, CP), lambda n: (n, 0, 0))),
        out_shape=(jax.ShapeDtypeStruct((N, H * W, CP), jnp.float32),
                   jax.ShapeDtypeStruct((N, 8, CP), jnp.float32)),
        scratch_shapes=[pltpu.VMEM((H + 2, W + 2, CP), jnp.bfloat16),
                        pltpu.VMEM((H * W, 9 * CP), jnp.bfloat16)],
        compiler_params=_compiler_params(),
    )(y1, scale, shift, w2d)


def _bn_res_relu_pass(y, scale, shift, res, N, H, W, CP):
    return pl.pallas_call(
        _bn_res_relu_kernel,
        grid=(N,),
        in_specs=[pl.BlockSpec((1, H * W, CP), lambda n: (n, 0, 0)),
                  pl.BlockSpec((1, CP), lambda n: (0, 0)),
                  pl.BlockSpec((1, CP), lambda n: (0, 0)),
                  pl.BlockSpec((1, H * W, CP), lambda n: (n, 0, 0))],
        out_specs=pl.BlockSpec((1, H * W, CP), lambda n: (n, 0, 0)),
        out_shape=jax.ShapeDtypeStruct((N, H * W, CP), jnp.float32),
        compiler_params=_compiler_params(),
    )(y, scale, shift, res)


def _bn_scale_shift(stats, gamma, beta, count):
    """Reduce per-image partials -> global batch mean/var -> scale/shift."""
    s = jnp.sum(stats[:, 0, :], axis=0)
    ss = jnp.sum(stats[:, 1, :], axis=0)
    mean = s / count
    var = ss / count - mean * mean          # biased variance (training-mode BN)
    scale = gamma * jax.lax.rsqrt(var + EPS)
    shift = beta - mean * scale
    cp = scale.shape[0]
    return scale.reshape(1, cp), shift.reshape(1, cp)


# ---------------------------------------------------------------------------
# Parameter packing / init / forward
# ---------------------------------------------------------------------------
def _pack_weight(w_hwio, CP):
    kh, kw, ci, co = w_hwio.shape
    wp = jnp.pad(w_hwio.astype(jnp.float32),
                 ((0, 0), (0, 0), (0, CP - ci), (0, CP - co)))
    return wp.reshape(kh * kw * CP, CP).astype(jnp.bfloat16)


def _pad_vec(v, CP):
    return jnp.pad(v.astype(jnp.float32), (0, CP - v.shape[0]))


def init_basic_block_params(key, inplanes, planes):
    """Deterministic init matching the shapes in BasicBlock.__init__."""
    k1, k2 = jax.random.split(key)
    std1 = (2.0 / (inplanes * 9)) ** 0.5
    std2 = (2.0 / (planes * 9)) ** 0.5
    return {
        "w1": jax.random.normal(k1, (3, 3, inplanes, planes), jnp.float32) * std1,
        "w2": jax.random.normal(k2, (3, 3, planes, planes), jnp.float32) * std2,
        "g1": jnp.ones((planes,), jnp.float32),   # bn1.weight
        "b1": jnp.zeros((planes,), jnp.float32),  # bn1.bias
        "g2": jnp.ones((planes,), jnp.float32),   # bn2.weight
        "b2": jnp.zeros((planes,), jnp.float32),  # bn2.bias
    }


def basic_block_forward(x_nchw, params):
    """Full BasicBlock forward. Input/output are NCHW (PyTorch convention)."""
    # TODO(synk): keep the surrounding network in NHWC to drop these two
    # boundary transposes (they are a full extra HBM pass each).
    N, C, H, W = x_nchw.shape
    CP = _round_up(C, LANES)
    assert (H * W) % 8 == 0, "unsupported spatial shape"

    x_nhwc = jnp.transpose(x_nchw, (0, 2, 3, 1)).astype(jnp.float32)
    # conv1 input: H/W zero-padded, channels zero-padded to CP, bf16
    x_pad = jnp.pad(x_nhwc, ((0, 0), (1, 1), (1, 1), (0, CP - C))
                    ).astype(jnp.bfloat16)
    # exact f32 residual in the flattened, channel-padded layout
    x_res = jnp.pad(x_nhwc, ((0, 0), (0, 0), (0, 0), (0, CP - C))
                    ).reshape(N, H * W, CP)

    w1 = _pack_weight(params["w1"], CP)
    w2 = _pack_weight(params["w2"], CP)
    g1, b1 = _pad_vec(params["g1"], CP), _pad_vec(params["b1"], CP)
    g2, b2 = _pad_vec(params["g2"], CP), _pad_vec(params["b2"], CP)
    count = float(N * H * W)

    # pass A: conv1 + BN partials
    y1, st1 = _conv1_pass(x_pad, w1, N, H, W, CP)
    sc1, sh1 = _bn_scale_shift(st1, g1, b1, count)

    # pass B: bn1+relu fused into conv2 + BN partials
    y2, st2 = _bn1_conv2_pass(y1, sc1, sh1, w2, N, H, W, CP)
    sc2, sh2 = _bn_scale_shift(st2, g2, b2, count)

    # pass C: bn2 + residual + relu
    out = _bn_res_relu_pass(y2, sc2, sh2, x_res, N, H, W, CP)

    out = out.reshape(N, H, W, CP)[..., :C]
    return jnp.transpose(out, (0, 3, 1, 2))


# ---------------- pure-JAX reference (for correctness check) ----------------
def _ref_conv_bn(x, w, g, b, residual=None):
    y = jax.lax.conv_general_dilated(
        x, w, window_strides=(1, 1), padding="SAME",
        dimension_numbers=("NHWC", "HWIO", "NHWC"))
    mean = jnp.mean(y, axis=(0, 1, 2), keepdims=True)
    var = jnp.mean((y - mean) ** 2, axis=(0, 1, 2), keepdims=True)
    y = (y - mean) * g.reshape(1, 1, 1, -1) / jnp.sqrt(var + EPS) \
        + b.reshape(1, 1, 1, -1)
    if residual is not None:
        y = y + residual
    return jnp.maximum(y, 0.0)


def _ref_forward(x_nchw, p):
    x = jnp.transpose(x_nchw, (0, 2, 3, 1))
    out = _ref_conv_bn(x, p["w1"], p["g1"], p["b1"])
    out = _ref_conv_bn(out, p["w2"], p["g2"], p["b2"], residual=x)
    return jnp.transpose(out, (0, 3, 1, 2))


if __name__ == "__main__":
    key = jax.random.PRNGKey(0)
    kx, kp = jax.random.split(key)

    # residual add requires inplanes == planes and stride == 1
    N, C, H, W = 2, 4, 16, 16
    x = jax.random.normal(kx, (N, C, H, W), jnp.float32)
    params = init_basic_block_params(kp, inplanes=C, planes=C)

    fwd = jax.jit(basic_block_forward)
    out = jax.block_until_ready(fwd(x, params))

    ref = jax.block_until_ready(_ref_forward(x, params))
    assert out.shape == (N, C, H, W)
    # bf16 MXU operands -> relaxed tolerance vs the all-f32 reference
    err = float(jnp.max(jnp.abs(out - ref)))
    assert err < 1e-1, f"mismatch vs JAX reference: max abs err = {err}"

    print("KERNEL_OK")
</pallas_src>

<mosaic_0001>
module attributes {stable_mosaic.version = 11 : i64} {
  func.func @_conv1_kernel(%arg0: i32, %arg1: memref<1x18x18x128xbf16, #tpu.memory_space<vmem>>, %arg2: memref<1152x128xbf16, #tpu.memory_space<vmem>>, %arg3: memref<1x256x128xf32, #tpu.memory_space<vmem>>, %arg4: memref<1x8x128xf32, #tpu.memory_space<vmem>>, %arg5: memref<256x1152xbf16, #tpu.memory_space<vmem>>) attributes {dimension_semantics = [#tpu.dimension_semantics<parallel>], iteration_bounds = array<i64: 2>, scalar_prefetch = 0 : i64, scratch_operands = 1 : i64, tpu.core_type = #tpu.core_type<tc>, window_params = [{transform_indices = @transform_0, window_bounds = array<i64: 1, 18, 18, 128>}, {pipeline_mode = #tpu.pipeline_mode<synchronous>, transform_indices = @transform_1, window_bounds = array<i64: 1152, 128>}, {transform_indices = @transform_2, window_bounds = array<i64: 1, 256, 128>}, {transform_indices = @transform_3, window_bounds = array<i64: 1, 8, 128>}]} {
    %c0 = arith.constant 0 : index
    %c0_0 = arith.constant 0 : index
    %c0_1 = arith.constant 0 : index
    %c0_2 = arith.constant 0 : index
    %0 = vector.load %arg1[%c0, %c0_0, %c0_1, %c0_2] : memref<1x18x18x128xbf16, #tpu.memory_space<vmem>>, vector<1x16x16x128xbf16>
    %1 = vector.shape_cast %0 : vector<1x16x16x128xbf16> to vector<16x16x128xbf16>
    %2 = vector.shape_cast %1 : vector<16x16x128xbf16> to vector<256x128xbf16>
    %c0_3 = arith.constant 0 : index
    %c0_4 = arith.constant 0 : index
    %3 = vector.load %arg5[%c0_3, %c0_4] : memref<256x1152xbf16, #tpu.memory_space<vmem>>, vector<256x128xbf16>
    tpu.vector_store %arg5[%c0_3, %c0_4], %2 {strides = array<i32>} : memref<256x1152xbf16, #tpu.memory_space<vmem>>, vector<256x128xbf16>,
    %c0_5 = arith.constant 0 : index
    %c0_6 = arith.constant 0 : index
    %c1 = arith.constant 1 : index
    %c0_7 = arith.constant 0 : index
    %4 = vector.load %arg1[%c0_5, %c0_6, %c1, %c0_7] : memref<1x18x18x128xbf16, #tpu.memory_space<vmem>>, vector<1x16x16x128xbf16>
    %5 = vector.shape_cast %4 : vector<1x16x16x128xbf16> to vector<16x16x128xbf16>
    %6 = vector.shape_cast %5 : vector<16x16x128xbf16> to vector<256x128xbf16>
    %c0_8 = arith.constant 0 : index
    %c128 = arith.constant 128 : index
    %7 = vector.load %arg5[%c0_8, %c128] : memref<256x1152xbf16, #tpu.memory_space<vmem>>, vector<256x128xbf16>
    tpu.vector_store %arg5[%c0_8, %c128], %6 {strides = array<i32>} : memref<256x1152xbf16, #tpu.memory_space<vmem>>, vector<256x128xbf16>,
    %c0_9 = arith.constant 0 : index
    %c0_10 = arith.constant 0 : index
    %c2 = arith.constant 2 : index
    %c0_11 = arith.constant 0 : index
    %8 = vector.load %arg1[%c0_9, %c0_10, %c2, %c0_11] : memref<1x18x18x128xbf16, #tpu.memory_space<vmem>>, vector<1x16x16x128xbf16>
    %9 = vector.shape_cast %8 : vector<1x16x16x128xbf16> to vector<16x16x128xbf16>
    %10 = vector.shape_cast %9 : vector<16x16x128xbf16> to vector<256x128xbf16>
    %c0_12 = arith.constant 0 : index
    %c256 = arith.constant 256 : index
    %11 = vector.load %arg5[%c0_12, %c256] : memref<256x1152xbf16, #tpu.memory_space<vmem>>, vector<256x128xbf16>
    tpu.vector_store %arg5[%c0_12, %c256], %10 {strides = array<i32>} : memref<256x1152xbf16, #tpu.memory_space<vmem>>, vector<256x128xbf16>,
    %c0_13 = arith.constant 0 : index
    %c1_14 = arith.constant 1 : index
    %c0_15 = arith.constant 0 : index
    %c0_16 = arith.constant 0 : index
    %12 = vector.load %arg1[%c0_13, %c1_14, %c0_15, %c0_16] : memref<1x18x18x128xbf16, #tpu.memory_space<vmem>>, vector<1x16x16x128xbf16>
    %13 = vector.shape_cast %12 : vector<1x16x16x128xbf16> to vector<16x16x128xbf16>
    %14 = vector.shape_cast %13 : vector<16x16x128xbf16> to vector<256x128xbf16>
    %c0_17 = arith.constant 0 : index
    %c384 = arith.constant 384 : index
    %15 = vector.load %arg5[%c0_17, %c384] : memref<256x1152xbf16, #tpu.memory_space<vmem>>, vector<256x128xbf16>
    tpu.vector_store %arg5[%c0_17, %c384], %14 {strides = array<i32>} : memref<256x1152xbf16, #tpu.memory_space<vmem>>, vector<256x128xbf16>,
    %c0_18 = arith.constant 0 : index
    %c1_19 = arith.constant 1 : index
    %c1_20 = arith.constant 1 : index
    %c0_21 = arith.constant 0 : index
    %16 = vector.load %arg1[%c0_18, %c1_19, %c1_20, %c0_21] : memref<1x18x18x128xbf16, #tpu.memory_space<vmem>>, vector<1x16x16x128xbf16>
    %17 = vector.shape_cast %16 : vector<1x16x16x128xbf16> to vector<16x16x128xbf16>
    %18 = vector.shape_cast %17 : vector<16x16x128xbf16> to vector<256x128xbf16>
    %c0_22 = arith.constant 0 : index
    %c512 = arith.constant 512 : index
    %19 = vector.load %arg5[%c0_22, %c512] : memref<256x1152xbf16, #tpu.memory_space<vmem>>, vector<256x128xbf16>
    tpu.vector_store %arg5[%c0_22, %c512], %18 {strides = array<i32>} : memref<256x1152xbf16, #tpu.memory_space<vmem>>, vector<256x128xbf16>,
    %c0_23 = arith.constant 0 : index
    %c1_24 = arith.constant 1 : index
    %c2_25 = arith.constant 2 : index
    %c0_26 = arith.constant 0 : index
    %20 = vector.load %arg1[%c0_23, %c1_24, %c2_25, %c0_26] : memref<1x18x18x128xbf16, #tpu.memory_space<vmem>>, vector<1x16x16x128xbf16>
    %21 = vector.shape_cast %20 : vector<1x16x16x128xbf16> to vector<16x16x128xbf16>
    %22 = vector.shape_cast %21 : vector<16x16x128xbf16> to vector<256x128xbf16>
    %c0_27 = arith.constant 0 : index
    %c640 = arith.constant 640 : index
    %23 = vector.load %arg5[%c0_27, %c640] : memref<256x1152xbf16, #tpu.memory_space<vmem>>, vector<256x128xbf16>
    tpu.vector_store %arg5[%c0_27, %c640], %22 {strides = array<i32>} : memref<256x1152xbf16, #tpu.memory_space<vmem>>, vector<256x128xbf16>,
    %c0_28 = arith.constant 0 : index
    %c2_29 = arith.constant 2 : index
    %c0_30 = arith.constant 0 : index
    %c0_31 = arith.constant 0 : index
    %24 = vector.load %arg1[%c0_28, %c2_29, %c0_30, %c0_31] : memref<1x18x18x128xbf16, #tpu.memory_space<vmem>>, vector<1x16x16x128xbf16>
    %25 = vector.shape_cast %24 : vector<1x16x16x128xbf16> to vector<16x16x128xbf16>
    %26 = vector.shape_cast %25 : vector<16x16x128xbf16> to vector<256x128xbf16>
    %c0_32 = arith.constant 0 : index
    %c768 = arith.constant 768 : index
    %27 = vector.load %arg5[%c0_32, %c768] : memref<256x1152xbf16, #tpu.memory_space<vmem>>, vector<256x128xbf16>
    tpu.vector_store %arg5[%c0_32, %c768], %26 {strides = array<i32>} : memref<256x1152xbf16, #tpu.memory_space<vmem>>, vector<256x128xbf16>,
    %c0_33 = arith.constant 0 : index
    %c2_34 = arith.constant 2 : index
    %c1_35 = arith.constant 1 : index
    %c0_36 = arith.constant 0 : index
    %28 = vector.load %arg1[%c0_33, %c2_34, %c1_35, %c0_36] : memref<1x18x18x128xbf16, #tpu.memory_space<vmem>>, vector<1x16x16x128xbf16>
    %29 = vector.shape_cast %28 : vector<1x16x16x128xbf16> to vector<16x16x128xbf16>
    %30 = vector.shape_cast %29 : vector<16x16x128xbf16> to vector<256x128xbf16>
    %c0_37 = arith.constant 0 : index
    %c896 = arith.constant 896 : index
    %31 = vector.load %arg5[%c0_37, %c896] : memref<256x1152xbf16, #tpu.memory_space<vmem>>, vector<256x128xbf16>
    tpu.vector_store %arg5[%c0_37, %c896], %30 {strides = array<i32>} : memref<256x1152xbf16, #tpu.memory_space<vmem>>, vector<256x128xbf16>,
    %c0_38 = arith.constant 0 : index
    %c2_39 = arith.constant 2 : index
    %c2_40 = arith.constant 2 : index
    %c0_41 = arith.constant 0 : index
    %32 = vector.load %arg1[%c0_38, %c2_39, %c2_40, %c0_41] : memref<1x18x18x128xbf16, #tpu.memory_space<vmem>>, vector<1x16x16x128xbf16>
    %33 = vector.shape_cast %32 : vector<1x16x16x128xbf16> to vector<16x16x128xbf16>
    %34 = vector.shape_cast %33 : vector<16x16x128xbf16> to vector<256x128xbf16>
    %c0_42 = arith.constant 0 : index
    %c1024 = arith.constant 1024 : index
    %35 = vector.load %arg5[%c0_42, %c1024] : memref<256x1152xbf16, #tpu.memory_space<vmem>>, vector<256x128xbf16>
    tpu.vector_store %arg5[%c0_42, %c1024], %34 {strides = array<i32>} : memref<256x1152xbf16, #tpu.memory_space<vmem>>, vector<256x128xbf16>,
    %c0_43 = arith.constant 0 : index
    %c0_44 = arith.constant 0 : index
    %36 = vector.load %arg5[%c0_43, %c0_44] : memref<256x1152xbf16, #tpu.memory_space<vmem>>, vector<256x1152xbf16>
    %c0_45 = arith.constant 0 : index
    %c0_46 = arith.constant 0 : index
    %37 = vector.load %arg2[%c0_45, %c0_46] : memref<1152x128xbf16, #tpu.memory_space<vmem>>, vector<1152x128xbf16>
    %cst = arith.constant dense<0.000000e+00> : vector<256x128xf32>
    %38 = tpu.matmul %36, %37, %cst {dimension_numbers = #tpu.dot_dimension_numbers<[1], [0], [0], [1], [0, 0, 1, 1], [], []>} : vector<256x1152xbf16>, vector<1152x128xbf16>, vector<256x128xf32> -> vector<256x128xf32>
    %c0_47 = arith.constant 0 : index
    %c0_48 = arith.constant 0 : index
    %c0_49 = arith.constant 0 : index
    %39 = vector.load %arg3[%c0_47, %c0_48, %c0_49] : memref<1x256x128xf32, #tpu.memory_space<vmem>>, vector<1x256x128xf32>
    %40 = vector.shape_cast %39 : vector<1x256x128xf32> to vector<256x128xf32>
    %41 = vector.shape_cast %38 : vector<256x128xf32> to vector<1x256x128xf32>
    tpu.vector_store %arg3[%c0_47, %c0_48, %c0_49], %41 {strides = array<i32>} : memref<1x256x128xf32, #tpu.memory_space<vmem>>, vector<1x256x128xf32>,
    %cst_50 = arith.constant 0.000000e+00 : f32
    %42 = vector.broadcast %cst_50 : f32 to vector<8x128xf32>
    %c0_51 = arith.constant 0 : index
    %c0_52 = arith.constant 0 : index
    %c0_53 = arith.constant 0 : index
    %43 = vector.load %arg4[%c0_51, %c0_52, %c0_53] : memref<1x8x128xf32, #tpu.memory_space<vmem>>, vector<1x8x128xf32>
    %44 = vector.shape_cast %43 : vector<1x8x128xf32> to vector<8x128xf32>
    %45 = vector.shape_cast %42 : vector<8x128xf32> to vector<1x8x128xf32>
    tpu.vector_store %arg4[%c0_51, %c0_52, %c0_53], %45 {strides = array<i32>} : memref<1x8x128xf32, #tpu.memory_space<vmem>>, vector<1x8x128xf32>,
    %cst_54 = arith.constant dense<0.000000e+00> : vector<128xf32>
    %46 = vector.multi_reduction <add>, %38, %cst_54 [0] : vector<256x128xf32> to vector<128xf32>
    %47 = vector.shape_cast %46 : vector<128xf32> to vector<1x128xf32>
    %c0_55 = arith.constant 0 : index
    %c0_56 = arith.constant 0 : index
    %c0_57 = arith.constant 0 : index
    %48 = vector.load %arg4[%c0_55, %c0_56, %c0_57] : memref<1x8x128xf32, #tpu.memory_space<vmem>>, vector<1x1x128xf32>
    %49 = vector.shape_cast %48 : vector<1x1x128xf32> to vector<1x128xf32>
    %50 = vector.shape_cast %47 : vector<1x128xf32> to vector<1x1x128xf32>
    tpu.vector_store %arg4[%c0_55, %c0_56, %c0_57], %50 {strides = array<i32>} : memref<1x8x128xf32, #tpu.memory_space<vmem>>, vector<1x1x128xf32>,
    %51 = arith.mulf %38, %38 : vector<256x128xf32>
    %cst_58 = arith.constant dense<0.000000e+00> : vector<128xf32>
    %52 = vector.multi_reduction <add>, %51, %cst_58 [0] : vector<256x128xf32> to vector<128xf32>
    %53 = vector.shape_cast %52 : vector<128xf32> to vector<1x128xf32>
    %c0_59 = arith.constant 0 : index
    %c1_60 = arith.constant 1 : index
    %c0_61 = arith.constant 0 : index
    %54 = vector.load %arg4[%c0_59, %c1_60, %c0_61] : memref<1x8x128xf32, #tpu.memory_space<vmem>>, vector<1x1x128xf32>
    %55 = vector.shape_cast %54 : vector<1x1x128xf32> to vector<1x128xf32>
    %56 = vector.shape_cast %53 : vector<1x128xf32> to vector<1x1x128xf32>
    tpu.vector_store %arg4[%c0_59, %c1_60, %c0_61], %56 {strides = array<i32>} : memref<1x8x128xf32, #tpu.memory_space<vmem>>, vector<1x1x128xf32>,
    return
  }
  func.func @transform_0(%arg0: i32) -> (i32, i32, i32, i32) {
    %c0_i32 = arith.constant 0 : i32
    %c0_i32_0 = arith.constant 0 : i32
    %c0_i32_1 = arith.constant 0 : i32
    %c0_i32_2 = arith.constant 0 : i32
    return %arg0, %c0_i32, %c0_i32_0, %c0_i32_1 : i32, i32, i32, i32
  }
  func.func @transform_1(%arg0: i32) -> (i32, i32) {
    %c0_i32 = arith.constant 0 : i32
    %c0_i32_0 = arith.constant 0 : i32
    %c0_i32_1 = arith.constant 0 : i32
    return %c0_i32, %c0_i32_0 : i32, i32
  }
  func.func @transform_2(%arg0: i32) -> (i32, i32, i32) {
    %c0_i32 = arith.constant 0 : i32
    %c0_i32_0 = arith.constant 0 : i32
    %c0_i32_1 = arith.constant 0 : i32
    return %arg0, %c0_i32, %c0_i32_0 : i32, i32, i32
  }
  func.func @transform_3(%arg0: i32) -> (i32, i32, i32) {
    %c0_i32 = arith.constant 0 : i32
    %c0_i32_0 = arith.constant 0 : i32
    %c0_i32_1 = arith.constant 0 : i32
    return %arg0, %c0_i32, %c0_i32_0 : i32, i32, i32
  }
}

module attributes {stable_mosaic.version = 11 : i64} {
  func.func @_bn1_conv2_kernel(%arg0: i32, %arg1: memref<1x256x128xf32, #tpu.memory_space<vmem>>, %arg2: memref<1x128xf32, #tpu.memory_space<vmem>>, %arg3: memref<1x128xf32, #tpu.memory_space<vmem>>, %arg4: memref<1152x128xbf16, #tpu.memory_space<vmem>>, %arg5: memref<1x256x128xf32, #tpu.memory_space<vmem>>, %arg6: memref<1x8x128xf32, #tpu.memory_space<vmem>>, %arg7: memref<18x18x128xbf16, #tpu.memory_space<vmem>>, %arg8: memref<256x1152xbf16, #tpu.memory_space<vmem>>) attributes {dimension_semantics = [#tpu.dimension_semantics<parallel>], iteration_bounds = array<i64: 2>, scalar_prefetch = 0 : i64, scratch_operands = 2 : i64, tpu.core_type = #tpu.core_type<tc>, window_params = [{transform_indices = @transform_0, window_bounds = array<i64: 1, 256, 128>}, {pipeline_mode = #tpu.pipeline_mode<synchronous>, transform_indices = @transform_1, window_bounds = array<i64: 1, 128>}, {pipeline_mode = #tpu.pipeline_mode<synchronous>, transform_indices = @transform_2, window_bounds = array<i64: 1, 128>}, {pipeline_mode = #tpu.pipeline_mode<synchronous>, transform_indices = @transform_3, window_bounds = array<i64: 1152, 128>}, {transform_indices = @transform_4, window_bounds = array<i64: 1, 256, 128>}, {transform_indices = @transform_5, window_bounds = array<i64: 1, 8, 128>}]} {
    %c0 = arith.constant 0 : index
    %c0_0 = arith.constant 0 : index
    %c0_1 = arith.constant 0 : index
    %0 = vector.load %arg1[%c0, %c0_0, %c0_1] : memref<1x256x128xf32, #tpu.memory_space<vmem>>, vector<1x256x128xf32>
    %1 = vector.shape_cast %0 : vector<1x256x128xf32> to vector<256x128xf32>
    %c0_2 = arith.constant 0 : index
    %c0_3 = arith.constant 0 : index
    %2 = vector.load %arg2[%c0_2, %c0_3] : memref<1x128xf32, #tpu.memory_space<vmem>>, vector<1x128xf32>
    %3 = vector.broadcast %2 : vector<1x128xf32> to vector<256x128xf32>
    %4 = arith.mulf %1, %3 : vector<256x128xf32>
    %c0_4 = arith.constant 0 : index
    %c0_5 = arith.constant 0 : index
    %5 = vector.load %arg3[%c0_4, %c0_5] : memref<1x128xf32, #tpu.memory_space<vmem>>, vector<1x128xf32>
    %6 = vector.broadcast %5 : vector<1x128xf32> to vector<256x128xf32>
    %7 = arith.addf %4, %6 : vector<256x128xf32>
    %cst = arith.constant 0.000000e+00 : f32
    %8 = vector.broadcast %cst : f32 to vector<256x128xf32>
    %9 = arith.maximumf %7, %8 : vector<256x128xf32>
    %10 = vector.shape_cast %9 : vector<256x128xf32> to vector<16x16x128xf32>
    %11 = arith.truncf %10 : vector<16x16x128xf32> to vector<16x16x128xbf16>
    %cst_6 = arith.constant 0.000000e+00 : bf16
    %12 = vector.broadcast %cst_6 : bf16 to vector<1x18x128xbf16>
    %cst_7 = arith.constant 0.000000e+00 : bf16
    %13 = vector.broadcast %cst_7 : bf16 to vector<16x1x128xbf16>
    %c0_8 = arith.constant 0 : index
    %c0_9 = arith.constant 0 : index
    %c0_10 = arith.constant 0 : index
    %14 = vector.load %arg7[%c0_8, %c0_9, %c0_10] : memref<18x18x128xbf16, #tpu.memory_space<vmem>>, vector<1x18x128xbf16>
    tpu.vector_store %arg7[%c0_8, %c0_9, %c0_10], %12 {strides = array<i32>} : memref<18x18x128xbf16, #tpu.memory_space<vmem>>, vector<1x18x128xbf16>,
    %c17 = arith.constant 17 : index
    %c0_11 = arith.constant 0 : index
    %c0_12 = arith.constant 0 : index
    %15 = vector.load %arg7[%c17, %c0_11, %c0_12] : memref<18x18x128xbf16, #tpu.memory_space<vmem>>, vector<1x18x128xbf16>
    tpu.vector_store %arg7[%c17, %c0_11, %c0_12], %12 {strides = array<i32>} : memref<18x18x128xbf16, #tpu.memory_space<vmem>>, vector<1x18x128xbf16>,
    %c1 = arith.constant 1 : index
    %c0_13 = arith.constant 0 : index
    %c0_14 = arith.constant 0 : index
    %16 = vector.load %arg7[%c1, %c0_13, %c0_14] : memref<18x18x128xbf16, #tpu.memory_space<vmem>>, vector<16x1x128xbf16>
    tpu.vector_store %arg7[%c1, %c0_13, %c0_14], %13 {strides = array<i32>} : memref<18x18x128xbf16, #tpu.memory_space<vmem>>, vector<16x1x128xbf16>,
    %c1_15 = arith.constant 1 : index
    %c17_16 = arith.constant 17 : index
    %c0_17 = arith.constant 0 : index
    %17 = vector.load %arg7[%c1_15, %c17_16, %c0_17] : memref<18x18x128xbf16, #tpu.memory_space<vmem>>, vector<16x1x128xbf16>
    tpu.vector_store %arg7[%c1_15, %c17_16, %c0_17], %13 {strides = array<i32>} : memref<18x18x128xbf16, #tpu.memory_space<vmem>>, vector<16x1x128xbf16>,
    %c1_18 = arith.constant 1 : index
    %c1_19 = arith.constant 1 : index
    %c0_20 = arith.constant 0 : index
    %18 = vector.load %arg7[%c1_18, %c1_19, %c0_20] : memref<18x18x128xbf16, #tpu.memory_space<vmem>>, vector<16x16x128xbf16>
    tpu.vector_store %arg7[%c1_18, %c1_19, %c0_20], %11 {strides = array<i32>} : memref<18x18x128xbf16, #tpu.memory_space<vmem>>, vector<16x16x128xbf16>,
    %c0_21 = arith.constant 0 : index
    %c0_22 = arith.constant 0 : index
    %c0_23 = arith.constant 0 : index
    %19 = vector.load %arg7[%c0_21, %c0_22, %c0_23] : memref<18x18x128xbf16, #tpu.memory_space<vmem>>, vector<16x16x128xbf16>
    %20 = vector.shape_cast %19 : vector<16x16x128xbf16> to vector<256x128xbf16>
    %c0_24 = arith.constant 0 : index
    %c0_25 = arith.constant 0 : index
    %21 = vector.load %arg8[%c0_24, %c0_25] : memref<256x1152xbf16, #tpu.memory_space<vmem>>, vector<256x128xbf16>
    tpu.vector_store %arg8[%c0_24, %c0_25], %20 {strides = array<i32>} : memref<256x1152xbf16, #tpu.memory_space<vmem>>, vector<256x128xbf16>,
    %c0_26 = arith.constant 0 : index
    %c1_27 = arith.constant 1 : index
    %c0_28 = arith.constant 0 : index
    %22 = vector.load %arg7[%c0_26, %c1_27, %c0_28] : memref<18x18x128xbf16, #tpu.memory_space<vmem>>, vector<16x16x128xbf16>
    %23 = vector.shape_cast %22 : vector<16x16x128xbf16> to vector<256x128xbf16>
    %c0_29 = arith.constant 0 : index
    %c128 = arith.constant 128 : index
    %24 = vector.load %arg8[%c0_29, %c128] : memref<256x1152xbf16, #tpu.memory_space<vmem>>, vector<256x128xbf16>
    tpu.vector_store %arg8[%c0_29, %c128], %23 {strides = array<i32>} : memref<256x1152xbf16, #tpu.memory_space<vmem>>, vector<256x128xbf16>,
    %c0_30 = arith.constant 0 : index
    %c2 = arith.constant 2 : index
    %c0_31 = arith.constant 0 : index
    %25 = vector.load %arg7[%c0_30, %c2, %c0_31] : memref<18x18x128xbf16, #tpu.memory_space<vmem>>, vector<16x16x128xbf16>
    %26 = vector.shape_cast %25 : vector<16x16x128xbf16> to vector<256x128xbf16>
    %c0_32 = arith.constant 0 : index
    %c256 = arith.constant 256 : index
    %27 = vector.load %arg8[%c0_32, %c256] : memref<256x1152xbf16, #tpu.memory_space<vmem>>, vector<256x128xbf16>
    tpu.vector_store %arg8[%c0_32, %c256], %26 {strides = array<i32>} : memref<256x1152xbf16, #tpu.memory_space<vmem>>, vector<256x128xbf16>,
    %c1_33 = arith.constant 1 : index
    %c0_34 = arith.constant 0 : index
    %c0_35 = arith.constant 0 : index
    %28 = vector.load %arg7[%c1_33, %c0_34, %c0_35] : memref<18x18x128xbf16, #tpu.memory_space<vmem>>, vector<16x16x128xbf16>
    %29 = vector.shape_cast %28 : vector<16x16x128xbf16> to vector<256x128xbf16>
    %c0_36 = arith.constant 0 : index
    %c384 = arith.constant 384 : index
    %30 = vector.load %arg8[%c0_36, %c384] : memref<256x1152xbf16, #tpu.memory_space<vmem>>, vector<256x128xbf16>
    tpu.vector_store %arg8[%c0_36, %c384], %29 {strides = array<i32>} : memref<256x1152xbf16, #tpu.memory_space<vmem>>, vector<256x128xbf16>,
    %c1_37 = arith.constant 1 : index
    %c1_38 = arith.constant 1 : index
    %c0_39 = arith.constant 0 : index
    %31 = vector.load %arg7[%c1_37, %c1_38, %c0_39] : memref<18x18x128xbf16, #tpu.memory_space<vmem>>, vector<16x16x128xbf16>
    %32 = vector.shape_cast %31 : vector<16x16x128xbf16> to vector<256x128xbf16>
    %c0_40 = arith.constant 0 : index
    %c512 = arith.constant 512 : index
    %33 = vector.load %arg8[%c0_40, %c512] : memref<256x1152xbf16, #tpu.memory_space<vmem>>, vector<256x128xbf16>
    tpu.vector_store %arg8[%c0_40, %c512], %32 {strides = array<i32>} : memref<256x1152xbf16, #tpu.memory_space<vmem>>, vector<256x128xbf16>,
    %c1_41 = arith.constant 1 : index
    %c2_42 = arith.constant 2 : index
    %c0_43 = arith.constant 0 : index
    %34 = vector.load %arg7[%c1_41, %c2_42, %c0_43] : memref<18x18x128xbf16, #tpu.memory_space<vmem>>, vector<16x16x128xbf16>
    %35 = vector.shape_cast %34 : vector<16x16x128xbf16> to vector<256x128xbf16>
    %c0_44 = arith.constant 0 : index
    %c640 = arith.constant 640 : index
    %36 = vector.load %arg8[%c0_44, %c640] : memref<256x1152xbf16, #tpu.memory_space<vmem>>, vector<256x128xbf16>
    tpu.vector_store %arg8[%c0_44, %c640], %35 {strides = array<i32>} : memref<256x1152xbf16, #tpu.memory_space<vmem>>, vector<256x128xbf16>,
    %c2_45 = arith.constant 2 : index
    %c0_46 = arith.constant 0 : index
    %c0_47 = arith.constant 0 : index
    %37 = vector.load %arg7[%c2_45, %c0_46, %c0_47] : memref<18x18x128xbf16, #tpu.memory_space<vmem>>, vector<16x16x128xbf16>
    %38 = vector.shape_cast %37 : vector<16x16x128xbf16> to vector<256x128xbf16>
    %c0_48 = arith.constant 0 : index
    %c768 = arith.constant 768 : index
    %39 = vector.load %arg8[%c0_48, %c768] : memref<256x1152xbf16, #tpu.memory_space<vmem>>, vector<256x128xbf16>
    tpu.vector_store %arg8[%c0_48, %c768], %38 {strides = array<i32>} : memref<256x1152xbf16, #tpu.memory_space<vmem>>, vector<256x128xbf16>,
    %c2_49 = arith.constant 2 : index
    %c1_50 = arith.constant 1 : index
    %c0_51 = arith.constant 0 : index
    %40 = vector.load %arg7[%c2_49, %c1_50, %c0_51] : memref<18x18x128xbf16, #tpu.memory_space<vmem>>, vector<16x16x128xbf16>
    %41 = vector.shape_cast %40 : vector<16x16x128xbf16> to vector<256x128xbf16>
    %c0_52 = arith.constant 0 : index
    %c896 = arith.constant 896 : index
    %42 = vector.load %arg8[%c0_52, %c896] : memref<256x1152xbf16, #tpu.memory_space<vmem>>, vector<256x128xbf16>
    tpu.vector_store %arg8[%c0_52, %c896], %41 {strides = array<i32>} : memref<256x1152xbf16, #tpu.memory_space<vmem>>, vector<256x128xbf16>,
    %c2_53 = arith.constant 2 : index
    %c2_54 = arith.constant 2 : index
    %c0_55 = arith.constant 0 : index
    %43 = vector.load %arg7[%c2_53, %c2_54, %c0_55] : memref<18x18x128xbf16, #tpu.memory_space<vmem>>, vector<16x16x128xbf16>
    %44 = vector.shape_cast %43 : vector<16x16x128xbf16> to vector<256x128xbf16>
    %c0_56 = arith.constant 0 : index
    %c1024 = arith.constant 1024 : index
    %45 = vector.load %arg8[%c0_56, %c1024] : memref<256x1152xbf16, #tpu.memory_space<vmem>>, vector<256x128xbf16>
    tpu.vector_store %arg8[%c0_56, %c1024], %44 {strides = array<i32>} : memref<256x1152xbf16, #tpu.memory_space<vmem>>, vector<256x128xbf16>,
    %c0_57 = arith.constant 0 : index
    %c0_58 = arith.constant 0 : index
    %46 = vector.load %arg8[%c0_57, %c0_58] : memref<256x1152xbf16, #tpu.memory_space<vmem>>, vector<256x1152xbf16>
    %c0_59 = arith.constant 0 : index
    %c0_60 = arith.constant 0 : index
    %47 = vector.load %arg4[%c0_59, %c0_60] : memref<1152x128xbf16, #tpu.memory_space<vmem>>, vector<1152x128xbf16>
    %cst_61 = arith.constant dense<0.000000e+00> : vector<256x128xf32>
    %48 = tpu.matmul %46, %47, %cst_61 {dimension_numbers = #tpu.dot_dimension_numbers<[1], [0], [0], [1], [0, 0, 1, 1], [], []>} : vector<256x1152xbf16>, vector<1152x128xbf16>, vector<256x128xf32> -> vector<256x128xf32>
    %c0_62 = arith.constant 0 : index
    %c0_63 = arith.constant 0 : index
    %c0_64 = arith.constant 0 : index
    %49 = vector.load %arg5[%c0_62, %c0_63, %c0_64] : memref<1x256x128xf32, #tpu.memory_space<vmem>>, vector<1x256x128xf32>
    %50 = vector.shape_cast %49 : vector<1x256x128xf32> to vector<256x128xf32>
    %51 = vector.shape_cast %48 : vector<256x128xf32> to vector<1x256x128xf32>
    tpu.vector_store %arg5[%c0_62, %c0_63, %c0_64], %51 {strides = array<i32>} : memref<1x256x128xf32, #tpu.memory_space<vmem>>, vector<1x256x128xf32>,
    %cst_65 = arith.constant 0.000000e+00 : f32
    %52 = vector.broadcast %cst_65 : f32 to vector<8x128xf32>
    %c0_66 = arith.constant 0 : index
    %c0_67 = arith.constant 0 : index
    %c0_68 = arith.constant 0 : index
    %53 = vector.load %arg6[%c0_66, %c0_67, %c0_68] : memref<1x8x128xf32, #tpu.memory_space<vmem>>, vector<1x8x128xf32>
    %54 = vector.shape_cast %53 : vector<1x8x128xf32> to vector<8x128xf32>
    %55 = vector.shape_cast %52 : vector<8x128xf32> to vector<1x8x128xf32>
    tpu.vector_store %arg6[%c0_66, %c0_67, %c0_68], %55 {strides = array<i32>} : memref<1x8x128xf32, #tpu.memory_space<vmem>>, vector<1x8x128xf32>,
    %cst_69 = arith.constant dense<0.000000e+00> : vector<128xf32>
    %56 = vector.multi_reduction <add>, %48, %cst_69 [0] : vector<256x128xf32> to vector<128xf32>
    %57 = vector.shape_cast %56 : vector<128xf32> to vector<1x128xf32>
    %c0_70 = arith.constant 0 : index
    %c0_71 = arith.constant 0 : index
    %c0_72 = arith.constant 0 : index
    %58 = vector.load %arg6[%c0_70, %c0_71, %c0_72] : memref<1x8x128xf32, #tpu.memory_space<vmem>>, vector<1x1x128xf32>
    %59 = vector.shape_cast %58 : vector<1x1x128xf32> to vector<1x128xf32>
    %60 = vector.shape_cast %57 : vector<1x128xf32> to vector<1x1x128xf32>
    tpu.vector_store %arg6[%c0_70, %c0_71, %c0_72], %60 {strides = array<i32>} : memref<1x8x128xf32, #tpu.memory_space<vmem>>, vector<1x1x128xf32>,
    %61 = arith.mulf %48, %48 : vector<256x128xf32>
    %cst_73 = arith.constant dense<0.000000e+00> : vector<128xf32>
    %62 = vector.multi_reduction <add>, %61, %cst_73 [0] : vector<256x128xf32> to vector<128xf32>
    %63 = vector.shape_cast %62 : vector<128xf32> to vector<1x128xf32>
    %c0_74 = arith.constant 0 : index
    %c1_75 = arith.constant 1 : index
    %c0_76 = arith.constant 0 : index
    %64 = vector.load %arg6[%c0_74, %c1_75, %c0_76] : memref<1x8x128xf32, #tpu.memory_space<vmem>>, vector<1x1x128xf32>
    %65 = vector.shape_cast %64 : vector<1x1x128xf32> to vector<1x128xf32>
    %66 = vector.shape_cast %63 : vector<1x128xf32> to vector<1x1x128xf32>
    tpu.vector_store %arg6[%c0_74, %c1_75, %c0_76], %66 {strides = array<i32>} : memref<1x8x128xf32, #tpu.memory_space<vmem>>, vector<1x1x128xf32>,
    return
  }
  func.func @transform_0(%arg0: i32) -> (i32, i32, i32) {
    %c0_i32 = arith.constant 0 : i32
    %c0_i32_0 = arith.constant 0 : i32
    %c0_i32_1 = arith.constant 0 : i32
    return %arg0, %c0_i32, %c0_i32_0 : i32, i32, i32
  }
  func.func @transform_1(%arg0: i32) -> (i32, i32) {
    %c0_i32 = arith.constant 0 : i32
    %c0_i32_0 = arith.constant 0 : i32
    %c0_i32_1 = arith.constant 0 : i32
    return %c0_i32, %c0_i32_0 : i32, i32
  }
  func.func @transform_2(%arg0: i32) -> (i32, i32) {
    %c0_i32 = arith.constant 0 : i32
    %c0_i32_0 = arith.constant 0 : i32
    %c0_i32_1 = arith.constant 0 : i32
    return %c0_i32, %c0_i32_0 : i32, i32
  }
  func.func @transform_3(%arg0: i32) -> (i32, i32) {
    %c0_i32 = arith.constant 0 : i32
    %c0_i32_0 = arith.constant 0 : i32
    %c0_i32_1 = arith.constant 0 : i32
    return %c0_i32, %c0_i32_0 : i32, i32
  }
  func.func @transform_4(%arg0: i32) -> (i32, i32, i32) {
    %c0_i32 = arith.constant 0 : i32
    %c0_i32_0 = arith.constant 0 : i32
    %c0_i32_1 = arith.constant 0 : i32
    return %arg0, %c0_i32, %c0_i32_0 : i32, i32, i32
  }
  func.func @transform_5(%arg0: i32) -> (i32, i32, i32) {
    %c0_i32 = arith.constant 0 : i32
    %c0_i32_0 = arith.constant 0 : i32
    %c0_i32_1 = arith.constant 0 : i32
    return %arg0, %c0_i32, %c0_i32_0 : i32, i32, i32
  }
}

module attributes {stable_mosaic.version = 11 : i64} {
  func.func @_bn_res_relu_kernel(%arg0: i32, %arg1: memref<1x256x128xf32, #tpu.memory_space<vmem>>, %arg2: memref<1x128xf32, #tpu.memory_space<vmem>>, %arg3: memref<1x128xf32, #tpu.memory_space<vmem>>, %arg4: memref<1x256x128xf32, #tpu.memory_space<vmem>>, %arg5: memref<1x256x128xf32, #tpu.memory_space<vmem>>) attributes {dimension_semantics = [#tpu.dimension_semantics<parallel>], iteration_bounds = array<i64: 2>, scalar_prefetch = 0 : i64, scratch_operands = 0 : i64, tpu.core_type = #tpu.core_type<tc>, window_params = [{transform_indices = @transform_0, window_bounds = array<i64: 1, 256, 128>}, {pipeline_mode = #tpu.pipeline_mode<synchronous>, transform_indices = @transform_1, window_bounds = array<i64: 1, 128>}, {pipeline_mode = #tpu.pipeline_mode<synchronous>, transform_indices = @transform_2, window_bounds = array<i64: 1, 128>}, {transform_indices = @transform_3, window_bounds = array<i64: 1, 256, 128>}, {transform_indices = @transform_4, window_bounds = array<i64: 1, 256, 128>}]} {
    %c0 = arith.constant 0 : index
    %c0_0 = arith.constant 0 : index
    %c0_1 = arith.constant 0 : index
    %0 = vector.load %arg1[%c0, %c0_0, %c0_1] : memref<1x256x128xf32, #tpu.memory_space<vmem>>, vector<1x256x128xf32>
    %1 = vector.shape_cast %0 : vector<1x256x128xf32> to vector<256x128xf32>
    %c0_2 = arith.constant 0 : index
    %c0_3 = arith.constant 0 : index
    %2 = vector.load %arg2[%c0_2, %c0_3] : memref<1x128xf32, #tpu.memory_space<vmem>>, vector<1x128xf32>
    %3 = vector.broadcast %2 : vector<1x128xf32> to vector<256x128xf32>
    %4 = arith.mulf %1, %3 : vector<256x128xf32>
    %c0_4 = arith.constant 0 : index
    %c0_5 = arith.constant 0 : index
    %5 = vector.load %arg3[%c0_4, %c0_5] : memref<1x128xf32, #tpu.memory_space<vmem>>, vector<1x128xf32>
    %6 = vector.broadcast %5 : vector<1x128xf32> to vector<256x128xf32>
    %7 = arith.addf %4, %6 : vector<256x128xf32>
    %c0_6 = arith.constant 0 : index
    %c0_7 = arith.constant 0 : index
    %c0_8 = arith.constant 0 : index
    %8 = vector.load %arg4[%c0_6, %c0_7, %c0_8] : memref<1x256x128xf32, #tpu.memory_space<vmem>>, vector<1x256x128xf32>
    %9 = vector.shape_cast %8 : vector<1x256x128xf32> to vector<256x128xf32>
    %10 = arith.addf %7, %9 : vector<256x128xf32>
    %cst = arith.constant 0.000000e+00 : f32
    %11 = vector.broadcast %cst : f32 to vector<256x128xf32>
    %12 = arith.maximumf %10, %11 : vector<256x128xf32>
    %c0_9 = arith.constant 0 : index
    %c0_10 = arith.constant 0 : index
    %c0_11 = arith.constant 0 : index
    %13 = vector.load %arg5[%c0_9, %c0_10, %c0_11] : memref<1x256x128xf32, #tpu.memory_space<vmem>>, vector<1x256x128xf32>
    %14 = vector.shape_cast %13 : vector<1x256x128xf32> to vector<256x128xf32>
    %15 = vector.shape_cast %12 : vector<256x128xf32> to vector<1x256x128xf32>
    tpu.vector_store %arg5[%c0_9, %c0_10, %c0_11], %15 {strides = array<i32>} : memref<1x256x128xf32, #tpu.memory_space<vmem>>, vector<1x256x128xf32>,
    return
  }
  func.func @transform_0(%arg0: i32) -> (i32, i32, i32) {
    %c0_i32 = arith.constant 0 : i32
    %c0_i32_0 = arith.constant 0 : i32
    %c0_i32_1 = arith.constant 0 : i32
    return %arg0, %c0_i32, %c0_i32_0 : i32, i32, i32
  }
  func.func @transform_1(%arg0: i32) -> (i32, i32) {
    %c0_i32 = arith.constant 0 : i32
    %c0_i32_0 = arith.constant 0 : i32
    %c0_i32_1 = arith.constant 0 : i32
    return %c0_i32, %c0_i32_0 : i32, i32
  }
  func.func @transform_2(%arg0: i32) -> (i32, i32) {
    %c0_i32 = arith.constant 0 : i32
    %c0_i32_0 = arith.constant 0 : i32
    %c0_i32_1 = arith.constant 0 : i32
    return %c0_i32, %c0_i32_0 : i32, i32
  }
  func.func @transform_3(%arg0: i32) -> (i32, i32, i32) {
    %c0_i32 = arith.constant 0 : i32
    %c0_i32_0 = arith.constant 0 : i32
    %c0_i32_1 = arith.constant 0 : i32
    return %arg0, %c0_i32, %c0_i32_0 : i32, i32, i32
  }
  func.func @transform_4(%arg0: i32) -> (i32, i32, i32) {
    %c0_i32 = arith.constant 0 : i32
    %c0_i32_0 = arith.constant 0 : i32
    %c0_i32_1 = arith.constant 0 : i32
    return %arg0, %c0_i32, %c0_i32_0 : i32, i32, i32
  }
}

</mosaic_0001>

<llo_original>
// kernel: basic_block_forward.5
$region0: #{basic_block_forward.5}
  #allocation0 [shape = 'u32[]', space=smem, size = 0x4, offset = 0x4, fixed_abs, tag = 'smem constant byte address 0x4 - core index']
  #allocation1 [shape = 'u32[144,128]{1,0:T(1,128)}', space=vmem, size = 0x12000, scoped, tag = 'internal scratch']
  %s0 = inlined_call_operand.vmem [shape: f32[2,256,128], index: 0, kind: input, shape index: {}]
  %s1 = inlined_call_operand.vmem [shape: f32[1,128], index: 1, kind: input, shape index: {}]
  %s2 = inlined_call_operand.vmem [shape: f32[1,128], index: 2, kind: input, shape index: {}]
  %s3 = inlined_call_operand.vmem [shape: f32[2,256,128], index: 3, kind: input, shape index: {}]
  %s4 = inlined_call_operand.vmem [shape: f32[2,256,128], index: 4, kind: output, shape index: {}]
  %s5 = sld [smem:[#allocation0]]
  $region49: #{basic_block_forward.5} parent=0
    _
  %s7 = ssub.s32 1, %s5
  %s8 = scalar_select 0, %s7, %s5
  loop: start=0, step=1, limit=4
  $region2: #{basic_block_forward.5} parent=0 // loop_pre_header
    _
  $region3: #{basic_block_forward.5} parent=0 // loop_header
    %s10 = sphi 0, %s14
    %p11 = scmp.ge.s32.totalorder %s10, 4
    %s20 = sphi 0, %s22
    %s23 = sphi 0, %s20
    %s24 = sphi 0, %s23
    %s40 = sphi 0, %s24
    %s44 = sphi 0, %s44
    %s46 = sphi 0, %s44
    %s47 = sphi 0, %s46
    %s61 = sphi 0, %s47
    %s65 = sphi 0, %s65
    %s67 = sphi 0, %s65
    %s68 = sphi 0, %s67
    %s82 = sphi 0, %s68
    %s88 = sphi 0, %s90
    %s91 = sphi 0, %s88
    %s92 = sphi 0, %s91
    %s108 = sphi 0, %s92
    %s114 = sphi 0, %s116
    %s117 = sphi 0, %s114
    %s118 = sphi 0, %s117
    %s134 = sphi 0, %s118
  $region4: #{basic_block_forward.5} parent=0 // loop_header_branch
    %13 = sbr.rel (%p11) target = $region8
  $region5: #{basic_block_forward.5} parent=0 // loop_body
    %s15 = ssub.s32 %s10, 1
    %s16 = ssub.s32 %s10, 2
    %s17 = sadd.s32 %s10, 1
    %s18 = ssub.s32 %s10, %s17
    %p19 = scmp.eq.s32.totalorder %s18, 0
    %s21 = sadd.s32 %s20, 1
    %s22 = scalar_select %p19, %s20, %s21
    %p25 = pneg %p19
    %p26 = scmp.eq.s32.totalorder %s10, 1
    %p27 = por %p25, %p26
    %p28 = scmp.ne.s32.totalorder %s20, %s23
    %p29 = scmp.eq.s32.totalorder %s10, 0
    %p30 = por %p28, %p29
    %p31 = scmp.ne.s32.totalorder %s20, %s23
    %p32 = scmp.eq.s32.totalorder %s15, 1
    %p33 = por %p31, %p32
    %p34 = scmp.ne.s32.totalorder %s23, %s24
    %p35 = scmp.eq.s32.totalorder %s15, 0
    %p36 = por %p34, %p35
    %p37 = scmp.ne.s32.totalorder %s23, %s24
    %p38 = scmp.eq.s32.totalorder %s16, 1
    %p39 = por %p37, %p38
    %p41 = scmp.ne.s32.totalorder %s24, %s40
    %p42 = scmp.eq.s32.totalorder %s16, 0
    %p43 = por %p41, %p42
    %s45 = sadd.s32 %s44, 1
    %p48 = scmp.eq.s32.totalorder %s10, 1
    %p49 = scmp.ne.s32.totalorder %s44, %s46
    %p50 = scmp.eq.s32.totalorder %s10, 0
    %p51 = por %p49, %p50
    %p52 = scmp.ne.s32.totalorder %s44, %s46
    %p53 = scmp.eq.s32.totalorder %s15, 1
    %p54 = por %p52, %p53
    %p55 = scmp.ne.s32.totalorder %s46, %s47
    %p56 = scmp.eq.s32.totalorder %s15, 0
    %p57 = por %p55, %p56
    %p58 = scmp.ne.s32.totalorder %s46, %s47
    %p59 = scmp.eq.s32.totalorder %s16, 1
    %p60 = por %p58, %p59
    %p62 = scmp.ne.s32.totalorder %s47, %s61
    %p63 = scmp.eq.s32.totalorder %s16, 0
    %p64 = por %p62, %p63
    %s66 = sadd.s32 %s65, 1
    %p69 = scmp.eq.s32.totalorder %s10, 1
    %p70 = scmp.ne.s32.totalorder %s65, %s67
    %p71 = scmp.eq.s32.totalorder %s10, 0
    %p72 = por %p70, %p71
    %p73 = scmp.ne.s32.totalorder %s65, %s67
    %p74 = scmp.eq.s32.totalorder %s15, 1
    %p75 = por %p73, %p74
    %p76 = scmp.ne.s32.totalorder %s67, %s68
    %p77 = scmp.eq.s32.totalorder %s15, 0
    %p78 = por %p76, %p77
    %p79 = scmp.ne.s32.totalorder %s67, %s68
    %p80 = scmp.eq.s32.totalorder %s16, 1
    %p81 = por %p79, %p80
    %p83 = scmp.ne.s32.totalorder %s68, %s82
    %p84 = scmp.eq.s32.totalorder %s16, 0
    %p85 = por %p83, %p84
    %s86 = ssub.s32 %s10, %s17
    %p87 = scmp.eq.s32.totalorder %s86, 0
    %s89 = sadd.s32 %s88, 1
    %s90 = scalar_select %p87, %s88, %s89
    %p93 = pneg %p87
    %p94 = scmp.eq.s32.totalorder %s10, 1
    %p95 = por %p93, %p94
    %p96 = scmp.ne.s32.totalorder %s88, %s91
    %p97 = scmp.eq.s32.totalorder %s10, 0
    %p98 = por %p96, %p97
    %p99 = scmp.ne.s32.totalorder %s88, %s91
    %p100 = scmp.eq.s32.totalorder %s15, 1
    %p101 = por %p99, %p100
    %p102 = scmp.ne.s32.totalorder %s91, %s92
    %p103 = scmp.eq.s32.totalorder %s15, 0
    %p104 = por %p102, %p103
    %p105 = scmp.ne.s32.totalorder %s91, %s92
    %p106 = scmp.eq.s32.totalorder %s16, 1
    %p107 = por %p105, %p106
    %p109 = scmp.ne.s32.totalorder %s92, %s108
    %p110 = scmp.eq.s32.totalorder %s16, 0
    %p111 = por %p109, %p110
    %s112 = ssub.s32 %s10, %s17
    %p113 = scmp.eq.s32.totalorder %s112, 0
    %s115 = sadd.s32 %s114, 1
    %s116 = scalar_select %p113, %s114, %s115
    %p119 = pneg %p113
    %p120 = scmp.eq.s32.totalorder %s10, 1
    %p121 = por %p119, %p120
    %p122 = scmp.ne.s32.totalorder %s114, %s117
    %p123 = scmp.eq.s32.totalorder %s10, 0
    %p124 = por %p122, %p123
    %p125 = scmp.ne.s32.totalorder %s114, %s117
    %p126 = scmp.eq.s32.totalorder %s15, 1
    %p127 = por %p125, %p126
    %p128 = scmp.ne.s32.totalorder %s117, %s118
    %p129 = scmp.eq.s32.totalorder %s15, 0
    %p130 = por %p128, %p129
    %p131 = scmp.ne.s32.totalorder %s117, %s118
    %p132 = scmp.eq.s32.totalorder %s16, 1
    %p133 = por %p131, %p132
    %p135 = scmp.ne.s32.totalorder %s118, %s134
    %p136 = scmp.eq.s32.totalorder %s16, 0
    %p137 = por %p135, %p136
    %p138 = scmp.le.s32.totalorder 1, %s10
    %p139 = scmp.lt.s32.totalorder %s10, 3
    %p140 = pnand %p138, %p139
    %p141 = pneg %p140
    // Predicated region
    $region9: #{basic_block_forward.5} parent=5 // pred_check
      _
    $region10: #{basic_block_forward.5} parent=5 // pred_check_branch
      %143 = sbr.rel (%p140) target = $region12
    $region11: #{basic_block_forward.5} parent=5 // pred_region
      %s144 = ssub.s32 %s10, 1
      // Predicated region
      $region13: #{basic_block_forward.5} parent=11 // pred_check
        %p145 = pneg %p57
      $region14: #{basic_block_forward.5} parent=11 // pred_check_branch
        %147 = sbr.rel (%p145) target = $region16
      $region15: #{basic_block_forward.5} parent=11 // pred_region
        _
      $region16: #{basic_block_forward.5} parent=11 // pred_fallthru
        _
      // Predicated region
      $region17: #{basic_block_forward.5} parent=11 // pred_check
        %p148 = pneg %p78
      $region18: #{basic_block_forward.5} parent=11 // pred_check_branch
        %150 = sbr.rel (%p148) target = $region20
      $region19: #{basic_block_forward.5} parent=11 // pred_region
        _
      $region20: #{basic_block_forward.5} parent=11 // pred_fallthru
        _
    $region12: #{basic_block_forward.5} parent=5 // pred_fallthru
      _
    %p151 = scmp.lt.s32.totalorder %s10, 2
    // Predicated region
    $region21: #{basic_block_forward.5} parent=5 // pred_check
      %p152 = pneg %p151
    $region22: #{basic_block_forward.5} parent=5 // pred_check_branch
      %154 = sbr.rel (%p152) target = $region24
    $region23: #{basic_block_forward.5} parent=5 // pred_region
      // Predicated region
      $region25: #{basic_block_forward.5} parent=23 // pred_check
        %p155 = pneg %p30
      $region26: #{basic_block_forward.5} parent=23 // pred_check_branch
        %157 = sbr.rel (%p155) target = $region28
      $region27: #{basic_block_forward.5} parent=23 // pred_region
        %p158 = scmp.lt.s32.totalorder %s10, 1
        %s159 = scalar_select %p158, %s10, 1
        %s160 = smul.addr %s159, 32
        %s161 = smul.addr %s160, 8
        %s162 = scalar_lea.vmem %s0, %s161
      $region28: #{basic_block_forward.5} parent=23 // pred_fallthru
        _
      // Predicated region
      $region29: #{basic_block_forward.5} parent=23 // pred_check
        %p163 = pneg %p98
      $region30: #{basic_block_forward.5} parent=23 // pred_check_branch
        %165 = sbr.rel (%p163) target = $region32
      $region31: #{basic_block_forward.5} parent=23 // pred_region
        %p166 = scmp.lt.s32.totalorder %s10, 1
        %s167 = scalar_select %p166, %s10, 1
        %s168 = smul.addr %s167, 32
        %s169 = smul.addr %s168, 8
        %s170 = scalar_lea.vmem %s3, %s169
      $region32: #{basic_block_forward.5} parent=23 // pred_fallthru
        _
    $region24: #{basic_block_forward.5} parent=5 // pred_fallthru
      _
    %p171 = scmp.le.s32.totalorder 1, %s10
    %p172 = scmp.lt.s32.totalorder %s10, 3
    %p173 = pnand %p171, %p172
    %p174 = pneg %p173
    // Predicated region
    $region33: #{basic_block_forward.5} parent=5 // pred_check
      _
    $region34: #{basic_block_forward.5} parent=5 // pred_check_branch
      %176 = sbr.rel (%p173) target = $region36
    $region35: #{basic_block_forward.5} parent=5 // pred_region
      %s177 = ssub.s32 %s10, 1
      %p178 = scmp.lt.s32.totalorder %s15, 1
      %s179 = scalar_select %p178, %s15, 1
      %s180 = smul.addr %s179, 32
      %s181 = smul.addr %s180, 8
      %s182 = scalar_lea.vmem %s0, %s181
      %p183 = pneg %p36
      %p184 = pneg %p33
      %p185 = pneg %p57
      %p186 = pneg %p54
      %p187 = pneg %p78
      %p188 = pneg %p75
      %p189 = scmp.lt.s32.totalorder %s15, 1
      %s190 = scalar_select %p189, %s15, 1
      %s191 = smul.addr %s190, 32
      %s192 = smul.addr %s191, 8
      %s193 = scalar_lea.vmem %s3, %s192
      %p194 = pneg %p104
      %p195 = pneg %p101
      %p196 = pneg %p130
      %p197 = pneg %p127
      %p198 = scmp.lt.s32.totalorder %s15, 1
      %s199 = scalar_select %p198, %s15, 1
      %s200 = smul.addr %s199, 32
      %s201 = smul.addr %s200, 8
      %s202 = scalar_lea.vmem %s4, %s201
      %p203 = scmp.lt.s32.totalorder %s15, 1
      %s204 = scalar_select %p203, %s15, 1
      %s205 = smul.addr %s204, 32
      %s206 = smul.addr %s205, 8
      %s207 = scalar_lea.vmem %s0, %s206
      %p208 = scmp.lt.s32.totalorder %s15, 1
      %s209 = scalar_select %p208, %s15, 1
      %s210 = smul.addr %s209, 32
      %s211 = smul.addr %s210, 8
      %s212 = scalar_lea.vmem %s3, %s211
      %p213 = scmp.lt.s32.totalorder %s15, 1
      %s214 = scalar_select %p213, %s15, 1
      %s215 = smul.addr %s214, 32
      %s216 = smul.addr %s215, 8
      %s217 = scalar_lea.vmem %s4, %s216
      %v218 = vld [vmem:[%s207] sm:$0xff]
      %v219 = vld [vmem:[%s207 + $0x8] sm:$0xff]
      %v220 = vld [vmem:[%s207 + $0x10] sm:$0xff]
      %v221 = vld [vmem:[%s207 + $0x18] sm:$0xff]
      %v222 = vld [vmem:[%s207 + $0x20] sm:$0xff]
      %v223 = vld [vmem:[%s207 + $0x28] sm:$0xff]
      %v224 = vld [vmem:[%s207 + $0x30] sm:$0xff]
      %v225 = vld [vmem:[%s207 + $0x38] sm:$0xff]
      %v226 = vld [vmem:[%s207 + $0x40] sm:$0xff]
      %v227 = vld [vmem:[%s207 + $0x48] sm:$0xff]
      %v228 = vld [vmem:[%s207 + $0x50] sm:$0xff]
      %v229 = vld [vmem:[%s207 + $0x58] sm:$0xff]
      %v230 = vld [vmem:[%s207 + $0x60] sm:$0xff]
      %v231 = vld [vmem:[%s207 + $0x68] sm:$0xff]
      %v232 = vld [vmem:[%s207 + $0x70] sm:$0xff]
      %v233 = vld [vmem:[%s207 + $0x78] sm:$0xff]
      %v234 = vld [vmem:[%s207 + $0x80] sm:$0xff]
      %v235 = vld [vmem:[%s207 + $0x88] sm:$0xff]
      %v236 = vld [vmem:[%s207 + $0x90] sm:$0xff]
      %v237 = vld [vmem:[%s207 + $0x98] sm:$0xff]
      %v238 = vld [vmem:[%s207 + $0xa0] sm:$0xff]
      %v239 = vld [vmem:[%s207 + $0xa8] sm:$0xff]
      %v240 = vld [vmem:[%s207 + $0xb0] sm:$0xff]
      %v241 = vld [vmem:[%s207 + $0xb8] sm:$0xff]
      %v242 = vld [vmem:[%s207 + $0xc0] sm:$0xff]
      %v243 = vld [vmem:[%s207 + $0xc8] sm:$0xff]
      %v244 = vld [vmem:[%s207 + $0xd0] sm:$0xff]
      %v245 = vld [vmem:[%s207 + $0xd8] sm:$0xff]
      %v246 = vld [vmem:[%s207 + $0xe0] sm:$0xff]
      %v247 = vld [vmem:[%s207 + $0xe8] sm:$0xff]
      %v248 = vld [vmem:[%s207 + $0xf0] sm:$0xff]
      %v249 = vld [vmem:[%s207 + $0xf8] sm:$0xff]
      %v250 = vld [vmem:[%s1] sm:$0x1]
      %v252 = vlaneseq
      %v253 = vshrl.u32 %v252, 7
      %v254 = vsub.s32 0, %v253
      %v255 = vrot.slane %v250, %v254
      %v257 = vmul.f32 %v218, %v255
      %v258 = vmul.f32 %v219, %v255
      %v259 = vmul.f32 %v220, %v255
      %v260 = vmul.f32 %v221, %v255
      %v261 = vmul.f32 %v222, %v255
      %v262 = vmul.f32 %v223, %v255
      %v263 = vmul.f32 %v224, %v255
      %v264 = vmul.f32 %v225, %v255
      %v265 = vmul.f32 %v226, %v255
      %v266 = vmul.f32 %v227, %v255
      %v267 = vmul.f32 %v228, %v255
      %v268 = vmul.f32 %v229, %v255
      %v269 = vmul.f32 %v230, %v255
      %v270 = vmul.f32 %v231, %v255
      %v271 = vmul.f32 %v232, %v255
      %v272 = vmul.f32 %v233, %v255
      %v273 = vmul.f32 %v234, %v255
      %v274 = vmul.f32 %v235, %v255
      %v275 = vmul.f32 %v236, %v255
      %v276 = vmul.f32 %v237, %v255
      %v277 = vmul.f32 %v238, %v255
      %v278 = vmul.f32 %v239, %v255
      %v279 = vmul.f32 %v240, %v255
      %v280 = vmul.f32 %v241, %v255
      %v281 = vmul.f32 %v242, %v255
      %v282 = vmul.f32 %v243, %v255
      %v283 = vmul.f32 %v244, %v255
      %v284 = vmul.f32 %v245, %v255
      %v285 = vmul.f32 %v246, %v255
      %v286 = vmul.f32 %v247, %v255
      %v287 = vmul.f32 %v248, %v255
      %v288 = vmul.f32 %v249, %v255
      %v289 = vld [vmem:[%s2] sm:$0x1]
      %v291 = vlaneseq
      %v292 = vshrl.u32 %v291, 7
      %v293 = vsub.s32 0, %v292
      %v294 = vrot.slane %v289, %v293
      %v296 = vadd.f32 %v257, %v294
      %v297 = vadd.f32 %v258, %v294
      %v298 = vadd.f32 %v259, %v294
      %v299 = vadd.f32 %v260, %v294
      %v300 = vadd.f32 %v261, %v294
      %v301 = vadd.f32 %v262, %v294
      %v302 = vadd.f32 %v263, %v294
      %v303 = vadd.f32 %v264, %v294
      %v304 = vadd.f32 %v265, %v294
      %v305 = vadd.f32 %v266, %v294
      %v306 = vadd.f32 %v267, %v294
      %v307 = vadd.f32 %v268, %v294
      %v308 = vadd.f32 %v269, %v294
      %v309 = vadd.f32 %v270, %v294
      %v310 = vadd.f32 %v271, %v294
      %v311 = vadd.f32 %v272, %v294
      %v312 = vadd.f32 %v273, %v294
      %v313 = vadd.f32 %v274, %v294
      %v314 = vadd.f32 %v275, %v294
      %v315 = vadd.f32 %v276, %v294
      %v316 = vadd.f32 %v277, %v294
      %v317 = vadd.f32 %v278, %v294
      %v318 = vadd.f32 %v279, %v294
      %v319 = vadd.f32 %v280, %v294
      %v320 = vadd.f32 %v281, %v294
      %v321 = vadd.f32 %v282, %v294
      %v322 = vadd.f32 %v283, %v294
      %v323 = vadd.f32 %v284, %v294
      %v324 = vadd.f32 %v285, %v294
      %v325 = vadd.f32 %v286, %v294
      %v326 = vadd.f32 %v287, %v294
      %v327 = vadd.f32 %v288, %v294
      %v328 = vld [vmem:[%s212] sm:$0xff]
      %v329 = vld [vmem:[%s212 + $0x8] sm:$0xff]
      %v330 = vld [vmem:[%s212 + $0x10] sm:$0xff]
      %v331 = vld [vmem:[%s212 + $0x18] sm:$0xff]
      %v332 = vld [vmem:[%s212 + $0x20] sm:$0xff]
      %v333 = vld [vmem:[%s212 + $0x28] sm:$0xff]
      %v334 = vld [vmem:[%s212 + $0x30] sm:$0xff]
      %v335 = vld [vmem:[%s212 + $0x38] sm:$0xff]
      %v336 = vld [vmem:[%s212 + $0x40] sm:$0xff]
      %v337 = vld [vmem:[%s212 + $0x48] sm:$0xff]
      %v338 = vld [vmem:[%s212 + $0x50] sm:$0xff]
      %v339 = vld [vmem:[%s212 + $0x58] sm:$0xff]
      %v340 = vld [vmem:[%s212 + $0x60] sm:$0xff]
      %v341 = vld [vmem:[%s212 + $0x68] sm:$0xff]
      %v342 = vld [vmem:[%s212 + $0x70] sm:$0xff]
      %v343 = vld [vmem:[%s212 + $0x78] sm:$0xff]
      %v344 = vld [vmem:[%s212 + $0x80] sm:$0xff]
      %v345 = vld [vmem:[%s212 + $0x88] sm:$0xff]
      %v346 = vld [vmem:[%s212 + $0x90] sm:$0xff]
      %v347 = vld [vmem:[%s212 + $0x98] sm:$0xff]
      %v348 = vld [vmem:[%s212 + $0xa0] sm:$0xff]
      %v349 = vld [vmem:[%s212 + $0xa8] sm:$0xff]
      %v350 = vld [vmem:[%s212 + $0xb0] sm:$0xff]
      %v351 = vld [vmem:[%s212 + $0xb8] sm:$0xff]
      %v352 = vld [vmem:[%s212 + $0xc0] sm:$0xff]
      %v353 = vld [vmem:[%s212 + $0xc8] sm:$0xff]
      %v354 = vld [vmem:[%s212 + $0xd0] sm:$0xff]
      %v355 = vld [vmem:[%s212 + $0xd8] sm:$0xff]
      %v356 = vld [vmem:[%s212 + $0xe0] sm:$0xff]
      %v357 = vld [vmem:[%s212 + $0xe8] sm:$0xff]
      %v358 = vld [vmem:[%s212 + $0xf0] sm:$0xff]
      %v359 = vld [vmem:[%s212 + $0xf8] sm:$0xff]
      %v360 = vadd.f32 %v296, %v328
      %v361 = vadd.f32 %v297, %v329
      %v362 = vadd.f32 %v298, %v330
      %v363 = vadd.f32 %v299, %v331
      %v364 = vadd.f32 %v300, %v332
      %v365 = vadd.f32 %v301, %v333
      %v366 = vadd.f32 %v302, %v334
      %v367 = vadd.f32 %v303, %v335
      %v368 = vadd.f32 %v304, %v336
      %v369 = vadd.f32 %v305, %v337
      %v370 = vadd.f32 %v306, %v338
      %v371 = vadd.f32 %v307, %v339
      %v372 = vadd.f32 %v308, %v340
      %v373 = vadd.f32 %v309, %v341
      %v374 = vadd.f32 %v310, %v342
      %v375 = vadd.f32 %v311, %v343
      %v376 = vadd.f32 %v312, %v344
      %v377 = vadd.f32 %v313, %v345
      %v378 = vadd.f32 %v314, %v346
      %v379 = vadd.f32 %v315, %v347
      %v380 = vadd.f32 %v316, %v348
      %v381 = vadd.f32 %v317, %v349
      %v382 = vadd.f32 %v318, %v350
      %v383 = vadd.f32 %v319, %v351
      %v384 = vadd.f32 %v320, %v352
      %v385 = vadd.f32 %v321, %v353
      %v386 = vadd.f32 %v322, %v354
      %v387 = vadd.f32 %v323, %v355
      %v388 = vadd.f32 %v324, %v356
      %v389 = vadd.f32 %v325, %v357
      %v390 = vadd.f32 %v326, %v358
      %v391 = vadd.f32 %v327, %v359
      %v392 = vmax.f32 %v360, 0.0
      %v393 = vmax.f32 %v361, 0.0
      %v394 = vmax.f32 %v362, 0.0
      %v395 = vmax.f32 %v363, 0.0
      %v396 = vmax.f32 %v364, 0.0
      %v397 = vmax.f32 %v365, 0.0
      %v398 = vmax.f32 %v366, 0.0
      %v399 = vmax.f32 %v367, 0.0
      %v400 = vmax.f32 %v368, 0.0
      %v401 = vmax.f32 %v369, 0.0
      %v402 = vmax.f32 %v370, 0.0
      %v403 = vmax.f32 %v371, 0.0
      %v404 = vmax.f32 %v372, 0.0
      %v405 = vmax.f32 %v373, 0.0
      %v406 = vmax.f32 %v374, 0.0
      %v407 = vmax.f32 %v375, 0.0
      %v408 = vmax.f32 %v376, 0.0
      %v409 = vmax.f32 %v377, 0.0
      %v410 = vmax.f32 %v378, 0.0
      %v411 = vmax.f32 %v379, 0.0
      %v412 = vmax.f32 %v380, 0.0
      %v413 = vmax.f32 %v381, 0.0
      %v414 = vmax.f32 %v382, 0.0
      %v415 = vmax.f32 %v383, 0.0
      %v416 = vmax.f32 %v384, 0.0
      %v417 = vmax.f32 %v385, 0.0
      %v418 = vmax.f32 %v386, 0.0
      %v419 = vmax.f32 %v387, 0.0
      %v420 = vmax.f32 %v388, 0.0
      %v421 = vmax.f32 %v389, 0.0
      %v422 = vmax.f32 %v390, 0.0
      %v423 = vmax.f32 %v391, 0.0
      %424 = vst [vmem:[%s217] sm:$0xff] %v392
      %425 = vst [vmem:[%s217 + $0x8] sm:$0xff] %v393
      %426 = vst [vmem:[%s217 + $0x10] sm:$0xff] %v394
      %427 = vst [vmem:[%s217 + $0x18] sm:$0xff] %v395
      %428 = vst [vmem:[%s217 + $0x20] sm:$0xff] %v396
      %429 = vst [vmem:[%s217 + $0x28] sm:$0xff] %v397
      %430 = vst [vmem:[%s217 + $0x30] sm:$0xff] %v398
      %431 = vst [vmem:[%s217 + $0x38] sm:$0xff] %v399
      %432 = vst [vmem:[%s217 + $0x40] sm:$0xff] %v400
      %433 = vst [vmem:[%s217 + $0x48] sm:$0xff] %v401
      %434 = vst [vmem:[%s217 + $0x50] sm:$0xff] %v402
      %435 = vst [vmem:[%s217 + $0x58] sm:$0xff] %v403
      %436 = vst [vmem:[%s217 + $0x60] sm:$0xff] %v404
      %437 = vst [vmem:[%s217 + $0x68] sm:$0xff] %v405
      %438 = vst [vmem:[%s217 + $0x70] sm:$0xff] %v406
      %439 = vst [vmem:[%s217 + $0x78] sm:$0xff] %v407
      %440 = vst [vmem:[%s217 + $0x80] sm:$0xff] %v408
      %441 = vst [vmem:[%s217 + $0x88] sm:$0xff] %v409
      %442 = vst [vmem:[%s217 + $0x90] sm:$0xff] %v410
      %443 = vst [vmem:[%s217 + $0x98] sm:$0xff] %v411
      %444 = vst [vmem:[%s217 + $0xa0] sm:$0xff] %v412
      %445 = vst [vmem:[%s217 + $0xa8] sm:$0xff] %v413
      %446 = vst [vmem:[%s217 + $0xb0] sm:$0xff] %v414
      %447 = vst [vmem:[%s217 + $0xb8] sm:$0xff] %v415
      %448 = vst [vmem:[%s217 + $0xc0] sm:$0xff] %v416
      %449 = vst [vmem:[%s217 + $0xc8] sm:$0xff] %v417
      %450 = vst [vmem:[%s217 + $0xd0] sm:$0xff] %v418
      %451 = vst [vmem:[%s217 + $0xd8] sm:$0xff] %v419
      %452 = vst [vmem:[%s217 + $0xe0] sm:$0xff] %v420
      %453 = vst [vmem:[%s217 + $0xe8] sm:$0xff] %v421
      %454 = vst [vmem:[%s217 + $0xf0] sm:$0xff] %v422
      %455 = vst [vmem:[%s217 + $0xf8] sm:$0xff] %v423
      %p456 = scmp.lt.s32.totalorder %s15, 1
      %s457 = scalar_select %p456, %s15, 1
      %s458 = smul.addr %s457, 32
      %s459 = smul.addr %s458, 8
      %s460 = scalar_lea.vmem %s4, %s459
      // Predicated region
      $region37: #{basic_block_forward.5} parent=35 // pred_check
        %p461 = pneg %p127
      $region38: #{basic_block_forward.5} parent=35 // pred_check_branch
        %463 = sbr.rel (%p461) target = $region40
      $region39: #{basic_block_forward.5} parent=35 // pred_region
        _
      $region40: #{basic_block_forward.5} parent=35 // pred_fallthru
        _
    $region36: #{basic_block_forward.5} parent=5 // pred_fallthru
      _
    %p464 = scmp.le.s32.totalorder 2, %s10
    // Predicated region
    $region41: #{basic_block_forward.5} parent=5 // pred_check
      %p465 = pneg %p464
    $region42: #{basic_block_forward.5} parent=5 // pred_check_branch
      %467 = sbr.rel (%p465) target = $region44
    $region43: #{basic_block_forward.5} parent=5 // pred_region
      %s468 = ssub.s32 %s10, 2
      // Predicated region
      $region45: #{basic_block_forward.5} parent=43 // pred_check
        %p469 = pneg %p133
      $region46: #{basic_block_forward.5} parent=43 // pred_check_branch
        %471 = sbr.rel (%p469) target = $region48
      $region47: #{basic_block_forward.5} parent=43 // pred_region
        %p472 = scmp.lt.s32.totalorder %s16, 1
        %s473 = scalar_select %p472, %s16, 1
        %s474 = smul.addr %s473, 32
        %s475 = smul.addr %s474, 8
        %s476 = scalar_lea.vmem %s4, %s475
      $region48: #{basic_block_forward.5} parent=43 // pred_fallthru
        _
    $region44: #{basic_block_forward.5} parent=5 // pred_fallthru
      _
  $region6: #{basic_block_forward.5} parent=0 // loop_footer
    %s14 = sadd.s32 1, %s10
  $region7: #{basic_block_forward.5} parent=0 // loop_footer_branch
    %9 = sbr.rel target = $region3
  $region8: #{basic_block_forward.5} parent=0 // loop_exit
    _

// kernel: basic_block_forward.3
$region0: #{basic_block_forward.3}
  #allocation0 [shape = 'u32[]', space=smem, size = 0x4, offset = 0x4, fixed_abs, tag = 'smem constant byte address 0x4 - core index']
  #allocation1 [shape = 'u32[144,128]{1,0:T(1,128)}', space=vmem, size = 0x12000, scoped, tag = 'internal scratch']
  #allocation2 [shape = 'bf16[256,1152]{1,0:T(16,128)(2,1)}', space=vmem, size = 0x90000, scoped, tag = 'scratch operand']
  %s0 = inlined_call_operand.vmem [shape: bf16[2,18,18,128], index: 0, kind: input, shape index: {}]
  %s1 = inlined_call_operand.vmem [shape: bf16[1152,128], index: 1, kind: input, shape index: {}]
  %s2 = inlined_call_operand.vmem [shape: f32[2,256,128], index: 2, kind: output, shape index: {0}]
  %s3 = inlined_call_operand.vmem [shape: f32[2,8,128], index: 3, kind: output, shape index: {1}]
  %4 = xla_tuple %s2, %s3
  %s5 = sld [smem:[#allocation0]]
  $region49: #{basic_block_forward.3} parent=0
    _
  %s7 = ssub.s32 1, %s5
  %s8 = scalar_select 0, %s7, %s5
  loop: start=0, step=1, limit=4
  $region2: #{basic_block_forward.3} parent=0 // loop_pre_header
    _
  $region3: #{basic_block_forward.3} parent=0 // loop_header
    %s10 = sphi 0, %s14
    %p11 = scmp.ge.s32.totalorder %s10, 4
    %s20 = sphi 0, %s22
    %s23 = sphi 0, %s20
    %s24 = sphi 0, %s23
    %s40 = sphi 0, %s24
    %s44 = sphi 0, %s44
    %s46 = sphi 0, %s44
    %s47 = sphi 0, %s46
    %s61 = sphi 0, %s47
    %s67 = sphi 0, %s69
    %s70 = sphi 0, %s67
    %s71 = sphi 0, %s70
    %s87 = sphi 0, %s71
    %s93 = sphi 0, %s95
    %s96 = sphi 0, %s93
    %s97 = sphi 0, %s96
    %s113 = sphi 0, %s97
  $region4: #{basic_block_forward.3} parent=0 // loop_header_branch
    %13 = sbr.rel (%p11) target = $region8
  $region5: #{basic_block_forward.3} parent=0 // loop_body
    %s15 = ssub.s32 %s10, 1
    %s16 = ssub.s32 %s10, 2
    %s17 = sadd.s32 %s10, 1
    %s18 = ssub.s32 %s10, %s17
    %p19 = scmp.eq.s32.totalorder %s18, 0
    %s21 = sadd.s32 %s20, 1
    %s22 = scalar_select %p19, %s20, %s21
    %p25 = pneg %p19
    %p26 = scmp.eq.s32.totalorder %s10, 1
    %p27 = por %p25, %p26
    %p28 = scmp.ne.s32.totalorder %s20, %s23
    %p29 = scmp.eq.s32.totalorder %s10, 0
    %p30 = por %p28, %p29
    %p31 = scmp.ne.s32.totalorder %s20, %s23
    %p32 = scmp.eq.s32.totalorder %s15, 1
    %p33 = por %p31, %p32
    %p34 = scmp.ne.s32.totalorder %s23, %s24
    %p35 = scmp.eq.s32.totalorder %s15, 0
    %p36 = por %p34, %p35
    %p37 = scmp.ne.s32.totalorder %s23, %s24
    %p38 = scmp.eq.s32.totalorder %s16, 1
    %p39 = por %p37, %p38
    %p41 = scmp.ne.s32.totalorder %s24, %s40
    %p42 = scmp.eq.s32.totalorder %s16, 0
    %p43 = por %p41, %p42
    %s45 = sadd.s32 %s44, 1
    %p48 = scmp.eq.s32.totalorder %s10, 1
    %p49 = scmp.ne.s32.totalorder %s44, %s46
    %p50 = scmp.eq.s32.totalorder %s10, 0
    %p51 = por %p49, %p50
    %p52 = scmp.ne.s32.totalorder %s44, %s46
    %p53 = scmp.eq.s32.totalorder %s15, 1
    %p54 = por %p52, %p53
    %p55 = scmp.ne.s32.totalorder %s46, %s47
    %p56 = scmp.eq.s32.totalorder %s15, 0
    %p57 = por %p55, %p56
    %p58 = scmp.ne.s32.totalorder %s46, %s47
    %p59 = scmp.eq.s32.totalorder %s16, 1
    %p60 = por %p58, %p59
    %p62 = scmp.ne.s32.totalorder %s47, %s61
    %p63 = scmp.eq.s32.totalorder %s16, 0
    %p64 = por %p62, %p63
    %s65 = ssub.s32 %s10, %s17
    %p66 = scmp.eq.s32.totalorder %s65, 0
    %s68 = sadd.s32 %s67, 1
    %s69 = scalar_select %p66, %s67, %s68
    %p72 = pneg %p66
    %p73 = scmp.eq.s32.totalorder %s10, 1
    %p74 = por %p72, %p73
    %p75 = scmp.ne.s32.totalorder %s67, %s70
    %p76 = scmp.eq.s32.totalorder %s10, 0
    %p77 = por %p75, %p76
    %p78 = scmp.ne.s32.totalorder %s67, %s70
    %p79 = scmp.eq.s32.totalorder %s15, 1
    %p80 = por %p78, %p79
    %p81 = scmp.ne.s32.totalorder %s70, %s71
    %p82 = scmp.eq.s32.totalorder %s15, 0
    %p83 = por %p81, %p82
    %p84 = scmp.ne.s32.totalorder %s70, %s71
    %p85 = scmp.eq.s32.totalorder %s16, 1
    %p86 = por %p84, %p85
    %p88 = scmp.ne.s32.totalorder %s71, %s87
    %p89 = scmp.eq.s32.totalorder %s16, 0
    %p90 = por %p88, %p89
    %s91 = ssub.s32 %s10, %s17
    %p92 = scmp.eq.s32.totalorder %s91, 0
    %s94 = sadd.s32 %s93, 1
    %s95 = scalar_select %p92, %s93, %s94
    %p98 = pneg %p92
    %p99 = scmp.eq.s32.totalorder %s10, 1
    %p100 = por %p98, %p99
    %p101 = scmp.ne.s32.totalorder %s93, %s96
    %p102 = scmp.eq.s32.totalorder %s10, 0
    %p103 = por %p101, %p102
    %p104 = scmp.ne.s32.totalorder %s93, %s96
    %p105 = scmp.eq.s32.totalorder %s15, 1
    %p106 = por %p104, %p105
    %p107 = scmp.ne.s32.totalorder %s96, %s97
    %p108 = scmp.eq.s32.totalorder %s15, 0
    %p109 = por %p107, %p108
    %p110 = scmp.ne.s32.totalorder %s96, %s97
    %p111 = scmp.eq.s32.totalorder %s16, 1
    %p112 = por %p110, %p111
    %p114 = scmp.ne.s32.totalorder %s97, %s113
    %p115 = scmp.eq.s32.totalorder %s16, 0
    %p116 = por %p114, %p115
    %p117 = scmp.le.s32.totalorder 1, %s10
    %p118 = scmp.lt.s32.totalorder %s10, 3
    %p119 = pnand %p117, %p118
    %p120 = pneg %p119
    // Predicated region
    $region9: #{basic_block_forward.3} parent=5 // pred_check
      _
    $region10: #{basic_block_forward.3} parent=5 // pred_check_branch
      %122 = sbr.rel (%p119) target = $region12
    $region11: #{basic_block_forward.3} parent=5 // pred_region
      %s123 = ssub.s32 %s10, 1
      // Predicated region
      $region13: #{basic_block_forward.3} parent=11 // pred_check
        %p124 = pneg %p57
      $region14: #{basic_block_forward.3} parent=11 // pred_check_branch
        %126 = sbr.rel (%p124) target = $region16
      $region15: #{basic_block_forward.3} parent=11 // pred_region
        _
      $region16: #{basic_block_forward.3} parent=11 // pred_fallthru
        _
    $region12: #{basic_block_forward.3} parent=5 // pred_fallthru
      _
    %p127 = scmp.lt.s32.totalorder %s10, 2
    // Predicated region
    $region17: #{basic_block_forward.3} parent=5 // pred_check
      %p128 = pneg %p127
    $region18: #{basic_block_forward.3} parent=5 // pred_check_branch
      %130 = sbr.rel (%p128) target = $region20
    $region19: #{basic_block_forward.3} parent=5 // pred_region
      // Predicated region
      $region21: #{basic_block_forward.3} parent=19 // pred_check
        %p131 = pneg %p30
      $region22: #{basic_block_forward.3} parent=19 // pred_check_branch
        %133 = sbr.rel (%p131) target = $region24
      $region23: #{basic_block_forward.3} parent=19 // pred_region
        %p134 = scmp.lt.s32.totalorder %s10, 1
        %s135 = scalar_select %p134, %s10, 1
        %s136 = smul.addr %s135, 54
        %s137 = smul.addr %s136, 4
        %s138 = scalar_lea.vmem %s0, %s137
      $region24: #{basic_block_forward.3} parent=19 // pred_fallthru
        _
    $region20: #{basic_block_forward.3} parent=5 // pred_fallthru
      _
    %p139 = scmp.le.s32.totalorder 1, %s10
    %p140 = scmp.lt.s32.totalorder %s10, 3
    %p141 = pnand %p139, %p140
    %p142 = pneg %p141
    // Predicated region
    $region25: #{basic_block_forward.3} parent=5 // pred_check
      _
    $region26: #{basic_block_forward.3} parent=5 // pred_check_branch
      %144 = sbr.rel (%p141) target = $region28
    $region27: #{basic_block_forward.3} parent=5 // pred_region
      %s145 = ssub.s32 %s10, 1
      %p146 = scmp.lt.s32.totalorder %s15, 1
      %s147 = scalar_select %p146, %s15, 1
      %s148 = smul.addr %s147, 54
      %s149 = smul.addr %s148, 4
      %s150 = scalar_lea.vmem %s0, %s149
      %p151 = pneg %p36
      %p152 = pneg %p33
      %p153 = pneg %p57
      %p154 = pneg %p54
      %p155 = pneg %p83
      %p156 = pneg %p80
      %p157 = scmp.lt.s32.totalorder %s15, 1
      %s158 = scalar_select %p157, %s15, 1
      %s159 = smul.addr %s158, 32
      %s160 = smul.addr %s159, 8
      %s161 = scalar_lea.vmem %s2, %s160
      %p162 = pneg %p109
      %p163 = pneg %p106
      %p164 = scmp.lt.s32.totalorder %s15, 1
      %s165 = scalar_select %p164, %s15, 1
      %s166 = smul.addr %s165, 8
      %s167 = scalar_lea.vmem %s3, %s166
      %p168 = scmp.lt.s32.totalorder %s15, 1
      %s169 = scalar_select %p168, %s15, 1
      %s170 = smul.addr %s169, 54
      %s171 = smul.addr %s170, 4
      %s172 = scalar_lea.vmem %s0, %s171
      %p173 = scmp.lt.s32.totalorder %s15, 1
      %s174 = scalar_select %p173, %s15, 1
      %s175 = smul.addr %s174, 32
      %s176 = smul.addr %s175, 8
      %s177 = scalar_lea.vmem %s2, %s176
      %p178 = scmp.lt.s32.totalorder %s15, 1
      %s179 = scalar_select %p178, %s15, 1
      %s180 = smul.addr %s179, 8
      %s181 = scalar_lea.vmem %s3, %s180
      %v183 = vld [vmem:[%s172] sm:$0xf]
      %v184 = vld [vmem:[%s172 + $0x4] sm:$0xf]
      %v185 = vld [vmem:[%s172 + $0xc] sm:$0xf]
      %v186 = vld [vmem:[%s172 + $0x10] sm:$0xf]
      %v187 = vld [vmem:[%s172 + $0x18] sm:$0xf]
      %v188 = vld [vmem:[%s172 + $0x1c] sm:$0xf]
      %v189 = vld [vmem:[%s172 + $0x24] sm:$0xf]
      %v190 = vld [vmem:[%s172 + $0x28] sm:$0xf]
      %v191 = vld [vmem:[%s172 + $0x30] sm:$0xf]
      %v192 = vld [vmem:[%s172 + $0x34] sm:$0xf]
      %v193 = vld [vmem:[%s172 + $0x3c] sm:$0xf]
      %v194 = vld [vmem:[%s172 + $0x40] sm:$0xf]
      %v195 = vld [vmem:[%s172 + $0x48] sm:$0xf]
      %v196 = vld [vmem:[%s172 + $0x4c] sm:$0xf]
      %v197 = vld [vmem:[%s172 + $0x54] sm:$0xf]
      %v198 = vld [vmem:[%s172 + $0x58] sm:$0xf]
      %v199 = vld [vmem:[%s172 + $0x60] sm:$0xf]
      %v200 = vld [vmem:[%s172 + $0x64] sm:$0xf]
      %v201 = vld [vmem:[%s172 + $0x6c] sm:$0xf]
      %v202 = vld [vmem:[%s172 + $0x70] sm:$0xf]
      %v203 = vld [vmem:[%s172 + $0x78] sm:$0xf]
      %v204 = vld [vmem:[%s172 + $0x7c] sm:$0xf]
      %v205 = vld [vmem:[%s172 + $0x84] sm:$0xf]
      %v206 = vld [vmem:[%s172 + $0x88] sm:$0xf]
      %v207 = vld [vmem:[%s172 + $0x90] sm:$0xf]
      %v208 = vld [vmem:[%s172 + $0x94] sm:$0xf]
      %v209 = vld [vmem:[%s172 + $0x9c] sm:$0xf]
      %v210 = vld [vmem:[%s172 + $0xa0] sm:$0xf]
      %v211 = vld [vmem:[%s172 + $0xa8] sm:$0xf]
      %v212 = vld [vmem:[%s172 + $0xac] sm:$0xf]
      %v213 = vld [vmem:[%s172 + $0xb4] sm:$0xf]
      %v214 = vld [vmem:[%s172 + $0xb8] sm:$0xf]
      %v247 = vunpack.c.l.b16 %v183
      %v248 = vunpack.c.l.b16 %v184
      %v249 = vunpack.c.l.b16 %v185
      %v250 = vunpack.c.l.b16 %v186
      %v251 = vunpack.c.l.b16 %v187
      %v252 = vunpack.c.l.b16 %v188
      %v253 = vunpack.c.l.b16 %v189
      %v254 = vunpack.c.l.b16 %v190
      %v255 = vunpack.c.l.b16 %v191
      %v256 = vunpack.c.l.b16 %v192
      %v257 = vunpack.c.l.b16 %v193
      %v258 = vunpack.c.l.b16 %v194
      %v259 = vunpack.c.l.b16 %v195
      %v260 = vunpack.c.l.b16 %v196
      %v261 = vunpack.c.l.b16 %v197
      %v262 = vunpack.c.l.b16 %v198
      %v263 = vunpack.c.l.b16 %v199
      %v264 = vunpack.c.l.b16 %v200
      %v265 = vunpack.c.l.b16 %v201
      %v266 = vunpack.c.l.b16 %v202
      %v267 = vunpack.c.l.b16 %v203
      %v268 = vunpack.c.l.b16 %v204
      %v269 = vunpack.c.l.b16 %v205
      %v270 = vunpack.c.l.b16 %v206
      %v271 = vunpack.c.l.b16 %v207
      %v272 = vunpack.c.l.b16 %v208
      %v273 = vunpack.c.l.b16 %v209
      %v274 = vunpack.c.l.b16 %v210
      %v275 = vunpack.c.l.b16 %v211
      %v276 = vunpack.c.l.b16 %v212
      %v277 = vunpack.c.l.b16 %v213
      %v278 = vunpack.c.l.b16 %v214
      %v279 = vpack.c.b16 %v248, %v247
      %v280 = vpack.c.b16 %v250, %v249
      %v281 = vpack.c.b16 %v252, %v251
      %v282 = vpack.c.b16 %v254, %v253
      %v283 = vpack.c.b16 %v256, %v255
      %v284 = vpack.c.b16 %v258, %v257
      %v285 = vpack.c.b16 %v260, %v259
      %v286 = vpack.c.b16 %v262, %v261
      %v287 = vpack.c.b16 %v264, %v263
      %v288 = vpack.c.b16 %v266, %v265
      %v289 = vpack.c.b16 %v268, %v267
      %v290 = vpack.c.b16 %v270, %v269
      %v291 = vpack.c.b16 %v272, %v271
      %v292 = vpack.c.b16 %v274, %v273
      %v293 = vpack.c.b16 %v276, %v275
      %v294 = vpack.c.b16 %v278, %v277
      %311 = vst [vmem:[#allocation2] sm:$0xff] %v279
      %312 = vst [vmem:[#allocation2 + $0x48] sm:$0xff] %v280
      %313 = vst [vmem:[#allocation2 + $0x90] sm:$0xff] %v281
      %314 = vst [vmem:[#allocation2 + $0xd8] sm:$0xff] %v282
      %315 = vst [vmem:[#allocation2 + $0x120] sm:$0xff] %v283
      %316 = vst [vmem:[#allocation2 + $0x168] sm:$0xff] %v284
      %317 = vst [vmem:[#allocation2 + $0x1b0] sm:$0xff] %v285
      %318 = vst [vmem:[#allocation2 + $0x1f8] sm:$0xff] %v286
      %319 = vst [vmem:[#allocation2 + $0x240] sm:$0xff] %v287
      %320 = vst [vmem:[#allocation2 + $0x288] sm:$0xff] %v288
      %321 = vst [vmem:[#allocation2 + $0x2d0] sm:$0xff] %v289
      %322 = vst [vmem:[#allocation2 + $0x318] sm:$0xff] %v290
      %323 = vst [vmem:[#allocation2 + $0x360] sm:$0xff] %v291
      %324 = vst [vmem:[#allocation2 + $0x3a8] sm:$0xff] %v292
      %325 = vst [vmem:[#allocation2 + $0x3f0] sm:$0xff] %v293
      %326 = vst [vmem:[#allocation2 + $0x438] sm:$0xff] %v294
      %v327 = vld [vmem:[%s172] sm:$0xf]
      %v328 = vld [vmem:[%s172 + $0x4] sm:$0xf]
      %v329 = vld [vmem:[%s172 + $0x8] sm:$0x1]
      %v330 = vld [vmem:[%s172 + $0xc] sm:$0xf]
      %v331 = vld [vmem:[%s172 + $0x10] sm:$0xf]
      %v332 = vld [vmem:[%s172 + $0x14] sm:$0x1]
      %v333 = vld [vmem:[%s172 + $0x18] sm:$0xf]
      %v334 = vld [vmem:[%s172 + $0x1c] sm:$0xf]
      %v335 = vld [vmem:[%s172 + $0x20] sm:$0x1]
      %v336 = vld [vmem:[%s172 + $0x24] sm:$0xf]
      %v337 = vld [vmem:[%s172 + $0x28] sm:$0xf]
      %v338 = vld [vmem:[%s172 + $0x2c] sm:$0x1]
      %v339 = vld [vmem:[%s172 + $0x30] sm:$0xf]
      %v340 = vld [vmem:[%s172 + $0x34] sm:$0xf]
      %v341 = vld [vmem:[%s172 + $0x38] sm:$0x1]
      %v342 = vld [vmem:[%s172 + $0x3c] sm:$0xf]
      %v343 = vld [vmem:[%s172 + $0x40] sm:$0xf]
      %v344 = vld [vmem:[%s172 + $0x44] sm:$0x1]
      %v345 = vld [vmem:[%s172 + $0x48] sm:$0xf]
      %v346 = vld [vmem:[%s172 + $0x4c] sm:$0xf]
      %v347 = vld [vmem:[%s172 + $0x50] sm:$0x1]
      %v348 = vld [vmem:[%s172 + $0x54] sm:$0xf]
      %v349 = vld [vmem:[%s172 + $0x58] sm:$0xf]
      %v350 = vld [vmem:[%s172 + $0x5c] sm:$0x1]
      %v351 = vld [vmem:[%s172 + $0x60] sm:$0xf]
      %v352 = vld [vmem:[%s172 + $0x64] sm:$0xf]
      %v353 = vld [vmem:[%s172 + $0x68] sm:$0x1]
      %v354 = vld [vmem:[%s172 + $0x6c] sm:$0xf]
      %v355 = vld [vmem:[%s172 + $0x70] sm:$0xf]
      %v356 = vld [vmem:[%s172 + $0x74] sm:$0x1]
      %v357 = vld [vmem:[%s172 + $0x78] sm:$0xf]
      %v358 = vld [vmem:[%s172 + $0x7c] sm:$0xf]
      %v359 = vld [vmem:[%s172 + $0x80] sm:$0x1]
      %v360 = vld [vmem:[%s172 + $0x84] sm:$0xf]
      %v361 = vld [vmem:[%s172 + $0x88] sm:$0xf]
      %v362 = vld [vmem:[%s172 + $0x8c] sm:$0x1]
      %v363 = vld [vmem:[%s172 + $0x90] sm:$0xf]
      %v364 = vld [vmem:[%s172 + $0x94] sm:$0xf]
      %v365 = vld [vmem:[%s172 + $0x98] sm:$0x1]
      %v366 = vld [vmem:[%s172 + $0x9c] sm:$0xf]
      %v367 = vld [vmem:[%s172 + $0xa0] sm:$0xf]
      %v368 = vld [vmem:[%s172 + $0xa4] sm:$0x1]
      %v369 = vld [vmem:[%s172 + $0xa8] sm:$0xf]
      %v370 = vld [vmem:[%s172 + $0xac] sm:$0xf]
      %v371 = vld [vmem:[%s172 + $0xb0] sm:$0x1]
      %v372 = vld [vmem:[%s172 + $0xb4] sm:$0xf]
      %v373 = vld [vmem:[%s172 + $0xb8] sm:$0xf]
      %v374 = vld [vmem:[%s172 + $0xbc] sm:$0x1]
      %vm375 = vsmask.f32 3328
      %vm376 = vsmask.f32 7440
      %vm377 = vmor %vm375, %vm376
      %v379 = vshrl.u32 %v327, 16
      %v381 = vrot.slane %v379, 4
      %v382 = vshll.u32 %v327, 16
      %v384 = vrot.slane %v382, 5
      %v385 = vor.u32 %v381, %v384
      %v386 = vrot.slane %v385, 4
      %v388 = vshll.u32 %v328, 16
      %v390 = vrot.slane %v388, 5
      %v391 = vsel %vm377, %v386, %v390
      %v392 = vshrl.u32 %v328, 16
      %v394 = vrot.slane %v392, 4
      %v395 = vor.u32 %v394, %v390
      %v396 = vrot.slane %v395, 4
      %v398 = vshll.u32 %v329, 16
      %v400 = vrot.slane %v398, 5
      %v401 = vsel %vm377, %v396, %v400
      %v403 = vshrl.u32 %v330, 16
      %v405 = vrot.slane %v403, 4
      %v406 = vshll.u32 %v330, 16
      %v408 = vrot.slane %v406, 5
      %v409 = vor.u32 %v405, %v408
      %v410 = vrot.slane %v409, 4
      %v412 = vshll.u32 %v331, 16
      %v414 = vrot.slane %v412, 5
      %v415 = vsel %vm377, %v410, %v414
      %v416 = vshrl.u32 %v331, 16
      %v418 = vrot.slane %v416, 4
      %v419 = vor.u32 %v418, %v414
      %v420 = vrot.slane %v419, 4
      %v422 = vshll.u32 %v332, 16
      %v424 = vrot.slane %v422, 5
      %v425 = vsel %vm377, %v420, %v424
      %v427 = vshrl.u32 %v333, 16
      %v429 = vrot.slane %v427, 4
      %v430 = vshll.u32 %v333, 16
      %v432 = vrot.slane %v430, 5
      %v433 = vor.u32 %v429, %v432
      %v434 = vrot.slane %v433, 4
      %v436 = vshll.u32 %v334, 16
      %v438 = vrot.slane %v436, 5
      %v439 = vsel %vm377, %v434, %v438
      %v440 = vshrl.u32 %v334, 16
      %v442 = vrot.slane %v440, 4
      %v443 = vor.u32 %v442, %v438
      %v444 = vrot.slane %v443, 4
      %v446 = vshll.u32 %v335, 16
      %v448 = vrot.slane %v446, 5
      %v449 = vsel %vm377, %v444, %v448
      %v451 = vshrl.u32 %v336, 16
      %v453 = vrot.slane %v451, 4
      %v454 = vshll.u32 %v336, 16
      %v456 = vrot.slane %v454, 5
      %v457 = vor.u32 %v453, %v456
      %v458 = vrot.slane %v457, 4
      %v460 = vshll.u32 %v337, 16
      %v462 = vrot.slane %v460, 5
      %v463 = vsel %vm377, %v458, %v462
      %v464 = vshrl.u32 %v337, 16
      %v466 = vrot.slane %v464, 4
      %v467 = vor.u32 %v466, %v462
      %v468 = vrot.slane %v467, 4
      %v470 = vshll.u32 %v338, 16
      %v472 = vrot.slane %v470, 5
      %v473 = vsel %vm377, %v468, %v472
      %v475 = vshrl.u32 %v339, 16
      %v477 = vrot.slane %v475, 4
      %v478 = vshll.u32 %v339, 16
      %v480 = vrot.slane %v478, 5
      %v481 = vor.u32 %v477, %v480
      %v482 = vrot.slane %v481, 4
      %v484 = vshll.u32 %v340, 16
      %v486 = vrot.slane %v484, 5
      %v487 = vsel %vm377, %v482, %v486
      %v488 = vshrl.u32 %v340, 16
      %v490 = vrot.slane %v488, 4
      %v491 = vor.u32 %v490, %v486
      %v492 = vrot.slane %v491, 4
      %v494 = vshll.u32 %v341, 16
      %v496 = vrot.slane %v494, 5
      %v497 = vsel %vm377, %v492, %v496
      %v499 = vshrl.u32 %v342, 16
      %v501 = vrot.slane %v499, 4
      %v502 = vshll.u32 %v342, 16
      %v504 = vrot.slane %v502, 5
      %v505 = vor.u32 %v501, %v504
      %v506 = vrot.slane %v505, 4
      %v508 = vshll.u32 %v343, 16
      %v510 = vrot.slane %v508, 5
      %v511 = vsel %vm377, %v506, %v510
      %v512 = vshrl.u32 %v343, 16
      %v514 = vrot.slane %v512, 4
      %v515 = vor.u32 %v514, %v510
      %v516 = vrot.slane %v515, 4
      %v518 = vshll.u32 %v344, 16
      %v520 = vrot.slane %v518, 5
      %v521 = vsel %vm377, %v516, %v520
      %v523 = vshrl.u32 %v345, 16
      %v525 = vrot.slane %v523, 4
      %v526 = vshll.u32 %v345, 16
      %v528 = vrot.slane %v526, 5
      %v529 = vor.u32 %v525, %v528
      %v530 = vrot.slane %v529, 4
      %v532 = vshll.u32 %v346, 16
      %v534 = vrot.slane %v532, 5
      %v535 = vsel %vm377, %v530, %v534
      %v536 = vshrl.u32 %v346, 16
      %v538 = vrot.slane %v536, 4
      %v539 = vor.u32 %v538, %v534
      %v540 = vrot.slane %v539, 4
      %v542 = vshll.u32 %v347, 16
      %v544 = vrot.slane %v542, 5
      %v545 = vsel %vm377, %v540, %v544
      %v547 = vshrl.u32 %v348, 16
      %v549 = vrot.slane %v547, 4
      %v550 = vshll.u32 %v348, 16
      %v552 = vrot.slane %v550, 5
      %v553 = vor.u32 %v549, %v552
      %v554 = vrot.slane %v553, 4
      %v556 = vshll.u32 %v349, 16
      %v558 = vrot.slane %v556, 5
      %v559 = vsel %vm377, %v554, %v558
      %v560 = vshrl.u32 %v349, 16
      %v562 = vrot.slane %v560, 4
      %v563 = vor.u32 %v562, %v558
      %v564 = vrot.slane %v563, 4
      %v566 = vshll.u32 %v350, 16
      %v568 = vrot.slane %v566, 5
      %v569 = vsel %vm377, %v564, %v568
      %v571 = vshrl.u32 %v351, 16
      %v573 = vrot.slane %v571, 4
      %v574 = vshll.u32 %v351, 16
      %v576 = vrot.slane %v574, 5
      %v577 = vor.u32 %v573, %v576
      %v578 = vrot.slane %v577, 4
      %v580 = vshll.u32 %v352, 16
      %v582 = vrot.slane %v580, 5
      %v583 = vsel %vm377, %v578, %v582
      %v584 = vshrl.u32 %v352, 16
      %v586 = vrot.slane %v584, 4
      %v587 = vor.u32 %v586, %v582
      %v588 = vrot.slane %v587, 4
      %v590 = vshll.u32 %v353, 16
      %v592 = vrot.slane %v590, 5
      %v593 = vsel %vm377, %v588, %v592
      %v595 = vshrl.u32 %v354, 16
      %v597 = vrot.slane %v595, 4
      %v598 = vshll.u32 %v354, 16
      %v600 = vrot.slane %v598, 5
      %v601 = vor.u32 %v597, %v600
      %v602 = vrot.slane %v601, 4
      %v604 = vshll.u32 %v355, 16
      %v606 = vrot.slane %v604, 5
      %v607 = vsel %vm377, %v602, %v606
      %v608 = vshrl.u32 %v355, 16
      %v610 = vrot.slane %v608, 4
      %v611 = vor.u32 %v610, %v606
      %v612 = vrot.slane %v611, 4
      %v614 = vshll.u32 %v356, 16
      %v616 = vrot.slane %v614, 5
      %v617 = vsel %vm377, %v612, %v616
      %v619 = vshrl.u32 %v357, 16
      %v621 = vrot.slane %v619, 4
      %v622 = vshll.u32 %v357, 16
      %v624 = vrot.slane %v622, 5
      %v625 = vor.u32 %v621, %v624
      %v626 = vrot.slane %v625, 4
      %v628 = vshll.u32 %v358, 16
      %v630 = vrot.slane %v628, 5
      %v631 = vsel %vm377, %v626, %v630
      %v632 = vshrl.u32 %v358, 16
      %v634 = vrot.slane %v632, 4
      %v635 = vor.u32 %v634, %v630
      %v636 = vrot.slane %v635, 4
      %v638 = vshll.u32 %v359, 16
      %v640 = vrot.slane %v638, 5
      %v641 = vsel %vm377, %v636, %v640
      %v643 = vshrl.u32 %v360, 16
      %v645 = vrot.slane %v643, 4
      %v646 = vshll.u32 %v360, 16
      %v648 = vrot.slane %v646, 5
      %v649 = vor.u32 %v645, %v648
      %v650 = vrot.slane %v649, 4
      %v652 = vshll.u32 %v361, 16
      %v654 = vrot.slane %v652, 5
      %v655 = vsel %vm377, %v650, %v654
      %v656 = vshrl.u32 %v361, 16
      %v658 = vrot.slane %v656, 4
      %v659 = vor.u32 %v658, %v654
      %v660 = vrot.slane %v659, 4
      %v662 = vshll.u32 %v362, 16
      %v664 = vrot.slane %v662, 5
      %v665 = vsel %vm377, %v660, %v664
      %v667 = vshrl.u32 %v363, 16
      %v669 = vrot.slane %v667, 4
      %v670 = vshll.u32 %v363, 16
      %v672 = vrot.slane %v670, 5
      %v673 = vor.u32 %v669, %v672
      %v674 = vrot.slane %v673, 4
      %v676 = vshll.u32 %v364, 16
      %v678 = vrot.slane %v676, 5
      %v679 = vsel %vm377, %v674, %v678
      %v680 = vshrl.u32 %v364, 16
      %v682 = vrot.slane %v680, 4
      %v683 = vor.u32 %v682, %v678
      %v684 = vrot.slane %v683, 4
      %v686 = vshll.u32 %v365, 16
      %v688 = vrot.slane %v686, 5
      %v689 = vsel %vm377, %v684, %v688
      %v691 = vshrl.u32 %v366, 16
      %v693 = vrot.slane %v691, 4
      %v694 = vshll.u32 %v366, 16
      %v696 = vrot.slane %v694, 5
      %v697 = vor.u32 %v693, %v696
      %v698 = vrot.slane %v697, 4
      %v700 = vshll.u32 %v367, 16
      %v702 = vrot.slane %v700, 5
      %v703 = vsel %vm377, %v698, %v702
      %v704 = vshrl.u32 %v367, 16
      %v706 = vrot.slane %v704, 4
      %v707 = vor.u32 %v706, %v702
      %v708 = vrot.slane %v707, 4
      %v710 = vshll.u32 %v368, 16
      %v712 = vrot.slane %v710, 5
      %v713 = vsel %vm377, %v708, %v712
      %v715 = vshrl.u32 %v369, 16
      %v717 = vrot.slane %v715, 4
      %v718 = vshll.u32 %v369, 16
      %v720 = vrot.slane %v718, 5
      %v721 = vor.u32 %v717, %v720
      %v722 = vrot.slane %v721, 4
      %v724 = vshll.u32 %v370, 16
      %v726 = vrot.slane %v724, 5
      %v727 = vsel %vm377, %v722, %v726
      %v728 = vshrl.u32 %v370, 16
      %v730 = vrot.slane %v728, 4
      %v731 = vor.u32 %v730, %v726
      %v732 = vrot.slane %v731, 4
      %v734 = vshll.u32 %v371, 16
      %v736 = vrot.slane %v734, 5
      %v737 = vsel %vm377, %v732, %v736
      %v739 = vshrl.u32 %v372, 16
      %v741 = vrot.slane %v739, 4
      %v742 = vshll.u32 %v372, 16
      %v744 = vrot.slane %v742, 5
      %v745 = vor.u32 %v741, %v744
      %v746 = vrot.slane %v745, 4
      %v748 = vshll.u32 %v373, 16
      %v750 = vrot.slane %v748, 5
      %v751 = vsel %vm377, %v746, %v750
      %v752 = vshrl.u32 %v373, 16
      %v754 = vrot.slane %v752, 4
      %v755 = vor.u32 %v754, %v750
      %v756 = vrot.slane %v755, 4
      %v758 = vshll.u32 %v374, 16
      %v760 = vrot.slane %v758, 5
      %v761 = vsel %vm377, %v756, %v760
      %v762 = vunpack.c.l.b16 %v391
      %v763 = vunpack.c.l.b16 %v401
      %v764 = vunpack.c.l.b16 %v415
      %v765 = vunpack.c.l.b16 %v425
      %v766 = vunpack.c.l.b16 %v439
      %v767 = vunpack.c.l.b16 %v449
      %v768 = vunpack.c.l.b16 %v463
      %v769 = vunpack.c.l.b16 %v473
      %v770 = vunpack.c.l.b16 %v487
      %v771 = vunpack.c.l.b16 %v497
      %v772 = vunpack.c.l.b16 %v511
      %v773 = vunpack.c.l.b16 %v521
      %v774 = vunpack.c.l.b16 %v535
      %v775 = vunpack.c.l.b16 %v545
      %v776 = vunpack.c.l.b16 %v559
      %v777 = vunpack.c.l.b16 %v569
      %v778 = vunpack.c.l.b16 %v583
      %v779 = vunpack.c.l.b16 %v593
      %v780 = vunpack.c.l.b16 %v607
      %v781 = vunpack.c.l.b16 %v617
      %v782 = vunpack.c.l.b16 %v631
      %v783 = vunpack.c.l.b16 %v641
      %v784 = vunpack.c.l.b16 %v655
      %v785 = vunpack.c.l.b16 %v665
      %v786 = vunpack.c.l.b16 %v679
      %v787 = vunpack.c.l.b16 %v689
      %v788 = vunpack.c.l.b16 %v703
      %v789 = vunpack.c.l.b16 %v713
      %v790 = vunpack.c.l.b16 %v727
      %v791 = vunpack.c.l.b16 %v737
      %v792 = vunpack.c.l.b16 %v751
      %v793 = vunpack.c.l.b16 %v761
      %v794 = vpack.c.b16 %v763, %v762
      %v795 = vpack.c.b16 %v765, %v764
      %v796 = vpack.c.b16 %v767, %v766
      %v797 = vpack.c.b16 %v769, %v768
      %v798 = vpack.c.b16 %v771, %v770
      %v799 = vpack.c.b16 %v773, %v772
      %v800 = vpack.c.b16 %v775, %v774
      %v801 = vpack.c.b16 %v777, %v776
      %v802 = vpack.c.b16 %v779, %v778
      %v803 = vpack.c.b16 %v781, %v780
      %v804 = vpack.c.b16 %v783, %v782
      %v805 = vpack.c.b16 %v785, %v784
      %v806 = vpack.c.b16 %v787, %v786
      %v807 = vpack.c.b16 %v789, %v788
      %v808 = vpack.c.b16 %v791, %v790
      %v809 = vpack.c.b16 %v793, %v792
      %826 = vst [vmem:[#allocation2 + $0x8] sm:$0xff] %v794
      %827 = vst [vmem:[#allocation2 + $0x50] sm:$0xff] %v795
      %828 = vst [vmem:[#allocation2 + $0x98] sm:$0xff] %v796
      %829 = vst [vmem:[#allocation2 + $0xe0] sm:$0xff] %v797
      %830 = vst [vmem:[#allocation2 + $0x128] sm:$0xff] %v798
      %831 = vst [vmem:[#allocation2 + $0x170] sm:$0xff] %v799
      %832 = vst [vmem:[#allocation2 + $0x1b8] sm:$0xff] %v800
      %833 = vst [vmem:[#allocation2 + $0x200] sm:$0xff] %v801
      %834 = vst [vmem:[#allocation2 + $0x248] sm:$0xff] %v802
      %835 = vst [vmem:[#allocation2 + $0x290] sm:$0xff] %v803
      %836 = vst [vmem:[#allocation2 + $0x2d8] sm:$0xff] %v804
      %837 = vst [vmem:[#allocation2 + $0x320] sm:$0xff] %v805
      %838 = vst [vmem:[#allocation2 + $0x368] sm:$0xff] %v806
      %839 = vst [vmem:[#allocation2 + $0x3b0] sm:$0xff] %v807
      %840 = vst [vmem:[#allocation2 + $0x3f8] sm:$0xff] %v808
      %841 = vst [vmem:[#allocation2 + $0x440] sm:$0xff] %v809
      %v842 = vld [vmem:[%s172] sm:$0xe]
      %v843 = vld [vmem:[%s172 + $0x4] sm:$0xf]
      %v844 = vld [vmem:[%s172 + $0x8] sm:$0x1]
      %v845 = vld [vmem:[%s172 + $0xc] sm:$0xe]
      %v846 = vld [vmem:[%s172 + $0x10] sm:$0xf]
      %v847 = vld [vmem:[%s172 + $0x14] sm:$0x1]
      %v848 = vld [vmem:[%s172 + $0x18] sm:$0xe]
      %v849 = vld [vmem:[%s172 + $0x1c] sm:$0xf]
      %v850 = vld [vmem:[%s172 + $0x20] sm:$0x1]
      %v851 = vld [vmem:[%s172 + $0x24] sm:$0xe]
      %v852 = vld [vmem:[%s172 + $0x28] sm:$0xf]
      %v853 = vld [vmem:[%s172 + $0x2c] sm:$0x1]
      %v854 = vld [vmem:[%s172 + $0x30] sm:$0xe]
      %v855 = vld [vmem:[%s172 + $0x34] sm:$0xf]
      %v856 = vld [vmem:[%s172 + $0x38] sm:$0x1]
      %v857 = vld [vmem:[%s172 + $0x3c] sm:$0xe]
      %v858 = vld [vmem:[%s172 + $0x40] sm:$0xf]
      %v859 = vld [vmem:[%s172 + $0x44] sm:$0x1]
      %v860 = vld [vmem:[%s172 + $0x48] sm:$0xe]
      %v861 = vld [vmem:[%s172 + $0x4c] sm:$0xf]
      %v862 = vld [vmem:[%s172 + $0x50] sm:$0x1]
      %v863 = vld [vmem:[%s172 + $0x54] sm:$0xe]
      %v864 = vld [vmem:[%s172 + $0x58] sm:$0xf]
      %v865 = vld [vmem:[%s172 + $0x5c] sm:$0x1]
      %v866 = vld [vmem:[%s172 + $0x60] sm:$0xe]
      %v867 = vld [vmem:[%s172 + $0x64] sm:$0xf]
      %v868 = vld [vmem:[%s172 + $0x68] sm:$0x1]
      %v869 = vld [vmem:[%s172 + $0x6c] sm:$0xe]
      %v870 = vld [vmem:[%s172 + $0x70] sm:$0xf]
      %v871 = vld [vmem:[%s172 + $0x74] sm:$0x1]
      %v872 = vld [vmem:[%s172 + $0x78] sm:$0xe]
      %v873 = vld [vmem:[%s172 + $0x7c] sm:$0xf]
      %v874 = vld [vmem:[%s172 + $0x80] sm:$0x1]
      %v875 = vld [vmem:[%s172 + $0x84] sm:$0xe]
      %v876 = vld [vmem:[%s172 + $0x88] sm:$0xf]
      %v877 = vld [vmem:[%s172 + $0x8c] sm:$0x1]
      %v878 = vld [vmem:[%s172 + $0x90] sm:$0xe]
      %v879 = vld [vmem:[%s172 + $0x94] sm:$0xf]
      %v880 = vld [vmem:[%s172 + $0x98] sm:$0x1]
      %v881 = vld [vmem:[%s172 + $0x9c] sm:$0xe]
      %v882 = vld [vmem:[%s172 + $0xa0] sm:$0xf]
      %v883 = vld [vmem:[%s172 + $0xa4] sm:$0x1]
      %v884 = vld [vmem:[%s172 + $0xa8] sm:$0xe]
      %v885 = vld [vmem:[%s172 + $0xac] sm:$0xf]
      %v886 = vld [vmem:[%s172 + $0xb0] sm:$0x1]
      %v887 = vld [vmem:[%s172 + $0xb4] sm:$0xe]
      %v888 = vld [vmem:[%s172 + $0xb8] sm:$0xf]
      %v889 = vld [vmem:[%s172 + $0xbc] sm:$0x1]
      %vm938 = vcmask 1042432
      %vm939 = vcmask 1046532
      %vm940 = vmor %vm938, %vm939
      %v941 = vrot.slane %v842, 5
      %v942 = vrot.slane %v941, 4
      %v943 = vrot.slane %v843, 5
      %v944 = vsel %vm940, %v942, %v943
      %v945 = vrot.slane %v943, 4
      %v946 = vrot.slane %v844, 5
      %v947 = vsel %vm940, %v945, %v946
      %v948 = vrot.slane %v845, 5
      %v949 = vrot.slane %v948, 4
      %v950 = vrot.slane %v846, 5
      %v951 = vsel %vm940, %v949, %v950
      %v952 = vrot.slane %v950, 4
      %v953 = vrot.slane %v847, 5
      %v954 = vsel %vm940, %v952, %v953
      %v955 = vrot.slane %v848, 5
      %v956 = vrot.slane %v955, 4
      %v957 = vrot.slane %v849, 5
      %v958 = vsel %vm940, %v956, %v957
      %v959 = vrot.slane %v957, 4
      %v960 = vrot.slane %v850, 5
      %v961 = vsel %vm940, %v959, %v960
      %v962 = vrot.slane %v851, 5
      %v963 = vrot.slane %v962, 4
      %v964 = vrot.slane %v852, 5
      %v965 = vsel %vm940, %v963, %v964
      %v966 = vrot.slane %v964, 4
      %v967 = vrot.slane %v853, 5
      %v968 = vsel %vm940, %v966, %v967
      %v969 = vrot.slane %v854, 5
      %v970 = vrot.slane %v969, 4
      %v971 = vrot.slane %v855, 5
      %v972 = vsel %vm940, %v970, %v971
      %v973 = vrot.slane %v971, 4
      %v974 = vrot.slane %v856, 5
      %v975 = vsel %vm940, %v973, %v974
      %v976 = vrot.slane %v857, 5
      %v977 = vrot.slane %v976, 4
      %v978 = vrot.slane %v858, 5
      %v979 = vsel %vm940, %v977, %v978
      %v980 = vrot.slane %v978, 4
      %v981 = vrot.slane %v859, 5
      %v982 = vsel %vm940, %v980, %v981
      %v983 = vrot.slane %v860, 5
      %v984 = vrot.slane %v983, 4
      %v985 = vrot.slane %v861, 5
      %v986 = vsel %vm940, %v984, %v985
      %v987 = vrot.slane %v985, 4
      %v988 = vrot.slane %v862, 5
      %v989 = vsel %vm940, %v987, %v988
      %v990 = vrot.slane %v863, 5
      %v991 = vrot.slane %v990, 4
      %v992 = vrot.slane %v864, 5
      %v993 = vsel %vm940, %v991, %v992
      %v994 = vrot.slane %v992, 4
      %v995 = vrot.slane %v865, 5
      %v996 = vsel %vm940, %v994, %v995
      %v997 = vrot.slane %v866, 5
      %v998 = vrot.slane %v997, 4
      %v999 = vrot.slane %v867, 5
      %v1000 = vsel %vm940, %v998, %v999
      %v1001 = vrot.slane %v999, 4
      %v1002 = vrot.slane %v868, 5
      %v1003 = vsel %vm940, %v1001, %v1002
      %v1004 = vrot.slane %v869, 5
      %v1005 = vrot.slane %v1004, 4
      %v1006 = vrot.slane %v870, 5
      %v1007 = vsel %vm940, %v1005, %v1006
      %v1008 = vrot.slane %v1006, 4
      %v1009 = vrot.slane %v871, 5
      %v1010 = vsel %vm940, %v1008, %v1009
      %v1011 = vrot.slane %v872, 5
      %v1012 = vrot.slane %v1011, 4
      %v1013 = vrot.slane %v873, 5
      %v1014 = vsel %vm940, %v1012, %v1013
      %v1015 = vrot.slane %v1013, 4
      %v1016 = vrot.slane %v874, 5
      %v1017 = vsel %vm940, %v1015, %v1016
      %v1018 = vrot.slane %v875, 5
      %v1019 = vrot.slane %v1018, 4
      %v1020 = vrot.slane %v876, 5
      %v1021 = vsel %vm940, %v1019, %v1020
      %v1022 = vrot.slane %v1020, 4
      %v1023 = vrot.slane %v877, 5
      %v1024 = vsel %vm940, %v1022, %v1023
      %v1025 = vrot.slane %v878, 5
      %v1026 = vrot.slane %v1025, 4
      %v1027 = vrot.slane %v879, 5
      %v1028 = vsel %vm940, %v1026, %v1027
      %v1029 = vrot.slane %v1027, 4
      %v1030 = vrot.slane %v880, 5
      %v1031 = vsel %vm940, %v1029, %v1030
      %v1032 = vrot.slane %v881, 5
      %v1033 = vrot.slane %v1032, 4
      %v1034 = vrot.slane %v882, 5
      %v1035 = vsel %vm940, %v1033, %v1034
      %v1036 = vrot.slane %v1034, 4
      %v1037 = vrot.slane %v883, 5
      %v1038 = vsel %vm940, %v1036, %v1037
      %v1039 = vrot.slane %v884, 5
      %v1040 = vrot.slane %v1039, 4
      %v1041 = vrot.slane %v885, 5
      %v1042 = vsel %vm940, %v1040, %v1041
      %v1043 = vrot.slane %v1041, 4
      %v1044 = vrot.slane %v886, 5
      %v1045 = vsel %vm940, %v1043, %v1044
      %v1046 = vrot.slane %v887, 5
      %v1047 = vrot.slane %v1046, 4
      %v1048 = vrot.slane %v888, 5
      %v1049 = vsel %vm940, %v1047, %v1048
      %v1050 = vrot.slane %v1048, 4
      %v1051 = vrot.slane %v889, 5
      %v1052 = vsel %vm940, %v1050, %v1051
      %v1053 = vunpack.c.l.b16 %v944
      %v1054 = vunpack.c.l.b16 %v947
      %v1055 = vunpack.c.l.b16 %v951
      %v1056 = vunpack.c.l.b16 %v954
      %v1057 = vunpack.c.l.b16 %v958
      %v1058 = vunpack.c.l.b16 %v961
      %v1059 = vunpack.c.l.b16 %v965
      %v1060 = vunpack.c.l.b16 %v968
      %v1061 = vunpack.c.l.b16 %v972
      %v1062 = vunpack.c.l.b16 %v975
      %v1063 = vunpack.c.l.b16 %v979
      %v1064 = vunpack.c.l.b16 %v982
      %v1065 = vunpack.c.l.b16 %v986
      %v1066 = vunpack.c.l.b16 %v989
      %v1067 = vunpack.c.l.b16 %v993
      %v1068 = vunpack.c.l.b16 %v996
      %v1069 = vunpack.c.l.b16 %v1000
      %v1070 = vunpack.c.l.b16 %v1003
      %v1071 = vunpack.c.l.b16 %v1007
      %v1072 = vunpack.c.l.b16 %v1010
      %v1073 = vunpack.c.l.b16 %v1014
      %v1074 = vunpack.c.l.b16 %v1017
      %v1075 = vunpack.c.l.b16 %v1021
      %v1076 = vunpack.c.l.b16 %v1024
      %v1077 = vunpack.c.l.b16 %v1028
      %v1078 = vunpack.c.l.b16 %v1031
      %v1079 = vunpack.c.l.b16 %v1035
      %v1080 = vunpack.c.l.b16 %v1038
      %v1081 = vunpack.c.l.b16 %v1042
      %v1082 = vunpack.c.l.b16 %v1045
      %v1083 = vunpack.c.l.b16 %v1049
      %v1084 = vunpack.c.l.b16 %v1052
      %v1085 = vpack.c.b16 %v1054, %v1053
      %v1086 = vpack.c.b16 %v1056, %v1055
      %v1087 = vpack.c.b16 %v1058, %v1057
      %v1088 = vpack.c.b16 %v1060, %v1059
      %v1089 = vpack.c.b16 %v1062, %v1061
      %v1090 = vpack.c.b16 %v1064, %v1063
      %v1091 = vpack.c.b16 %v1066, %v1065
      %v1092 = vpack.c.b16 %v1068, %v1067
      %v1093 = vpack.c.b16 %v1070, %v1069
      %v1094 = vpack.c.b16 %v1072, %v1071
      %v1095 = vpack.c.b16 %v1074, %v1073
      %v1096 = vpack.c.b16 %v1076, %v1075
      %v1097 = vpack.c.b16 %v1078, %v1077
      %v1098 = vpack.c.b16 %v1080, %v1079
      %v1099 = vpack.c.b16 %v1082, %v1081
      %v1100 = vpack.c.b16 %v1084, %v1083
      %1117 = vst [vmem:[#allocation2 + $0x10] sm:$0xff] %v1085
      %1118 = vst [vmem:[#allocation2 + $0x58] sm:$0xff] %v1086
      %1119 = vst [vmem:[#allocation2 + $0xa0] sm:$0xff] %v1087
      %1120 = vst [vmem:[#allocation2 + $0xe8] sm:$0xff] %v1088
      %1121 = vst [vmem:[#allocation2 + $0x130] sm:$0xff] %v1089
      %1122 = vst [vmem:[#allocation2 + $0x178] sm:$0xff] %v1090
      %1123 = vst [vmem:[#allocation2 + $0x1c0] sm:$0xff] %v1091
      %1124 = vst [vmem:[#allocation2 + $0x208] sm:$0xff] %v1092
      %1125 = vst [vmem:[#allocation2 + $0x250] sm:$0xff] %v1093
      %1126 = vst [vmem:[#allocation2 + $0x298] sm:$0xff] %v1094
      %1127 = vst [vmem:[#allocation2 + $0x2e0] sm:$0xff] %v1095
      %1128 = vst [vmem:[#allocation2 + $0x328] sm:$0xff] %v1096
      %1129 = vst [vmem:[#allocation2 + $0x370] sm:$0xff] %v1097
      %1130 = vst [vmem:[#allocation2 + $0x3b8] sm:$0xff] %v1098
      %1131 = vst [vmem:[#allocation2 + $0x400] sm:$0xff] %v1099
      %1132 = vst [vmem:[#allocation2 + $0x448] sm:$0xff] %v1100
      %s1133 = scalar_lea.vmem %s172, 12
      %v1134 = vld [vmem:[%s1133] sm:$0xf]
      %v1135 = vld [vmem:[%s1133 + $0x4] sm:$0xf]
      %v1136 = vld [vmem:[%s1133 + $0xc] sm:$0xf]
      %v1137 = vld [vmem:[%s1133 + $0x10] sm:$0xf]
      %v1138 = vld [vmem:[%s1133 + $0x18] sm:$0xf]
      %v1139 = vld [vmem:[%s1133 + $0x1c] sm:$0xf]
      %v1140 = vld [vmem:[%s1133 + $0x24] sm:$0xf]
      %v1141 = vld [vmem:[%s1133 + $0x28] sm:$0xf]
      %v1142 = vld [vmem:[%s1133 + $0x30] sm:$0xf]
      %v1143 = vld [vmem:[%s1133 + $0x34] sm:$0xf]
      %v1144 = vld [vmem:[%s1133 + $0x3c] sm:$0xf]
      %v1145 = vld [vmem:[%s1133 + $0x40] sm:$0xf]
      %v1146 = vld [vmem:[%s1133 + $0x48] sm:$0xf]
      %v1147 = vld [vmem:[%s1133 + $0x4c] sm:$0xf]
      %v1148 = vld [vmem:[%s1133 + $0x54] sm:$0xf]
      %v1149 = vld [vmem:[%s1133 + $0x58] sm:$0xf]
      %v1150 = vld [vmem:[%s1133 + $0x60] sm:$0xf]
      %v1151 = vld [vmem:[%s1133 + $0x64] sm:$0xf]
      %v1152 = vld [vmem:[%s1133 + $0x6c] sm:$0xf]
      %v1153 = vld [vmem:[%s1133 + $0x70] sm:$0xf]
      %v1154 = vld [vmem:[%s1133 + $0x78] sm:$0xf]
      %v1155 = vld [vmem:[%s1133 + $0x7c] sm:$0xf]
      %v1156 = vld [vmem:[%s1133 + $0x84] sm:$0xf]
      %v1157 = vld [vmem:[%s1133 + $0x88] sm:$0xf]
      %v1158 = vld [vmem:[%s1133 + $0x90] sm:$0xf]
      %v1159 = vld [vmem:[%s1133 + $0x94] sm:$0xf]
      %v1160 = vld [vmem:[%s1133 + $0x9c] sm:$0xf]
      %v1161 = vld [vmem:[%s1133 + $0xa0] sm:$0xf]
      %v1162 = vld [vmem:[%s1133 + $0xa8] sm:$0xf]
      %v1163 = vld [vmem:[%s1133 + $0xac] sm:$0xf]
      %v1164 = vld [vmem:[%s1133 + $0xb4] sm:$0xf]
      %v1165 = vld [vmem:[%s1133 + $0xb8] sm:$0xf]
      %v1198 = vunpack.c.l.b16 %v1134
      %v1199 = vunpack.c.l.b16 %v1135
      %v1200 = vunpack.c.l.b16 %v1136
      %v1201 = vunpack.c.l.b16 %v1137
      %v1202 = vunpack.c.l.b16 %v1138
      %v1203 = vunpack.c.l.b16 %v1139
      %v1204 = vunpack.c.l.b16 %v1140
      %v1205 = vunpack.c.l.b16 %v1141
      %v1206 = vunpack.c.l.b16 %v1142
      %v1207 = vunpack.c.l.b16 %v1143
      %v1208 = vunpack.c.l.b16 %v1144
      %v1209 = vunpack.c.l.b16 %v1145
      %v1210 = vunpack.c.l.b16 %v1146
      %v1211 = vunpack.c.l.b16 %v1147
      %v1212 = vunpack.c.l.b16 %v1148
      %v1213 = vunpack.c.l.b16 %v1149
      %v1214 = vunpack.c.l.b16 %v1150
      %v1215 = vunpack.c.l.b16 %v1151
      %v1216 = vunpack.c.l.b16 %v1152
      %v1217 = vunpack.c.l.b16 %v1153
      %v1218 = vunpack.c.l.b16 %v1154
      %v1219 = vunpack.c.l.b16 %v1155
      %v1220 = vunpack.c.l.b16 %v1156
      %v1221 = vunpack.c.l.b16 %v1157
      %v1222 = vunpack.c.l.b16 %v1158
      %v1223 = vunpack.c.l.b16 %v1159
      %v1224 = vunpack.c.l.b16 %v1160
      %v1225 = vunpack.c.l.b16 %v1161
      %v1226 = vunpack.c.l.b16 %v1162
      %v1227 = vunpack.c.l.b16 %v1163
      %v1228 = vunpack.c.l.b16 %v1164
      %v1229 = vunpack.c.l.b16 %v1165
      %v1230 = vpack.c.b16 %v1199, %v1198
      %v1231 = vpack.c.b16 %v1201, %v1200
      %v1232 = vpack.c.b16 %v1203, %v1202
      %v1233 = vpack.c.b16 %v1205, %v1204
      %v1234 = vpack.c.b16 %v1207, %v1206
      %v1235 = vpack.c.b16 %v1209, %v1208
      %v1236 = vpack.c.b16 %v1211, %v1210
      %v1237 = vpack.c.b16 %v1213, %v1212
      %v1238 = vpack.c.b16 %v1215, %v1214
      %v1239 = vpack.c.b16 %v1217, %v1216
      %v1240 = vpack.c.b16 %v1219, %v1218
      %v1241 = vpack.c.b16 %v1221, %v1220
      %v1242 = vpack.c.b16 %v1223, %v1222
      %v1243 = vpack.c.b16 %v1225, %v1224
      %v1244 = vpack.c.b16 %v1227, %v1226
      %v1245 = vpack.c.b16 %v1229, %v1228
      %1262 = vst [vmem:[#allocation2 + $0x18] sm:$0xff] %v1230
      %1263 = vst [vmem:[#allocation2 + $0x60] sm:$0xff] %v1231
      %1264 = vst [vmem:[#allocation2 + $0xa8] sm:$0xff] %v1232
      %1265 = vst [vmem:[#allocation2 + $0xf0] sm:$0xff] %v1233
      %1266 = vst [vmem:[#allocation2 + $0x138] sm:$0xff] %v1234
      %1267 = vst [vmem:[#allocation2 + $0x180] sm:$0xff] %v1235
      %1268 = vst [vmem:[#allocation2 + $0x1c8] sm:$0xff] %v1236
      %1269 = vst [vmem:[#allocation2 + $0x210] sm:$0xff] %v1237
      %1270 = vst [vmem:[#allocation2 + $0x258] sm:$0xff] %v1238
      %1271 = vst [vmem:[#allocation2 + $0x2a0] sm:$0xff] %v1239
      %1272 = vst [vmem:[#allocation2 + $0x2e8] sm:$0xff] %v1240
      %1273 = vst [vmem:[#allocation2 + $0x330] sm:$0xff] %v1241
      %1274 = vst [vmem:[#allocation2 + $0x378] sm:$0xff] %v1242
      %1275 = vst [vmem:[#allocation2 + $0x3c0] sm:$0xff] %v1243
      %1276 = vst [vmem:[#allocation2 + $0x408] sm:$0xff] %v1244
      %1277 = vst [vmem:[#allocation2 + $0x450] sm:$0xff] %v1245
      %v1278 = vld [vmem:[%s1133] sm:$0xf]
      %v1279 = vld [vmem:[%s1133 + $0x4] sm:$0xf]
      %v1280 = vld [vmem:[%s1133 + $0x8] sm:$0x1]
      %v1281 = vld [vmem:[%s1133 + $0xc] sm:$0xf]
      %v1282 = vld [vmem:[%s1133 + $0x10] sm:$0xf]
      %v1283 = vld [vmem:[%s1133 + $0x14] sm:$0x1]
      %v1284 = vld [vmem:[%s1133 + $0x18] sm:$0xf]
      %v1285 = vld [vmem:[%s1133 + $0x1c] sm:$0xf]
      %v1286 = vld [vmem:[%s1133 + $0x20] sm:$0x1]
      %v1287 = vld [vmem:[%s1133 + $0x24] sm:$0xf]
      %v1288 = vld [vmem:[%s1133 + $0x28] sm:$0xf]
      %v1289 = vld [vmem:[%s1133 + $0x2c] sm:$0x1]
      %v1290 = vld [vmem:[%s1133 + $0x30] sm:$0xf]
      %v1291 = vld [vmem:[%s1133 + $0x34] sm:$0xf]
      %v1292 = vld [vmem:[%s1133 + $0x38] sm:$0x1]
      %v1293 = vld [vmem:[%s1133 + $0x3c] sm:$0xf]
      %v1294 = vld [vmem:[%s1133 + $0x40] sm:$0xf]
      %v1295 = vld [vmem:[%s1133 + $0x44] sm:$0x1]
      %v1296 = vld [vmem:[%s1133 + $0x48] sm:$0xf]
      %v1297 = vld [vmem:[%s1133 + $0x4c] sm:$0xf]
      %v1298 = vld [vmem:[%s1133 + $0x50] sm:$0x1]
      %v1299 = vld [vmem:[%s1133 + $0x54] sm:$0xf]
      %v1300 = vld [vmem:[%s1133 + $0x58] sm:$0xf]
      %v1301 = vld [vmem:[%s1133 + $0x5c] sm:$0x1]
      %v1302 = vld [vmem:[%s1133 + $0x60] sm:$0xf]
      %v1303 = vld [vmem:[%s1133 + $0x64] sm:$0xf]
      %v1304 = vld [vmem:[%s1133 + $0x68] sm:$0x1]
      %v1305 = vld [vmem:[%s1133 + $0x6c] sm:$0xf]
      %v1306 = vld [vmem:[%s1133 + $0x70] sm:$0xf]
      %v1307 = vld [vmem:[%s1133 + $0x74] sm:$0x1]
      %v1308 = vld [vmem:[%s1133 + $0x78] sm:$0xf]
      %v1309 = vld [vmem:[%s1133 + $0x7c] sm:$0xf]
      %v1310 = vld [vmem:[%s1133 + $0x80] sm:$0x1]
      %v1311 = vld [vmem:[%s1133 + $0x84] sm:$0xf]
      %v1312 = vld [vmem:[%s1133 + $0x88] sm:$0xf]
      %v1313 = vld [vmem:[%s1133 + $0x8c] sm:$0x1]
      %v1314 = vld [vmem:[%s1133 + $0x90] sm:$0xf]
      %v1315 = vld [vmem:[%s1133 + $0x94] sm:$0xf]
      %v1316 = vld [vmem:[%s1133 + $0x98] sm:$0x1]
      %v1317 = vld [vmem:[%s1133 + $0x9c] sm:$0xf]
      %v1318 = vld [vmem:[%s1133 + $0xa0] sm:$0xf]
      %v1319 = vld [vmem:[%s1133 + $0xa4] sm:$0x1]
      %v1320 = vld [vmem:[%s1133 + $0xa8] sm:$0xf]
      %v1321 = vld [vmem:[%s1133 + $0xac] sm:$0xf]
      %v1322 = vld [vmem:[%s1133 + $0xb0] sm:$0x1]
      %v1323 = vld [vmem:[%s1133 + $0xb4] sm:$0xf]
      %v1324 = vld [vmem:[%s1133 + $0xb8] sm:$0xf]
      %v1325 = vld [vmem:[%s1133 + $0xbc] sm:$0x1]
      %v1327 = vshrl.u32 %v1278, 16
      %v1329 = vrot.slane %v1327, 4
      %v1330 = vshll.u32 %v1278, 16
      %v1332 = vrot.slane %v1330, 5
      %v1333 = vor.u32 %v1329, %v1332
      %v1334 = vrot.slane %v1333, 4
      %v1336 = vshll.u32 %v1279, 16
      %v1338 = vrot.slane %v1336, 5
      %v1339 = vsel %vm377, %v1334, %v1338
      %v1340 = vshrl.u32 %v1279, 16
      %v1342 = vrot.slane %v1340, 4
      %v1343 = vor.u32 %v1342, %v1338
      %v1344 = vrot.slane %v1343, 4
      %v1346 = vshll.u32 %v1280, 16
      %v1348 = vrot.slane %v1346, 5
      %v1349 = vsel %vm377, %v1344, %v1348
      %v1351 = vshrl.u32 %v1281, 16
      %v1353 = vrot.slane %v1351, 4
      %v1354 = vshll.u32 %v1281, 16
      %v1356 = vrot.slane %v1354, 5
      %v1357 = vor.u32 %v1353, %v1356
      %v1358 = vrot.slane %v1357, 4
      %v1360 = vshll.u32 %v1282, 16
      %v1362 = vrot.slane %v1360, 5
      %v1363 = vsel %vm377, %v1358, %v1362
      %v1364 = vshrl.u32 %v1282, 16
      %v1366 = vrot.slane %v1364, 4
      %v1367 = vor.u32 %v1366, %v1362
      %v1368 = vrot.slane %v1367, 4
      %v1370 = vshll.u32 %v1283, 16
      %v1372 = vrot.slane %v1370, 5
      %v1373 = vsel %vm377, %v1368, %v1372
      %v1375 = vshrl.u32 %v1284, 16
      %v1377 = vrot.slane %v1375, 4
      %v1378 = vshll.u32 %v1284, 16
      %v1380 = vrot.slane %v1378, 5
      %v1381 = vor.u32 %v1377, %v1380
      %v1382 = vrot.slane %v1381, 4
      %v1384 = vshll.u32 %v1285, 16
      %v1386 = vrot.slane %v1384, 5
      %v1387 = vsel %vm377, %v1382, %v1386
      %v1388 = vshrl.u32 %v1285, 16
      %v1390 = vrot.slane %v1388, 4
      %v1391 = vor.u32 %v1390, %v1386
      %v1392 = vrot.slane %v1391, 4
      %v1394 = vshll.u32 %v1286, 16
      %v1396 = vrot.slane %v1394, 5
      %v1397 = vsel %vm377, %v1392, %v1396
      %v1399 = vshrl.u32 %v1287, 16
      %v1401 = vrot.slane %v1399, 4
      %v1402 = vshll.u32 %v1287, 16
      %v1404 = vrot.slane %v1402, 5
      %v1405 = vor.u32 %v1401, %v1404
      %v1406 = vrot.slane %v1405, 4
      %v1408 = vshll.u32 %v1288, 16
      %v1410 = vrot.slane %v1408, 5
      %v1411 = vsel %vm377, %v1406, %v1410
      %v1412 = vshrl.u32 %v1288, 16
      %v1414 = vrot.slane %v1412, 4
      %v1415 = vor.u32 %v1414, %v1410
      %v1416 = vrot.slane %v1415, 4
      %v1418 = vshll.u32 %v1289, 16
      %v1420 = vrot.slane %v1418, 5
      %v1421 = vsel %vm377, %v1416, %v1420
      %v1423 = vshrl.u32 %v1290, 16
      %v1425 = vrot.slane %v1423, 4
      %v1426 = vshll.u32 %v1290, 16
      %v1428 = vrot.slane %v1426, 5
      %v1429 = vor.u32 %v1425, %v1428
      %v1430 = vrot.slane %v1429, 4
      %v1432 = vshll.u32 %v1291, 16
      %v1434 = vrot.slane %v1432, 5
      %v1435 = vsel %vm377, %v1430, %v1434
      %v1436 = vshrl.u32 %v1291, 16
      %v1438 = vrot.slane %v1436, 4
      %v1439 = vor.u32 %v1438, %v1434
      %v1440 = vrot.slane %v1439, 4
      %v1442 = vshll.u32 %v1292, 16
      %v1444 = vrot.slane %v1442, 5
      %v1445 = vsel %vm377, %v1440, %v1444
      %v1447 = vshrl.u32 %v1293, 16
      %v1449 = vrot.slane %v1447, 4
      %v1450 = vshll.u32 %v1293, 16
      %v1452 = vrot.slane %v1450, 5
      %v1453 = vor.u32 %v1449, %v1452
      %v1454 = vrot.slane %v1453, 4
      %v1456 = vshll.u32 %v1294, 16
      %v1458 = vrot.slane %v1456, 5
      %v1459 = vsel %vm377, %v1454, %v1458
      %v1460 = vshrl.u32 %v1294, 16
      %v1462 = vrot.slane %v1460, 4
      %v1463 = vor.u32 %v1462, %v1458
      %v1464 = vrot.slane %v1463, 4
      %v1466 = vshll.u32 %v1295, 16
      %v1468 = vrot.slane %v1466, 5
      %v1469 = vsel %vm377, %v1464, %v1468
      %v1471 = vshrl.u32 %v1296, 16
      %v1473 = vrot.slane %v1471, 4
      %v1474 = vshll.u32 %v1296, 16
      %v1476 = vrot.slane %v1474, 5
      %v1477 = vor.u32 %v1473, %v1476
      %v1478 = vrot.slane %v1477, 4
      %v1480 = vshll.u32 %v1297, 16
      %v1482 = vrot.slane %v1480, 5
      %v1483 = vsel %vm377, %v1478, %v1482
      %v1484 = vshrl.u32 %v1297, 16
      %v1486 = vrot.slane %v1484, 4
      %v1487 = vor.u32 %v1486, %v1482
      %v1488 = vrot.slane %v1487, 4
      %v1490 = vshll.u32 %v1298, 16
      %v1492 = vrot.slane %v1490, 5
      %v1493 = vsel %vm377, %v1488, %v1492
      %v1495 = vshrl.u32 %v1299, 16
      %v1497 = vrot.slane %v1495, 4
      %v1498 = vshll.u32 %v1299, 16
      %v1500 = vrot.slane %v1498, 5
      %v1501 = vor.u32 %v1497, %v1500
      %v1502 = vrot.slane %v1501, 4
      %v1504 = vshll.u32 %v1300, 16
      %v1506 = vrot.slane %v1504, 5
      %v1507 = vsel %vm377, %v1502, %v1506
      %v1508 = vshrl.u32 %v1300, 16
      %v1510 = vrot.slane %v1508, 4
      %v1511 = vor.u32 %v1510, %v1506
      %v1512 = vrot.slane %v1511, 4
      %v1514 = vshll.u32 %v1301, 16
      %v1516 = vrot.slane %v1514, 5
      %v1517 = vsel %vm377, %v1512, %v1516
      %v1519 = vshrl.u32 %v1302, 16
      %v1521 = vrot.slane %v1519, 4
      %v1522 = vshll.u32 %v1302, 16
      %v1524 = vrot.slane %v1522, 5
      %v1525 = vor.u32 %v1521, %v1524
      %v1526 = vrot.slane %v1525, 4
      %v1528 = vshll.u32 %v1303, 16
      %v1530 = vrot.slane %v1528, 5
      %v1531 = vsel %vm377, %v1526, %v1530
      %v1532 = vshrl.u32 %v1303, 16
      %v1534 = vrot.slane %v1532, 4
      %v1535 = vor.u32 %v1534, %v1530
      %v1536 = vrot.slane %v1535, 4
      %v1538 = vshll.u32 %v1304, 16
      %v1540 = vrot.slane %v1538, 5
      %v1541 = vsel %vm377, %v1536, %v1540
      %v1543 = vshrl.u32 %v1305, 16
      %v1545 = vrot.slane %v1543, 4
      %v1546 = vshll.u32 %v1305, 16
      %v1548 = vrot.slane %v1546, 5
      %v1549 = vor.u32 %v1545, %v1548
      %v1550 = vrot.slane %v1549, 4
      %v1552 = vshll.u32 %v1306, 16
      %v1554 = vrot.slane %v1552, 5
      %v1555 = vsel %vm377, %v1550, %v1554
      %v1556 = vshrl.u32 %v1306, 16
      %v1558 = vrot.slane %v1556, 4
      %v1559 = vor.u32 %v1558, %v1554
      %v1560 = vrot.slane %v1559, 4
      %v1562 = vshll.u32 %v1307, 16
      %v1564 = vrot.slane %v1562, 5
      %v1565 = vsel %vm377, %v1560, %v1564
      %v1567 = vshrl.u32 %v1308, 16
      %v1569 = vrot.slane %v1567, 4
      %v1570 = vshll.u32 %v1308, 16
      %v1572 = vrot.slane %v1570, 5
      %v1573 = vor.u32 %v1569, %v1572
      %v1574 = vrot.slane %v1573, 4
      %v1576 = vshll.u32 %v1309, 16
      %v1578 = vrot.slane %v1576, 5
      %v1579 = vsel %vm377, %v1574, %v1578
      %v1580 = vshrl.u32 %v1309, 16
      %v1582 = vrot.slane %v1580, 4
      %v1583 = vor.u32 %v1582, %v1578
      %v1584 = vrot.slane %v1583, 4
      %v1586 = vshll.u32 %v1310, 16
      %v1588 = vrot.slane %v1586, 5
      %v1589 = vsel %vm377, %v1584, %v1588
      %v1591 = vshrl.u32 %v1311, 16
      %v1593 = vrot.slane %v1591, 4
      %v1594 = vshll.u32 %v1311, 16
      %v1596 = vrot.slane %v1594, 5
      %v1597 = vor.u32 %v1593, %v1596
      %v1598 = vrot.slane %v1597, 4
      %v1600 = vshll.u32 %v1312, 16
      %v1602 = vrot.slane %v1600, 5
      %v1603 = vsel %vm377, %v1598, %v1602
      %v1604 = vshrl.u32 %v1312, 16
      %v1606 = vrot.slane %v1604, 4
      %v1607 = vor.u32 %v1606, %v1602
      %v1608 = vrot.slane %v1607, 4
      %v1610 = vshll.u32 %v1313, 16
      %v1612 = vrot.slane %v1610, 5
      %v1613 = vsel %vm377, %v1608, %v1612
      %v1615 = vshrl.u32 %v1314, 16
      %v1617 = vrot.slane %v1615, 4
      %v1618 = vshll.u32 %v1314, 16
      %v1620 = vrot.slane %v1618, 5
      %v1621 = vor.u32 %v1617, %v1620
      %v1622 = vrot.slane %v1621, 4
      %v1624 = vshll.u32 %v1315, 16
      %v1626 = vrot.slane %v1624, 5
      %v1627 = vsel %vm377, %v1622, %v1626
      %v1628 = vshrl.u32 %v1315, 16
      %v1630 = vrot.slane %v1628, 4
      %v1631 = vor.u32 %v1630, %v1626
      %v1632 = vrot.slane %v1631, 4
      %v1634 = vshll.u32 %v1316, 16
      %v1636 = vrot.slane %v1634, 5
      %v1637 = vsel %vm377, %v1632, %v1636
      %v1639 = vshrl.u32 %v1317, 16
      %v1641 = vrot.slane %v1639, 4
      %v1642 = vshll.u32 %v1317, 16
      %v1644 = vrot.slane %v1642, 5
      %v1645 = vor.u32 %v1641, %v1644
      %v1646 = vrot.slane %v1645, 4
      %v1648 = vshll.u32 %v1318, 16
      %v1650 = vrot.slane %v1648, 5
      %v1651 = vsel %vm377, %v1646, %v1650
      %v1652 = vshrl.u32 %v1318, 16
      %v1654 = vrot.slane %v1652, 4
      %v1655 = vor.u32 %v1654, %v1650
      %v1656 = vrot.slane %v1655, 4
      %v1658 = vshll.u32 %v1319, 16
      %v1660 = vrot.slane %v1658, 5
      %v1661 = vsel %vm377, %v1656, %v1660
      %v1663 = vshrl.u32 %v1320, 16
      %v1665 = vrot.slane %v1663, 4
      %v1666 = vshll.u32 %v1320, 16
      %v1668 = vrot.slane %v1666, 5
      %v1669 = vor.u32 %v1665, %v1668
      %v1670 = vrot.slane %v1669, 4
      %v1672 = vshll.u32 %v1321, 16
      %v1674 = vrot.slane %v1672, 5
      %v1675 = vsel %vm377, %v1670, %v1674
      %v1676 = vshrl.u32 %v1321, 16
      %v1678 = vrot.slane %v1676, 4
      %v1679 = vor.u32 %v1678, %v1674
      %v1680 = vrot.slane %v1679, 4
      %v1682 = vshll.u32 %v1322, 16
      %v1684 = vrot.slane %v1682, 5
      %v1685 = vsel %vm377, %v1680, %v1684
      %v1687 = vshrl.u32 %v1323, 16
      %v1689 = vrot.slane %v1687, 4
      %v1690 = vshll.u32 %v1323, 16
      %v1692 = vrot.slane %v1690, 5
      %v1693 = vor.u32 %v1689, %v1692
      %v1694 = vrot.slane %v1693, 4
      %v1696 = vshll.u32 %v1324, 16
      %v1698 = vrot.slane %v1696, 5
      %v1699 = vsel %vm377, %v1694, %v1698
      %v1700 = vshrl.u32 %v1324, 16
      %v1702 = vrot.slane %v1700, 4
      %v1703 = vor.u32 %v1702, %v1698
      %v1704 = vrot.slane %v1703, 4
      %v1706 = vshll.u32 %v1325, 16
      %v1708 = vrot.slane %v1706, 5
      %v1709 = vsel %vm377, %v1704, %v1708
      %v1710 = vunpack.c.l.b16 %v1339
      %v1711 = vunpack.c.l.b16 %v1349
      %v1712 = vunpack.c.l.b16 %v1363
      %v1713 = vunpack.c.l.b16 %v1373
      %v1714 = vunpack.c.l.b16 %v1387
      %v1715 = vunpack.c.l.b16 %v1397
      %v1716 = vunpack.c.l.b16 %v1411
      %v1717 = vunpack.c.l.b16 %v1421
      %v1718 = vunpack.c.l.b16 %v1435
      %v1719 = vunpack.c.l.b16 %v1445
      %v1720 = vunpack.c.l.b16 %v1459
      %v1721 = vunpack.c.l.b16 %v1469
      %v1722 = vunpack.c.l.b16 %v1483
      %v1723 = vunpack.c.l.b16 %v1493
      %v1724 = vunpack.c.l.b16 %v1507
      %v1725 = vunpack.c.l.b16 %v1517
      %v1726 = vunpack.c.l.b16 %v1531
      %v1727 = vunpack.c.l.b16 %v1541
      %v1728 = vunpack.c.l.b16 %v1555
      %v1729 = vunpack.c.l.b16 %v1565
      %v1730 = vunpack.c.l.b16 %v1579
      %v1731 = vunpack.c.l.b16 %v1589
      %v1732 = vunpack.c.l.b16 %v1603
      %v1733 = vunpack.c.l.b16 %v1613
      %v1734 = vunpack.c.l.b16 %v1627
      %v1735 = vunpack.c.l.b16 %v1637
      %v1736 = vunpack.c.l.b16 %v1651
      %v1737 = vunpack.c.l.b16 %v1661
      %v1738 = vunpack.c.l.b16 %v1675
      %v1739 = vunpack.c.l.b16 %v1685
      %v1740 = vunpack.c.l.b16 %v1699
      %v1741 = vunpack.c.l.b16 %v1709
      %v1742 = vpack.c.b16 %v1711, %v1710
      %v1743 = vpack.c.b16 %v1713, %v1712
      %v1744 = vpack.c.b16 %v1715, %v1714
      %v1745 = vpack.c.b16 %v1717, %v1716
      %v1746 = vpack.c.b16 %v1719, %v1718
      %v1747 = vpack.c.b16 %v1721, %v1720
      %v1748 = vpack.c.b16 %v1723, %v1722
      %v1749 = vpack.c.b16 %v1725, %v1724
      %v1750 = vpack.c.b16 %v1727, %v1726
      %v1751 = vpack.c.b16 %v1729, %v1728
      %v1752 = vpack.c.b16 %v1731, %v1730
      %v1753 = vpack.c.b16 %v1733, %v1732
      %v1754 = vpack.c.b16 %v1735, %v1734
      %v1755 = vpack.c.b16 %v1737, %v1736
      %v1756 = vpack.c.b16 %v1739, %v1738
      %v1757 = vpack.c.b16 %v1741, %v1740
      %1774 = vst [vmem:[#allocation2 + $0x20] sm:$0xff] %v1742
      %1775 = vst [vmem:[#allocation2 + $0x68] sm:$0xff] %v1743
      %1776 = vst [vmem:[#allocation2 + $0xb0] sm:$0xff] %v1744
      %1777 = vst [vmem:[#allocation2 + $0xf8] sm:$0xff] %v1745
      %1778 = vst [vmem:[#allocation2 + $0x140] sm:$0xff] %v1746
      %1779 = vst [vmem:[#allocation2 + $0x188] sm:$0xff] %v1747
      %1780 = vst [vmem:[#allocation2 + $0x1d0] sm:$0xff] %v1748
      %1781 = vst [vmem:[#allocation2 + $0x218] sm:$0xff] %v1749
      %1782 = vst [vmem:[#allocation2 + $0x260] sm:$0xff] %v1750
      %1783 = vst [vmem:[#allocation2 + $0x2a8] sm:$0xff] %v1751
      %1784 = vst [vmem:[#allocation2 + $0x2f0] sm:$0xff] %v1752
      %1785 = vst [vmem:[#allocation2 + $0x338] sm:$0xff] %v1753
      %1786 = vst [vmem:[#allocation2 + $0x380] sm:$0xff] %v1754
      %1787 = vst [vmem:[#allocation2 + $0x3c8] sm:$0xff] %v1755
      %1788 = vst [vmem:[#allocation2 + $0x410] sm:$0xff] %v1756
      %1789 = vst [vmem:[#allocation2 + $0x458] sm:$0xff] %v1757
      %v1790 = vld [vmem:[%s1133] sm:$0xe]
      %v1791 = vld [vmem:[%s1133 + $0x4] sm:$0xf]
      %v1792 = vld [vmem:[%s1133 + $0x8] sm:$0x1]
      %v1793 = vld [vmem:[%s1133 + $0xc] sm:$0xe]
      %v1794 = vld [vmem:[%s1133 + $0x10] sm:$0xf]
      %v1795 = vld [vmem:[%s1133 + $0x14] sm:$0x1]
      %v1796 = vld [vmem:[%s1133 + $0x18] sm:$0xe]
      %v1797 = vld [vmem:[%s1133 + $0x1c] sm:$0xf]
      %v1798 = vld [vmem:[%s1133 + $0x20] sm:$0x1]
      %v1799 = vld [vmem:[%s1133 + $0x24] sm:$0xe]
      %v1800 = vld [vmem:[%s1133 + $0x28] sm:$0xf]
      %v1801 = vld [vmem:[%s1133 + $0x2c] sm:$0x1]
      %v1802 = vld [vmem:[%s1133 + $0x30] sm:$0xe]
      %v1803 = vld [vmem:[%s1133 + $0x34] sm:$0xf]
      %v1804 = vld [vmem:[%s1133 + $0x38] sm:$0x1]
      %v1805 = vld [vmem:[%s1133 + $0x3c] sm:$0xe]
      %v1806 = vld [vmem:[%s1133 + $0x40] sm:$0xf]
      %v1807 = vld [vmem:[%s1133 + $0x44] sm:$0x1]
      %v1808 = vld [vmem:[%s1133 + $0x48] sm:$0xe]
      %v1809 = vld [vmem:[%s1133 + $0x4c] sm:$0xf]
      %v1810 = vld [vmem:[%s1133 + $0x50] sm:$0x1]
      %v1811 = vld [vmem:[%s1133 + $0x54] sm:$0xe]
      %v1812 = vld [vmem:[%s1133 + $0x58] sm:$0xf]
      %v1813 = vld [vmem:[%s1133 + $0x5c] sm:$0x1]
      %v1814 = vld [vmem:[%s1133 + $0x60] sm:$0xe]
      %v1815 = vld [vmem:[%s1133 + $0x64] sm:$0xf]
      %v1816 = vld [vmem:[%s1133 + $0x68] sm:$0x1]
      %v1817 = vld [vmem:[%s1133 + $0x6c] sm:$0xe]
      %v1818 = vld [vmem:[%s1133 + $0x70] sm:$0xf]
      %v1819 = vld [vmem:[%s1133 + $0x74] sm:$0x1]
      %v1820 = vld [vmem:[%s1133 + $0x78] sm:$0xe]
      %v1821 = vld [vmem:[%s1133 + $0x7c] sm:$0xf]
      %v1822 = vld [vmem:[%s1133 + $0x80] sm:$0x1]
      %v1823 = vld [vmem:[%s1133 + $0x84] sm:$0xe]
      %v1824 = vld [vmem:[%s1133 + $0x88] sm:$0xf]
      %v1825 = vld [vmem:[%s1133 + $0x8c] sm:$0x1]
      %v1826 = vld [vmem:[%s1133 + $0x90] sm:$0xe]
      %v1827 = vld [vmem:[%s1133 + $0x94] sm:$0xf]
      %v1828 = vld [vmem:[%s1133 + $0x98] sm:$0x1]
      %v1829 = vld [vmem:[%s1133 + $0x9c] sm:$0xe]
      %v1830 = vld [vmem:[%s1133 + $0xa0] sm:$0xf]
      %v1831 = vld [vmem:[%s1133 + $0xa4] sm:$0x1]
      %v1832 = vld [vmem:[%s1133 + $0xa8] sm:$0xe]
      %v1833 = vld [vmem:[%s1133 + $0xac] sm:$0xf]
      %v1834 = vld [vmem:[%s1133 + $0xb0] sm:$0x1]
      %v1835 = vld [vmem:[%s1133 + $0xb4] sm:$0xe]
      %v1836 = vld [vmem:[%s1133 + $0xb8] sm:$0xf]
      %v1837 = vld [vmem:[%s1133 + $0xbc] sm:$0x1]
      %v1886 = vrot.slane %v1790, 5
      %v1887 = vrot.slane %v1886, 4
      %v1888 = vrot.slane %v1791, 5
      %v1889 = vsel %vm940, %v1887, %v1888
      %v1890 = vrot.slane %v1888, 4
      %v1891 = vrot.slane %v1792, 5
      %v1892 = vsel %vm940, %v1890, %v1891
      %v1893 = vrot.slane %v1793, 5
      %v1894 = vrot.slane %v1893, 4
      %v1895 = vrot.slane %v1794, 5
      %v1896 = vsel %vm940, %v1894, %v1895
      %v1897 = vrot.slane %v1895, 4
      %v1898 = vrot.slane %v1795, 5
      %v1899 = vsel %vm940, %v1897, %v1898
      %v1900 = vrot.slane %v1796, 5
      %v1901 = vrot.slane %v1900, 4
      %v1902 = vrot.slane %v1797, 5
      %v1903 = vsel %vm940, %v1901, %v1902
      %v1904 = vrot.slane %v1902, 4
      %v1905 = vrot.slane %v1798, 5
      %v1906 = vsel %vm940, %v1904, %v1905
      %v1907 = vrot.slane %v1799, 5
      %v1908 = vrot.slane %v1907, 4
      %v1909 = vrot.slane %v1800, 5
      %v1910 = vsel %vm940, %v1908, %v1909
      %v1911 = vrot.slane %v1909, 4
      %v1912 = vrot.slane %v1801, 5
      %v1913 = vsel %vm940, %v1911, %v1912
      %v1914 = vrot.slane %v1802, 5
      %v1915 = vrot.slane %v1914, 4
      %v1916 = vrot.slane %v1803, 5
      %v1917 = vsel %vm940, %v1915, %v1916
      %v1918 = vrot.slane %v1916, 4
      %v1919 = vrot.slane %v1804, 5
      %v1920 = vsel %vm940, %v1918, %v1919
      %v1921 = vrot.slane %v1805, 5
      %v1922 = vrot.slane %v1921, 4
      %v1923 = vrot.slane %v1806, 5
      %v1924 = vsel %vm940, %v1922, %v1923
      %v1925 = vrot.slane %v1923, 4
      %v1926 = vrot.slane %v1807, 5
      %v1927 = vsel %vm940, %v1925, %v1926
      %v1928 = vrot.slane %v1808, 5
      %v1929 = vrot.slane %v1928, 4
      %v1930 = vrot.slane %v1809, 5
      %v1931 = vsel %vm940, %v1929, %v1930
      %v1932 = vrot.slane %v1930, 4
      %v1933 = vrot.slane %v1810, 5
      %v1934 = vsel %vm940, %v1932, %v1933
      %v1935 = vrot.slane %v1811, 5
      %v1936 = vrot.slane %v1935, 4
      %v1937 = vrot.slane %v1812, 5
      %v1938 = vsel %vm940, %v1936, %v1937
      %v1939 = vrot.slane %v1937, 4
      %v1940 = vrot.slane %v1813, 5
      %v1941 = vsel %vm940, %v1939, %v1940
      %v1942 = vrot.slane %v1814, 5
      %v1943 = vrot.slane %v1942, 4
      %v1944 = vrot.slane %v1815, 5
      %v1945 = vsel %vm940, %v1943, %v1944
      %v1946 = vrot.slane %v1944, 4
      %v1947 = vrot.slane %v1816, 5
      %v1948 = vsel %vm940, %v1946, %v1947
      %v1949 = vrot.slane %v1817, 5
      %v1950 = vrot.slane %v1949, 4
      %v1951 = vrot.slane %v1818, 5
      %v1952 = vsel %vm940, %v1950, %v1951
      %v1953 = vrot.slane %v1951, 4
      %v1954 = vrot.slane %v1819, 5
      %v1955 = vsel %vm940, %v1953, %v1954
      %v1956 = vrot.slane %v1820, 5
      %v1957 = vrot.slane %v1956, 4
      %v1958 = vrot.slane %v1821, 5
      %v1959 = vsel %vm940, %v1957, %v1958
      %v1960 = vrot.slane %v1958, 4
      %v1961 = vrot.slane %v1822, 5
      %v1962 = vsel %vm940, %v1960, %v1961
      %v1963 = vrot.slane %v1823, 5
      %v1964 = vrot.slane %v1963, 4
      %v1965 = vrot.slane %v1824, 5
      %v1966 = vsel %vm940, %v1964, %v1965
      %v1967 = vrot.slane %v1965, 4
      %v1968 = vrot.slane %v1825, 5
      %v1969 = vsel %vm940, %v1967, %v1968
      %v1970 = vrot.slane %v1826, 5
      %v1971 = vrot.slane %v1970, 4
      %v1972 = vrot.slane %v1827, 5
      %v1973 = vsel %vm940, %v1971, %v1972
      %v1974 = vrot.slane %v1972, 4
      %v1975 = vrot.slane %v1828, 5
      %v1976 = vsel %vm940, %v1974, %v1975
      %v1977 = vrot.slane %v1829, 5
      %v1978 = vrot.slane %v1977, 4
      %v1979 = vrot.slane %v1830, 5
      %v1980 = vsel %vm940, %v1978, %v1979
      %v1981 = vrot.slane %v1979, 4
      %v1982 = vrot.slane %v1831, 5
      %v1983 = vsel %vm940, %v1981, %v1982
      %v1984 = vrot.slane %v1832, 5
      %v1985 = vrot.slane %v1984, 4
      %v1986 = vrot.slane %v1833, 5
      %v1987 = vsel %vm940, %v1985, %v1986
      %v1988 = vrot.slane %v1986, 4
      %v1989 = vrot.slane %v1834, 5
      %v1990 = vsel %vm940, %v1988, %v1989
      %v1991 = vrot.slane %v1835, 5
      %v1992 = vrot.slane %v1991, 4
      %v1993 = vrot.slane %v1836, 5
      %v1994 = vsel %vm940, %v1992, %v1993
      %v1995 = vrot.slane %v1993, 4
      %v1996 = vrot.slane %v1837, 5
      %v1997 = vsel %vm940, %v1995, %v1996
      %v1998 = vunpack.c.l.b16 %v1889
      %v1999 = vunpack.c.l.b16 %v1892
      %v2000 = vunpack.c.l.b16 %v1896
      %v2001 = vunpack.c.l.b16 %v1899
      %v2002 = vunpack.c.l.b16 %v1903
      %v2003 = vunpack.c.l.b16 %v1906
      %v2004 = vunpack.c.l.b16 %v1910
      %v2005 = vunpack.c.l.b16 %v1913
      %v2006 = vunpack.c.l.b16 %v1917
      %v2007 = vunpack.c.l.b16 %v1920
      %v2008 = vunpack.c.l.b16 %v1924
      %v2009 = vunpack.c.l.b16 %v1927
      %v2010 = vunpack.c.l.b16 %v1931
      %v2011 = vunpack.c.l.b16 %v1934
      %v2012 = vunpack.c.l.b16 %v1938
      %v2013 = vunpack.c.l.b16 %v1941
      %v2014 = vunpack.c.l.b16 %v1945
      %v2015 = vunpack.c.l.b16 %v1948
      %v2016 = vunpack.c.l.b16 %v1952
      %v2017 = vunpack.c.l.b16 %v1955
      %v2018 = vunpack.c.l.b16 %v1959
      %v2019 = vunpack.c.l.b16 %v1962
      %v2020 = vunpack.c.l.b16 %v1966
      %v2021 = vunpack.c.l.b16 %v1969
      %v2022 = vunpack.c.l.b16 %v1973
      %v2023 = vunpack.c.l.b16 %v1976
      %v2024 = vunpack.c.l.b16 %v1980
      %v2025 = vunpack.c.l.b16 %v1983
      %v2026 = vunpack.c.l.b16 %v1987
      %v2027 = vunpack.c.l.b16 %v1990
      %v2028 = vunpack.c.l.b16 %v1994
      %v2029 = vunpack.c.l.b16 %v1997
      %v2030 = vpack.c.b16 %v1999, %v1998
      %v2031 = vpack.c.b16 %v2001, %v2000
      %v2032 = vpack.c.b16 %v2003, %v2002
      %v2033 = vpack.c.b16 %v2005, %v2004
      %v2034 = vpack.c.b16 %v2007, %v2006
      %v2035 = vpack.c.b16 %v2009, %v2008
      %v2036 = vpack.c.b16 %v2011, %v2010
      %v2037 = vpack.c.b16 %v2013, %v2012
      %v2038 = vpack.c.b16 %v2015, %v2014
      %v2039 = vpack.c.b16 %v2017, %v2016
      %v2040 = vpack.c.b16 %v2019, %v2018
      %v2041 = vpack.c.b16 %v2021, %v2020
      %v2042 = vpack.c.b16 %v2023, %v2022
      %v2043 = vpack.c.b16 %v2025, %v2024
      %v2044 = vpack.c.b16 %v2027, %v2026
      %v2045 = vpack.c.b16 %v2029, %v2028
      %2062 = vst [vmem:[#allocation2 + $0x28] sm:$0xff] %v2030
      %2063 = vst [vmem:[#allocation2 + $0x70] sm:$0xff] %v2031
      %2064 = vst [vmem:[#allocation2 + $0xb8] sm:$0xff] %v2032
      %2065 = vst [vmem:[#allocation2 + $0x100] sm:$0xff] %v2033
      %2066 = vst [vmem:[#allocation2 + $0x148] sm:$0xff] %v2034
      %2067 = vst [vmem:[#allocation2 + $0x190] sm:$0xff] %v2035
      %2068 = vst [vmem:[#allocation2 + $0x1d8] sm:$0xff] %v2036
      %2069 = vst [vmem:[#allocation2 + $0x220] sm:$0xff] %v2037
      %2070 = vst [vmem:[#allocation2 + $0x268] sm:$0xff] %v2038
      %2071 = vst [vmem:[#allocation2 + $0x2b0] sm:$0xff] %v2039
      %2072 = vst [vmem:[#allocation2 + $0x2f8] sm:$0xff] %v2040
      %2073 = vst [vmem:[#allocation2 + $0x340] sm:$0xff] %v2041
      %2074 = vst [vmem:[#allocation2 + $0x388] sm:$0xff] %v2042
      %2075 = vst [vmem:[#allocation2 + $0x3d0] sm:$0xff] %v2043
      %2076 = vst [vmem:[#allocation2 + $0x418] sm:$0xff] %v2044
      %2077 = vst [vmem:[#allocation2 + $0x460] sm:$0xff] %v2045
      %s2078 = scalar_lea.vmem %s172, 24
      %v2079 = vld [vmem:[%s2078] sm:$0xf]
      %v2080 = vld [vmem:[%s2078 + $0x4] sm:$0xf]
      %v2081 = vld [vmem:[%s2078 + $0xc] sm:$0xf]
      %v2082 = vld [vmem:[%s2078 + $0x10] sm:$0xf]
      %v2083 = vld [vmem:[%s2078 + $0x18] sm:$0xf]
      %v2084 = vld [vmem:[%s2078 + $0x1c] sm:$0xf]
      %v2085 = vld [vmem:[%s2078 + $0x24] sm:$0xf]
      %v2086 = vld [vmem:[%s2078 + $0x28] sm:$0xf]
      %v2087 = vld [vmem:[%s2078 + $0x30] sm:$0xf]
      %v2088 = vld [vmem:[%s2078 + $0x34] sm:$0xf]
      %v2089 = vld [vmem:[%s2078 + $0x3c] sm:$0xf]
      %v2090 = vld [vmem:[%s2078 + $0x40] sm:$0xf]
      %v2091 = vld [vmem:[%s2078 + $0x48] sm:$0xf]
      %v2092 = vld [vmem:[%s2078 + $0x4c] sm:$0xf]
      %v2093 = vld [vmem:[%s2078 + $0x54] sm:$0xf]
      %v2094 = vld [vmem:[%s2078 + $0x58] sm:$0xf]
      %v2095 = vld [vmem:[%s2078 + $0x60] sm:$0xf]
      %v2096 = vld [vmem:[%s2078 + $0x64] sm:$0xf]
      %v2097 = vld [vmem:[%s2078 + $0x6c] sm:$0xf]
      %v2098 = vld [vmem:[%s2078 + $0x70] sm:$0xf]
      %v2099 = vld [vmem:[%s2078 + $0x78] sm:$0xf]
      %v2100 = vld [vmem:[%s2078 + $0x7c] sm:$0xf]
      %v2101 = vld [vmem:[%s2078 + $0x84] sm:$0xf]
      %v2102 = vld [vmem:[%s2078 + $0x88] sm:$0xf]
      %v2103 = vld [vmem:[%s2078 + $0x90] sm:$0xf]
      %v2104 = vld [vmem:[%s2078 + $0x94] sm:$0xf]
      %v2105 = vld [vmem:[%s2078 + $0x9c] sm:$0xf]
      %v2106 = vld [vmem:[%s2078 + $0xa0] sm:$0xf]
      %v2107 = vld [vmem:[%s2078 + $0xa8] sm:$0xf]
      %v2108 = vld [vmem:[%s2078 + $0xac] sm:$0xf]
      %v2109 = vld [vmem:[%s2078 + $0xb4] sm:$0xf]
      %v2110 = vld [vmem:[%s2078 + $0xb8] sm:$0xf]
      %v2143 = vunpack.c.l.b16 %v2079
      %v2144 = vunpack.c.l.b16 %v2080
      %v2145 = vunpack.c.l.b16 %v2081
      %v2146 = vunpack.c.l.b16 %v2082
      %v2147 = vunpack.c.l.b16 %v2083
      %v2148 = vunpack.c.l.b16 %v2084
      %v2149 = vunpack.c.l.b16 %v2085
      %v2150 = vunpack.c.l.b16 %v2086
      %v2151 = vunpack.c.l.b16 %v2087
      %v2152 = vunpack.c.l.b16 %v2088
      %v2153 = vunpack.c.l.b16 %v2089
      %v2154 = vunpack.c.l.b16 %v2090
      %v2155 = vunpack.c.l.b16 %v2091
      %v2156 = vunpack.c.l.b16 %v2092
      %v2157 = vunpack.c.l.b16 %v2093
      %v2158 = vunpack.c.l.b16 %v2094
      %v2159 = vunpack.c.l.b16 %v2095
      %v2160 = vunpack.c.l.b16 %v2096
      %v2161 = vunpack.c.l.b16 %v2097
      %v2162 = vunpack.c.l.b16 %v2098
      %v2163 = vunpack.c.l.b16 %v2099
      %v2164 = vunpack.c.l.b16 %v2100
      %v2165 = vunpack.c.l.b16 %v2101
      %v2166 = vunpack.c.l.b16 %v2102
      %v2167 = vunpack.c.l.b16 %v2103
      %v2168 = vunpack.c.l.b16 %v2104
      %v2169 = vunpack.c.l.b16 %v2105
      %v2170 = vunpack.c.l.b16 %v2106
      %v2171 = vunpack.c.l.b16 %v2107
      %v2172 = vunpack.c.l.b16 %v2108
      %v2173 = vunpack.c.l.b16 %v2109
      %v2174 = vunpack.c.l.b16 %v2110
      %v2175 = vpack.c.b16 %v2144, %v2143
      %v2176 = vpack.c.b16 %v2146, %v2145
      %v2177 = vpack.c.b16 %v2148, %v2147
      %v2178 = vpack.c.b16 %v2150, %v2149
      %v2179 = vpack.c.b16 %v2152, %v2151
      %v2180 = vpack.c.b16 %v2154, %v2153
      %v2181 = vpack.c.b16 %v2156, %v2155
      %v2182 = vpack.c.b16 %v2158, %v2157
      %v2183 = vpack.c.b16 %v2160, %v2159
      %v2184 = vpack.c.b16 %v2162, %v2161
      %v2185 = vpack.c.b16 %v2164, %v2163
      %v2186 = vpack.c.b16 %v2166, %v2165
      %v2187 = vpack.c.b16 %v2168, %v2167
      %v2188 = vpack.c.b16 %v2170, %v2169
      %v2189 = vpack.c.b16 %v2172, %v2171
      %v2190 = vpack.c.b16 %v2174, %v2173
      %2207 = vst [vmem:[#allocation2 + $0x30] sm:$0xff] %v2175
      %2208 = vst [vmem:[#allocation2 + $0x78] sm:$0xff] %v2176
      %2209 = vst [vmem:[#allocation2 + $0xc0] sm:$0xff] %v2177
      %2210 = vst [vmem:[#allocation2 + $0x108] sm:$0xff] %v2178
      %2211 = vst [vmem:[#allocation2 + $0x150] sm:$0xff] %v2179
      %2212 = vst [vmem:[#allocation2 + $0x198] sm:$0xff] %v2180
      %2213 = vst [vmem:[#allocation2 + $0x1e0] sm:$0xff] %v2181
      %2214 = vst [vmem:[#allocation2 + $0x228] sm:$0xff] %v2182
      %2215 = vst [vmem:[#allocation2 + $0x270] sm:$0xff] %v2183
      %2216 = vst [vmem:[#allocation2 + $0x2b8] sm:$0xff] %v2184
      %2217 = vst [vmem:[#allocation2 + $0x300] sm:$0xff] %v2185
      %2218 = vst [vmem:[#allocation2 + $0x348] sm:$0xff] %v2186
      %2219 = vst [vmem:[#allocation2 + $0x390] sm:$0xff] %v2187
      %2220 = vst [vmem:[#allocation2 + $0x3d8] sm:$0xff] %v2188
      %2221 = vst [vmem:[#allocation2 + $0x420] sm:$0xff] %v2189
      %2222 = vst [vmem:[#allocation2 + $0x468] sm:$0xff] %v2190
      %v2223 = vld [vmem:[%s2078] sm:$0xf]
      %v2224 = vld [vmem:[%s2078 + $0x4] sm:$0xf]
      %v2225 = vld [vmem:[%s2078 + $0x8] sm:$0x1]
      %v2226 = vld [vmem:[%s2078 + $0xc] sm:$0xf]
      %v2227 = vld [vmem:[%s2078 + $0x10] sm:$0xf]
      %v2228 = vld [vmem:[%s2078 + $0x14] sm:$0x1]
      %v2229 = vld [vmem:[%s2078 + $0x18] sm:$0xf]
      %v2230 = vld [vmem:[%s2078 + $0x1c] sm:$0xf]
      %v2231 = vld [vmem:[%s2078 + $0x20] sm:$0x1]
      %v2232 = vld [vmem:[%s2078 + $0x24] sm:$0xf]
      %v2233 = vld [vmem:[%s2078 + $0x28] sm:$0xf]
      %v2234 = vld [vmem:[%s2078 + $0x2c] sm:$0x1]
      %v2235 = vld [vmem:[%s2078 + $0x30] sm:$0xf]
      %v2236 = vld [vmem:[%s2078 + $0x34] sm:$0xf]
      %v2237 = vld [vmem:[%s2078 + $0x38] sm:$0x1]
      %v2238 = vld [vmem:[%s2078 + $0x3c] sm:$0xf]
      %v2239 = vld [vmem:[%s2078 + $0x40] sm:$0xf]
      %v2240 = vld [vmem:[%s2078 + $0x44] sm:$0x1]
      %v2241 = vld [vmem:[%s2078 + $0x48] sm:$0xf]
      %v2242 = vld [vmem:[%s2078 + $0x4c] sm:$0xf]
      %v2243 = vld [vmem:[%s2078 + $0x50] sm:$0x1]
      %v2244 = vld [vmem:[%s2078 + $0x54] sm:$0xf]
      %v2245 = vld [vmem:[%s2078 + $0x58] sm:$0xf]
      %v2246 = vld [vmem:[%s2078 + $0x5c] sm:$0x1]
      %v2247 = vld [vmem:[%s2078 + $0x60] sm:$0xf]
      %v2248 = vld [vmem:[%s2078 + $0x64] sm:$0xf]
      %v2249 = vld [vmem:[%s2078 + $0x68] sm:$0x1]
      %v2250 = vld [vmem:[%s2078 + $0x6c] sm:$0xf]
      %v2251 = vld [vmem:[%s2078 + $0x70] sm:$0xf]
      %v2252 = vld [vmem:[%s2078 + $0x74] sm:$0x1]
      %v2253 = vld [vmem:[%s2078 + $0x78] sm:$0xf]
      %v2254 = vld [vmem:[%s2078 + $0x7c] sm:$0xf]
      %v2255 = vld [vmem:[%s2078 + $0x80] sm:$0x1]
      %v2256 = vld [vmem:[%s2078 + $0x84] sm:$0xf]
      %v2257 = vld [vmem:[%s2078 + $0x88] sm:$0xf]
      %v2258 = vld [vmem:[%s2078 + $0x8c] sm:$0x1]
      %v2259 = vld [vmem:[%s2078 + $0x90] sm:$0xf]
      %v2260 = vld [vmem:[%s2078 + $0x94] sm:$0xf]
      %v2261 = vld [vmem:[%s2078 + $0x98] sm:$0x1]
      %v2262 = vld [vmem:[%s2078 + $0x9c] sm:$0xf]
      %v2263 = vld [vmem:[%s2078 + $0xa0] sm:$0xf]
      %v2264 = vld [vmem:[%s2078 + $0xa4] sm:$0x1]
      %v2265 = vld [vmem:[%s2078 + $0xa8] sm:$0xf]
      %v2266 = vld [vmem:[%s2078 + $0xac] sm:$0xf]
      %v2267 = vld [vmem:[%s2078 + $0xb0] sm:$0x1]
      %v2268 = vld [vmem:[%s2078 + $0xb4] sm:$0xf]
      %v2269 = vld [vmem:[%s2078 + $0xb8] sm:$0xf]
      %v2270 = vld [vmem:[%s2078 + $0xbc] sm:$0x1]
      %v2272 = vshrl.u32 %v2223, 16
      %v2274 = vrot.slane %v2272, 4
      %v2275 = vshll.u32 %v2223, 16
      %v2277 = vrot.slane %v2275, 5
      %v2278 = vor.u32 %v2274, %v2277
      %v2279 = vrot.slane %v2278, 4
      %v2281 = vshll.u32 %v2224, 16
      %v2283 = vrot.slane %v2281, 5
      %v2284 = vsel %vm377, %v2279, %v2283
      %v2285 = vshrl.u32 %v2224, 16
      %v2287 = vrot.slane %v2285, 4
      %v2288 = vor.u32 %v2287, %v2283
      %v2289 = vrot.slane %v2288, 4
      %v2291 = vshll.u32 %v2225, 16
      %v2293 = vrot.slane %v2291, 5
      %v2294 = vsel %vm377, %v2289, %v2293
      %v2296 = vshrl.u32 %v2226, 16
      %v2298 = vrot.slane %v2296, 4
      %v2299 = vshll.u32 %v2226, 16
      %v2301 = vrot.slane %v2299, 5
      %v2302 = vor.u32 %v2298, %v2301
      %v2303 = vrot.slane %v2302, 4
      %v2305 = vshll.u32 %v2227, 16
      %v2307 = vrot.slane %v2305, 5
      %v2308 = vsel %vm377, %v2303, %v2307
      %v2309 = vshrl.u32 %v2227, 16
      %v2311 = vrot.slane %v2309, 4
      %v2312 = vor.u32 %v2311, %v2307
      %v2313 = vrot.slane %v2312, 4
      %v2315 = vshll.u32 %v2228, 16
      %v2317 = vrot.slane %v2315, 5
      %v2318 = vsel %vm377, %v2313, %v2317
      %v2320 = vshrl.u32 %v2229, 16
      %v2322 = vrot.slane %v2320, 4
      %v2323 = vshll.u32 %v2229, 16
      %v2325 = vrot.slane %v2323, 5
      %v2326 = vor.u32 %v2322, %v2325
      %v2327 = vrot.slane %v2326, 4
      %v2329 = vshll.u32 %v2230, 16
      %v2331 = vrot.slane %v2329, 5
      %v2332 = vsel %vm377, %v2327, %v2331
      %v2333 = vshrl.u32 %v2230, 16
      %v2335 = vrot.slane %v2333, 4
      %v2336 = vor.u32 %v2335, %v2331
      %v2337 = vrot.slane %v2336, 4
      %v2339 = vshll.u32 %v2231, 16
      %v2341 = vrot.slane %v2339, 5
      %v2342 = vsel %vm377, %v2337, %v2341
      %v2344 = vshrl.u32 %v2232, 16
      %v2346 = vrot.slane %v2344, 4
      %v2347 = vshll.u32 %v2232, 16
      %v2349 = vrot.slane %v2347, 5
      %v2350 = vor.u32 %v2346, %v2349
      %v2351 = vrot.slane %v2350, 4
      %v2353 = vshll.u32 %v2233, 16
      %v2355 = vrot.slane %v2353, 5
      %v2356 = vsel %vm377, %v2351, %v2355
      %v2357 = vshrl.u32 %v2233, 16
      %v2359 = vrot.slane %v2357, 4
      %v2360 = vor.u32 %v2359, %v2355
      %v2361 = vrot.slane %v2360, 4
      %v2363 = vshll.u32 %v2234, 16
      %v2365 = vrot.slane %v2363, 5
      %v2366 = vsel %vm377, %v2361, %v2365
      %v2368 = vshrl.u32 %v2235, 16
      %v2370 = vrot.slane %v2368, 4
      %v2371 = vshll.u32 %v2235, 16
      %v2373 = vrot.slane %v2371, 5
      %v2374 = vor.u32 %v2370, %v2373
      %v2375 = vrot.slane %v2374, 4
      %v2377 = vshll.u32 %v2236, 16
      %v2379 = vrot.slane %v2377, 5
      %v2380 = vsel %vm377, %v2375, %v2379
      %v2381 = vshrl.u32 %v2236, 16
      %v2383 = vrot.slane %v2381, 4
      %v2384 = vor.u32 %v2383, %v2379
      %v2385 = vrot.slane %v2384, 4
      %v2387 = vshll.u32 %v2237, 16
      %v2389 = vrot.slane %v2387, 5
      %v2390 = vsel %vm377, %v2385, %v2389
      %v2392 = vshrl.u32 %v2238, 16
      %v2394 = vrot.slane %v2392, 4
      %v2395 = vshll.u32 %v2238, 16
      %v2397 = vrot.slane %v2395, 5
      %v2398 = vor.u32 %v2394, %v2397
      %v2399 = vrot.slane %v2398, 4
      %v2401 = vshll.u32 %v2239, 16
      %v2403 = vrot.slane %v2401, 5
      %v2404 = vsel %vm377, %v2399, %v2403
      %v2405 = vshrl.u32 %v2239, 16
      %v2407 = vrot.slane %v2405, 4
      %v2408 = vor.u32 %v2407, %v2403
      %v2409 = vrot.slane %v2408, 4
      %v2411 = vshll.u32 %v2240, 16
      %v2413 = vrot.slane %v2411, 5
      %v2414 = vsel %vm377, %v2409, %v2413
      %v2416 = vshrl.u32 %v2241, 16
      %v2418 = vrot.slane %v2416, 4
      %v2419 = vshll.u32 %v2241, 16
      %v2421 = vrot.slane %v2419, 5
      %v2422 = vor.u32 %v2418, %v2421
      %v2423 = vrot.slane %v2422, 4
      %v2425 = vshll.u32 %v2242, 16
      %v2427 = vrot.slane %v2425, 5
      %v2428 = vsel %vm377, %v2423, %v2427
      %v2429 = vshrl.u32 %v2242, 16
      %v2431 = vrot.slane %v2429, 4
      %v2432 = vor.u32 %v2431, %v2427
      %v2433 = vrot.slane %v2432, 4
      %v2435 = vshll.u32 %v2243, 16
      %v2437 = vrot.slane %v2435, 5
      %v2438 = vsel %vm377, %v2433, %v2437
      %v2440 = vshrl.u32 %v2244, 16
      %v2442 = vrot.slane %v2440, 4
      %v2443 = vshll.u32 %v2244, 16
      %v2445 = vrot.slane %v2443, 5
      %v2446 = vor.u32 %v2442, %v2445
      %v2447 = vrot.slane %v2446, 4
      %v2449 = vshll.u32 %v2245, 16
      %v2451 = vrot.slane %v2449, 5
      %v2452 = vsel %vm377, %v2447, %v2451
      %v2453 = vshrl.u32 %v2245, 16
      %v2455 = vrot.slane %v2453, 4
      %v2456 = vor.u32 %v2455, %v2451
      %v2457 = vrot.slane %v2456, 4
      %v2459 = vshll.u32 %v2246, 16
      %v2461 = vrot.slane %v2459, 5
      %v2462 = vsel %vm377, %v2457, %v2461
      %v2464 = vshrl.u32 %v2247, 16
      %v2466 = vrot.slane %v2464, 4
      %v2467 = vshll.u32 %v2247, 16
      %v2469 = vrot.slane %v2467, 5
      %v2470 = vor.u32 %v2466, %v2469
      %v2471 = vrot.slane %v2470, 4
      %v2473 = vshll.u32 %v2248, 16
      %v2475 = vrot.slane %v2473, 5
      %v2476 = vsel %vm377, %v2471, %v2475
      %v2477 = vshrl.u32 %v2248, 16
      %v2479 = vrot.slane %v2477, 4
      %v2480 = vor.u32 %v2479, %v2475
      %v2481 = vrot.slane %v2480, 4
      %v2483 = vshll.u32 %v2249, 16
      %v2485 = vrot.slane %v2483, 5
      %v2486 = vsel %vm377, %v2481, %v2485
      %v2488 = vshrl.u32 %v2250, 16
      %v2490 = vrot.slane %v2488, 4
      %v2491 = vshll.u32 %v2250, 16
      %v2493 = vrot.slane %v2491, 5
      %v2494 = vor.u32 %v2490, %v2493
      %v2495 = vrot.slane %v2494, 4
      %v2497 = vshll.u32 %v2251, 16
      %v2499 = vrot.slane %v2497, 5
      %v2500 = vsel %vm377, %v2495, %v2499
      %v2501 = vshrl.u32 %v2251, 16
      %v2503 = vrot.slane %v2501, 4
      %v2504 = vor.u32 %v2503, %v2499
      %v2505 = vrot.slane %v2504, 4
      %v2507 = vshll.u32 %v2252, 16
      %v2509 = vrot.slane %v2507, 5
      %v2510 = vsel %vm377, %v2505, %v2509
      %v2512 = vshrl.u32 %v2253, 16
      %v2514 = vrot.slane %v2512, 4
      %v2515 = vshll.u32 %v2253, 16
      %v2517 = vrot.slane %v2515, 5
      %v2518 = vor.u32 %v2514, %v2517
      %v2519 = vrot.slane %v2518, 4
      %v2521 = vshll.u32 %v2254, 16
      %v2523 = vrot.slane %v2521, 5
      %v2524 = vsel %vm377, %v2519, %v2523
      %v2525 = vshrl.u32 %v2254, 16
      %v2527 = vrot.slane %v2525, 4
      %v2528 = vor.u32 %v2527, %v2523
      %v2529 = vrot.slane %v2528, 4
      %v2531 = vshll.u32 %v2255, 16
      %v2533 = vrot.slane %v2531, 5
      %v2534 = vsel %vm377, %v2529, %v2533
      %v2536 = vshrl.u32 %v2256, 16
      %v2538 = vrot.slane %v2536, 4
      %v2539 = vshll.u32 %v2256, 16
      %v2541 = vrot.slane %v2539, 5
      %v2542 = vor.u32 %v2538, %v2541
      %v2543 = vrot.slane %v2542, 4
      %v2545 = vshll.u32 %v2257, 16
      %v2547 = vrot.slane %v2545, 5
      %v2548 = vsel %vm377, %v2543, %v2547
      %v2549 = vshrl.u32 %v2257, 16
      %v2551 = vrot.slane %v2549, 4
      %v2552 = vor.u32 %v2551, %v2547
      %v2553 = vrot.slane %v2552, 4
      %v2555 = vshll.u32 %v2258, 16
      %v2557 = vrot.slane %v2555, 5
      %v2558 = vsel %vm377, %v2553, %v2557
      %v2560 = vshrl.u32 %v2259, 16
      %v2562 = vrot.slane %v2560, 4
      %v2563 = vshll.u32 %v2259, 16
      %v2565 = vrot.slane %v2563, 5
      %v2566 = vor.u32 %v2562, %v2565
      %v2567 = vrot.slane %v2566, 4
      %v2569 = vshll.u32 %v2260, 16
      %v2571 = vrot.slane %v2569, 5
      %v2572 = vsel %vm377, %v2567, %v2571
      %v2573 = vshrl.u32 %v2260, 16
      %v2575 = vrot.slane %v2573, 4
      %v2576 = vor.u32 %v2575, %v2571
      %v2577 = vrot.slane %v2576, 4
      %v2579 = vshll.u32 %v2261, 16
      %v2581 = vrot.slane %v2579, 5
      %v2582 = vsel %vm377, %v2577, %v2581
      %v2584 = vshrl.u32 %v2262, 16
      %v2586 = vrot.slane %v2584, 4
      %v2587 = vshll.u32 %v2262, 16
      %v2589 = vrot.slane %v2587, 5
      %v2590 = vor.u32 %v2586, %v2589
      %v2591 = vrot.slane %v2590, 4
      %v2593 = vshll.u32 %v2263, 16
      %v2595 = vrot.slane %v2593, 5
      %v2596 = vsel %vm377, %v2591, %v2595
      %v2597 = vshrl.u32 %v2263, 16
      %v2599 = vrot.slane %v2597, 4
      %v2600 = vor.u32 %v2599, %v2595
      %v2601 = vrot.slane %v2600, 4
      %v2603 = vshll.u32 %v2264, 16
      %v2605 = vrot.slane %v2603, 5
      %v2606 = vsel %vm377, %v2601, %v2605
      %v2608 = vshrl.u32 %v2265, 16
      %v2610 = vrot.slane %v2608, 4
      %v2611 = vshll.u32 %v2265, 16
      %v2613 = vrot.slane %v2611, 5
      %v2614 = vor.u32 %v2610, %v2613
      %v2615 = vrot.slane %v2614, 4
      %v2617 = vshll.u32 %v2266, 16
      %v2619 = vrot.slane %v2617, 5
      %v2620 = vsel %vm377, %v2615, %v2619
      %v2621 = vshrl.u32 %v2266, 16
      %v2623 = vrot.slane %v2621, 4
      %v2624 = vor.u32 %v2623, %v2619
      %v2625 = vrot.slane %v2624, 4
      %v2627 = vshll.u32 %v2267, 16
      %v2629 = vrot.slane %v2627, 5
      %v2630 = vsel %vm377, %v2625, %v2629
      %v2632 = vshrl.u32 %v2268, 16
      %v2634 = vrot.slane %v2632, 4
      %v2635 = vshll.u32 %v2268, 16
      %v2637 = vrot.slane %v2635, 5
      %v2638 = vor.u32 %v2634, %v2637
      %v2639 = vrot.slane %v2638, 4
      %v2641 = vshll.u32 %v2269, 16
      %v2643 = vrot.slane %v2641, 5
      %v2644 = vsel %vm377, %v2639, %v2643
      %v2645 = vshrl.u32 %v2269, 16
      %v2647 = vrot.slane %v2645, 4
      %v2648 = vor.u32 %v2647, %v2643
      %v2649 = vrot.slane %v2648, 4
      %v2651 = vshll.u32 %v2270, 16
      %v2653 = vrot.slane %v2651, 5
      %v2654 = vsel %vm377, %v2649, %v2653
      %v2655 = vunpack.c.l.b16 %v2284
      %v2656 = vunpack.c.l.b16 %v2294
      %v2657 = vunpack.c.l.b16 %v2308
      %v2658 = vunpack.c.l.b16 %v2318
      %v2659 = vunpack.c.l.b16 %v2332
      %v2660 = vunpack.c.l.b16 %v2342
      %v2661 = vunpack.c.l.b16 %v2356
      %v2662 = vunpack.c.l.b16 %v2366
      %v2663 = vunpack.c.l.b16 %v2380
      %v2664 = vunpack.c.l.b16 %v2390
      %v2665 = vunpack.c.l.b16 %v2404
      %v2666 = vunpack.c.l.b16 %v2414
      %v2667 = vunpack.c.l.b16 %v2428
      %v2668 = vunpack.c.l.b16 %v2438
      %v2669 = vunpack.c.l.b16 %v2452
      %v2670 = vunpack.c.l.b16 %v2462
      %v2671 = vunpack.c.l.b16 %v2476
      %v2672 = vunpack.c.l.b16 %v2486
      %v2673 = vunpack.c.l.b16 %v2500
      %v2674 = vunpack.c.l.b16 %v2510
      %v2675 = vunpack.c.l.b16 %v2524
      %v2676 = vunpack.c.l.b16 %v2534
      %v2677 = vunpack.c.l.b16 %v2548
      %v2678 = vunpack.c.l.b16 %v2558
      %v2679 = vunpack.c.l.b16 %v2572
      %v2680 = vunpack.c.l.b16 %v2582
      %v2681 = vunpack.c.l.b16 %v2596
      %v2682 = vunpack.c.l.b16 %v2606
      %v2683 = vunpack.c.l.b16 %v2620
      %v2684 = vunpack.c.l.b16 %v2630
      %v2685 = vunpack.c.l.b16 %v2644
      %v2686 = vunpack.c.l.b16 %v2654
      %v2687 = vpack.c.b16 %v2656, %v2655
      %v2688 = vpack.c.b16 %v2658, %v2657
      %v2689 = vpack.c.b16 %v2660, %v2659
      %v2690 = vpack.c.b16 %v2662, %v2661
      %v2691 = vpack.c.b16 %v2664, %v2663
      %v2692 = vpack.c.b16 %v2666, %v2665
      %v2693 = vpack.c.b16 %v2668, %v2667
      %v2694 = vpack.c.b16 %v2670, %v2669
      %v2695 = vpack.c.b16 %v2672, %v2671
      %v2696 = vpack.c.b16 %v2674, %v2673
      %v2697 = vpack.c.b16 %v2676, %v2675
      %v2698 = vpack.c.b16 %v2678, %v2677
      %v2699 = vpack.c.b16 %v2680, %v2679
      %v2700 = vpack.c.b16 %v2682, %v2681
      %v2701 = vpack.c.b16 %v2684, %v2683
      %v2702 = vpack.c.b16 %v2686, %v2685
      %2719 = vst [vmem:[#allocation2 + $0x38] sm:$0xff] %v2687
      %2720 = vst [vmem:[#allocation2 + $0x80] sm:$0xff] %v2688
      %2721 = vst [vmem:[#allocation2 + $0xc8] sm:$0xff] %v2689
      %2722 = vst [vmem:[#allocation2 + $0x110] sm:$0xff] %v2690
      %2723 = vst [vmem:[#allocation2 + $0x158] sm:$0xff] %v2691
      %2724 = vst [vmem:[#allocation2 + $0x1a0] sm:$0xff] %v2692
      %2725 = vst [vmem:[#allocation2 + $0x1e8] sm:$0xff] %v2693
      %2726 = vst [vmem:[#allocation2 + $0x230] sm:$0xff] %v2694
      %2727 = vst [vmem:[#allocation2 + $0x278] sm:$0xff] %v2695
      %2728 = vst [vmem:[#allocation2 + $0x2c0] sm:$0xff] %v2696
      %2729 = vst [vmem:[#allocation2 + $0x308] sm:$0xff] %v2697
      %2730 = vst [vmem:[#allocation2 + $0x350] sm:$0xff] %v2698
      %2731 = vst [vmem:[#allocation2 + $0x398] sm:$0xff] %v2699
      %2732 = vst [vmem:[#allocation2 + $0x3e0] sm:$0xff] %v2700
      %2733 = vst [vmem:[#allocation2 + $0x428] sm:$0xff] %v2701
      %2734 = vst [vmem:[#allocation2 + $0x470] sm:$0xff] %v2702
      %v2735 = vld [vmem:[%s2078] sm:$0xe]
      %v2736 = vld [vmem:[%s2078 + $0x4] sm:$0xf]
      %v2737 = vld [vmem:[%s2078 + $0x8] sm:$0x1]
      %v2738 = vld [vmem:[%s2078 + $0xc] sm:$0xe]
      %v2739 = vld [vmem:[%s2078 + $0x10] sm:$0xf]
      %v2740 = vld [vmem:[%s2078 + $0x14] sm:$0x1]
      %v2741 = vld [vmem:[%s2078 + $0x18] sm:$0xe]
      %v2742 = vld [vmem:[%s2078 + $0x1c] sm:$0xf]
      %v2743 = vld [vmem:[%s2078 + $0x20] sm:$0x1]
      %v2744 = vld [vmem:[%s2078 + $0x24] sm:$0xe]
      %v2745 = vld [vmem:[%s2078 + $0x28] sm:$0xf]
      %v2746 = vld [vmem:[%s2078 + $0x2c] sm:$0x1]
      %v2747 = vld [vmem:[%s2078 + $0x30] sm:$0xe]
      %v2748 = vld [vmem:[%s2078 + $0x34] sm:$0xf]
      %v2749 = vld [vmem:[%s2078 + $0x38] sm:$0x1]
      %v2750 = vld [vmem:[%s2078 + $0x3c] sm:$0xe]
      %v2751 = vld [vmem:[%s2078 + $0x40] sm:$0xf]
      %v2752 = vld [vmem:[%s2078 + $0x44] sm:$0x1]
      %v2753 = vld [vmem:[%s2078 + $0x48] sm:$0xe]
      %v2754 = vld [vmem:[%s2078 + $0x4c] sm:$0xf]
      %v2755 = vld [vmem:[%s2078 + $0x50] sm:$0x1]
      %v2756 = vld [vmem:[%s2078 + $0x54] sm:$0xe]
      %v2757 = vld [vmem:[%s2078 + $0x58] sm:$0xf]
      %v2758 = vld [vmem:[%s2078 + $0x5c] sm:$0x1]
      %v2759 = vld [vmem:[%s2078 + $0x60] sm:$0xe]
      %v2760 = vld [vmem:[%s2078 + $0x64] sm:$0xf]
      %v2761 = vld [vmem:[%s2078 + $0x68] sm:$0x1]
      %v2762 = vld [vmem:[%s2078 + $0x6c] sm:$0xe]
      %v2763 = vld [vmem:[%s2078 + $0x70] sm:$0xf]
      %v2764 = vld [vmem:[%s2078 + $0x74] sm:$0x1]
      %v2765 = vld [vmem:[%s2078 + $0x78] sm:$0xe]
      %v2766 = vld [vmem:[%s2078 + $0x7c] sm:$0xf]
      %v2767 = vld [vmem:[%s2078 + $0x80] sm:$0x1]
      %v2768 = vld [vmem:[%s2078 + $0x84] sm:$0xe]
      %v2769 = vld [vmem:[%s2078 + $0x88] sm:$0xf]
      %v2770 = vld [vmem:[%s2078 + $0x8c] sm:$0x1]
      %v2771 = vld [vmem:[%s2078 + $0x90] sm:$0xe]
      %v2772 = vld [vmem:[%s2078 + $0x94] sm:$0xf]
      %v2773 = vld [vmem:[%s2078 + $0x98] sm:$0x1]
      %v2774 = vld [vmem:[%s2078 + $0x9c] sm:$0xe]
      %v2775 = vld [vmem:[%s2078 + $0xa0] sm:$0xf]
      %v2776 = vld [vmem:[%s2078 + $0xa4] sm:$0x1]
      %v2777 = vld [vmem:[%s2078 + $0xa8] sm:$0xe]
      %v2778 = vld [vmem:[%s2078 + $0xac] sm:$0xf]
      %v2779 = vld [vmem:[%s2078 + $0xb0] sm:$0x1]
      %v2780 = vld [vmem:[%s2078 + $0xb4] sm:$0xe]
      %v2781 = vld [vmem:[%s2078 + $0xb8] sm:$0xf]
      %v2782 = vld [vmem:[%s2078 + $0xbc] sm:$0x1]
      %v2831 = vrot.slane %v2735, 5
      %v2832 = vrot.slane %v2831, 4
      %v2833 = vrot.slane %v2736, 5
      %v2834 = vsel %vm940, %v2832, %v2833
      %v2835 = vrot.slane %v2833, 4
      %v2836 = vrot.slane %v2737, 5
      %v2837 = vsel %vm940, %v2835, %v2836
      %v2838 = vrot.slane %v2738, 5
      %v2839 = vrot.slane %v2838, 4
      %v2840 = vrot.slane %v2739, 5
      %v2841 = vsel %vm940, %v2839, %v2840
      %v2842 = vrot.slane %v2840, 4
      %v2843 = vrot.slane %v2740, 5
      %v2844 = vsel %vm940, %v2842, %v2843
      %v2845 = vrot.slane %v2741, 5
      %v2846 = vrot.slane %v2845, 4
      %v2847 = vrot.slane %v2742, 5
      %v2848 = vsel %vm940, %v2846, %v2847
      %v2849 = vrot.slane %v2847, 4
      %v2850 = vrot.slane %v2743, 5
      %v2851 = vsel %vm940, %v2849, %v2850
      %v2852 = vrot.slane %v2744, 5
      %v2853 = vrot.slane %v2852, 4
      %v2854 = vrot.slane %v2745, 5
      %v2855 = vsel %vm940, %v2853, %v2854
      %v2856 = vrot.slane %v2854, 4
      %v2857 = vrot.slane %v2746, 5
      %v2858 = vsel %vm940, %v2856, %v2857
      %v2859 = vrot.slane %v2747, 5
      %v2860 = vrot.slane %v2859, 4
      %v2861 = vrot.slane %v2748, 5
      %v2862 = vsel %vm940, %v2860, %v2861
      %v2863 = vrot.slane %v2861, 4
      %v2864 = vrot.slane %v2749, 5
      %v2865 = vsel %vm940, %v2863, %v2864
      %v2866 = vrot.slane %v2750, 5
      %v2867 = vrot.slane %v2866, 4
      %v2868 = vrot.slane %v2751, 5
      %v2869 = vsel %vm940, %v2867, %v2868
      %v2870 = vrot.slane %v2868, 4
      %v2871 = vrot.slane %v2752, 5
      %v2872 = vsel %vm940, %v2870, %v2871
      %v2873 = vrot.slane %v2753, 5
      %v2874 = vrot.slane %v2873, 4
      %v2875 = vrot.slane %v2754, 5
      %v2876 = vsel %vm940, %v2874, %v2875
      %v2877 = vrot.slane %v2875, 4
      %v2878 = vrot.slane %v2755, 5
      %v2879 = vsel %vm940, %v2877, %v2878
      %v2880 = vrot.slane %v2756, 5
      %v2881 = vrot.slane %v2880, 4
      %v2882 = vrot.slane %v2757, 5
      %v2883 = vsel %vm940, %v2881, %v2882
      %v2884 = vrot.slane %v2882, 4
      %v2885 = vrot.slane %v2758, 5
      %v2886 = vsel %vm940, %v2884, %v2885
      %v2887 = vrot.slane %v2759, 5
      %v2888 = vrot.slane %v2887, 4
      %v2889 = vrot.slane %v2760, 5
      %v2890 = vsel %vm940, %v2888, %v2889
      %v2891 = vrot.slane %v2889, 4
      %v2892 = vrot.slane %v2761, 5
      %v2893 = vsel %vm940, %v2891, %v2892
      %v2894 = vrot.slane %v2762, 5
      %v2895 = vrot.slane %v2894, 4
      %v2896 = vrot.slane %v2763, 5
      %v2897 = vsel %vm940, %v2895, %v2896
      %v2898 = vrot.slane %v2896, 4
      %v2899 = vrot.slane %v2764, 5
      %v2900 = vsel %vm940, %v2898, %v2899
      %v2901 = vrot.slane %v2765, 5
      %v2902 = vrot.slane %v2901, 4
      %v2903 = vrot.slane %v2766, 5
      %v2904 = vsel %vm940, %v2902, %v2903
      %v2905 = vrot.slane %v2903, 4
      %v2906 = vrot.slane %v2767, 5
      %v2907 = vsel %vm940, %v2905, %v2906
      %v2908 = vrot.slane %v2768, 5
      %v2909 = vrot.slane %v2908, 4
      %v2910 = vrot.slane %v2769, 5
      %v2911 = vsel %vm940, %v2909, %v2910
      %v2912 = vrot.slane %v2910, 4
      %v2913 = vrot.slane %v2770, 5
      %v2914 = vsel %vm940, %v2912, %v2913
      %v2915 = vrot.slane %v2771, 5
      %v2916 = vrot.slane %v2915, 4
      %v2917 = vrot.slane %v2772, 5
      %v2918 = vsel %vm940, %v2916, %v2917
      %v2919 = vrot.slane %v2917, 4
      %v2920 = vrot.slane %v2773, 5
      %v2921 = vsel %vm940, %v2919, %v2920
      %v2922 = vrot.slane %v2774, 5
      %v2923 = vrot.slane %v2922, 4
      %v2924 = vrot.slane %v2775, 5
      %v2925 = vsel %vm940, %v2923, %v2924
      %v2926 = vrot.slane %v2924, 4
      %v2927 = vrot.slane %v2776, 5
      %v2928 = vsel %vm940, %v2926, %v2927
      %v2929 = vrot.slane %v2777, 5
      %v2930 = vrot.slane %v2929, 4
      %v2931 = vrot.slane %v2778, 5
      %v2932 = vsel %vm940, %v2930, %v2931
      %v2933 = vrot.slane %v2931, 4
      %v2934 = vrot.slane %v2779, 5
      %v2935 = vsel %vm940, %v2933, %v2934
      %v2936 = vrot.slane %v2780, 5
      %v2937 = vrot.slane %v2936, 4
      %v2938 = vrot.slane %v2781, 5
      %v2939 = vsel %vm940, %v2937, %v2938
      %v2940 = vrot.slane %v2938, 4
      %v2941 = vrot.slane %v2782, 5
      %v2942 = vsel %vm940, %v2940, %v2941
      %v2943 = vunpack.c.l.b16 %v2834
      %v2944 = vunpack.c.l.b16 %v2837
      %v2945 = vunpack.c.l.b16 %v2841
      %v2946 = vunpack.c.l.b16 %v2844
      %v2947 = vunpack.c.l.b16 %v2848
      %v2948 = vunpack.c.l.b16 %v2851
      %v2949 = vunpack.c.l.b16 %v2855
      %v2950 = vunpack.c.l.b16 %v2858
      %v2951 = vunpack.c.l.b16 %v2862
      %v2952 = vunpack.c.l.b16 %v2865
      %v2953 = vunpack.c.l.b16 %v2869
      %v2954 = vunpack.c.l.b16 %v2872
      %v2955 = vunpack.c.l.b16 %v2876
      %v2956 = vunpack.c.l.b16 %v2879
      %v2957 = vunpack.c.l.b16 %v2883
      %v2958 = vunpack.c.l.b16 %v2886
      %v2959 = vunpack.c.l.b16 %v2890
      %v2960 = vunpack.c.l.b16 %v2893
      %v2961 = vunpack.c.l.b16 %v2897
      %v2962 = vunpack.c.l.b16 %v2900
      %v2963 = vunpack.c.l.b16 %v2904
      %v2964 = vunpack.c.l.b16 %v2907
      %v2965 = vunpack.c.l.b16 %v2911
      %v2966 = vunpack.c.l.b16 %v2914
      %v2967 = vunpack.c.l.b16 %v2918
      %v2968 = vunpack.c.l.b16 %v2921
      %v2969 = vunpack.c.l.b16 %v2925
      %v2970 = vunpack.c.l.b16 %v2928
      %v2971 = vunpack.c.l.b16 %v2932
      %v2972 = vunpack.c.l.b16 %v2935
      %v2973 = vunpack.c.l.b16 %v2939
      %v2974 = vunpack.c.l.b16 %v2942
      %v2975 = vpack.c.b16 %v2944, %v2943
      %v2976 = vpack.c.b16 %v2946, %v2945
      %v2977 = vpack.c.b16 %v2948, %v2947
      %v2978 = vpack.c.b16 %v2950, %v2949
      %v2979 = vpack.c.b16 %v2952, %v2951
      %v2980 = vpack.c.b16 %v2954, %v2953
      %v2981 = vpack.c.b16 %v2956, %v2955
      %v2982 = vpack.c.b16 %v2958, %v2957
      %v2983 = vpack.c.b16 %v2960, %v2959
      %v2984 = vpack.c.b16 %v2962, %v2961
      %v2985 = vpack.c.b16 %v2964, %v2963
      %v2986 = vpack.c.b16 %v2966, %v2965
      %v2987 = vpack.c.b16 %v2968, %v2967
      %v2988 = vpack.c.b16 %v2970, %v2969
      %v2989 = vpack.c.b16 %v2972, %v2971
      %v2990 = vpack.c.b16 %v2974, %v2973
      %3007 = vst [vmem:[#allocation2 + $0x40] sm:$0xff] %v2975
      %3008 = vst [vmem:[#allocation2 + $0x88] sm:$0xff] %v2976
      %3009 = vst [vmem:[#allocation2 + $0xd0] sm:$0xff] %v2977
      %3010 = vst [vmem:[#allocation2 + $0x118] sm:$0xff] %v2978
      %3011 = vst [vmem:[#allocation2 + $0x160] sm:$0xff] %v2979
      %3012 = vst [vmem:[#allocation2 + $0x1a8] sm:$0xff] %v2980
      %3013 = vst [vmem:[#allocation2 + $0x1f0] sm:$0xff] %v2981
      %3014 = vst [vmem:[#allocation2 + $0x238] sm:$0xff] %v2982
      %3015 = vst [vmem:[#allocation2 + $0x280] sm:$0xff] %v2983
      %3016 = vst [vmem:[#allocation2 + $0x2c8] sm:$0xff] %v2984
      %3017 = vst [vmem:[#allocation2 + $0x310] sm:$0xff] %v2985
      %3018 = vst [vmem:[#allocation2 + $0x358] sm:$0xff] %v2986
      %3019 = vst [vmem:[#allocation2 + $0x3a0] sm:$0xff] %v2987
      %3020 = vst [vmem:[#allocation2 + $0x3e8] sm:$0xff] %v2988
      %3021 = vst [vmem:[#allocation2 + $0x430] sm:$0xff] %v2989
      %3022 = vst [vmem:[#allocation2 + $0x478] sm:$0xff] %v2990
      %v3023 = vld [vmem:[#allocation2] sm:$0xff]
      %v3024 = vld [vmem:[#allocation2 + $0x8] sm:$0xff]
      %v3025 = vld [vmem:[#allocation2 + $0x10] sm:$0xff]
      %v3026 = vld [vmem:[#allocation2 + $0x18] sm:$0xff]
      %v3027 = vld [vmem:[#allocation2 + $0x20] sm:$0xff]
      %v3028 = vld [vmem:[#allocation2 + $0x28] sm:$0xff]
      %v3029 = vld [vmem:[#allocation2 + $0x30] sm:$0xff]
      %v3030 = vld [vmem:[#allocation2 + $0x38] sm:$0xff]
      %v3031 = vld [vmem:[#allocation2 + $0x40] sm:$0xff]
      %v3032 = vld [vmem:[#allocation2 + $0x48] sm:$0xff]
      %v3033 = vld [vmem:[#allocation2 + $0x50] sm:$0xff]
      %v3034 = vld [vmem:[#allocation2 + $0x58] sm:$0xff]
      %v3035 = vld [vmem:[#allocation2 + $0x60] sm:$0xff]
      %v3036 = vld [vmem:[#allocation2 + $0x68] sm:$0xff]
      %v3037 = vld [vmem:[#allocation2 + $0x70] sm:$0xff]
      %v3038 = vld [vmem:[#allocation2 + $0x78] sm:$0xff]
      %v3039 = vld [vmem:[#allocation2 + $0x80] sm:$0xff]
      %v3040 = vld [vmem:[#allocation2 + $0x88] sm:$0xff]
      %v3041 = vld [vmem:[#allocation2 + $0x90] sm:$0xff]
      %v3042 = vld [vmem:[#allocation2 + $0x98] sm:$0xff]
      %v3043 = vld [vmem:[#allocation2 + $0xa0] sm:$0xff]
      %v3044 = vld [vmem:[#allocation2 + $0xa8] sm:$0xff]
      %v3045 = vld [vmem:[#allocation2 + $0xb0] sm:$0xff]
      %v3046 = vld [vmem:[#allocation2 + $0xb8] sm:$0xff]
      %v3047 = vld [vmem:[#allocation2 + $0xc0] sm:$0xff]
      %v3048 = vld [vmem:[#allocation2 + $0xc8] sm:$0xff]
      %v3049 = vld [vmem:[#allocation2 + $0xd0] sm:$0xff]
      %v3050 = vld [vmem:[#allocation2 + $0xd8] sm:$0xff]
      %v3051 = vld [vmem:[#allocation2 + $0xe0] sm:$0xff]
      %v3052 = vld [vmem:[#allocation2 + $0xe8] sm:$0xff]
      %v3053 = vld [vmem:[#allocation2 + $0xf0] sm:$0xff]
      %v3054 = vld [vmem:[#allocation2 + $0xf8] sm:$0xff]
      %v3055 = vld [vmem:[#allocation2 + $0x100] sm:$0xff]
      %v3056 = vld [vmem:[#allocation2 + $0x108] sm:$0xff]
      %v3057 = vld [vmem:[#allocation2 + $0x110] sm:$0xff]
      %v3058 = vld [vmem:[#allocation2 + $0x118] sm:$0xff]
      %v3059 = vld [vmem:[#allocation2 + $0x120] sm:$0xff]
      %v3060 = vld [vmem:[#allocation2 + $0x128] sm:$0xff]
      %v3061 = vld [vmem:[#allocation2 + $0x130] sm:$0xff]
      %v3062 = vld [vmem:[#allocation2 + $0x138] sm:$0xff]
      %v3063 = vld [vmem:[#allocation2 + $0x140] sm:$0xff]
      %v3064 = vld [vmem:[#allocation2 + $0x148] sm:$0xff]
      %v3065 = vld [vmem:[#allocation2 + $0x150] sm:$0xff]
      %v3066 = vld [vmem:[#allocation2 + $0x158] sm:$0xff]
      %v3067 = vld [vmem:[#allocation2 + $0x160] sm:$0xff]
      %v3068 = vld [vmem:[#allocation2 + $0x168] sm:$0xff]
      %v3069 = vld [vmem:[#allocation2 + $0x170] sm:$0xff]
      %v3070 = vld [vmem:[#allocation2 + $0x178] sm:$0xff]
      %v3071 = vld [vmem:[#allocation2 + $0x180] sm:$0xff]
      %v3072 = vld [vmem:[#allocation2 + $0x188] sm:$0xff]
      %v3073 = vld [vmem:[#allocation2 + $0x190] sm:$0xff]
      %v3074 = vld [vmem:[#allocation2 + $0x198] sm:$0xff]
      %v3075 = vld [vmem:[#allocation2 + $0x1a0] sm:$0xff]
      %v3076 = vld [vmem:[#allocation2 + $0x1a8] sm:$0xff]
      %v3077 = vld [vmem:[#allocation2 + $0x1b0] sm:$0xff]
      %v3078 = vld [vmem:[#allocation2 + $0x1b8] sm:$0xff]
      %v3079 = vld [vmem:[#allocation2 + $0x1c0] sm:$0xff]
      %v3080 = vld [vmem:[#allocation2 + $0x1c8] sm:$0xff]
      %v3081 = vld [vmem:[#allocation2 + $0x1d0] sm:$0xff]
      %v3082 = vld [vmem:[#allocation2 + $0x1d8] sm:$0xff]
      %v3083 = vld [vmem:[#allocation2 + $0x1e0] sm:$0xff]
      %v3084 = vld [vmem:[#allocation2 + $0x1e8] sm:$0xff]
      %v3085 = vld [vmem:[#allocation2 + $0x1f0] sm:$0xff]
      %v3086 = vld [vmem:[#allocation2 + $0x1f8] sm:$0xff]
      %v3087 = vld [vmem:[#allocation2 + $0x200] sm:$0xff]
      %v3088 = vld [vmem:[#allocation2 + $0x208] sm:$0xff]
      %v3089 = vld [vmem:[#allocation2 + $0x210] sm:$0xff]
      %v3090 = vld [vmem:[#allocation2 + $0x218] sm:$0xff]
      %v3091 = vld [vmem:[#allocation2 + $0x220] sm:$0xff]
      %v3092 = vld [vmem:[#allocation2 + $0x228] sm:$0xff]
      %v3093 = vld [vmem:[#allocation2 + $0x230] sm:$0xff]
      %v3094 = vld [vmem:[#allocation2 + $0x238] sm:$0xff]
      %v3095 = vld [vmem:[#allocation2 + $0x240] sm:$0xff]
      %v3096 = vld [vmem:[#allocation2 + $0x248] sm:$0xff]
      %v3097 = vld [vmem:[#allocation2 + $0x250] sm:$0xff]
      %v3098 = vld [vmem:[#allocation2 + $0x258] sm:$0xff]
      %v3099 = vld [vmem:[#allocation2 + $0x260] sm:$0xff]
      %v3100 = vld [vmem:[#allocation2 + $0x268] sm:$0xff]
      %v3101 = vld [vmem:[#allocation2 + $0x270] sm:$0xff]
      %v3102 = vld [vmem:[#allocation2 + $0x278] sm:$0xff]
      %v3103 = vld [vmem:[#allocation2 + $0x280] sm:$0xff]
      %v3104 = vld [vmem:[#allocation2 + $0x288] sm:$0xff]
      %v3105 = vld [vmem:[#allocation2 + $0x290] sm:$0xff]
      %v3106 = vld [vmem:[#allocation2 + $0x298] sm:$0xff]
      %v3107 = vld [vmem:[#allocation2 + $0x2a0] sm:$0xff]
      %v3108 = vld [vmem:[#allocation2 + $0x2a8] sm:$0xff]
      %v3109 = vld [vmem:[#allocation2 + $0x2b0] sm:$0xff]
      %v3110 = vld [vmem:[#allocation2 + $0x2b8] sm:$0xff]
      %v3111 = vld [vmem:[#allocation2 + $0x2c0] sm:$0xff]
      %v3112 = vld [vmem:[#allocation2 + $0x2c8] sm:$0xff]
      %v3113 = vld [vmem:[#allocation2 + $0x2d0] sm:$0xff]
      %v3114 = vld [vmem:[#allocation2 + $0x2d8] sm:$0xff]
      %v3115 = vld [vmem:[#allocation2 + $0x2e0] sm:$0xff]
      %v3116 = vld [vmem:[#allocation2 + $0x2e8] sm:$0xff]
      %v3117 = vld [vmem:[#allocation2 + $0x2f0] sm:$0xff]
      %v3118 = vld [vmem:[#allocation2 + $0x2f8] sm:$0xff]
      %v3119 = vld [vmem:[#allocation2 + $0x300] sm:$0xff]
      %v3120 = vld [vmem:[#allocation2 + $0x308] sm:$0xff]
      %v3121 = vld [vmem:[#allocation2 + $0x310] sm:$0xff]
      %v3122 = vld [vmem:[#allocation2 + $0x318] sm:$0xff]
      %v3123 = vld [vmem:[#allocation2 + $0x320] sm:$0xff]
      %v3124 = vld [vmem:[#allocation2 + $0x328] sm:$0xff]
      %v3125 = vld [vmem:[#allocation2 + $0x330] sm:$0xff]
      %v3126 = vld [vmem:[#allocation2 + $0x338] sm:$0xff]
      %v3127 = vld [vmem:[#allocation2 + $0x340] sm:$0xff]
      %v3128 = vld [vmem:[#allocation2 + $0x348] sm:$0xff]
      %v3129 = vld [vmem:[#allocation2 + $0x350] sm:$0xff]
      %v3130 = vld [vmem:[#allocation2 + $0x358] sm:$0xff]
      %v3131 = vld [vmem:[#allocation2 + $0x360] sm:$0xff]
      %v3132 = vld [vmem:[#allocation2 + $0x368] sm:$0xff]
      %v3133 = vld [vmem:[#allocation2 + $0x370] sm:$0xff]
      %v3134 = vld [vmem:[#allocation2 + $0x378] sm:$0xff]
      %v3135 = vld [vmem:[#allocation2 + $0x380] sm:$0xff]
      %v3136 = vld [vmem:[#allocation2 + $0x388] sm:$0xff]
      %v3137 = vld [vmem:[#allocation2 + $0x390] sm:$0xff]
      %v3138 = vld [vmem:[#allocation2 + $0x398] sm:$0xff]
      %v3139 = vld [vmem:[#allocation2 + $0x3a0] sm:$0xff]
      %v3140 = vld [vmem:[#allocation2 + $0x3a8] sm:$0xff]
      %v3141 = vld [vmem:[#allocation2 + $0x3b0] sm:$0xff]
      %v3142 = vld [vmem:[#allocation2 + $0x3b8] sm:$0xff]
      %v3143 = vld [vmem:[#allocation2 + $0x3c0] sm:$0xff]
      %v3144 = vld [vmem:[#allocation2 + $0x3c8] sm:$0xff]
      %v3145 = vld [vmem:[#allocation2 + $0x3d0] sm:$0xff]
      %v3146 = vld [vmem:[#allocation2 + $0x3d8] sm:$0xff]
      %v3147 = vld [vmem:[#allocation2 + $0x3e0] sm:$0xff]
      %v3148 = vld [vmem:[#allocation2 + $0x3e8] sm:$0xff]
      %v3149 = vld [vmem:[#allocation2 + $0x3f0] sm:$0xff]
      %v3150 = vld [vmem:[#allocation2 + $0x3f8] sm:$0xff]
      %v3151 = vld [vmem:[#allocation2 + $0x400] sm:$0xff]
      %v3152 = vld [vmem:[#allocation2 + $0x408] sm:$0xff]
      %v3153 = vld [vmem:[#allocation2 + $0x410] sm:$0xff]
      %v3154 = vld [vmem:[#allocation2 + $0x418] sm:$0xff]
      %v3155 = vld [vmem:[#allocation2 + $0x420] sm:$0xff]
      %v3156 = vld [vmem:[#allocation2 + $0x428] sm:$0xff]
      %v3157 = vld [vmem:[#allocation2 + $0x430] sm:$0xff]
      %v3158 = vld [vmem:[#allocation2 + $0x438] sm:$0xff]
      %v3159 = vld [vmem:[#allocation2 + $0x440] sm:$0xff]
      %v3160 = vld [vmem:[#allocation2 + $0x448] sm:$0xff]
      %v3161 = vld [vmem:[#allocation2 + $0x450] sm:$0xff]
      %v3162 = vld [vmem:[#allocation2 + $0x458] sm:$0xff]
      %v3163 = vld [vmem:[#allocation2 + $0x460] sm:$0xff]
      %v3164 = vld [vmem:[#allocation2 + $0x468] sm:$0xff]
      %v3165 = vld [vmem:[#allocation2 + $0x470] sm:$0xff]
      %v3166 = vld [vmem:[#allocation2 + $0x478] sm:$0xff]
      %v3167 = vld [vmem:[%s1] sm:$0xf]
      %v3168 = vld [vmem:[%s1 + $0x4] sm:$0xf]
      %v3169 = vld [vmem:[%s1 + $0x8] sm:$0xf]
      %v3170 = vld [vmem:[%s1 + $0xc] sm:$0xf]
      %v3171 = vld [vmem:[%s1 + $0x10] sm:$0xf]
      %v3172 = vld [vmem:[%s1 + $0x14] sm:$0xf]
      %v3173 = vld [vmem:[%s1 + $0x18] sm:$0xf]
      %v3174 = vld [vmem:[%s1 + $0x1c] sm:$0xf]
      %v3175 = vld [vmem:[%s1 + $0x20] sm:$0xf]
      %v3176 = vld [vmem:[%s1 + $0x24] sm:$0xf]
      %v3177 = vld [vmem:[%s1 + $0x28] sm:$0xf]
      %v3178 = vld [vmem:[%s1 + $0x2c] sm:$0xf]
      %v3179 = vld [vmem:[%s1 + $0x30] sm:$0xf]
      %v3180 = vld [vmem:[%s1 + $0x34] sm:$0xf]
      %v3181 = vld [vmem:[%s1 + $0x38] sm:$0xf]
      %v3182 = vld [vmem:[%s1 + $0x3c] sm:$0xf]
      %v3183 = vld [vmem:[%s1 + $0x40] sm:$0xf]
      %v3184 = vld [vmem:[%s1 + $0x44] sm:$0xf]
      %v3185 = vld [vmem:[%s1 + $0x48] sm:$0xf]
      %v3186 = vld [vmem:[%s1 + $0x4c] sm:$0xf]
      %v3187 = vld [vmem:[%s1 + $0x50] sm:$0xf]
      %v3188 = vld [vmem:[%s1 + $0x54] sm:$0xf]
      %v3189 = vld [vmem:[%s1 + $0x58] sm:$0xf]
      %v3190 = vld [vmem:[%s1 + $0x5c] sm:$0xf]
      %v3191 = vld [vmem:[%s1 + $0x60] sm:$0xf]
      %v3192 = vld [vmem:[%s1 + $0x64] sm:$0xf]
      %v3193 = vld [vmem:[%s1 + $0x68] sm:$0xf]
      %v3194 = vld [vmem:[%s1 + $0x6c] sm:$0xf]
      %v3195 = vld [vmem:[%s1 + $0x70] sm:$0xf]
      %v3196 = vld [vmem:[%s1 + $0x74] sm:$0xf]
      %v3197 = vld [vmem:[%s1 + $0x78] sm:$0xf]
      %v3198 = vld [vmem:[%s1 + $0x7c] sm:$0xf]
      %v3199 = vld [vmem:[%s1 + $0x80] sm:$0xf]
      %v3200 = vld [vmem:[%s1 + $0x84] sm:$0xf]
      %v3201 = vld [vmem:[%s1 + $0x88] sm:$0xf]
      %v3202 = vld [vmem:[%s1 + $0x8c] sm:$0xf]
      %v3203 = vld [vmem:[%s1 + $0x90] sm:$0xf]
      %v3204 = vld [vmem:[%s1 + $0x94] sm:$0xf]
      %v3205 = vld [vmem:[%s1 + $0x98] sm:$0xf]
      %v3206 = vld [vmem:[%s1 + $0x9c] sm:$0xf]
      %v3207 = vld [vmem:[%s1 + $0xa0] sm:$0xf]
      %v3208 = vld [vmem:[%s1 + $0xa4] sm:$0xf]
      %v3209 = vld [vmem:[%s1 + $0xa8] sm:$0xf]
      %v3210 = vld [vmem:[%s1 + $0xac] sm:$0xf]
      %v3211 = vld [vmem:[%s1 + $0xb0] sm:$0xf]
      %v3212 = vld [vmem:[%s1 + $0xb4] sm:$0xf]
      %v3213 = vld [vmem:[%s1 + $0xb8] sm:$0xf]
      %v3214 = vld [vmem:[%s1 + $0xbc] sm:$0xf]
      %v3215 = vld [vmem:[%s1 + $0xc0] sm:$0xf]
      %v3216 = vld [vmem:[%s1 + $0xc4] sm:$0xf]
      %v3217 = vld [vmem:[%s1 + $0xc8] sm:$0xf]
      %v3218 = vld [vmem:[%s1 + $0xcc] sm:$0xf]
      %v3219 = vld [vmem:[%s1 + $0xd0] sm:$0xf]
      %v3220 = vld [vmem:[%s1 + $0xd4] sm:$0xf]
      %v3221 = vld [vmem:[%s1 + $0xd8] sm:$0xf]
      %v3222 = vld [vmem:[%s1 + $0xdc] sm:$0xf]
      %v3223 = vld [vmem:[%s1 + $0xe0] sm:$0xf]
      %v3224 = vld [vmem:[%s1 + $0xe4] sm:$0xf]
      %v3225 = vld [vmem:[%s1 + $0xe8] sm:$0xf]
      %v3226 = vld [vmem:[%s1 + $0xec] sm:$0xf]
      %v3227 = vld [vmem:[%s1 + $0xf0] sm:$0xf]
      %v3228 = vld [vmem:[%s1 + $0xf4] sm:$0xf]
      %v3229 = vld [vmem:[%s1 + $0xf8] sm:$0xf]
      %v3230 = vld [vmem:[%s1 + $0xfc] sm:$0xf]
      %v3231 = vld [vmem:[%s1 + $0x100] sm:$0xf]
      %v3232 = vld [vmem:[%s1 + $0x104] sm:$0xf]
      %v3233 = vld [vmem:[%s1 + $0x108] sm:$0xf]
      %v3234 = vld [vmem:[%s1 + $0x10c] sm:$0xf]
      %v3235 = vld [vmem:[%s1 + $0x110] sm:$0xf]
      %v3236 = vld [vmem:[%s1 + $0x114] sm:$0xf]
      %v3237 = vld [vmem:[%s1 + $0x118] sm:$0xf]
      %v3238 = vld [vmem:[%s1 + $0x11c] sm:$0xf]
      %v3239 = vld [vmem:[%s1 + $0x120] sm:$0xf]
      %v3240 = vld [vmem:[%s1 + $0x124] sm:$0xf]
      %v3241 = vld [vmem:[%s1 + $0x128] sm:$0xf]
      %v3242 = vld [vmem:[%s1 + $0x12c] sm:$0xf]
      %v3243 = vld [vmem:[%s1 + $0x130] sm:$0xf]
      %v3244 = vld [vmem:[%s1 + $0x134] sm:$0xf]
      %v3245 = vld [vmem:[%s1 + $0x138] sm:$0xf]
      %v3246 = vld [vmem:[%s1 + $0x13c] sm:$0xf]
      %v3247 = vld [vmem:[%s1 + $0x140] sm:$0xf]
      %v3248 = vld [vmem:[%s1 + $0x144] sm:$0xf]
      %v3249 = vld [vmem:[%s1 + $0x148] sm:$0xf]
      %v3250 = vld [vmem:[%s1 + $0x14c] sm:$0xf]
      %v3251 = vld [vmem:[%s1 + $0x150] sm:$0xf]
      %v3252 = vld [vmem:[%s1 + $0x154] sm:$0xf]
      %v3253 = vld [vmem:[%s1 + $0x158] sm:$0xf]
      %v3254 = vld [vmem:[%s1 + $0x15c] sm:$0xf]
      %v3255 = vld [vmem:[%s1 + $0x160] sm:$0xf]
      %v3256 = vld [vmem:[%s1 + $0x164] sm:$0xf]
      %v3257 = vld [vmem:[%s1 + $0x168] sm:$0xf]
      %v3258 = vld [vmem:[%s1 + $0x16c] sm:$0xf]
      %v3259 = vld [vmem:[%s1 + $0x170] sm:$0xf]
      %v3260 = vld [vmem:[%s1 + $0x174] sm:$0xf]
      %v3261 = vld [vmem:[%s1 + $0x178] sm:$0xf]
      %v3262 = vld [vmem:[%s1 + $0x17c] sm:$0xf]
      %v3263 = vld [vmem:[%s1 + $0x180] sm:$0xf]
      %v3264 = vld [vmem:[%s1 + $0x184] sm:$0xf]
      %v3265 = vld [vmem:[%s1 + $0x188] sm:$0xf]
      %v3266 = vld [vmem:[%s1 + $0x18c] sm:$0xf]
      %v3267 = vld [vmem:[%s1 + $0x190] sm:$0xf]
      %v3268 = vld [vmem:[%s1 + $0x194] sm:$0xf]
      %v3269 = vld [vmem:[%s1 + $0x198] sm:$0xf]
      %v3270 = vld [vmem:[%s1 + $0x19c] sm:$0xf]
      %v3271 = vld [vmem:[%s1 + $0x1a0] sm:$0xf]
      %v3272 = vld [vmem:[%s1 + $0x1a4] sm:$0xf]
      %v3273 = vld [vmem:[%s1 + $0x1a8] sm:$0xf]
      %v3274 = vld [vmem:[%s1 + $0x1ac] sm:$0xf]
      %v3275 = vld [vmem:[%s1 + $0x1b0] sm:$0xf]
      %v3276 = vld [vmem:[%s1 + $0x1b4] sm:$0xf]
      %v3277 = vld [vmem:[%s1 + $0x1b8] sm:$0xf]
      %v3278 = vld [vmem:[%s1 + $0x1bc] sm:$0xf]
      %v3279 = vld [vmem:[%s1 + $0x1c0] sm:$0xf]
      %v3280 = vld [vmem:[%s1 + $0x1c4] sm:$0xf]
      %v3281 = vld [vmem:[%s1 + $0x1c8] sm:$0xf]
      %v3282 = vld [vmem:[%s1 + $0x1cc] sm:$0xf]
      %v3283 = vld [vmem:[%s1 + $0x1d0] sm:$0xf]
      %v3284 = vld [vmem:[%s1 + $0x1d4] sm:$0xf]
      %v3285 = vld [vmem:[%s1 + $0x1d8] sm:$0xf]
      %v3286 = vld [vmem:[%s1 + $0x1dc] sm:$0xf]
      %v3287 = vld [vmem:[%s1 + $0x1e0] sm:$0xf]
      %v3288 = vld [vmem:[%s1 + $0x1e4] sm:$0xf]
      %v3289 = vld [vmem:[%s1 + $0x1e8] sm:$0xf]
      %v3290 = vld [vmem:[%s1 + $0x1ec] sm:$0xf]
      %v3291 = vld [vmem:[%s1 + $0x1f0] sm:$0xf]
      %v3292 = vld [vmem:[%s1 + $0x1f4] sm:$0xf]
      %v3293 = vld [vmem:[%s1 + $0x1f8] sm:$0xf]
      %v3294 = vld [vmem:[%s1 + $0x1fc] sm:$0xf]
      %v3295 = vld [vmem:[%s1 + $0x200] sm:$0xf]
      %v3296 = vld [vmem:[%s1 + $0x204] sm:$0xf]
      %v3297 = vld [vmem:[%s1 + $0x208] sm:$0xf]
      %v3298 = vld [vmem:[%s1 + $0x20c] sm:$0xf]
      %v3299 = vld [vmem:[%s1 + $0x210] sm:$0xf]
      %v3300 = vld [vmem:[%s1 + $0x214] sm:$0xf]
      %v3301 = vld [vmem:[%s1 + $0x218] sm:$0xf]
      %v3302 = vld [vmem:[%s1 + $0x21c] sm:$0xf]
      %v3303 = vld [vmem:[%s1 + $0x220] sm:$0xf]
      %v3304 = vld [vmem:[%s1 + $0x224] sm:$0xf]
      %v3305 = vld [vmem:[%s1 + $0x228] sm:$0xf]
      %v3306 = vld [vmem:[%s1 + $0x22c] sm:$0xf]
      %v3307 = vld [vmem:[%s1 + $0x230] sm:$0xf]
      %v3308 = vld [vmem:[%s1 + $0x234] sm:$0xf]
      %v3309 = vld [vmem:[%s1 + $0x238] sm:$0xf]
      %v3310 = vld [vmem:[%s1 + $0x23c] sm:$0xf]
      %v3455 = vunpack.c.l.b16 %v3167
      %v3456 = vunpack.c.l.b16 %v3168
      %v3457 = vunpack.c.l.b16 %v3169
      %v3458 = vunpack.c.l.b16 %v3170
      %v3459 = vunpack.c.l.b16 %v3171
      %v3460 = vunpack.c.l.b16 %v3172
      %v3461 = vunpack.c.l.b16 %v3173
      %v3462 = vunpack.c.l.b16 %v3174
      %v3463 = vunpack.c.l.b16 %v3175
      %v3464 = vunpack.c.l.b16 %v3176
      %v3465 = vunpack.c.l.b16 %v3177
      %v3466 = vunpack.c.l.b16 %v3178
      %v3467 = vunpack.c.l.b16 %v3179
      %v3468 = vunpack.c.l.b16 %v3180
      %v3469 = vunpack.c.l.b16 %v3181
      %v3470 = vunpack.c.l.b16 %v3182
      %v3471 = vunpack.c.l.b16 %v3183
      %v3472 = vunpack.c.l.b16 %v3184
      %v3473 = vunpack.c.l.b16 %v3185
      %v3474 = vunpack.c.l.b16 %v3186
      %v3475 = vunpack.c.l.b16 %v3187
      %v3476 = vunpack.c.l.b16 %v3188
      %v3477 = vunpack.c.l.b16 %v3189
      %v3478 = vunpack.c.l.b16 %v3190
      %v3479 = vunpack.c.l.b16 %v3191
      %v3480 = vunpack.c.l.b16 %v3192
      %v3481 = vunpack.c.l.b16 %v3193
      %v3482 = vunpack.c.l.b16 %v3194
      %v3483 = vunpack.c.l.b16 %v3195
      %v3484 = vunpack.c.l.b16 %v3196
      %v3485 = vunpack.c.l.b16 %v3197
      %v3486 = vunpack.c.l.b16 %v3198
      %v3487 = vunpack.c.l.b16 %v3199
      %v3488 = vunpack.c.l.b16 %v3200
      %v3489 = vunpack.c.l.b16 %v3201
      %v3490 = vunpack.c.l.b16 %v3202
      %v3491 = vunpack.c.l.b16 %v3203
      %v3492 = vunpack.c.l.b16 %v3204
      %v3493 = vunpack.c.l.b16 %v3205
      %v3494 = vunpack.c.l.b16 %v3206
      %v3495 = vunpack.c.l.b16 %v3207
      %v3496 = vunpack.c.l.b16 %v3208
      %v3497 = vunpack.c.l.b16 %v3209
      %v3498 = vunpack.c.l.b16 %v3210
      %v3499 = vunpack.c.l.b16 %v3211
      %v3500 = vunpack.c.l.b16 %v3212
      %v3501 = vunpack.c.l.b16 %v3213
      %v3502 = vunpack.c.l.b16 %v3214
      %v3503 = vunpack.c.l.b16 %v3215
      %v3504 = vunpack.c.l.b16 %v3216
      %v3505 = vunpack.c.l.b16 %v3217
      %v3506 = vunpack.c.l.b16 %v3218
      %v3507 = vunpack.c.l.b16 %v3219
      %v3508 = vunpack.c.l.b16 %v3220
      %v3509 = vunpack.c.l.b16 %v3221
      %v3510 = vunpack.c.l.b16 %v3222
      %v3511 = vunpack.c.l.b16 %v3223
      %v3512 = vunpack.c.l.b16 %v3224
      %v3513 = vunpack.c.l.b16 %v3225
      %v3514 = vunpack.c.l.b16 %v3226
      %v3515 = vunpack.c.l.b16 %v3227
      %v3516 = vunpack.c.l.b16 %v3228
      %v3517 = vunpack.c.l.b16 %v3229
      %v3518 = vunpack.c.l.b16 %v3230
      %v3519 = vunpack.c.l.b16 %v3231
      %v3520 = vunpack.c.l.b16 %v3232
      %v3521 = vunpack.c.l.b16 %v3233
      %v3522 = vunpack.c.l.b16 %v3234
      %v3523 = vunpack.c.l.b16 %v3235
      %v3524 = vunpack.c.l.b16 %v3236
      %v3525 = vunpack.c.l.b16 %v3237
      %v3526 = vunpack.c.l.b16 %v3238
      %v3527 = vunpack.c.l.b16 %v3239
      %v3528 = vunpack.c.l.b16 %v3240
      %v3529 = vunpack.c.l.b16 %v3241
      %v3530 = vunpack.c.l.b16 %v3242
      %v3531 = vunpack.c.l.b16 %v3243
      %v3532 = vunpack.c.l.b16 %v3244
      %v3533 = vunpack.c.l.b16 %v3245
      %v3534 = vunpack.c.l.b16 %v3246
      %v3535 = vunpack.c.l.b16 %v3247
      %v3536 = vunpack.c.l.b16 %v3248
      %v3537 = vunpack.c.l.b16 %v3249
      %v3538 = vunpack.c.l.b16 %v3250
      %v3539 = vunpack.c.l.b16 %v3251
      %v3540 = vunpack.c.l.b16 %v3252
      %v3541 = vunpack.c.l.b16 %v3253
      %v3542 = vunpack.c.l.b16 %v3254
      %v3543 = vunpack.c.l.b16 %v3255
      %v3544 = vunpack.c.l.b16 %v3256
      %v3545 = vunpack.c.l.b16 %v3257
      %v3546 = vunpack.c.l.b16 %v3258
      %v3547 = vunpack.c.l.b16 %v3259
      %v3548 = vunpack.c.l.b16 %v3260
      %v3549 = vunpack.c.l.b16 %v3261
      %v3550 = vunpack.c.l.b16 %v3262
      %v3551 = vunpack.c.l.b16 %v3263
      %v3552 = vunpack.c.l.b16 %v3264
      %v3553 = vunpack.c.l.b16 %v3265
      %v3554 = vunpack.c.l.b16 %v3266
      %v3555 = vunpack.c.l.b16 %v3267
      %v3556 = vunpack.c.l.b16 %v3268
      %v3557 = vunpack.c.l.b16 %v3269
      %v3558 = vunpack.c.l.b16 %v3270
      %v3559 = vunpack.c.l.b16 %v3271
      %v3560 = vunpack.c.l.b16 %v3272
      %v3561 = vunpack.c.l.b16 %v3273
      %v3562 = vunpack.c.l.b16 %v3274
      %v3563 = vunpack.c.l.b16 %v3275
      %v3564 = vunpack.c.l.b16 %v3276
      %v3565 = vunpack.c.l.b16 %v3277
      %v3566 = vunpack.c.l.b16 %v3278
      %v3567 = vunpack.c.l.b16 %v3279
      %v3568 = vunpack.c.l.b16 %v3280
      %v3569 = vunpack.c.l.b16 %v3281
      %v3570 = vunpack.c.l.b16 %v3282
      %v3571 = vunpack.c.l.b16 %v3283
      %v3572 = vunpack.c.l.b16 %v3284
      %v3573 = vunpack.c.l.b16 %v3285
      %v3574 = vunpack.c.l.b16 %v3286
      %v3575 = vunpack.c.l.b16 %v3287
      %v3576 = vunpack.c.l.b16 %v3288
      %v3577 = vunpack.c.l.b16 %v3289
      %v3578 = vunpack.c.l.b16 %v3290
      %v3579 = vunpack.c.l.b16 %v3291
      %v3580 = vunpack.c.l.b16 %v3292
      %v3581 = vunpack.c.l.b16 %v3293
      %v3582 = vunpack.c.l.b16 %v3294
      %v3583 = vunpack.c.l.b16 %v3295
      %v3584 = vunpack.c.l.b16 %v3296
      %v3585 = vunpack.c.l.b16 %v3297
      %v3586 = vunpack.c.l.b16 %v3298
      %v3587 = vunpack.c.l.b16 %v3299
      %v3588 = vunpack.c.l.b16 %v3300
      %v3589 = vunpack.c.l.b16 %v3301
      %v3590 = vunpack.c.l.b16 %v3302
      %v3591 = vunpack.c.l.b16 %v3303
      %v3592 = vunpack.c.l.b16 %v3304
      %v3593 = vunpack.c.l.b16 %v3305
      %v3594 = vunpack.c.l.b16 %v3306
      %v3595 = vunpack.c.l.b16 %v3307
      %v3596 = vunpack.c.l.b16 %v3308
      %v3597 = vunpack.c.l.b16 %v3309
      %v3598 = vunpack.c.l.b16 %v3310
      %v3599 = vpack.c.b16 %v3456, %v3455
      %v3600 = vpack.c.b16 %v3458, %v3457
      %v3601 = vpack.c.b16 %v3460, %v3459
      %v3602 = vpack.c.b16 %v3462, %v3461
      %v3603 = vpack.c.b16 %v3464, %v3463
      %v3604 = vpack.c.b16 %v3466, %v3465
      %v3605 = vpack.c.b16 %v3468, %v3467
      %v3606 = vpack.c.b16 %v3470, %v3469
      %v3607 = vpack.c.b16 %v3472, %v3471
      %v3608 = vpack.c.b16 %v3474, %v3473
      %v3609 = vpack.c.b16 %v3476, %v3475
      %v3610 = vpack.c.b16 %v3478, %v3477
      %v3611 = vpack.c.b16 %v3480, %v3479
      %v3612 = vpack.c.b16 %v3482, %v3481
      %v3613 = vpack.c.b16 %v3484, %v3483
      %v3614 = vpack.c.b16 %v3486, %v3485
      %v3615 = vpack.c.b16 %v3488, %v3487
      %v3616 = vpack.c.b16 %v3490, %v3489
      %v3617 = vpack.c.b16 %v3492, %v3491
      %v3618 = vpack.c.b16 %v3494, %v3493
      %v3619 = vpack.c.b16 %v3496, %v3495
      %v3620 = vpack.c.b16 %v3498, %v3497
      %v3621 = vpack.c.b16 %v3500, %v3499
      %v3622 = vpack.c.b16 %v3502, %v3501
      %v3623 = vpack.c.b16 %v3504, %v3503
      %v3624 = vpack.c.b16 %v3506, %v3505
      %v3625 = vpack.c.b16 %v3508, %v3507
      %v3626 = vpack.c.b16 %v3510, %v3509
      %v3627 = vpack.c.b16 %v3512, %v3511
      %v3628 = vpack.c.b16 %v3514, %v3513
      %v3629 = vpack.c.b16 %v3516, %v3515
      %v3630 = vpack.c.b16 %v3518, %v3517
      %v3631 = vpack.c.b16 %v3520, %v3519
      %v3632 = vpack.c.b16 %v3522, %v3521
      %v3633 = vpack.c.b16 %v3524, %v3523
      %v3634 = vpack.c.b16 %v3526, %v3525
      %v3635 = vpack.c.b16 %v3528, %v3527
      %v3636 = vpack.c.b16 %v3530, %v3529
      %v3637 = vpack.c.b16 %v3532, %v3531
      %v3638 = vpack.c.b16 %v3534, %v3533
      %v3639 = vpack.c.b16 %v3536, %v3535
      %v3640 = vpack.c.b16 %v3538, %v3537
      %v3641 = vpack.c.b16 %v3540, %v3539
      %v3642 = vpack.c.b16 %v3542, %v3541
      %v3643 = vpack.c.b16 %v3544, %v3543
      %v3644 = vpack.c.b16 %v3546, %v3545
      %v3645 = vpack.c.b16 %v3548, %v3547
      %v3646 = vpack.c.b16 %v3550, %v3549
      %v3647 = vpack.c.b16 %v3552, %v3551
      %v3648 = vpack.c.b16 %v3554, %v3553
      %v3649 = vpack.c.b16 %v3556, %v3555
      %v3650 = vpack.c.b16 %v3558, %v3557
      %v3651 = vpack.c.b16 %v3560, %v3559
      %v3652 = vpack.c.b16 %v3562, %v3561
      %v3653 = vpack.c.b16 %v3564, %v3563
      %v3654 = vpack.c.b16 %v3566, %v3565
      %v3655 = vpack.c.b16 %v3568, %v3567
      %v3656 = vpack.c.b16 %v3570, %v3569
      %v3657 = vpack.c.b16 %v3572, %v3571
      %v3658 = vpack.c.b16 %v3574, %v3573
      %v3659 = vpack.c.b16 %v3576, %v3575
      %v3660 = vpack.c.b16 %v3578, %v3577
      %v3661 = vpack.c.b16 %v3580, %v3579
      %v3662 = vpack.c.b16 %v3582, %v3581
      %v3663 = vpack.c.b16 %v3584, %v3583
      %v3664 = vpack.c.b16 %v3586, %v3585
      %v3665 = vpack.c.b16 %v3588, %v3587
      %v3666 = vpack.c.b16 %v3590, %v3589
      %v3667 = vpack.c.b16 %v3592, %v3591
      %v3668 = vpack.c.b16 %v3594, %v3593
      %v3669 = vpack.c.b16 %v3596, %v3595
      %v3670 = vpack.c.b16 %v3598, %v3597
      %3743 = vmatprep.subr.bf16.mxu0 0
      %3744 = vmatpush1.bf16.msra.mxu0 %v3599
      %3745 = vmatprep.subr.bf16.mxu0 0
      %3746 = vmatpush1.bf16.msra.mxu0 %v3600
      %3747 = vmatprep.subr.bf16.mxu0 0
      %3748 = vmatpush1.bf16.msra.mxu0 %v3601
      %3749 = vmatprep.subr.bf16.mxu0 0
      %3750 = vmatpush1.bf16.msra.mxu0 %v3602
      %3751 = vmatprep.subr.bf16.mxu0 0
      %3752 = vmatpush1.bf16.msra.mxu0 %v3603
      %3753 = vmatprep.subr.bf16.mxu0 0
      %3754 = vmatpush1.bf16.msra.mxu0 %v3604
      %3755 = vmatprep.subr.bf16.mxu0 0
      %3756 = vmatpush1.bf16.msra.mxu0 %v3605
      %3757 = vmatprep.subr.bf16.mxu0 0
      %3758 = vmatpush1.bf16.msra.mxu0 %v3606
      %3759 = vmatprep.subr.bf16.mxu0 0
      %3760 = vmatpush1.bf16.msra.mxu0 %v3607
      %3761 = vmatprep.subr.bf16.mxu0 0
      %3762 = vmatpush1.bf16.msra.mxu0 %v3608
      %3763 = vmatprep.subr.bf16.mxu0 0
      %3764 = vmatpush1.bf16.msra.mxu0 %v3609
      %3765 = vmatprep.subr.bf16.mxu0 0
      %3766 = vmatpush1.bf16.msra.mxu0 %v3610
      %3767 = vmatprep.subr.bf16.mxu0 0
      %3768 = vmatpush1.bf16.msra.mxu0 %v3611
      %3769 = vmatprep.subr.bf16.mxu0 0
      %3770 = vmatpush1.bf16.msra.mxu0 %v3612
      %3771 = vmatprep.subr.bf16.mxu0 0
      %3772 = vmatpush1.bf16.msra.mxu0 %v3613
      %3773 = vmatprep.subr.bf16.mxu0 0
      %3774 = vmatpush1.bf16.msra.mxu0 %v3614
      %3775 = vmatprep.mubr.bf16.mxu0 %v3024
      %3776 = vmatmul.mubr.bf16.gmra.mrb[0].mxu0 %v3023
      %v3777 = vpop.f32.mrb[0].mxu0
      %v3778 = vadd.f32 0.0, %v3777
      %v3779 = vpop.f32.mrb[0].mxu0
      %v3780 = vpop.f32.mrb[0].mxu0
      %v3781 = vadd.f32 0.0, %v3780
      %v3782 = vpop.f32.mrb[0].mxu0
      %3783 = vmatprep.mubr.bf16.mxu0 %v3033
      %3784 = vmatmul.mubr.bf16.gmra.mrb[0].mxu0 %v3032
      %v3785 = vpop.f32.mrb[0].mxu0
      %v3786 = vadd.f32 0.0, %v3785
      %v3787 = vpop.f32.mrb[0].mxu0
      %v3788 = vpop.f32.mrb[0].mxu0
      %v3789 = vadd.f32 0.0, %v3788
      %v3790 = vpop.f32.mrb[0].mxu0
      %3791 = vmatprep.mubr.bf16.mxu0 %v3042
      %3792 = vmatmul.mubr.bf16.gmra.mrb[0].mxu0 %v3041
      %v3793 = vpop.f32.mrb[0].mxu0
      %v3794 = vadd.f32 0.0, %v3793
      %v3795 = vpop.f32.mrb[0].mxu0
      %v3796 = vpop.f32.mrb[0].mxu0
      %v3797 = vadd.f32 0.0, %v3796
      %v3798 = vpop.f32.mrb[0].mxu0
      %3799 = vmatprep.mubr.bf16.mxu0 %v3051
      %3800 = vmatmul.mubr.bf16.gmra.mrb[0].mxu0 %v3050
      %v3801 = vpop.f32.mrb[0].mxu0
      %v3802 = vadd.f32 0.0, %v3801
      %v3803 = vpop.f32.mrb[0].mxu0
      %v3804 = vpop.f32.mrb[0].mxu0
      %v3805 = vadd.f32 0.0, %v3804
      %v3806 = vpop.f32.mrb[0].mxu0
      %3807 = vmatprep.mubr.bf16.mxu0 %v3060
      %3808 = vmatmul.mubr.bf16.gmra.mrb[0].mxu0 %v3059
      %v3809 = vpop.f32.mrb[0].mxu0
      %v3810 = vadd.f32 0.0, %v3809
      %v3811 = vpop.f32.mrb[0].mxu0
      %v3812 = vpop.f32.mrb[0].mxu0
      %v3813 = vadd.f32 0.0, %v3812
      %v3814 = vpop.f32.mrb[0].mxu0
      %3815 = vmatprep.mubr.bf16.mxu0 %v3069
      %3816 = vmatmul.mubr.bf16.gmra.mrb[0].mxu0 %v3068
      %v3817 = vpop.f32.mrb[0].mxu0
      %v3818 = vadd.f32 0.0, %v3817
      %v3819 = vpop.f32.mrb[0].mxu0
      %v3820 = vpop.f32.mrb[0].mxu0
      %v3821 = vadd.f32 0.0, %v3820
      %v3822 = vpop.f32.mrb[0].mxu0
      %3823 = vmatprep.mubr.bf16.mxu0 %v3078
      %3824 = vmatmul.mubr.bf16.gmra.mrb[0].mxu0 %v3077
      %v3825 = vpop.f32.mrb[0].mxu0
      %v3826 = vadd.f32 0.0, %v3825
      %v3827 = vpop.f32.mrb[0].mxu0
      %v3828 = vpop.f32.mrb[0].mxu0
      %v3829 = vadd.f32 0.0, %v3828
      %v3830 = vpop.f32.mrb[0].mxu0
      %3831 = vmatprep.mubr.bf16.mxu0 %v3087
      %3832 = vmatmul.mubr.bf16.gmra.mrb[0].mxu0 %v3086
      %v3833 = vpop.f32.mrb[0].mxu0
      %v3834 = vadd.f32 0.0, %v3833
      %v3835 = vpop.f32.mrb[0].mxu0
      %v3836 = vpop.f32.mrb[0].mxu0
      %v3837 = vadd.f32 0.0, %v3836
      %v3838 = vpop.f32.mrb[0].mxu0
      %3839 = vmatprep.mubr.bf16.mxu0 %v3096
      %3840 = vmatmul.mubr.bf16.gmra.mrb[0].mxu0 %v3095
      %v3841 = vpop.f32.mrb[0].mxu0
      %v3842 = vadd.f32 0.0, %v3841
      %v3843 = vpop.f32.mrb[0].mxu0
      %v3844 = vpop.f32.mrb[0].mxu0
      %v3845 = vadd.f32 0.0, %v3844
      %v3846 = vpop.f32.mrb[0].mxu0
      %3847 = vmatprep.mubr.bf16.mxu0 %v3105
      %3848 = vmatmul.mubr.bf16.gmra.mrb[0].mxu0 %v3104
      %v3849 = vpop.f32.mrb[0].mxu0
      %v3850 = vadd.f32 0.0, %v3849
      %v3851 = vpop.f32.mrb[0].mxu0
      %v3852 = vpop.f32.mrb[0].mxu0
      %v3853 = vadd.f32 0.0, %v3852
      %v3854 = vpop.f32.mrb[0].mxu0
      %3855 = vmatprep.mubr.bf16.mxu0 %v3114
      %3856 = vmatmul.mubr.bf16.gmra.mrb[0].mxu0 %v3113
      %v3857 = vpop.f32.mrb[0].mxu0
      %v3858 = vadd.f32 0.0, %v3857
      %v3859 = vpop.f32.mrb[0].mxu0
      %v3860 = vpop.f32.mrb[0].mxu0
      %v3861 = vadd.f32 0.0, %v3860
      %v3862 = vpop.f32.mrb[0].mxu0
      %3863 = vmatprep.mubr.bf16.mxu0 %v3123
      %3864 = vmatmul.mubr.bf16.gmra.mrb[0].mxu0 %v3122
      %v3865 = vpop.f32.mrb[0].mxu0
      %v3866 = vadd.f32 0.0, %v3865
      %v3867 = vpop.f32.mrb[0].mxu0
      %v3868 = vpop.f32.mrb[0].mxu0
      %v3869 = vadd.f32 0.0, %v3868
      %v3870 = vpop.f32.mrb[0].mxu0
      %3871 = vmatprep.mubr.bf16.mxu0 %v3132
      %3872 = vmatmul.mubr.bf16.gmra.mrb[0].mxu0 %v3131
      %v3873 = vpop.f32.mrb[0].mxu0
      %v3874 = vadd.f32 0.0, %v3873
      %v3875 = vpop.f32.mrb[0].mxu0
      %v3876 = vpop.f32.mrb[0].mxu0
      %v3877 = vadd.f32 0.0, %v3876
      %v3878 = vpop.f32.mrb[0].mxu0
      %3879 = vmatprep.mubr.bf16.mxu0 %v3141
      %3880 = vmatmul.mubr.bf16.gmra.mrb[0].mxu0 %v3140
      %v3881 = vpop.f32.mrb[0].mxu0
      %v3882 = vadd.f32 0.0, %v3881
      %v3883 = vpop.f32.mrb[0].mxu0
      %v3884 = vpop.f32.mrb[0].mxu0
      %v3885 = vadd.f32 0.0, %v3884
      %v3886 = vpop.f32.mrb[0].mxu0
      %3887 = vmatprep.mubr.bf16.mxu0 %v3150
      %3888 = vmatmul.mubr.bf16.gmra.mrb[0].mxu0 %v3149
      %v3889 = vpop.f32.mrb[0].mxu0
      %v3890 = vadd.f32 0.0, %v3889
      %v3891 = vpop.f32.mrb[0].mxu0
      %v3892 = vpop.f32.mrb[0].mxu0
      %v3893 = vadd.f32 0.0, %v3892
      %v3894 = vpop.f32.mrb[0].mxu0
      %3895 = vmatprep.mubr.bf16.mxu0 %v3159
      %3896 = vmatmul.mubr.bf16.gmra.mrb[0].mxu0 %v3158
      %v3897 = vpop.f32.mrb[0].mxu0
      %v3898 = vadd.f32 0.0, %v3897
      %v3899 = vpop.f32.mrb[0].mxu0
      %v3900 = vpop.f32.mrb[0].mxu0
      %v3901 = vadd.f32 0.0, %v3900
      %v3902 = vpop.f32.mrb[0].mxu0
      %3903 = vdwg.mxu0
      %3904 = vmatprep.subr.bf16.mxu0 0
      %3905 = vmatpush1.bf16.msra.mxu0 %v3615
      %3906 = vmatprep.subr.bf16.mxu0 0
      %3907 = vmatpush1.bf16.msra.mxu0 %v3616
      %3908 = vmatprep.subr.bf16.mxu0 0
      %3909 = vmatpush1.bf16.msra.mxu0 %v3617
      %3910 = vmatprep.subr.bf16.mxu0 0
      %3911 = vmatpush1.bf16.msra.mxu0 %v3618
      %3912 = vmatprep.subr.bf16.mxu0 0
      %3913 = vmatpush1.bf16.msra.mxu0 %v3619
      %3914 = vmatprep.subr.bf16.mxu0 0
      %3915 = vmatpush1.bf16.msra.mxu0 %v3620
      %3916 = vmatprep.subr.bf16.mxu0 0
      %3917 = vmatpush1.bf16.msra.mxu0 %v3621
      %3918 = vmatprep.subr.bf16.mxu0 0
      %3919 = vmatpush1.bf16.msra.mxu0 %v3622
      %3920 = vmatprep.subr.bf16.mxu0 0
      %3921 = vmatpush1.bf16.msra.mxu0 %v3623
      %3922 = vmatprep.subr.bf16.mxu0 0
      %3923 = vmatpush1.bf16.msra.mxu0 %v3624
      %3924 = vmatprep.subr.bf16.mxu0 0
      %3925 = vmatpush1.bf16.msra.mxu0 %v3625
      %3926 = vmatprep.subr.bf16.mxu0 0
      %3927 = vmatpush1.bf16.msra.mxu0 %v3626
      %3928 = vmatprep.subr.bf16.mxu0 0
      %3929 = vmatpush1.bf16.msra.mxu0 %v3627
      %3930 = vmatprep.subr.bf16.mxu0 0
      %3931 = vmatpush1.bf16.msra.mxu0 %v3628
      %3932 = vmatprep.subr.bf16.mxu0 0
      %3933 = vmatpush1.bf16.msra.mxu0 %v3629
      %3934 = vmatprep.subr.bf16.mxu0 0
      %3935 = vmatpush1.bf16.msra.mxu0 %v3630
      %3936 = vmatprep.mubr.bf16.mxu0 %v3026
      %3937 = vmatmul.mubr.bf16.gmra.mrb[0].mxu0 %v3025
      %v3938 = vpop.f32.mrb[0].mxu0
      %v3939 = vadd.f32 %v3778, %v3938
      %v3940 = vpop.f32.mrb[0].mxu0
      %v3941 = vpop.f32.mrb[0].mxu0
      %v3942 = vadd.f32 %v3781, %v3941
      %v3943 = vpop.f32.mrb[0].mxu0
      %3944 = vmatprep.mubr.bf16.mxu0 %v3035
      %3945 = vmatmul.mubr.bf16.gmra.mrb[0].mxu0 %v3034
      %v3946 = vpop.f32.mrb[0].mxu0
      %v3947 = vadd.f32 %v3786, %v3946
      %v3948 = vpop.f32.mrb[0].mxu0
      %v3949 = vpop.f32.mrb[0].mxu0
      %v3950 = vadd.f32 %v3789, %v3949
      %v3951 = vpop.f32.mrb[0].mxu0
      %3952 = vmatprep.mubr.bf16.mxu0 %v3044
      %3953 = vmatmul.mubr.bf16.gmra.mrb[0].mxu0 %v3043
      %v3954 = vpop.f32.mrb[0].mxu0
      %v3955 = vadd.f32 %v3794, %v3954
      %v3956 = vpop.f32.mrb[0].mxu0
      %v3957 = vpop.f32.mrb[0].mxu0
      %v3958 = vadd.f32 %v3797, %v3957
      %v3959 = vpop.f32.mrb[0].mxu0
      %3960 = vmatprep.mubr.bf16.mxu0 %v3053
      %3961 = vmatmul.mubr.bf16.gmra.mrb[0].mxu0 %v3052
      %v3962 = vpop.f32.mrb[0].mxu0
      %v3963 = vadd.f32 %v3802, %v3962
      %v3964 = vpop.f32.mrb[0].mxu0
      %v3965 = vpop.f32.mrb[0].mxu0
      %v3966 = vadd.f32 %v3805, %v3965
      %v3967 = vpop.f32.mrb[0].mxu0
      %3968 = vmatprep.mubr.bf16.mxu0 %v3062
      %3969 = vmatmul.mubr.bf16.gmra.mrb[0].mxu0 %v3061
      %v3970 = vpop.f32.mrb[0].mxu0
      %v3971 = vadd.f32 %v3810, %v3970
      %v3972 = vpop.f32.mrb[0].mxu0
      %v3973 = vpop.f32.mrb[0].mxu0
      %v3974 = vadd.f32 %v3813, %v3973
      %v3975 = vpop.f32.mrb[0].mxu0
      %3976 = vmatprep.mubr.bf16.mxu0 %v3071
      %3977 = vmatmul.mubr.bf16.gmra.mrb[0].mxu0 %v3070
      %v3978 = vpop.f32.mrb[0].mxu0
      %v3979 = vadd.f32 %v3818, %v3978
      %v3980 = vpop.f32.mrb[0].mxu0
      %v3981 = vpop.f32.mrb[0].mxu0
      %v3982 = vadd.f32 %v3821, %v3981
      %v3983 = vpop.f32.mrb[0].mxu0
      %3984 = vmatprep.mubr.bf16.mxu0 %v3080
      %3985 = vmatmul.mubr.bf16.gmra.mrb[0].mxu0 %v3079
      %v3986 = vpop.f32.mrb[0].mxu0
      %v3987 = vadd.f32 %v3826, %v3986
      %v3988 = vpop.f32.mrb[0].mxu0
      %v3989 = vpop.f32.mrb[0].mxu0
      %v3990 = vadd.f32 %v3829, %v3989
      %v3991 = vpop.f32.mrb[0].mxu0
      %3992 = vmatprep.mubr.bf16.mxu0 %v3089
      %3993 = vmatmul.mubr.bf16.gmra.mrb[0].mxu0 %v3088
      %v3994 = vpop.f32.mrb[0].mxu0
      %v3995 = vadd.f32 %v3834, %v3994
      %v3996 = vpop.f32.mrb[0].mxu0
      %v3997 = vpop.f32.mrb[0].mxu0
      %v3998 = vadd.f32 %v3837, %v3997
      %v3999 = vpop.f32.mrb[0].mxu0
      %4000 = vmatprep.mubr.bf16.mxu0 %v3098
      %4001 = vmatmul.mubr.bf16.gmra.mrb[0].mxu0 %v3097
      %v4002 = vpop.f32.mrb[0].mxu0
      %v4003 = vadd.f32 %v3842, %v4002
      %v4004 = vpop.f32.mrb[0].mxu0
      %v4005 = vpop.f32.mrb[0].mxu0
      %v4006 = vadd.f32 %v3845, %v4005
      %v4007 = vpop.f32.mrb[0].mxu0
      %4008 = vmatprep.mubr.bf16.mxu0 %v3107
      %4009 = vmatmul.mubr.bf16.gmra.mrb[0].mxu0 %v3106
      %v4010 = vpop.f32.mrb[0].mxu0
      %v4011 = vadd.f32 %v3850, %v4010
      %v4012 = vpop.f32.mrb[0].mxu0
      %v4013 = vpop.f32.mrb[0].mxu0
      %v4014 = vadd.f32 %v3853, %v4013
      %v4015 = vpop.f32.mrb[0].mxu0
      %4016 = vmatprep.mubr.bf16.mxu0 %v3116
      %4017 = vmatmul.mubr.bf16.gmra.mrb[0].mxu0 %v3115
      %v4018 = vpop.f32.mrb[0].mxu0
      %v4019 = vadd.f32 %v3858, %v4018
      %v4020 = vpop.f32.mrb[0].mxu0
      %v4021 = vpop.f32.mrb[0].mxu0
      %v4022 = vadd.f32 %v3861, %v4021
      %v4023 = vpop.f32.mrb[0].mxu0
      %4024 = vmatprep.mubr.bf16.mxu0 %v3125
      %4025 = vmatmul.mubr.bf16.gmra.mrb[0].mxu0 %v3124
      %v4026 = vpop.f32.mrb[0].mxu0
      %v4027 = vadd.f32 %v3866, %v4026
      %v4028 = vpop.f32.mrb[0].mxu0
      %v4029 = vpop.f32.mrb[0].mxu0
      %v4030 = vadd.f32 %v3869, %v4029
      %v4031 = vpop.f32.mrb[0].mxu0
      %4032 = vmatprep.mubr.bf16.mxu0 %v3134
      %4033 = vmatmul.mubr.bf16.gmra.mrb[0].mxu0 %v3133
      %v4034 = vpop.f32.mrb[0].mxu0
      %v4035 = vadd.f32 %v3874, %v4034
      %v4036 = vpop.f32.mrb[0].mxu0
      %v4037 = vpop.f32.mrb[0].mxu0
      %v4038 = vadd.f32 %v3877, %v4037
      %v4039 = vpop.f32.mrb[0].mxu0
      %4040 = vmatprep.mubr.bf16.mxu0 %v3143
      %4041 = vmatmul.mubr.bf16.gmra.mrb[0].mxu0 %v3142
      %v4042 = vpop.f32.mrb[0].mxu0
      %v4043 = vadd.f32 %v3882, %v4042
      %v4044 = vpop.f32.mrb[0].mxu0
      %v4045 = vpop.f32.mrb[0].mxu0
      %v4046 = vadd.f32 %v3885, %v4045
      %v4047 = vpop.f32.mrb[0].mxu0
      %4048 = vmatprep.mubr.bf16.mxu0 %v3152
      %4049 = vmatmul.mubr.bf16.gmra.mrb[0].mxu0 %v3151
      %v4050 = vpop.f32.mrb[0].mxu0
      %v4051 = vadd.f32 %v3890, %v4050
      %v4052 = vpop.f32.mrb[0].mxu0
      %v4053 = vpop.f32.mrb[0].mxu0
      %v4054 = vadd.f32 %v3893, %v4053
      %v4055 = vpop.f32.mrb[0].mxu0
      %4056 = vmatprep.mubr.bf16.mxu0 %v3161
      %4057 = vmatmul.mubr.bf16.gmra.mrb[0].mxu0 %v3160
      %v4058 = vpop.f32.mrb[0].mxu0
      %v4059 = vadd.f32 %v3898, %v4058
      %v4060 = vpop.f32.mrb[0].mxu0
      %v4061 = vpop.f32.mrb[0].mxu0
      %v4062 = vadd.f32 %v3901, %v4061
      %v4063 = vpop.f32.mrb[0].mxu0
      %4064 = vdwg.mxu0
      %4065 = vmatprep.subr.bf16.mxu0 0
      %4066 = vmatpush1.bf16.msra.mxu0 %v3631
      %4067 = vmatprep.subr.bf16.mxu0 0
      %4068 = vmatpush1.bf16.msra.mxu0 %v3632
      %4069 = vmatprep.subr.bf16.mxu0 0
      %4070 = vmatpush1.bf16.msra.mxu0 %v3633
      %4071 = vmatprep.subr.bf16.mxu0 0
      %4072 = vmatpush1.bf16.msra.mxu0 %v3634
      %4073 = vmatprep.subr.bf16.mxu0 0
      %4074 = vmatpush1.bf16.msra.mxu0 %v3635
      %4075 = vmatprep.subr.bf16.mxu0 0
      %4076 = vmatpush1.bf16.msra.mxu0 %v3636
      %4077 = vmatprep.subr.bf16.mxu0 0
      %4078 = vmatpush1.bf16.msra.mxu0 %v3637
      %4079 = vmatprep.subr.bf16.mxu0 0
      %4080 = vmatpush1.bf16.msra.mxu0 %v3638
      %4081 = vmatprep.subr.bf16.mxu0 0
      %4082 = vmatpush1.bf16.msra.mxu0 %v3639
      %4083 = vmatprep.subr.bf16.mxu0 0
      %4084 = vmatpush1.bf16.msra.mxu0 %v3640
      %4085 = vmatprep.subr.bf16.mxu0 0
      %4086 = vmatpush1.bf16.msra.mxu0 %v3641
      %4087 = vmatprep.subr.bf16.mxu0 0
      %4088 = vmatpush1.bf16.msra.mxu0 %v3642
      %4089 = vmatprep.subr.bf16.mxu0 0
      %4090 = vmatpush1.bf16.msra.mxu0 %v3643
      %4091 = vmatprep.subr.bf16.mxu0 0
      %4092 = vmatpush1.bf16.msra.mxu0 %v3644
      %4093 = vmatprep.subr.bf16.mxu0 0
      %4094 = vmatpush1.bf16.msra.mxu0 %v3645
      %4095 = vmatprep.subr.bf16.mxu0 0
      %4096 = vmatpush1.bf16.msra.mxu0 %v3646
      %4097 = vmatprep.mubr.bf16.mxu0 %v3028
      %4098 = vmatmul.mubr.bf16.gmra.mrb[0].mxu0 %v3027
      %v4099 = vpop.f32.mrb[0].mxu0
      %v4100 = vadd.f32 %v3939, %v4099
      %v4101 = vpop.f32.mrb[0].mxu0
      %v4102 = vpop.f32.mrb[0].mxu0
      %v4103 = vadd.f32 %v3942, %v4102
      %v4104 = vpop.f32.mrb[0].mxu0
      %4105 = vmatprep.mubr.bf16.mxu0 %v3037
      %4106 = vmatmul.mubr.bf16.gmra.mrb[0].mxu0 %v3036
      %v4107 = vpop.f32.mrb[0].mxu0
      %v4108 = vadd.f32 %v3947, %v4107
      %v4109 = vpop.f32.mrb[0].mxu0
      %v4110 = vpop.f32.mrb[0].mxu0
      %v4111 = vadd.f32 %v3950, %v4110
      %v4112 = vpop.f32.mrb[0].mxu0
      %4113 = vmatprep.mubr.bf16.mxu0 %v3046
      %4114 = vmatmul.mubr.bf16.gmra.mrb[0].mxu0 %v3045
      %v4115 = vpop.f32.mrb[0].mxu0
      %v4116 = vadd.f32 %v3955, %v4115
      %v4117 = vpop.f32.mrb[0].mxu0
      %v4118 = vpop.f32.mrb[0].mxu0
      %v4119 = vadd.f32 %v3958, %v4118
      %v4120 = vpop.f32.mrb[0].mxu0
      %4121 = vmatprep.mubr.bf16.mxu0 %v3055
      %4122 = vmatmul.mubr.bf16.gmra.mrb[0].mxu0 %v3054
      %v4123 = vpop.f32.mrb[0].mxu0
      %v4124 = vadd.f32 %v3963, %v4123
      %v4125 = vpop.f32.mrb[0].mxu0
      %v4126 = vpop.f32.mrb[0].mxu0
      %v4127 = vadd.f32 %v3966, %v4126
      %v4128 = vpop.f32.mrb[0].mxu0
      %4129 = vmatprep.mubr.bf16.mxu0 %v3064
      %4130 = vmatmul.mubr.bf16.gmra.mrb[0].mxu0 %v3063
      %v4131 = vpop.f32.mrb[0].mxu0
      %v4132 = vadd.f32 %v3971, %v4131
      %v4133 = vpop.f32.mrb[0].mxu0
      %v4134 = vpop.f32.mrb[0].mxu0
      %v4135 = vadd.f32 %v3974, %v4134
      %v4136 = vpop.f32.mrb[0].mxu0
      %4137 = vmatprep.mubr.bf16.mxu0 %v3073
      %4138 = vmatmul.mubr.bf16.gmra.mrb[0].mxu0 %v3072
      %v4139 = vpop.f32.mrb[0].mxu0
      %v4140 = vadd.f32 %v3979, %v4139
      %v4141 = vpop.f32.mrb[0].mxu0
      %v4142 = vpop.f32.mrb[0].mxu0
      %v4143 = vadd.f32 %v3982, %v4142
      %v4144 = vpop.f32.mrb[0].mxu0
      %4145 = vmatprep.mubr.bf16.mxu0 %v3082
      %4146 = vmatmul.mubr.bf16.gmra.mrb[0].mxu0 %v3081
      %v4147 = vpop.f32.mrb[0].mxu0
      %v4148 = vadd.f32 %v3987, %v4147
      %v4149 = vpop.f32.mrb[0].mxu0
      %v4150 = vpop.f32.mrb[0].mxu0
      %v4151 = vadd.f32 %v3990, %v4150
      %v4152 = vpop.f32.mrb[0].mxu0
      %4153 = vmatprep.mubr.bf16.mxu0 %v3091
      %4154 = vmatmul.mubr.bf16.gmra.mrb[0].mxu0 %v3090
      %v4155 = vpop.f32.mrb[0].mxu0
      %v4156 = vadd.f32 %v3995, %v4155
      %v4157 = vpop.f32.mrb[0].mxu0
      %v4158 = vpop.f32.mrb[0].mxu0
      %v4159 = vadd.f32 %v3998, %v4158
      %v4160 = vpop.f32.mrb[0].mxu0
      %4161 = vmatprep.mubr.bf16.mxu0 %v3100
      %4162 = vmatmul.mubr.bf16.gmra.mrb[0].mxu0 %v3099
      %v4163 = vpop.f32.mrb[0].mxu0
      %v4164 = vadd.f32 %v4003, %v4163
      %v4165 = vpop.f32.mrb[0].mxu0
      %v4166 = vpop.f32.mrb[0].mxu0
      %v4167 = vadd.f32 %v4006, %v4166
      %v4168 = vpop.f32.mrb[0].mxu0
      %4169 = vmatprep.mubr.bf16.mxu0 %v3109
      %4170 = vmatmul.mubr.bf16.gmra.mrb[0].mxu0 %v3108
      %v4171 = vpop.f32.mrb[0].mxu0
      %v4172 = vadd.f32 %v4011, %v4171
      %v4173 = vpop.f32.mrb[0].mxu0
      %v4174 = vpop.f32.mrb[0].mxu0
      %v4175 = vadd.f32 %v4014, %v4174
      %v4176 = vpop.f32.mrb[0].mxu0
      %4177 = vmatprep.mubr.bf16.mxu0 %v3118
      %4178 = vmatmul.mubr.bf16.gmra.mrb[0].mxu0 %v3117
      %v4179 = vpop.f32.mrb[0].mxu0
      %v4180 = vadd.f32 %v4019, %v4179
      %v4181 = vpop.f32.mrb[0].mxu0
      %v4182 = vpop.f32.mrb[0].mxu0
      %v4183 = vadd.f32 %v4022, %v4182
      %v4184 = vpop.f32.mrb[0].mxu0
      %4185 = vmatprep.mubr.bf16.mxu0 %v3127
      %4186 = vmatmul.mubr.bf16.gmra.mrb[0].mxu0 %v3126
      %v4187 = vpop.f32.mrb[0].mxu0
      %v4188 = vadd.f32 %v4027, %v4187
      %v4189 = vpop.f32.mrb[0].mxu0
      %v4190 = vpop.f32.mrb[0].mxu0
      %v4191 = vadd.f32 %v4030, %v4190
      %v4192 = vpop.f32.mrb[0].mxu0
      %4193 = vmatprep.mubr.bf16.mxu0 %v3136
      %4194 = vmatmul.mubr.bf16.gmra.mrb[0].mxu0 %v3135
      %v4195 = vpop.f32.mrb[0].mxu0
      %v4196 = vadd.f32 %v4035, %v4195
      %v4197 = vpop.f32.mrb[0].mxu0
      %v4198 = vpop.f32.mrb[0].mxu0
      %v4199 = vadd.f32 %v4038, %v4198
      %v4200 = vpop.f32.mrb[0].mxu0
      %4201 = vmatprep.mubr.bf16.mxu0 %v3145
      %4202 = vmatmul.mubr.bf16.gmra.mrb[0].mxu0 %v3144
      %v4203 = vpop.f32.mrb[0].mxu0
      %v4204 = vadd.f32 %v4043, %v4203
      %v4205 = vpop.f32.mrb[0].mxu0
      %v4206 = vpop.f32.mrb[0].mxu0
      %v4207 = vadd.f32 %v4046, %v4206
      %v4208 = vpop.f32.mrb[0].mxu0
      %4209 = vmatprep.mubr.bf16.mxu0 %v3154
      %4210 = vmatmul.mubr.bf16.gmra.mrb[0].mxu0 %v3153
      %v4211 = vpop.f32.mrb[0].mxu0
      %v4212 = vadd.f32 %v4051, %v4211
      %v4213 = vpop.f32.mrb[0].mxu0
      %v4214 = vpop.f32.mrb[0].mxu0
      %v4215 = vadd.f32 %v4054, %v4214
      %v4216 = vpop.f32.mrb[0].mxu0
      %4217 = vmatprep.mubr.bf16.mxu0 %v3163
      %4218 = vmatmul.mubr.bf16.gmra.mrb[0].mxu0 %v3162
      %v4219 = vpop.f32.mrb[0].mxu0
      %v4220 = vadd.f32 %v4059, %v4219
      %v4221 = vpop.f32.mrb[0].mxu0
      %v4222 = vpop.f32.mrb[0].mxu0
      %v4223 = vadd.f32 %v4062, %v4222
      %v4224 = vpop.f32.mrb[0].mxu0
      %4225 = vdwg.mxu0
      %4226 = vmatprep.subr.bf16.mxu0 0
      %4227 = vmatpush1.bf16.msra.mxu0 %v3647
      %4228 = vmatprep.subr.bf16.mxu0 0
      %4229 = vmatpush1.bf16.msra.mxu0 %v3648
      %4230 = vmatprep.subr.bf16.mxu0 0
      %4231 = vmatpush1.bf16.msra.mxu0 %v3649
      %4232 = vmatprep.subr.bf16.mxu0 0
      %4233 = vmatpush1.bf16.msra.mxu0 %v3650
      %4234 = vmatprep.subr.bf16.mxu0 0
      %4235 = vmatpush1.bf16.msra.mxu0 %v3651
      %4236 = vmatprep.subr.bf16.mxu0 0
      %4237 = vmatpush1.bf16.msra.mxu0 %v3652
      %4238 = vmatprep.subr.bf16.mxu0 0
      %4239 = vmatpush1.bf16.msra.mxu0 %v3653
      %4240 = vmatprep.subr.bf16.mxu0 0
      %4241 = vmatpush1.bf16.msra.mxu0 %v3654
      %4242 = vmatprep.subr.bf16.mxu0 0
      %4243 = vmatpush1.bf16.msra.mxu0 %v3655
      %4244 = vmatprep.subr.bf16.mxu0 0
      %4245 = vmatpush1.bf16.msra.mxu0 %v3656
      %4246 = vmatprep.subr.bf16.mxu0 0
      %4247 = vmatpush1.bf16.msra.mxu0 %v3657
      %4248 = vmatprep.subr.bf16.mxu0 0
      %4249 = vmatpush1.bf16.msra.mxu0 %v3658
      %4250 = vmatprep.subr.bf16.mxu0 0
      %4251 = vmatpush1.bf16.msra.mxu0 %v3659
      %4252 = vmatprep.subr.bf16.mxu0 0
      %4253 = vmatpush1.bf16.msra.mxu0 %v3660
      %4254 = vmatprep.subr.bf16.mxu0 0
      %4255 = vmatpush1.bf16.msra.mxu0 %v3661
      %4256 = vmatprep.subr.bf16.mxu0 0
      %4257 = vmatpush1.bf16.msra.mxu0 %v3662
      %4258 = vmatprep.mubr.bf16.mxu0 %v3030
      %4259 = vmatmul.mubr.bf16.gmra.mrb[0].mxu0 %v3029
      %v4260 = vpop.f32.mrb[0].mxu0
      %v4261 = vadd.f32 %v4100, %v4260
      %v4262 = vpop.f32.mrb[0].mxu0
      %v4263 = vpop.f32.mrb[0].mxu0
      %v4264 = vadd.f32 %v4103, %v4263
      %v4265 = vpop.f32.mrb[0].mxu0
      %4266 = vmatprep.mubr.bf16.mxu0 %v3039
      %4267 = vmatmul.mubr.bf16.gmra.mrb[0].mxu0 %v3038
      %v4268 = vpop.f32.mrb[0].mxu0
      %v4269 = vadd.f32 %v4108, %v4268
      %v4270 = vpop.f32.mrb[0].mxu0
      %v4271 = vpop.f32.mrb[0].mxu0
      %v4272 = vadd.f32 %v4111, %v4271
      %v4273 = vpop.f32.mrb[0].mxu0
      %4274 = vmatprep.mubr.bf16.mxu0 %v3048
      %4275 = vmatmul.mubr.bf16.gmra.mrb[0].mxu0 %v3047
      %v4276 = vpop.f32.mrb[0].mxu0
      %v4277 = vadd.f32 %v4116, %v4276
      %v4278 = vpop.f32.mrb[0].mxu0
      %v4279 = vpop.f32.mrb[0].mxu0
      %v4280 = vadd.f32 %v4119, %v4279
      %v4281 = vpop.f32.mrb[0].mxu0
      %4282 = vmatprep.mubr.bf16.mxu0 %v3057
      %4283 = vmatmul.mubr.bf16.gmra.mrb[0].mxu0 %v3056
      %v4284 = vpop.f32.mrb[0].mxu0
      %v4285 = vadd.f32 %v4124, %v4284
      %v4286 = vpop.f32.mrb[0].mxu0
      %v4287 = vpop.f32.mrb[0].mxu0
      %v4288 = vadd.f32 %v4127, %v4287
      %v4289 = vpop.f32.mrb[0].mxu0
      %4290 = vmatprep.mubr.bf16.mxu0 %v3066
      %4291 = vmatmul.mubr.bf16.gmra.mrb[0].mxu0 %v3065
      %v4292 = vpop.f32.mrb[0].mxu0
      %v4293 = vadd.f32 %v4132, %v4292
      %v4294 = vpop.f32.mrb[0].mxu0
      %v4295 = vpop.f32.mrb[0].mxu0
      %v4296 = vadd.f32 %v4135, %v4295
      %v4297 = vpop.f32.mrb[0].mxu0
      %4298 = vmatprep.mubr.bf16.mxu0 %v3075
      %4299 = vmatmul.mubr.bf16.gmra.mrb[0].mxu0 %v3074
      %v4300 = vpop.f32.mrb[0].mxu0
      %v4301 = vadd.f32 %v4140, %v4300
      %v4302 = vpop.f32.mrb[0].mxu0
      %v4303 = vpop.f32.mrb[0].mxu0
      %v4304 = vadd.f32 %v4143, %v4303
      %v4305 = vpop.f32.mrb[0].mxu0
      %4306 = vmatprep.mubr.bf16.mxu0 %v3084
      %4307 = vmatmul.mubr.bf16.gmra.mrb[0].mxu0 %v3083
      %v4308 = vpop.f32.mrb[0].mxu0
      %v4309 = vadd.f32 %v4148, %v4308
      %v4310 = vpop.f32.mrb[0].mxu0
      %v4311 = vpop.f32.mrb[0].mxu0
      %v4312 = vadd.f32 %v4151, %v4311
      %v4313 = vpop.f32.mrb[0].mxu0
      %4314 = vmatprep.mubr.bf16.mxu0 %v3093
      %4315 = vmatmul.mubr.bf16.gmra.mrb[0].mxu0 %v3092
      %v4316 = vpop.f32.mrb[0].mxu0
      %v4317 = vadd.f32 %v4156, %v4316
      %v4318 = vpop.f32.mrb[0].mxu0
      %v4319 = vpop.f32.mrb[0].mxu0
      %v4320 = vadd.f32 %v4159, %v4319
      %v4321 = vpop.f32.mrb[0].mxu0
      %4322 = vmatprep.mubr.bf16.mxu0 %v3102
      %4323 = vmatmul.mubr.bf16.gmra.mrb[0].mxu0 %v3101
      %v4324 = vpop.f32.mrb[0].mxu0
      %v4325 = vadd.f32 %v4164, %v4324
      %v4326 = vpop.f32.mrb[0].mxu0
      %v4327 = vpop.f32.mrb[0].mxu0
      %v4328 = vadd.f32 %v4167, %v4327
      %v4329 = vpop.f32.mrb[0].mxu0
      %4330 = vmatprep.mubr.bf16.mxu0 %v3111
      %4331 = vmatmul.mubr.bf16.gmra.mrb[0].mxu0 %v3110
      %v4332 = vpop.f32.mrb[0].mxu0
      %v4333 = vadd.f32 %v4172, %v4332
      %v4334 = vpop.f32.mrb[0].mxu0
      %v4335 = vpop.f32.mrb[0].mxu0
      %v4336 = vadd.f32 %v4175, %v4335
      %v4337 = vpop.f32.mrb[0].mxu0
      %4338 = vmatprep.mubr.bf16.mxu0 %v3120
      %4339 = vmatmul.mubr.bf16.gmra.mrb[0].mxu0 %v3119
      %v4340 = vpop.f32.mrb[0].mxu0
      %v4341 = vadd.f32 %v4180, %v4340
      %v4342 = vpop.f32.mrb[0].mxu0
      %v4343 = vpop.f32.mrb[0].mxu0
      %v4344 = vadd.f32 %v4183, %v4343
      %v4345 = vpop.f32.mrb[0].mxu0
      %4346 = vmatprep.mubr.bf16.mxu0 %v3129
      %4347 = vmatmul.mubr.bf16.gmra.mrb[0].mxu0 %v3128
      %v4348 = vpop.f32.mrb[0].mxu0
      %v4349 = vadd.f32 %v4188, %v4348
      %v4350 = vpop.f32.mrb[0].mxu0
      %v4351 = vpop.f32.mrb[0].mxu0
      %v4352 = vadd.f32 %v4191, %v4351
      %v4353 = vpop.f32.mrb[0].mxu0
      %4354 = vmatprep.mubr.bf16.mxu0 %v3138
      %4355 = vmatmul.mubr.bf16.gmra.mrb[0].mxu0 %v3137
      %v4356 = vpop.f32.mrb[0].mxu0
      %v4357 = vadd.f32 %v4196, %v4356
      %v4358 = vpop.f32.mrb[0].mxu0
      %v4359 = vpop.f32.mrb[0].mxu0
      %v4360 = vadd.f32 %v4199, %v4359
      %v4361 = vpop.f32.mrb[0].mxu0
      %4362 = vmatprep.mubr.bf16.mxu0 %v3147
      %4363 = vmatmul.mubr.bf16.gmra.mrb[0].mxu0 %v3146
      %v4364 = vpop.f32.mrb[0].mxu0
      %v4365 = vadd.f32 %v4204, %v4364
      %v4366 = vpop.f32.mrb[0].mxu0
      %v4367 = vpop.f32.mrb[0].mxu0
      %v4368 = vadd.f32 %v4207, %v4367
      %v4369 = vpop.f32.mrb[0].mxu0
      %4370 = vmatprep.mubr.bf16.mxu0 %v3156
      %4371 = vmatmul.mubr.bf16.gmra.mrb[0].mxu0 %v3155
      %v4372 = vpop.f32.mrb[0].mxu0
      %v4373 = vadd.f32 %v4212, %v4372
      %v4374 = vpop.f32.mrb[0].mxu0
      %v4375 = vpop.f32.mrb[0].mxu0
      %v4376 = vadd.f32 %v4215, %v4375
      %v4377 = vpop.f32.mrb[0].mxu0
      %4378 = vmatprep.mubr.bf16.mxu0 %v3165
      %4379 = vmatmul.mubr.bf16.gmra.mrb[0].mxu0 %v3164
      %v4380 = vpop.f32.mrb[0].mxu0
      %v4381 = vadd.f32 %v4220, %v4380
      %v4382 = vpop.f32.mrb[0].mxu0
      %v4383 = vpop.f32.mrb[0].mxu0
      %v4384 = vadd.f32 %v4223, %v4383
      %v4385 = vpop.f32.mrb[0].mxu0
      %4386 = vdwg.mxu0
      %4387 = vmatprep.subr.bf16.mxu0 0
      %4388 = vmatpush1.bf16.msra.mxu0 %v3663
      %4389 = vmatprep.subr.bf16.mxu0 0
      %4390 = vmatpush1.bf16.msra.mxu0 %v3664
      %4391 = vmatprep.subr.bf16.mxu0 0
      %4392 = vmatpush1.bf16.msra.mxu0 %v3665
      %4393 = vmatprep.subr.bf16.mxu0 0
      %4394 = vmatpush1.bf16.msra.mxu0 %v3666
      %4395 = vmatprep.subr.bf16.mxu0 0
      %4396 = vmatpush1.bf16.msra.mxu0 %v3667
      %4397 = vmatprep.subr.bf16.mxu0 0
      %4398 = vmatpush1.bf16.msra.mxu0 %v3668
      %4399 = vmatprep.subr.bf16.mxu0 0
      %4400 = vmatpush1.bf16.msra.mxu0 %v3669
      %4401 = vmatprep.subr.bf16.mxu0 0
      %4402 = vmatpush1.bf16.msra.mxu0 %v3670
      %4403 = vmatprep.subr.bf16.mxu0 0
      %4404 = vmatpush1.bf16.msra.mxu0 0
      %4405 = vmatprep.subr.bf16.mxu0 0
      %4406 = vmatpush1.bf16.msra.mxu0 0
      %4407 = vmatprep.subr.bf16.mxu0 0
      %4408 = vmatpush1.bf16.msra.mxu0 0
      %4409 = vmatprep.subr.bf16.mxu0 0
      %4410 = vmatpush1.bf16.msra.mxu0 0
      %4411 = vmatprep.subr.bf16.mxu0 0
      %4412 = vmatpush1.bf16.msra.mxu0 0
      %4413 = vmatprep.subr.bf16.mxu0 0
      %4414 = vmatpush1.bf16.msra.mxu0 0
      %4415 = vmatprep.subr.bf16.mxu0 0
      %4416 = vmatpush1.bf16.msra.mxu0 0
      %4417 = vmatprep.subr.bf16.mxu0 0
      %4418 = vmatpush1.bf16.msra.mxu0 0
      %4419 = vmatprep.mubr.bf16.mxu0 0
      %4420 = vmatmul.mubr.bf16.gmra.mrb[0].mxu0 %v3031
      %v4421 = vpop.f32.mrb[0].mxu0
      %v4422 = vadd.f32 %v4261, %v4421
      %v4423 = vpop.f32.mrb[0].mxu0
      %v4424 = vpop.f32.mrb[0].mxu0
      %v4425 = vadd.f32 %v4264, %v4424
      %v4426 = vpop.f32.mrb[0].mxu0
      %4427 = vmatprep.mubr.bf16.mxu0 0
      %4428 = vmatmul.mubr.bf16.gmra.mrb[0].mxu0 %v3040
      %v4429 = vpop.f32.mrb[0].mxu0
      %v4430 = vadd.f32 %v4269, %v4429
      %v4431 = vpop.f32.mrb[0].mxu0
      %v4432 = vpop.f32.mrb[0].mxu0
      %v4433 = vadd.f32 %v4272, %v4432
      %v4434 = vpop.f32.mrb[0].mxu0
      %4435 = vmatprep.mubr.bf16.mxu0 0
      %4436 = vmatmul.mubr.bf16.gmra.mrb[0].mxu0 %v3049
      %v4437 = vpop.f32.mrb[0].mxu0
      %v4438 = vadd.f32 %v4277, %v4437
      %v4439 = vpop.f32.mrb[0].mxu0
      %v4440 = vpop.f32.mrb[0].mxu0
      %v4441 = vadd.f32 %v4280, %v4440
      %v4442 = vpop.f32.mrb[0].mxu0
      %4443 = vmatprep.mubr.bf16.mxu0 0
      %4444 = vmatmul.mubr.bf16.gmra.mrb[0].mxu0 %v3058
      %v4445 = vpop.f32.mrb[0].mxu0
      %v4446 = vadd.f32 %v4285, %v4445
      %v4447 = vpop.f32.mrb[0].mxu0
      %v4448 = vpop.f32.mrb[0].mxu0
      %v4449 = vadd.f32 %v4288, %v4448
      %v4450 = vpop.f32.mrb[0].mxu0
      %4451 = vmatprep.mubr.bf16.mxu0 0
      %4452 = vmatmul.mubr.bf16.gmra.mrb[0].mxu0 %v3067
      %v4453 = vpop.f32.mrb[0].mxu0
      %v4454 = vadd.f32 %v4293, %v4453
      %v4455 = vpop.f32.mrb[0].mxu0
      %v4456 = vpop.f32.mrb[0].mxu0
      %v4457 = vadd.f32 %v4296, %v4456
      %v4458 = vpop.f32.mrb[0].mxu0
      %4459 = vmatprep.mubr.bf16.mxu0 0
      %4460 = vmatmul.mubr.bf16.gmra.mrb[0].mxu0 %v3076
      %v4461 = vpop.f32.mrb[0].mxu0
      %v4462 = vadd.f32 %v4301, %v4461
      %v4463 = vpop.f32.mrb[0].mxu0
      %v4464 = vpop.f32.mrb[0].mxu0
      %v4465 = vadd.f32 %v4304, %v4464
      %v4466 = vpop.f32.mrb[0].mxu0
      %4467 = vmatprep.mubr.bf16.mxu0 0
      %4468 = vmatmul.mubr.bf16.gmra.mrb[0].mxu0 %v3085
      %v4469 = vpop.f32.mrb[0].mxu0
      %v4470 = vadd.f32 %v4309, %v4469
      %v4471 = vpop.f32.mrb[0].mxu0
      %v4472 = vpop.f32.mrb[0].mxu0
      %v4473 = vadd.f32 %v4312, %v4472
      %v4474 = vpop.f32.mrb[0].mxu0
      %4475 = vmatprep.mubr.bf16.mxu0 0
      %4476 = vmatmul.mubr.bf16.gmra.mrb[0].mxu0 %v3094
      %v4477 = vpop.f32.mrb[0].mxu0
      %v4478 = vadd.f32 %v4317, %v4477
      %v4479 = vpop.f32.mrb[0].mxu0
      %v4480 = vpop.f32.mrb[0].mxu0
      %v4481 = vadd.f32 %v4320, %v4480
      %v4482 = vpop.f32.mrb[0].mxu0
      %4483 = vmatprep.mubr.bf16.mxu0 0
      %4484 = vmatmul.mubr.bf16.gmra.mrb[0].mxu0 %v3103
      %v4485 = vpop.f32.mrb[0].mxu0
      %v4486 = vadd.f32 %v4325, %v4485
      %v4487 = vpop.f32.mrb[0].mxu0
      %v4488 = vpop.f32.mrb[0].mxu0
      %v4489 = vadd.f32 %v4328, %v4488
      %v4490 = vpop.f32.mrb[0].mxu0
      %4491 = vmatprep.mubr.bf16.mxu0 0
      %4492 = vmatmul.mubr.bf16.gmra.mrb[0].mxu0 %v3112
      %v4493 = vpop.f32.mrb[0].mxu0
      %v4494 = vadd.f32 %v4333, %v4493
      %v4495 = vpop.f32.mrb[0].mxu0
      %v4496 = vpop.f32.mrb[0].mxu0
      %v4497 = vadd.f32 %v4336, %v4496
      %v4498 = vpop.f32.mrb[0].mxu0
      %4499 = vmatprep.mubr.bf16.mxu0 0
      %4500 = vmatmul.mubr.bf16.gmra.mrb[0].mxu0 %v3121
      %v4501 = vpop.f32.mrb[0].mxu0
      %v4502 = vadd.f32 %v4341, %v4501
      %v4503 = vpop.f32.mrb[0].mxu0
      %v4504 = vpop.f32.mrb[0].mxu0
      %v4505 = vadd.f32 %v4344, %v4504
      %v4506 = vpop.f32.mrb[0].mxu0
      %4507 = vmatprep.mubr.bf16.mxu0 0
      %4508 = vmatmul.mubr.bf16.gmra.mrb[0].mxu0 %v3130
      %v4509 = vpop.f32.mrb[0].mxu0
      %v4510 = vadd.f32 %v4349, %v4509
      %v4511 = vpop.f32.mrb[0].mxu0
      %v4512 = vpop.f32.mrb[0].mxu0
      %v4513 = vadd.f32 %v4352, %v4512
      %v4514 = vpop.f32.mrb[0].mxu0
      %4515 = vmatprep.mubr.bf16.mxu0 0
      %4516 = vmatmul.mubr.bf16.gmra.mrb[0].mxu0 %v3139
      %v4517 = vpop.f32.mrb[0].mxu0
      %v4518 = vadd.f32 %v4357, %v4517
      %v4519 = vpop.f32.mrb[0].mxu0
      %v4520 = vpop.f32.mrb[0].mxu0
      %v4521 = vadd.f32 %v4360, %v4520
      %v4522 = vpop.f32.mrb[0].mxu0
      %4523 = vmatprep.mubr.bf16.mxu0 0
      %4524 = vmatmul.mubr.bf16.gmra.mrb[0].mxu0 %v3148
      %v4525 = vpop.f32.mrb[0].mxu0
      %v4526 = vadd.f32 %v4365, %v4525
      %v4527 = vpop.f32.mrb[0].mxu0
      %v4528 = vpop.f32.mrb[0].mxu0
      %v4529 = vadd.f32 %v4368, %v4528
      %v4530 = vpop.f32.mrb[0].mxu0
      %4531 = vmatprep.mubr.bf16.mxu0 0
      %4532 = vmatmul.mubr.bf16.gmra.mrb[0].mxu0 %v3157
      %v4533 = vpop.f32.mrb[0].mxu0
      %v4534 = vadd.f32 %v4373, %v4533
      %v4535 = vpop.f32.mrb[0].mxu0
      %v4536 = vpop.f32.mrb[0].mxu0
      %v4537 = vadd.f32 %v4376, %v4536
      %v4538 = vpop.f32.mrb[0].mxu0
      %4539 = vmatprep.mubr.bf16.mxu0 0
      %4540 = vmatmul.mubr.bf16.gmra.mrb[0].mxu0 %v3166
      %v4541 = vpop.f32.mrb[0].mxu0
      %v4542 = vadd.f32 %v4381, %v4541
      %v4543 = vpop.f32.mrb[0].mxu0
      %v4544 = vpop.f32.mrb[0].mxu0
      %v4545 = vadd.f32 %v4384, %v4544
      %v4546 = vpop.f32.mrb[0].mxu0
      %4547 = vdwg.mxu0
      %4548 = vst [vmem:[%s177] sm:$0xff] %v4422
      %4549 = vst [vmem:[%s177 + $0x8] sm:$0xff] %v4425
      %4550 = vst [vmem:[%s177 + $0x10] sm:$0xff] %v4430
      %4551 = vst [vmem:[%s177 + $0x18] sm:$0xff] %v4433
      %4552 = vst [vmem:[%s177 + $0x20] sm:$0xff] %v4438
      %4553 = vst [vmem:[%s177 + $0x28] sm:$0xff] %v4441
      %4554 = vst [vmem:[%s177 + $0x30] sm:$0xff] %v4446
      %4555 = vst [vmem:[%s177 + $0x38] sm:$0xff] %v4449
      %4556 = vst [vmem:[%s177 + $0x40] sm:$0xff] %v4454
      %4557 = vst [vmem:[%s177 + $0x48] sm:$0xff] %v4457
      %4558 = vst [vmem:[%s177 + $0x50] sm:$0xff] %v4462
      %4559 = vst [vmem:[%s177 + $0x58] sm:$0xff] %v4465
      %4560 = vst [vmem:[%s177 + $0x60] sm:$0xff] %v4470
      %4561 = vst [vmem:[%s177 + $0x68] sm:$0xff] %v4473
      %4562 = vst [vmem:[%s177 + $0x70] sm:$0xff] %v4478
      %4563 = vst [vmem:[%s177 + $0x78] sm:$0xff] %v4481
      %4564 = vst [vmem:[%s177 + $0x80] sm:$0xff] %v4486
      %4565 = vst [vmem:[%s177 + $0x88] sm:$0xff] %v4489
      %4566 = vst [vmem:[%s177 + $0x90] sm:$0xff] %v4494
      %4567 = vst [vmem:[%s177 + $0x98] sm:$0xff] %v4497
      %4568 = vst [vmem:[%s177 + $0xa0] sm:$0xff] %v4502
      %4569 = vst [vmem:[%s177 + $0xa8] sm:$0xff] %v4505
      %4570 = vst [vmem:[%s177 + $0xb0] sm:$0xff] %v4510
      %4571 = vst [vmem:[%s177 + $0xb8] sm:$0xff] %v4513
      %4572 = vst [vmem:[%s177 + $0xc0] sm:$0xff] %v4518
      %4573 = vst [vmem:[%s177 + $0xc8] sm:$0xff] %v4521
      %4574 = vst [vmem:[%s177 + $0xd0] sm:$0xff] %v4526
      %4575 = vst [vmem:[%s177 + $0xd8] sm:$0xff] %v4529
      %4576 = vst [vmem:[%s177 + $0xe0] sm:$0xff] %v4534
      %4577 = vst [vmem:[%s177 + $0xe8] sm:$0xff] %v4537
      %4578 = vst [vmem:[%s177 + $0xf0] sm:$0xff] %v4542
      %4579 = vst [vmem:[%s177 + $0xf8] sm:$0xff] %v4545
      %4580 = vst [vmem:[%s181] sm:$0xff] 0.0
      %v4581 = vadd.f32 %v4422, %v4425
      %v4582 = vadd.f32 %v4581, %v4430
      %v4583 = vadd.f32 %v4582, %v4433
      %v4584 = vadd.f32 %v4583, %v4438
      %v4585 = vadd.f32 %v4584, %v4441
      %v4586 = vadd.f32 %v4585, %v4446
      %v4587 = vadd.f32 %v4586, %v4449
      %v4588 = vadd.f32 %v4587, %v4454
      %v4589 = vadd.f32 %v4588, %v4457
      %v4590 = vadd.f32 %v4589, %v4462
      %v4591 = vadd.f32 %v4590, %v4465
      %v4592 = vadd.f32 %v4591, %v4470
      %v4593 = vadd.f32 %v4592, %v4473
      %v4594 = vadd.f32 %v4593, %v4478
      %v4595 = vadd.f32 %v4594, %v4481
      %v4596 = vadd.f32 %v4595, %v4486
      %v4597 = vadd.f32 %v4596, %v4489
      %v4598 = vadd.f32 %v4597, %v4494
      %v4599 = vadd.f32 %v4598, %v4497
      %v4600 = vadd.f32 %v4599, %v4502
      %v4601 = vadd.f32 %v4600, %v4505
      %v4602 = vadd.f32 %v4601, %v4510
      %v4603 = vadd.f32 %v4602, %v4513
      %v4604 = vadd.f32 %v4603, %v4518
      %v4605 = vadd.f32 %v4604, %v4521
      %v4606 = vadd.f32 %v4605, %v4526
      %v4607 = vadd.f32 %v4606, %v4529
      %v4608 = vadd.f32 %v4607, %v4534
      %v4609 = vadd.f32 %v4608, %v4537
      %v4610 = vadd.f32 %v4609, %v4542
      %v4611 = vadd.f32 %v4610, %v4545
      %v4612 = vrot.slane %v4611, 4
      %v4613 = vadd.f32 %v4611, %v4612
      %v4614 = vrot.slane %v4613, 2
      %v4615 = vadd.f32 %v4613, %v4614
      %v4616 = vrot.slane %v4615, 1
      %v4617 = vadd.f32 %v4615, %v4616
      %4618 = vst [vmem:[%s181] sm:$0x1] %v4617
      %v4619 = vmul.f32 %v4422, %v4422
      %v4620 = vmul.f32 %v4425, %v4425
      %v4621 = vmul.f32 %v4430, %v4430
      %v4622 = vmul.f32 %v4433, %v4433
      %v4623 = vmul.f32 %v4438, %v4438
      %v4624 = vmul.f32 %v4441, %v4441
      %v4625 = vmul.f32 %v4446, %v4446
      %v4626 = vmul.f32 %v4449, %v4449
      %v4627 = vmul.f32 %v4454, %v4454
      %v4628 = vmul.f32 %v4457, %v4457
      %v4629 = vmul.f32 %v4462, %v4462
      %v4630 = vmul.f32 %v4465, %v4465
      %v4631 = vmul.f32 %v4470, %v4470
      %v4632 = vmul.f32 %v4473, %v4473
      %v4633 = vmul.f32 %v4478, %v4478
      %v4634 = vmul.f32 %v4481, %v4481
      %v4635 = vmul.f32 %v4486, %v4486
      %v4636 = vmul.f32 %v4489, %v4489
      %v4637 = vmul.f32 %v4494, %v4494
      %v4638 = vmul.f32 %v4497, %v4497
      %v4639 = vmul.f32 %v4502, %v4502
      %v4640 = vmul.f32 %v4505, %v4505
      %v4641 = vmul.f32 %v4510, %v4510
      %v4642 = vmul.f32 %v4513, %v4513
      %v4643 = vmul.f32 %v4518, %v4518
      %v4644 = vmul.f32 %v4521, %v4521
      %v4645 = vmul.f32 %v4526, %v4526
      %v4646 = vmul.f32 %v4529, %v4529
      %v4647 = vmul.f32 %v4534, %v4534
      %v4648 = vmul.f32 %v4537, %v4537
      %v4649 = vmul.f32 %v4542, %v4542
      %v4650 = vmul.f32 %v4545, %v4545
      %v4651 = vadd.f32 %v4619, %v4620
      %v4652 = vadd.f32 %v4651, %v4621
      %v4653 = vadd.f32 %v4652, %v4622
      %v4654 = vadd.f32 %v4653, %v4623
      %v4655 = vadd.f32 %v4654, %v4624
      %v4656 = vadd.f32 %v4655, %v4625
      %v4657 = vadd.f32 %v4656, %v4626
      %v4658 = vadd.f32 %v4657, %v4627
      %v4659 = vadd.f32 %v4658, %v4628
      %v4660 = vadd.f32 %v4659, %v4629
      %v4661 = vadd.f32 %v4660, %v4630
      %v4662 = vadd.f32 %v4661, %v4631
      %v4663 = vadd.f32 %v4662, %v4632
      %v4664 = vadd.f32 %v4663, %v4633
      %v4665 = vadd.f32 %v4664, %v4634
      %v4666 = vadd.f32 %v4665, %v4635
      %v4667 = vadd.f32 %v4666, %v4636
      %v4668 = vadd.f32 %v4667, %v4637
      %v4669 = vadd.f32 %v4668, %v4638
      %v4670 = vadd.f32 %v4669, %v4639
      %v4671 = vadd.f32 %v4670, %v4640
      %v4672 = vadd.f32 %v4671, %v4641
      %v4673 = vadd.f32 %v4672, %v4642
      %v4674 = vadd.f32 %v4673, %v4643
      %v4675 = vadd.f32 %v4674, %v4644
      %v4676 = vadd.f32 %v4675, %v4645
      %v4677 = vadd.f32 %v4676, %v4646
      %v4678 = vadd.f32 %v4677, %v4647
      %v4679 = vadd.f32 %v4678, %v4648
      %v4680 = vadd.f32 %v4679, %v4649
      %v4681 = vadd.f32 %v4680, %v4650
      %v4682 = vrot.slane %v4681, 4
      %v4683 = vadd.f32 %v4681, %v4682
      %v4684 = vrot.slane %v4683, 2
      %v4685 = vadd.f32 %v4683, %v4684
      %v4686 = vrot.slane %v4685, 1
      %v4687 = vadd.f32 %v4685, %v4686
      %4688 = vst [vmem:[%s181 + $0x1] sm:$0x1] %v4687
      %p4689 = scmp.lt.s32.totalorder %s15, 1
      %s4690 = scalar_select %p4689, %s15, 1
      %s4691 = smul.addr %s4690, 32
      %s4692 = smul.addr %s4691, 8
      %s4693 = scalar_lea.vmem %s2, %s4692
      %p4694 = scmp.lt.s32.totalorder %s15, 1
      %s4695 = scalar_select %p4694, %s15, 1
      %s4696 = smul.addr %s4695, 8
      %s4697 = scalar_lea.vmem %s3, %s4696
      // Predicated region
      $region29: #{basic_block_forward.3} parent=27 // pred_check
        %p4698 = pneg %p80
      $region30: #{basic_block_forward.3} parent=27 // pred_check_branch
        %4700 = sbr.rel (%p4698) target = $region32
      $region31: #{basic_block_forward.3} parent=27 // pred_region
        _
      $region32: #{basic_block_forward.3} parent=27 // pred_fallthru
        _
      // Predicated region
      $region33: #{basic_block_forward.3} parent=27 // pred_check
        %p4701 = pneg %p106
      $region34: #{basic_block_forward.3} parent=27 // pred_check_branch
        %4703 = sbr.rel (%p4701) target = $region36
      $region35: #{basic_block_forward.3} parent=27 // pred_region
        _
      $region36: #{basic_block_forward.3} parent=27 // pred_fallthru
        _
    $region28: #{basic_block_forward.3} parent=5 // pred_fallthru
      _
    %p4704 = scmp.le.s32.totalorder 2, %s10
    // Predicated region
    $region37: #{basic_block_forward.3} parent=5 // pred_check
      %p4705 = pneg %p4704
    $region38: #{basic_block_forward.3} parent=5 // pred_check_branch
      %4707 = sbr.rel (%p4705) target = $region40
    $region39: #{basic_block_forward.3} parent=5 // pred_region
      %s4708 = ssub.s32 %s10, 2
      // Predicated region
      $region41: #{basic_block_forward.3} parent=39 // pred_check
        %p4709 = pneg %p86
      $region42: #{basic_block_forward.3} parent=39 // pred_check_branch
        %4711 = sbr.rel (%p4709) target = $region44
      $region43: #{basic_block_forward.3} parent=39 // pred_region
        %p4712 = scmp.lt.s32.totalorder %s16, 1
        %s4713 = scalar_select %p4712, %s16, 1
        %s4714 = smul.addr %s4713, 32
        %s4715 = smul.addr %s4714, 8
        %s4716 = scalar_lea.vmem %s2, %s4715
      $region44: #{basic_block_forward.3} parent=39 // pred_fallthru
        _
      // Predicated region
      $region45: #{basic_block_forward.3} parent=39 // pred_check
        %p4717 = pneg %p112
      $region46: #{basic_block_forward.3} parent=39 // pred_check_branch
        %4719 = sbr.rel (%p4717) target = $region48
      $region47: #{basic_block_forward.3} parent=39 // pred_region
        %p4720 = scmp.lt.s32.totalorder %s16, 1
        %s4721 = scalar_select %p4720, %s16, 1
        %s4722 = smul.addr %s4721, 8
        %s4723 = scalar_lea.vmem %s3, %s4722
      $region48: #{basic_block_forward.3} parent=39 // pred_fallthru
        _
    $region40: #{basic_block_forward.3} parent=5 // pred_fallthru
      _
  $region6: #{basic_block_forward.3} parent=0 // loop_footer
    %s14 = sadd.s32 1, %s10
  $region7: #{basic_block_forward.3} parent=0 // loop_footer_branch
    %9 = sbr.rel target = $region3
  $region8: #{basic_block_forward.3} parent=0 // loop_exit
    _

// kernel: basic_block_forward.4
$region0: #{basic_block_forward.4}
  #allocation0 [shape = 'u32[]', space=smem, size = 0x4, offset = 0x4, fixed_abs, tag = 'smem constant byte address 0x4 - core index']
  #allocation1 [shape = 'u32[144,128]{1,0:T(1,128)}', space=vmem, size = 0x12000, scoped, tag = 'internal scratch']
  #allocation2 [shape = 'bf16[18,18,128]{2,1,0:T(8,128)(2,1)}', space=vmem, size = 0x1b000, scoped, tag = 'scratch operand']
  #allocation3 [shape = 'bf16[256,1152]{1,0:T(16,128)(2,1)}', space=vmem, size = 0x90000, scoped, tag = 'scratch operand']
  %s0 = inlined_call_operand.vmem [shape: f32[2,256,128], index: 0, kind: input, shape index: {}]
  %s1 = inlined_call_operand.vmem [shape: f32[1,128], index: 1, kind: input, shape index: {}]
  %s2 = inlined_call_operand.vmem [shape: f32[1,128], index: 2, kind: input, shape index: {}]
  %s3 = inlined_call_operand.vmem [shape: bf16[1152,128], index: 3, kind: input, shape index: {}]
  %s4 = inlined_call_operand.vmem [shape: f32[2,256,128], index: 4, kind: output, shape index: {0}]
  %s5 = inlined_call_operand.vmem [shape: f32[2,8,128], index: 5, kind: output, shape index: {1}]
  %6 = xla_tuple %s4, %s5
  %s7 = sld [smem:[#allocation0]]
  $region57: #{basic_block_forward.4} parent=0
    _
  %s9 = ssub.s32 1, %s7
  %s10 = scalar_select 0, %s9, %s7
  loop: start=0, step=1, limit=4
  $region2: #{basic_block_forward.4} parent=0 // loop_pre_header
    _
  $region3: #{basic_block_forward.4} parent=0 // loop_header
    %s12 = sphi 0, %s16
    %p13 = scmp.ge.s32.totalorder %s12, 4
    %s22 = sphi 0, %s24
    %s25 = sphi 0, %s22
    %s26 = sphi 0, %s25
    %s42 = sphi 0, %s26
    %s46 = sphi 0, %s46
    %s48 = sphi 0, %s46
    %s49 = sphi 0, %s48
    %s63 = sphi 0, %s49
    %s67 = sphi 0, %s67
    %s69 = sphi 0, %s67
    %s70 = sphi 0, %s69
    %s84 = sphi 0, %s70
    %s88 = sphi 0, %s88
    %s90 = sphi 0, %s88
    %s91 = sphi 0, %s90
    %s105 = sphi 0, %s91
    %s111 = sphi 0, %s113
    %s114 = sphi 0, %s111
    %s115 = sphi 0, %s114
    %s131 = sphi 0, %s115
    %s137 = sphi 0, %s139
    %s140 = sphi 0, %s137
    %s141 = sphi 0, %s140
    %s157 = sphi 0, %s141
  $region4: #{basic_block_forward.4} parent=0 // loop_header_branch
    %15 = sbr.rel (%p13) target = $region8
  $region5: #{basic_block_forward.4} parent=0 // loop_body
    %s17 = ssub.s32 %s12, 1
    %s18 = ssub.s32 %s12, 2
    %s19 = sadd.s32 %s12, 1
    %s20 = ssub.s32 %s12, %s19
    %p21 = scmp.eq.s32.totalorder %s20, 0
    %s23 = sadd.s32 %s22, 1
    %s24 = scalar_select %p21, %s22, %s23
    %p27 = pneg %p21
    %p28 = scmp.eq.s32.totalorder %s12, 1
    %p29 = por %p27, %p28
    %p30 = scmp.ne.s32.totalorder %s22, %s25
    %p31 = scmp.eq.s32.totalorder %s12, 0
    %p32 = por %p30, %p31
    %p33 = scmp.ne.s32.totalorder %s22, %s25
    %p34 = scmp.eq.s32.totalorder %s17, 1
    %p35 = por %p33, %p34
    %p36 = scmp.ne.s32.totalorder %s25, %s26
    %p37 = scmp.eq.s32.totalorder %s17, 0
    %p38 = por %p36, %p37
    %p39 = scmp.ne.s32.totalorder %s25, %s26
    %p40 = scmp.eq.s32.totalorder %s18, 1
    %p41 = por %p39, %p40
    %p43 = scmp.ne.s32.totalorder %s26, %s42
    %p44 = scmp.eq.s32.totalorder %s18, 0
    %p45 = por %p43, %p44
    %s47 = sadd.s32 %s46, 1
    %p50 = scmp.eq.s32.totalorder %s12, 1
    %p51 = scmp.ne.s32.totalorder %s46, %s48
    %p52 = scmp.eq.s32.totalorder %s12, 0
    %p53 = por %p51, %p52
    %p54 = scmp.ne.s32.totalorder %s46, %s48
    %p55 = scmp.eq.s32.totalorder %s17, 1
    %p56 = por %p54, %p55
    %p57 = scmp.ne.s32.totalorder %s48, %s49
    %p58 = scmp.eq.s32.totalorder %s17, 0
    %p59 = por %p57, %p58
    %p60 = scmp.ne.s32.totalorder %s48, %s49
    %p61 = scmp.eq.s32.totalorder %s18, 1
    %p62 = por %p60, %p61
    %p64 = scmp.ne.s32.totalorder %s49, %s63
    %p65 = scmp.eq.s32.totalorder %s18, 0
    %p66 = por %p64, %p65
    %s68 = sadd.s32 %s67, 1
    %p71 = scmp.eq.s32.totalorder %s12, 1
    %p72 = scmp.ne.s32.totalorder %s67, %s69
    %p73 = scmp.eq.s32.totalorder %s12, 0
    %p74 = por %p72, %p73
    %p75 = scmp.ne.s32.totalorder %s67, %s69
    %p76 = scmp.eq.s32.totalorder %s17, 1
    %p77 = por %p75, %p76
    %p78 = scmp.ne.s32.totalorder %s69, %s70
    %p79 = scmp.eq.s32.totalorder %s17, 0
    %p80 = por %p78, %p79
    %p81 = scmp.ne.s32.totalorder %s69, %s70
    %p82 = scmp.eq.s32.totalorder %s18, 1
    %p83 = por %p81, %p82
    %p85 = scmp.ne.s32.totalorder %s70, %s84
    %p86 = scmp.eq.s32.totalorder %s18, 0
    %p87 = por %p85, %p86
    %s89 = sadd.s32 %s88, 1
    %p92 = scmp.eq.s32.totalorder %s12, 1
    %p93 = scmp.ne.s32.totalorder %s88, %s90
    %p94 = scmp.eq.s32.totalorder %s12, 0
    %p95 = por %p93, %p94
    %p96 = scmp.ne.s32.totalorder %s88, %s90
    %p97 = scmp.eq.s32.totalorder %s17, 1
    %p98 = por %p96, %p97
    %p99 = scmp.ne.s32.totalorder %s90, %s91
    %p100 = scmp.eq.s32.totalorder %s17, 0
    %p101 = por %p99, %p100
    %p102 = scmp.ne.s32.totalorder %s90, %s91
    %p103 = scmp.eq.s32.totalorder %s18, 1
    %p104 = por %p102, %p103
    %p106 = scmp.ne.s32.totalorder %s91, %s105
    %p107 = scmp.eq.s32.totalorder %s18, 0
    %p108 = por %p106, %p107
    %s109 = ssub.s32 %s12, %s19
    %p110 = scmp.eq.s32.totalorder %s109, 0
    %s112 = sadd.s32 %s111, 1
    %s113 = scalar_select %p110, %s111, %s112
    %p116 = pneg %p110
    %p117 = scmp.eq.s32.totalorder %s12, 1
    %p118 = por %p116, %p117
    %p119 = scmp.ne.s32.totalorder %s111, %s114
    %p120 = scmp.eq.s32.totalorder %s12, 0
    %p121 = por %p119, %p120
    %p122 = scmp.ne.s32.totalorder %s111, %s114
    %p123 = scmp.eq.s32.totalorder %s17, 1
    %p124 = por %p122, %p123
    %p125 = scmp.ne.s32.totalorder %s114, %s115
    %p126 = scmp.eq.s32.totalorder %s17, 0
    %p127 = por %p125, %p126
    %p128 = scmp.ne.s32.totalorder %s114, %s115
    %p129 = scmp.eq.s32.totalorder %s18, 1
    %p130 = por %p128, %p129
    %p132 = scmp.ne.s32.totalorder %s115, %s131
    %p133 = scmp.eq.s32.totalorder %s18, 0
    %p134 = por %p132, %p133
    %s135 = ssub.s32 %s12, %s19
    %p136 = scmp.eq.s32.totalorder %s135, 0
    %s138 = sadd.s32 %s137, 1
    %s139 = scalar_select %p136, %s137, %s138
    %p142 = pneg %p136
    %p143 = scmp.eq.s32.totalorder %s12, 1
    %p144 = por %p142, %p143
    %p145 = scmp.ne.s32.totalorder %s137, %s140
    %p146 = scmp.eq.s32.totalorder %s12, 0
    %p147 = por %p145, %p146
    %p148 = scmp.ne.s32.totalorder %s137, %s140
    %p149 = scmp.eq.s32.totalorder %s17, 1
    %p150 = por %p148, %p149
    %p151 = scmp.ne.s32.totalorder %s140, %s141
    %p152 = scmp.eq.s32.totalorder %s17, 0
    %p153 = por %p151, %p152
    %p154 = scmp.ne.s32.totalorder %s140, %s141
    %p155 = scmp.eq.s32.totalorder %s18, 1
    %p156 = por %p154, %p155
    %p158 = scmp.ne.s32.totalorder %s141, %s157
    %p159 = scmp.eq.s32.totalorder %s18, 0
    %p160 = por %p158, %p159
    %p161 = scmp.le.s32.totalorder 1, %s12
    %p162 = scmp.lt.s32.totalorder %s12, 3
    %p163 = pnand %p161, %p162
    %p164 = pneg %p163
    // Predicated region
    $region9: #{basic_block_forward.4} parent=5 // pred_check
      _
    $region10: #{basic_block_forward.4} parent=5 // pred_check_branch
      %166 = sbr.rel (%p163) target = $region12
    $region11: #{basic_block_forward.4} parent=5 // pred_region
      %s167 = ssub.s32 %s12, 1
      // Predicated region
      $region13: #{basic_block_forward.4} parent=11 // pred_check
        %p168 = pneg %p59
      $region14: #{basic_block_forward.4} parent=11 // pred_check_branch
        %170 = sbr.rel (%p168) target = $region16
      $region15: #{basic_block_forward.4} parent=11 // pred_region
        _
      $region16: #{basic_block_forward.4} parent=11 // pred_fallthru
        _
      // Predicated region
      $region17: #{basic_block_forward.4} parent=11 // pred_check
        %p171 = pneg %p80
      $region18: #{basic_block_forward.4} parent=11 // pred_check_branch
        %173 = sbr.rel (%p171) target = $region20
      $region19: #{basic_block_forward.4} parent=11 // pred_region
        _
      $region20: #{basic_block_forward.4} parent=11 // pred_fallthru
        _
      // Predicated region
      $region21: #{basic_block_forward.4} parent=11 // pred_check
        %p174 = pneg %p101
      $region22: #{basic_block_forward.4} parent=11 // pred_check_branch
        %176 = sbr.rel (%p174) target = $region24
      $region23: #{basic_block_forward.4} parent=11 // pred_region
        _
      $region24: #{basic_block_forward.4} parent=11 // pred_fallthru
        _
    $region12: #{basic_block_forward.4} parent=5 // pred_fallthru
      _
    %p177 = scmp.lt.s32.totalorder %s12, 2
    // Predicated region
    $region25: #{basic_block_forward.4} parent=5 // pred_check
      %p178 = pneg %p177
    $region26: #{basic_block_forward.4} parent=5 // pred_check_branch
      %180 = sbr.rel (%p178) target = $region28
    $region27: #{basic_block_forward.4} parent=5 // pred_region
      // Predicated region
      $region29: #{basic_block_forward.4} parent=27 // pred_check
        %p181 = pneg %p32
      $region30: #{basic_block_forward.4} parent=27 // pred_check_branch
        %183 = sbr.rel (%p181) target = $region32
      $region31: #{basic_block_forward.4} parent=27 // pred_region
        %p184 = scmp.lt.s32.totalorder %s12, 1
        %s185 = scalar_select %p184, %s12, 1
        %s186 = smul.addr %s185, 32
        %s187 = smul.addr %s186, 8
        %s188 = scalar_lea.vmem %s0, %s187
      $region32: #{basic_block_forward.4} parent=27 // pred_fallthru
        _
    $region28: #{basic_block_forward.4} parent=5 // pred_fallthru
      _
    %p189 = scmp.le.s32.totalorder 1, %s12
    %p190 = scmp.lt.s32.totalorder %s12, 3
    %p191 = pnand %p189, %p190
    %p192 = pneg %p191
    // Predicated region
    $region33: #{basic_block_forward.4} parent=5 // pred_check
      _
    $region34: #{basic_block_forward.4} parent=5 // pred_check_branch
      %194 = sbr.rel (%p191) target = $region36
    $region35: #{basic_block_forward.4} parent=5 // pred_region
      %s195 = ssub.s32 %s12, 1
      %p196 = scmp.lt.s32.totalorder %s17, 1
      %s197 = scalar_select %p196, %s17, 1
      %s198 = smul.addr %s197, 32
      %s199 = smul.addr %s198, 8
      %s200 = scalar_lea.vmem %s0, %s199
      %p201 = pneg %p38
      %p202 = pneg %p35
      %p203 = pneg %p59
      %p204 = pneg %p56
      %p205 = pneg %p80
      %p206 = pneg %p77
      %p207 = pneg %p101
      %p208 = pneg %p98
      %p209 = pneg %p127
      %p210 = pneg %p124
      %p211 = scmp.lt.s32.totalorder %s17, 1
      %s212 = scalar_select %p211, %s17, 1
      %s213 = smul.addr %s212, 32
      %s214 = smul.addr %s213, 8
      %s215 = scalar_lea.vmem %s4, %s214
      %p216 = pneg %p153
      %p217 = pneg %p150
      %p218 = scmp.lt.s32.totalorder %s17, 1
      %s219 = scalar_select %p218, %s17, 1
      %s220 = smul.addr %s219, 8
      %s221 = scalar_lea.vmem %s5, %s220
      %p222 = scmp.lt.s32.totalorder %s17, 1
      %s223 = scalar_select %p222, %s17, 1
      %s224 = smul.addr %s223, 32
      %s225 = smul.addr %s224, 8
      %s226 = scalar_lea.vmem %s0, %s225
      %p227 = scmp.lt.s32.totalorder %s17, 1
      %s228 = scalar_select %p227, %s17, 1
      %s229 = smul.addr %s228, 32
      %s230 = smul.addr %s229, 8
      %s231 = scalar_lea.vmem %s4, %s230
      %p232 = scmp.lt.s32.totalorder %s17, 1
      %s233 = scalar_select %p232, %s17, 1
      %s234 = smul.addr %s233, 8
      %s235 = scalar_lea.vmem %s5, %s234
      %v237 = vld [vmem:[%s226] sm:$0xff]
      %v238 = vld [vmem:[%s226 + $0x8] sm:$0xff]
      %v239 = vld [vmem:[%s226 + $0x10] sm:$0xff]
      %v240 = vld [vmem:[%s226 + $0x18] sm:$0xff]
      %v241 = vld [vmem:[%s226 + $0x20] sm:$0xff]
      %v242 = vld [vmem:[%s226 + $0x28] sm:$0xff]
      %v243 = vld [vmem:[%s226 + $0x30] sm:$0xff]
      %v244 = vld [vmem:[%s226 + $0x38] sm:$0xff]
      %v245 = vld [vmem:[%s226 + $0x40] sm:$0xff]
      %v246 = vld [vmem:[%s226 + $0x48] sm:$0xff]
      %v247 = vld [vmem:[%s226 + $0x50] sm:$0xff]
      %v248 = vld [vmem:[%s226 + $0x58] sm:$0xff]
      %v249 = vld [vmem:[%s226 + $0x60] sm:$0xff]
      %v250 = vld [vmem:[%s226 + $0x68] sm:$0xff]
      %v251 = vld [vmem:[%s226 + $0x70] sm:$0xff]
      %v252 = vld [vmem:[%s226 + $0x78] sm:$0xff]
      %v253 = vld [vmem:[%s226 + $0x80] sm:$0xff]
      %v254 = vld [vmem:[%s226 + $0x88] sm:$0xff]
      %v255 = vld [vmem:[%s226 + $0x90] sm:$0xff]
      %v256 = vld [vmem:[%s226 + $0x98] sm:$0xff]
      %v257 = vld [vmem:[%s226 + $0xa0] sm:$0xff]
      %v258 = vld [vmem:[%s226 + $0xa8] sm:$0xff]
      %v259 = vld [vmem:[%s226 + $0xb0] sm:$0xff]
      %v260 = vld [vmem:[%s226 + $0xb8] sm:$0xff]
      %v261 = vld [vmem:[%s226 + $0xc0] sm:$0xff]
      %v262 = vld [vmem:[%s226 + $0xc8] sm:$0xff]
      %v263 = vld [vmem:[%s226 + $0xd0] sm:$0xff]
      %v264 = vld [vmem:[%s226 + $0xd8] sm:$0xff]
      %v265 = vld [vmem:[%s226 + $0xe0] sm:$0xff]
      %v266 = vld [vmem:[%s226 + $0xe8] sm:$0xff]
      %v267 = vld [vmem:[%s226 + $0xf0] sm:$0xff]
      %v268 = vld [vmem:[%s226 + $0xf8] sm:$0xff]
      %v269 = vld [vmem:[%s1] sm:$0x1]
      %v271 = vlaneseq
      %v272 = vshrl.u32 %v271, 7
      %v273 = vsub.s32 0, %v272
      %v274 = vrot.slane %v269, %v273
      %v276 = vmul.f32 %v237, %v274
      %v277 = vmul.f32 %v238, %v274
      %v278 = vmul.f32 %v239, %v274
      %v279 = vmul.f32 %v240, %v274
      %v280 = vmul.f32 %v241, %v274
      %v281 = vmul.f32 %v242, %v274
      %v282 = vmul.f32 %v243, %v274
      %v283 = vmul.f32 %v244, %v274
      %v284 = vmul.f32 %v245, %v274
      %v285 = vmul.f32 %v246, %v274
      %v286 = vmul.f32 %v247, %v274
      %v287 = vmul.f32 %v248, %v274
      %v288 = vmul.f32 %v249, %v274
      %v289 = vmul.f32 %v250, %v274
      %v290 = vmul.f32 %v251, %v274
      %v291 = vmul.f32 %v252, %v274
      %v292 = vmul.f32 %v253, %v274
      %v293 = vmul.f32 %v254, %v274
      %v294 = vmul.f32 %v255, %v274
      %v295 = vmul.f32 %v256, %v274
      %v296 = vmul.f32 %v257, %v274
      %v297 = vmul.f32 %v258, %v274
      %v298 = vmul.f32 %v259, %v274
      %v299 = vmul.f32 %v260, %v274
      %v300 = vmul.f32 %v261, %v274
      %v301 = vmul.f32 %v262, %v274
      %v302 = vmul.f32 %v263, %v274
      %v303 = vmul.f32 %v264, %v274
      %v304 = vmul.f32 %v265, %v274
      %v305 = vmul.f32 %v266, %v274
      %v306 = vmul.f32 %v267, %v274
      %v307 = vmul.f32 %v268, %v274
      %v308 = vld [vmem:[%s2] sm:$0x1]
      %v310 = vlaneseq
      %v311 = vshrl.u32 %v310, 7
      %v312 = vsub.s32 0, %v311
      %v313 = vrot.slane %v308, %v312
      %v315 = vadd.f32 %v276, %v313
      %v316 = vadd.f32 %v277, %v313
      %v317 = vadd.f32 %v278, %v313
      %v318 = vadd.f32 %v279, %v313
      %v319 = vadd.f32 %v280, %v313
      %v320 = vadd.f32 %v281, %v313
      %v321 = vadd.f32 %v282, %v313
      %v322 = vadd.f32 %v283, %v313
      %v323 = vadd.f32 %v284, %v313
      %v324 = vadd.f32 %v285, %v313
      %v325 = vadd.f32 %v286, %v313
      %v326 = vadd.f32 %v287, %v313
      %v327 = vadd.f32 %v288, %v313
      %v328 = vadd.f32 %v289, %v313
      %v329 = vadd.f32 %v290, %v313
      %v330 = vadd.f32 %v291, %v313
      %v331 = vadd.f32 %v292, %v313
      %v332 = vadd.f32 %v293, %v313
      %v333 = vadd.f32 %v294, %v313
      %v334 = vadd.f32 %v295, %v313
      %v335 = vadd.f32 %v296, %v313
      %v336 = vadd.f32 %v297, %v313
      %v337 = vadd.f32 %v298, %v313
      %v338 = vadd.f32 %v299, %v313
      %v339 = vadd.f32 %v300, %v313
      %v340 = vadd.f32 %v301, %v313
      %v341 = vadd.f32 %v302, %v313
      %v342 = vadd.f32 %v303, %v313
      %v343 = vadd.f32 %v304, %v313
      %v344 = vadd.f32 %v305, %v313
      %v345 = vadd.f32 %v306, %v313
      %v346 = vadd.f32 %v307, %v313
      %v347 = vmax.f32 %v315, 0.0
      %v348 = vmax.f32 %v316, 0.0
      %v349 = vmax.f32 %v317, 0.0
      %v350 = vmax.f32 %v318, 0.0
      %v351 = vmax.f32 %v319, 0.0
      %v352 = vmax.f32 %v320, 0.0
      %v353 = vmax.f32 %v321, 0.0
      %v354 = vmax.f32 %v322, 0.0
      %v355 = vmax.f32 %v323, 0.0
      %v356 = vmax.f32 %v324, 0.0
      %v357 = vmax.f32 %v325, 0.0
      %v358 = vmax.f32 %v326, 0.0
      %v359 = vmax.f32 %v327, 0.0
      %v360 = vmax.f32 %v328, 0.0
      %v361 = vmax.f32 %v329, 0.0
      %v362 = vmax.f32 %v330, 0.0
      %v363 = vmax.f32 %v331, 0.0
      %v364 = vmax.f32 %v332, 0.0
      %v365 = vmax.f32 %v333, 0.0
      %v366 = vmax.f32 %v334, 0.0
      %v367 = vmax.f32 %v335, 0.0
      %v368 = vmax.f32 %v336, 0.0
      %v369 = vmax.f32 %v337, 0.0
      %v370 = vmax.f32 %v338, 0.0
      %v371 = vmax.f32 %v339, 0.0
      %v372 = vmax.f32 %v340, 0.0
      %v373 = vmax.f32 %v341, 0.0
      %v374 = vmax.f32 %v342, 0.0
      %v375 = vmax.f32 %v343, 0.0
      %v376 = vmax.f32 %v344, 0.0
      %v377 = vmax.f32 %v345, 0.0
      %v378 = vmax.f32 %v346, 0.0
      %v379 = vpack.c.bf16 %v348, %v347
      %v380 = vpack.c.bf16 %v350, %v349
      %v381 = vpack.c.bf16 %v352, %v351
      %v382 = vpack.c.bf16 %v354, %v353
      %v383 = vpack.c.bf16 %v356, %v355
      %v384 = vpack.c.bf16 %v358, %v357
      %v385 = vpack.c.bf16 %v360, %v359
      %v386 = vpack.c.bf16 %v362, %v361
      %v387 = vpack.c.bf16 %v364, %v363
      %v388 = vpack.c.bf16 %v366, %v365
      %v389 = vpack.c.bf16 %v368, %v367
      %v390 = vpack.c.bf16 %v370, %v369
      %v391 = vpack.c.bf16 %v372, %v371
      %v392 = vpack.c.bf16 %v374, %v373
      %v393 = vpack.c.bf16 %v376, %v375
      %v394 = vpack.c.bf16 %v378, %v377
      %395 = vst [vmem:[#allocation2] sm:$0xf] 0
      %396 = vst [vmem:[#allocation2 + $0x4] sm:$0xf] 0
      %397 = vst [vmem:[#allocation2 + $0x8] sm:$0x1] 0
      %s398 = scalar_lea.vmem [#allocation2], 204
      %399 = vst [vmem:[%s398] sm:$0xf] 0
      %400 = vst [vmem:[%s398 + $0x4] sm:$0xf] 0
      %401 = vst [vmem:[%s398 + $0x8] sm:$0x1] 0
      %s402 = scalar_lea.vmem [#allocation2], 12
      %vm403 = vcmask 1040384
      %vm404 = vsmask.f32 256
      %vm405 = vmand %vm403, %vm404
      %v406 = vld [vmem:[%s402] sm:$0x1]
      %v407 = vsel %vm405, 0, %v406
      %408 = vst [vmem:[%s402] sm:$0x1] %v407
      %v409 = vld [vmem:[%s402 + $0xc] sm:$0x1]
      %v410 = vsel %vm405, 0, %v409
      %411 = vst [vmem:[%s402 + $0xc] sm:$0x1] %v410
      %v412 = vld [vmem:[%s402 + $0x18] sm:$0x1]
      %v413 = vsel %vm405, 0, %v412
      %414 = vst [vmem:[%s402 + $0x18] sm:$0x1] %v413
      %v415 = vld [vmem:[%s402 + $0x24] sm:$0x1]
      %v416 = vsel %vm405, 0, %v415
      %417 = vst [vmem:[%s402 + $0x24] sm:$0x1] %v416
      %v418 = vld [vmem:[%s402 + $0x30] sm:$0x1]
      %v419 = vsel %vm405, 0, %v418
      %420 = vst [vmem:[%s402 + $0x30] sm:$0x1] %v419
      %v421 = vld [vmem:[%s402 + $0x3c] sm:$0x1]
      %v422 = vsel %vm405, 0, %v421
      %423 = vst [vmem:[%s402 + $0x3c] sm:$0x1] %v422
      %v424 = vld [vmem:[%s402 + $0x48] sm:$0x1]
      %v425 = vsel %vm405, 0, %v424
      %426 = vst [vmem:[%s402 + $0x48] sm:$0x1] %v425
      %v427 = vld [vmem:[%s402 + $0x54] sm:$0x1]
      %v428 = vsel %vm405, 0, %v427
      %429 = vst [vmem:[%s402 + $0x54] sm:$0x1] %v428
      %v430 = vld [vmem:[%s402 + $0x60] sm:$0x1]
      %v431 = vsel %vm405, 0, %v430
      %432 = vst [vmem:[%s402 + $0x60] sm:$0x1] %v431
      %v433 = vld [vmem:[%s402 + $0x6c] sm:$0x1]
      %v434 = vsel %vm405, 0, %v433
      %435 = vst [vmem:[%s402 + $0x6c] sm:$0x1] %v434
      %v436 = vld [vmem:[%s402 + $0x78] sm:$0x1]
      %v437 = vsel %vm405, 0, %v436
      %438 = vst [vmem:[%s402 + $0x78] sm:$0x1] %v437
      %v439 = vld [vmem:[%s402 + $0x84] sm:$0x1]
      %v440 = vsel %vm405, 0, %v439
      %441 = vst [vmem:[%s402 + $0x84] sm:$0x1] %v440
      %v442 = vld [vmem:[%s402 + $0x90] sm:$0x1]
      %v443 = vsel %vm405, 0, %v442
      %444 = vst [vmem:[%s402 + $0x90] sm:$0x1] %v443
      %v445 = vld [vmem:[%s402 + $0x9c] sm:$0x1]
      %v446 = vsel %vm405, 0, %v445
      %447 = vst [vmem:[%s402 + $0x9c] sm:$0x1] %v446
      %v448 = vld [vmem:[%s402 + $0xa8] sm:$0x1]
      %v449 = vsel %vm405, 0, %v448
      %450 = vst [vmem:[%s402 + $0xa8] sm:$0x1] %v449
      %v451 = vld [vmem:[%s402 + $0xb4] sm:$0x1]
      %v452 = vsel %vm405, 0, %v451
      %453 = vst [vmem:[%s402 + $0xb4] sm:$0x1] %v452
      %vm454 = vsmask.f32 7938
      %vm455 = vmand %vm403, %vm454
      %v456 = vld [vmem:[%s402 + $0x8] sm:$0x1]
      %v457 = vsel %vm455, 0, %v456
      %458 = vst [vmem:[%s402 + $0x8] sm:$0x1] %v457
      %v459 = vld [vmem:[%s402 + $0x14] sm:$0x1]
      %v460 = vsel %vm455, 0, %v459
      %461 = vst [vmem:[%s402 + $0x14] sm:$0x1] %v460
      %v462 = vld [vmem:[%s402 + $0x20] sm:$0x1]
      %v463 = vsel %vm455, 0, %v462
      %464 = vst [vmem:[%s402 + $0x20] sm:$0x1] %v463
      %v465 = vld [vmem:[%s402 + $0x2c] sm:$0x1]
      %v466 = vsel %vm455, 0, %v465
      %467 = vst [vmem:[%s402 + $0x2c] sm:$0x1] %v466
      %v468 = vld [vmem:[%s402 + $0x38] sm:$0x1]
      %v469 = vsel %vm455, 0, %v468
      %470 = vst [vmem:[%s402 + $0x38] sm:$0x1] %v469
      %v471 = vld [vmem:[%s402 + $0x44] sm:$0x1]
      %v472 = vsel %vm455, 0, %v471
      %473 = vst [vmem:[%s402 + $0x44] sm:$0x1] %v472
      %v474 = vld [vmem:[%s402 + $0x50] sm:$0x1]
      %v475 = vsel %vm455, 0, %v474
      %476 = vst [vmem:[%s402 + $0x50] sm:$0x1] %v475
      %v477 = vld [vmem:[%s402 + $0x5c] sm:$0x1]
      %v478 = vsel %vm455, 0, %v477
      %479 = vst [vmem:[%s402 + $0x5c] sm:$0x1] %v478
      %v480 = vld [vmem:[%s402 + $0x68] sm:$0x1]
      %v481 = vsel %vm455, 0, %v480
      %482 = vst [vmem:[%s402 + $0x68] sm:$0x1] %v481
      %v483 = vld [vmem:[%s402 + $0x74] sm:$0x1]
      %v484 = vsel %vm455, 0, %v483
      %485 = vst [vmem:[%s402 + $0x74] sm:$0x1] %v484
      %v486 = vld [vmem:[%s402 + $0x80] sm:$0x1]
      %v487 = vsel %vm455, 0, %v486
      %488 = vst [vmem:[%s402 + $0x80] sm:$0x1] %v487
      %v489 = vld [vmem:[%s402 + $0x8c] sm:$0x1]
      %v490 = vsel %vm455, 0, %v489
      %491 = vst [vmem:[%s402 + $0x8c] sm:$0x1] %v490
      %v492 = vld [vmem:[%s402 + $0x98] sm:$0x1]
      %v493 = vsel %vm455, 0, %v492
      %494 = vst [vmem:[%s402 + $0x98] sm:$0x1] %v493
      %v495 = vld [vmem:[%s402 + $0xa4] sm:$0x1]
      %v496 = vsel %vm455, 0, %v495
      %497 = vst [vmem:[%s402 + $0xa4] sm:$0x1] %v496
      %v498 = vld [vmem:[%s402 + $0xb0] sm:$0x1]
      %v499 = vsel %vm455, 0, %v498
      %500 = vst [vmem:[%s402 + $0xb0] sm:$0x1] %v499
      %v501 = vld [vmem:[%s402 + $0xbc] sm:$0x1]
      %v502 = vsel %vm455, 0, %v501
      %503 = vst [vmem:[%s402 + $0xbc] sm:$0x1] %v502
      %v520 = vunpack.c.l.b16 %v379
      %v521 = vunpack.c.h.b16 %v379
      %v522 = vunpack.c.l.b16 %v380
      %v523 = vunpack.c.h.b16 %v380
      %v524 = vunpack.c.l.b16 %v381
      %v525 = vunpack.c.h.b16 %v381
      %v526 = vunpack.c.l.b16 %v382
      %v527 = vunpack.c.h.b16 %v382
      %v528 = vunpack.c.l.b16 %v383
      %v529 = vunpack.c.h.b16 %v383
      %v530 = vunpack.c.l.b16 %v384
      %v531 = vunpack.c.h.b16 %v384
      %v532 = vunpack.c.l.b16 %v385
      %v533 = vunpack.c.h.b16 %v385
      %v534 = vunpack.c.l.b16 %v386
      %v535 = vunpack.c.h.b16 %v386
      %v536 = vunpack.c.l.b16 %v387
      %v537 = vunpack.c.h.b16 %v387
      %v538 = vunpack.c.l.b16 %v388
      %v539 = vunpack.c.h.b16 %v388
      %v540 = vunpack.c.l.b16 %v389
      %v541 = vunpack.c.h.b16 %v389
      %v542 = vunpack.c.l.b16 %v390
      %v543 = vunpack.c.h.b16 %v390
      %v544 = vunpack.c.l.b16 %v391
      %v545 = vunpack.c.h.b16 %v391
      %v546 = vunpack.c.l.b16 %v392
      %v547 = vunpack.c.h.b16 %v392
      %v548 = vunpack.c.l.b16 %v393
      %v549 = vunpack.c.h.b16 %v393
      %v550 = vunpack.c.l.b16 %v394
      %v551 = vunpack.c.h.b16 %v394
      %v552 = vpack.c.b16 %v520, %v520
      %v553 = vpack.c.b16 %v521, %v521
      %v554 = vpack.c.b16 %v522, %v522
      %v555 = vpack.c.b16 %v523, %v523
      %v556 = vpack.c.b16 %v524, %v524
      %v557 = vpack.c.b16 %v525, %v525
      %v558 = vpack.c.b16 %v526, %v526
      %v559 = vpack.c.b16 %v527, %v527
      %v560 = vpack.c.b16 %v528, %v528
      %v561 = vpack.c.b16 %v529, %v529
      %v562 = vpack.c.b16 %v530, %v530
      %v563 = vpack.c.b16 %v531, %v531
      %v564 = vpack.c.b16 %v532, %v532
      %v565 = vpack.c.b16 %v533, %v533
      %v566 = vpack.c.b16 %v534, %v534
      %v567 = vpack.c.b16 %v535, %v535
      %v568 = vpack.c.b16 %v536, %v536
      %v569 = vpack.c.b16 %v537, %v537
      %v570 = vpack.c.b16 %v538, %v538
      %v571 = vpack.c.b16 %v539, %v539
      %v572 = vpack.c.b16 %v540, %v540
      %v573 = vpack.c.b16 %v541, %v541
      %v574 = vpack.c.b16 %v542, %v542
      %v575 = vpack.c.b16 %v543, %v543
      %v576 = vpack.c.b16 %v544, %v544
      %v577 = vpack.c.b16 %v545, %v545
      %v578 = vpack.c.b16 %v546, %v546
      %v579 = vpack.c.b16 %v547, %v547
      %v580 = vpack.c.b16 %v548, %v548
      %v581 = vpack.c.b16 %v549, %v549
      %v582 = vpack.c.b16 %v550, %v550
      %v583 = vpack.c.b16 %v551, %v551
      %vm584 = vsmask.f32 4368
      %vm585 = vmor %vm404, %vm584
      %v587 = vshrl.u32 %v552, 16
      %v589 = vrot.slane %v587, 7
      %v590 = vshll.u32 %v552, 16
      %v592 = vor.u32 %v589, %v590
      %v593 = vrot.slane %v589, 4
      %v595 = vshrl.u32 %v553, 16
      %v597 = vrot.slane %v595, 7
      %v598 = vshll.u32 %v553, 16
      %v600 = vor.u32 %v597, %v598
      %v601 = vsel %vm585, %v593, %v600
      %v602 = vrot.slane %v597, 4
      %v604 = vshrl.u32 %v554, 16
      %v606 = vrot.slane %v604, 7
      %v607 = vshll.u32 %v554, 16
      %v609 = vor.u32 %v606, %v607
      %v610 = vrot.slane %v606, 4
      %v612 = vshrl.u32 %v555, 16
      %v614 = vrot.slane %v612, 7
      %v615 = vshll.u32 %v555, 16
      %v617 = vor.u32 %v614, %v615
      %v618 = vsel %vm585, %v610, %v617
      %v619 = vrot.slane %v614, 4
      %v621 = vshrl.u32 %v556, 16
      %v623 = vrot.slane %v621, 7
      %v624 = vshll.u32 %v556, 16
      %v626 = vor.u32 %v623, %v624
      %v627 = vrot.slane %v623, 4
      %v629 = vshrl.u32 %v557, 16
      %v631 = vrot.slane %v629, 7
      %v632 = vshll.u32 %v557, 16
      %v634 = vor.u32 %v631, %v632
      %v635 = vsel %vm585, %v627, %v634
      %v636 = vrot.slane %v631, 4
      %v638 = vshrl.u32 %v558, 16
      %v640 = vrot.slane %v638, 7
      %v641 = vshll.u32 %v558, 16
      %v643 = vor.u32 %v640, %v641
      %v644 = vrot.slane %v640, 4
      %v646 = vshrl.u32 %v559, 16
      %v648 = vrot.slane %v646, 7
      %v649 = vshll.u32 %v559, 16
      %v651 = vor.u32 %v648, %v649
      %v652 = vsel %vm585, %v644, %v651
      %v653 = vrot.slane %v648, 4
      %v655 = vshrl.u32 %v560, 16
      %v657 = vrot.slane %v655, 7
      %v658 = vshll.u32 %v560, 16
      %v660 = vor.u32 %v657, %v658
      %v661 = vrot.slane %v657, 4
      %v663 = vshrl.u32 %v561, 16
      %v665 = vrot.slane %v663, 7
      %v666 = vshll.u32 %v561, 16
      %v668 = vor.u32 %v665, %v666
      %v669 = vsel %vm585, %v661, %v668
      %v670 = vrot.slane %v665, 4
      %v672 = vshrl.u32 %v562, 16
      %v674 = vrot.slane %v672, 7
      %v675 = vshll.u32 %v562, 16
      %v677 = vor.u32 %v674, %v675
      %v678 = vrot.slane %v674, 4
      %v680 = vshrl.u32 %v563, 16
      %v682 = vrot.slane %v680, 7
      %v683 = vshll.u32 %v563, 16
      %v685 = vor.u32 %v682, %v683
      %v686 = vsel %vm585, %v678, %v685
      %v687 = vrot.slane %v682, 4
      %v689 = vshrl.u32 %v564, 16
      %v691 = vrot.slane %v689, 7
      %v692 = vshll.u32 %v564, 16
      %v694 = vor.u32 %v691, %v692
      %v695 = vrot.slane %v691, 4
      %v697 = vshrl.u32 %v565, 16
      %v699 = vrot.slane %v697, 7
      %v700 = vshll.u32 %v565, 16
      %v702 = vor.u32 %v699, %v700
      %v703 = vsel %vm585, %v695, %v702
      %v704 = vrot.slane %v699, 4
      %v706 = vshrl.u32 %v566, 16
      %v708 = vrot.slane %v706, 7
      %v709 = vshll.u32 %v566, 16
      %v711 = vor.u32 %v708, %v709
      %v712 = vrot.slane %v708, 4
      %v714 = vshrl.u32 %v567, 16
      %v716 = vrot.slane %v714, 7
      %v717 = vshll.u32 %v567, 16
      %v719 = vor.u32 %v716, %v717
      %v720 = vsel %vm585, %v712, %v719
      %v721 = vrot.slane %v716, 4
      %v723 = vshrl.u32 %v568, 16
      %v725 = vrot.slane %v723, 7
      %v726 = vshll.u32 %v568, 16
      %v728 = vor.u32 %v725, %v726
      %v729 = vrot.slane %v725, 4
      %v731 = vshrl.u32 %v569, 16
      %v733 = vrot.slane %v731, 7
      %v734 = vshll.u32 %v569, 16
      %v736 = vor.u32 %v733, %v734
      %v737 = vsel %vm585, %v729, %v736
      %v738 = vrot.slane %v733, 4
      %v740 = vshrl.u32 %v570, 16
      %v742 = vrot.slane %v740, 7
      %v743 = vshll.u32 %v570, 16
      %v745 = vor.u32 %v742, %v743
      %v746 = vrot.slane %v742, 4
      %v748 = vshrl.u32 %v571, 16
      %v750 = vrot.slane %v748, 7
      %v751 = vshll.u32 %v571, 16
      %v753 = vor.u32 %v750, %v751
      %v754 = vsel %vm585, %v746, %v753
      %v755 = vrot.slane %v750, 4
      %v757 = vshrl.u32 %v572, 16
      %v759 = vrot.slane %v757, 7
      %v760 = vshll.u32 %v572, 16
      %v762 = vor.u32 %v759, %v760
      %v763 = vrot.slane %v759, 4
      %v765 = vshrl.u32 %v573, 16
      %v767 = vrot.slane %v765, 7
      %v768 = vshll.u32 %v573, 16
      %v770 = vor.u32 %v767, %v768
      %v771 = vsel %vm585, %v763, %v770
      %v772 = vrot.slane %v767, 4
      %v774 = vshrl.u32 %v574, 16
      %v776 = vrot.slane %v774, 7
      %v777 = vshll.u32 %v574, 16
      %v779 = vor.u32 %v776, %v777
      %v780 = vrot.slane %v776, 4
      %v782 = vshrl.u32 %v575, 16
      %v784 = vrot.slane %v782, 7
      %v785 = vshll.u32 %v575, 16
      %v787 = vor.u32 %v784, %v785
      %v788 = vsel %vm585, %v780, %v787
      %v789 = vrot.slane %v784, 4
      %v791 = vshrl.u32 %v576, 16
      %v793 = vrot.slane %v791, 7
      %v794 = vshll.u32 %v576, 16
      %v796 = vor.u32 %v793, %v794
      %v797 = vrot.slane %v793, 4
      %v799 = vshrl.u32 %v577, 16
      %v801 = vrot.slane %v799, 7
      %v802 = vshll.u32 %v577, 16
      %v804 = vor.u32 %v801, %v802
      %v805 = vsel %vm585, %v797, %v804
      %v806 = vrot.slane %v801, 4
      %v808 = vshrl.u32 %v578, 16
      %v810 = vrot.slane %v808, 7
      %v811 = vshll.u32 %v578, 16
      %v813 = vor.u32 %v810, %v811
      %v814 = vrot.slane %v810, 4
      %v816 = vshrl.u32 %v579, 16
      %v818 = vrot.slane %v816, 7
      %v819 = vshll.u32 %v579, 16
      %v821 = vor.u32 %v818, %v819
      %v822 = vsel %vm585, %v814, %v821
      %v823 = vrot.slane %v818, 4
      %v825 = vshrl.u32 %v580, 16
      %v827 = vrot.slane %v825, 7
      %v828 = vshll.u32 %v580, 16
      %v830 = vor.u32 %v827, %v828
      %v831 = vrot.slane %v827, 4
      %v833 = vshrl.u32 %v581, 16
      %v835 = vrot.slane %v833, 7
      %v836 = vshll.u32 %v581, 16
      %v838 = vor.u32 %v835, %v836
      %v839 = vsel %vm585, %v831, %v838
      %v840 = vrot.slane %v835, 4
      %v842 = vshrl.u32 %v582, 16
      %v844 = vrot.slane %v842, 7
      %v845 = vshll.u32 %v582, 16
      %v847 = vor.u32 %v844, %v845
      %v848 = vrot.slane %v844, 4
      %v850 = vshrl.u32 %v583, 16
      %v852 = vrot.slane %v850, 7
      %v853 = vshll.u32 %v583, 16
      %v855 = vor.u32 %v852, %v853
      %v856 = vsel %vm585, %v848, %v855
      %v857 = vrot.slane %v852, 4
      %vm906 = vcmask 1043456
      %vm907 = vmand %vm906, %vm454
      %v908 = vld [vmem:[%s402] sm:$0xf]
      %v909 = vsel %vm907, %v592, %v908
      %910 = vst [vmem:[%s402] sm:$0xf] %v909
      %911 = vst [vmem:[%s402 + $0x4] sm:$0xf] %v601
      %v912 = vld [vmem:[%s402 + $0x8] sm:$0x1]
      %v913 = vsel %vm405, %v602, %v912
      %914 = vst [vmem:[%s402 + $0x8] sm:$0x1] %v913
      %v915 = vld [vmem:[%s402 + $0xc] sm:$0xf]
      %v916 = vsel %vm907, %v609, %v915
      %917 = vst [vmem:[%s402 + $0xc] sm:$0xf] %v916
      %918 = vst [vmem:[%s402 + $0x10] sm:$0xf] %v618
      %v919 = vld [vmem:[%s402 + $0x14] sm:$0x1]
      %v920 = vsel %vm405, %v619, %v919
      %921 = vst [vmem:[%s402 + $0x14] sm:$0x1] %v920
      %v922 = vld [vmem:[%s402 + $0x18] sm:$0xf]
      %v923 = vsel %vm907, %v626, %v922
      %924 = vst [vmem:[%s402 + $0x18] sm:$0xf] %v923
      %925 = vst [vmem:[%s402 + $0x1c] sm:$0xf] %v635
      %v926 = vld [vmem:[%s402 + $0x20] sm:$0x1]
      %v927 = vsel %vm405, %v636, %v926
      %928 = vst [vmem:[%s402 + $0x20] sm:$0x1] %v927
      %v929 = vld [vmem:[%s402 + $0x24] sm:$0xf]
      %v930 = vsel %vm907, %v643, %v929
      %931 = vst [vmem:[%s402 + $0x24] sm:$0xf] %v930
      %932 = vst [vmem:[%s402 + $0x28] sm:$0xf] %v652
      %v933 = vld [vmem:[%s402 + $0x2c] sm:$0x1]
      %v934 = vsel %vm405, %v653, %v933
      %935 = vst [vmem:[%s402 + $0x2c] sm:$0x1] %v934
      %v936 = vld [vmem:[%s402 + $0x30] sm:$0xf]
      %v937 = vsel %vm907, %v660, %v936
      %938 = vst [vmem:[%s402 + $0x30] sm:$0xf] %v937
      %939 = vst [vmem:[%s402 + $0x34] sm:$0xf] %v669
      %v940 = vld [vmem:[%s402 + $0x38] sm:$0x1]
      %v941 = vsel %vm405, %v670, %v940
      %942 = vst [vmem:[%s402 + $0x38] sm:$0x1] %v941
      %v943 = vld [vmem:[%s402 + $0x3c] sm:$0xf]
      %v944 = vsel %vm907, %v677, %v943
      %945 = vst [vmem:[%s402 + $0x3c] sm:$0xf] %v944
      %946 = vst [vmem:[%s402 + $0x40] sm:$0xf] %v686
      %v947 = vld [vmem:[%s402 + $0x44] sm:$0x1]
      %v948 = vsel %vm405, %v687, %v947
      %949 = vst [vmem:[%s402 + $0x44] sm:$0x1] %v948
      %v950 = vld [vmem:[%s402 + $0x48] sm:$0xf]
      %v951 = vsel %vm907, %v694, %v950
      %952 = vst [vmem:[%s402 + $0x48] sm:$0xf] %v951
      %953 = vst [vmem:[%s402 + $0x4c] sm:$0xf] %v703
      %v954 = vld [vmem:[%s402 + $0x50] sm:$0x1]
      %v955 = vsel %vm405, %v704, %v954
      %956 = vst [vmem:[%s402 + $0x50] sm:$0x1] %v955
      %v957 = vld [vmem:[%s402 + $0x54] sm:$0xf]
      %v958 = vsel %vm907, %v711, %v957
      %959 = vst [vmem:[%s402 + $0x54] sm:$0xf] %v958
      %960 = vst [vmem:[%s402 + $0x58] sm:$0xf] %v720
      %v961 = vld [vmem:[%s402 + $0x5c] sm:$0x1]
      %v962 = vsel %vm405, %v721, %v961
      %963 = vst [vmem:[%s402 + $0x5c] sm:$0x1] %v962
      %v964 = vld [vmem:[%s402 + $0x60] sm:$0xf]
      %v965 = vsel %vm907, %v728, %v964
      %966 = vst [vmem:[%s402 + $0x60] sm:$0xf] %v965
      %967 = vst [vmem:[%s402 + $0x64] sm:$0xf] %v737
      %v968 = vld [vmem:[%s402 + $0x68] sm:$0x1]
      %v969 = vsel %vm405, %v738, %v968
      %970 = vst [vmem:[%s402 + $0x68] sm:$0x1] %v969
      %v971 = vld [vmem:[%s402 + $0x6c] sm:$0xf]
      %v972 = vsel %vm907, %v745, %v971
      %973 = vst [vmem:[%s402 + $0x6c] sm:$0xf] %v972
      %974 = vst [vmem:[%s402 + $0x70] sm:$0xf] %v754
      %v975 = vld [vmem:[%s402 + $0x74] sm:$0x1]
      %v976 = vsel %vm405, %v755, %v975
      %977 = vst [vmem:[%s402 + $0x74] sm:$0x1] %v976
      %v978 = vld [vmem:[%s402 + $0x78] sm:$0xf]
      %v979 = vsel %vm907, %v762, %v978
      %980 = vst [vmem:[%s402 + $0x78] sm:$0xf] %v979
      %981 = vst [vmem:[%s402 + $0x7c] sm:$0xf] %v771
      %v982 = vld [vmem:[%s402 + $0x80] sm:$0x1]
      %v983 = vsel %vm405, %v772, %v982
      %984 = vst [vmem:[%s402 + $0x80] sm:$0x1] %v983
      %v985 = vld [vmem:[%s402 + $0x84] sm:$0xf]
      %v986 = vsel %vm907, %v779, %v985
      %987 = vst [vmem:[%s402 + $0x84] sm:$0xf] %v986
      %988 = vst [vmem:[%s402 + $0x88] sm:$0xf] %v788
      %v989 = vld [vmem:[%s402 + $0x8c] sm:$0x1]
      %v990 = vsel %vm405, %v789, %v989
      %991 = vst [vmem:[%s402 + $0x8c] sm:$0x1] %v990
      %v992 = vld [vmem:[%s402 + $0x90] sm:$0xf]
      %v993 = vsel %vm907, %v796, %v992
      %994 = vst [vmem:[%s402 + $0x90] sm:$0xf] %v993
      %995 = vst [vmem:[%s402 + $0x94] sm:$0xf] %v805
      %v996 = vld [vmem:[%s402 + $0x98] sm:$0x1]
      %v997 = vsel %vm405, %v806, %v996
      %998 = vst [vmem:[%s402 + $0x98] sm:$0x1] %v997
      %v999 = vld [vmem:[%s402 + $0x9c] sm:$0xf]
      %v1000 = vsel %vm907, %v813, %v999
      %1001 = vst [vmem:[%s402 + $0x9c] sm:$0xf] %v1000
      %1002 = vst [vmem:[%s402 + $0xa0] sm:$0xf] %v822
      %v1003 = vld [vmem:[%s402 + $0xa4] sm:$0x1]
      %v1004 = vsel %vm405, %v823, %v1003
      %1005 = vst [vmem:[%s402 + $0xa4] sm:$0x1] %v1004
      %v1006 = vld [vmem:[%s402 + $0xa8] sm:$0xf]
      %v1007 = vsel %vm907, %v830, %v1006
      %1008 = vst [vmem:[%s402 + $0xa8] sm:$0xf] %v1007
      %1009 = vst [vmem:[%s402 + $0xac] sm:$0xf] %v839
      %v1010 = vld [vmem:[%s402 + $0xb0] sm:$0x1]
      %v1011 = vsel %vm405, %v840, %v1010
      %1012 = vst [vmem:[%s402 + $0xb0] sm:$0x1] %v1011
      %v1013 = vld [vmem:[%s402 + $0xb4] sm:$0xf]
      %v1014 = vsel %vm907, %v847, %v1013
      %1015 = vst [vmem:[%s402 + $0xb4] sm:$0xf] %v1014
      %1016 = vst [vmem:[%s402 + $0xb8] sm:$0xf] %v856
      %v1017 = vld [vmem:[%s402 + $0xbc] sm:$0x1]
      %v1018 = vsel %vm405, %v857, %v1017
      %1019 = vst [vmem:[%s402 + $0xbc] sm:$0x1] %v1018
      %v1020 = vld [vmem:[#allocation2] sm:$0xf]
      %v1021 = vld [vmem:[#allocation2 + $0x4] sm:$0xf]
      %v1022 = vld [vmem:[#allocation2 + $0xc] sm:$0xf]
      %v1023 = vld [vmem:[#allocation2 + $0x10] sm:$0xf]
      %v1024 = vld [vmem:[#allocation2 + $0x18] sm:$0xf]
      %v1025 = vld [vmem:[#allocation2 + $0x1c] sm:$0xf]
      %v1026 = vld [vmem:[#allocation2 + $0x24] sm:$0xf]
      %v1027 = vld [vmem:[#allocation2 + $0x28] sm:$0xf]
      %v1028 = vld [vmem:[#allocation2 + $0x30] sm:$0xf]
      %v1029 = vld [vmem:[#allocation2 + $0x34] sm:$0xf]
      %v1030 = vld [vmem:[#allocation2 + $0x3c] sm:$0xf]
      %v1031 = vld [vmem:[#allocation2 + $0x40] sm:$0xf]
      %v1032 = vld [vmem:[#allocation2 + $0x48] sm:$0xf]
      %v1033 = vld [vmem:[#allocation2 + $0x4c] sm:$0xf]
      %v1034 = vld [vmem:[#allocation2 + $0x54] sm:$0xf]
      %v1035 = vld [vmem:[#allocation2 + $0x58] sm:$0xf]
      %v1036 = vld [vmem:[#allocation2 + $0x60] sm:$0xf]
      %v1037 = vld [vmem:[#allocation2 + $0x64] sm:$0xf]
      %v1038 = vld [vmem:[#allocation2 + $0x6c] sm:$0xf]
      %v1039 = vld [vmem:[#allocation2 + $0x70] sm:$0xf]
      %v1040 = vld [vmem:[#allocation2 + $0x78] sm:$0xf]
      %v1041 = vld [vmem:[#allocation2 + $0x7c] sm:$0xf]
      %v1042 = vld [vmem:[#allocation2 + $0x84] sm:$0xf]
      %v1043 = vld [vmem:[#allocation2 + $0x88] sm:$0xf]
      %v1044 = vld [vmem:[#allocation2 + $0x90] sm:$0xf]
      %v1045 = vld [vmem:[#allocation2 + $0x94] sm:$0xf]
      %v1046 = vld [vmem:[#allocation2 + $0x9c] sm:$0xf]
      %v1047 = vld [vmem:[#allocation2 + $0xa0] sm:$0xf]
      %v1048 = vld [vmem:[#allocation2 + $0xa8] sm:$0xf]
      %v1049 = vld [vmem:[#allocation2 + $0xac] sm:$0xf]
      %v1050 = vld [vmem:[#allocation2 + $0xb4] sm:$0xf]
      %v1051 = vld [vmem:[#allocation2 + $0xb8] sm:$0xf]
      %v1084 = vunpack.c.l.b16 %v1020
      %v1085 = vunpack.c.l.b16 %v1021
      %v1086 = vunpack.c.l.b16 %v1022
      %v1087 = vunpack.c.l.b16 %v1023
      %v1088 = vunpack.c.l.b16 %v1024
      %v1089 = vunpack.c.l.b16 %v1025
      %v1090 = vunpack.c.l.b16 %v1026
      %v1091 = vunpack.c.l.b16 %v1027
      %v1092 = vunpack.c.l.b16 %v1028
      %v1093 = vunpack.c.l.b16 %v1029
      %v1094 = vunpack.c.l.b16 %v1030
      %v1095 = vunpack.c.l.b16 %v1031
      %v1096 = vunpack.c.l.b16 %v1032
      %v1097 = vunpack.c.l.b16 %v1033
      %v1098 = vunpack.c.l.b16 %v1034
      %v1099 = vunpack.c.l.b16 %v1035
      %v1100 = vunpack.c.l.b16 %v1036
      %v1101 = vunpack.c.l.b16 %v1037
      %v1102 = vunpack.c.l.b16 %v1038
      %v1103 = vunpack.c.l.b16 %v1039
      %v1104 = vunpack.c.l.b16 %v1040
      %v1105 = vunpack.c.l.b16 %v1041
      %v1106 = vunpack.c.l.b16 %v1042
      %v1107 = vunpack.c.l.b16 %v1043
      %v1108 = vunpack.c.l.b16 %v1044
      %v1109 = vunpack.c.l.b16 %v1045
      %v1110 = vunpack.c.l.b16 %v1046
      %v1111 = vunpack.c.l.b16 %v1047
      %v1112 = vunpack.c.l.b16 %v1048
      %v1113 = vunpack.c.l.b16 %v1049
      %v1114 = vunpack.c.l.b16 %v1050
      %v1115 = vunpack.c.l.b16 %v1051
      %v1116 = vpack.c.b16 %v1085, %v1084
      %v1117 = vpack.c.b16 %v1087, %v1086
      %v1118 = vpack.c.b16 %v1089, %v1088
      %v1119 = vpack.c.b16 %v1091, %v1090
      %v1120 = vpack.c.b16 %v1093, %v1092
      %v1121 = vpack.c.b16 %v1095, %v1094
      %v1122 = vpack.c.b16 %v1097, %v1096
      %v1123 = vpack.c.b16 %v1099, %v1098
      %v1124 = vpack.c.b16 %v1101, %v1100
      %v1125 = vpack.c.b16 %v1103, %v1102
      %v1126 = vpack.c.b16 %v1105, %v1104
      %v1127 = vpack.c.b16 %v1107, %v1106
      %v1128 = vpack.c.b16 %v1109, %v1108
      %v1129 = vpack.c.b16 %v1111, %v1110
      %v1130 = vpack.c.b16 %v1113, %v1112
      %v1131 = vpack.c.b16 %v1115, %v1114
      %1148 = vst [vmem:[#allocation3] sm:$0xff] %v1116
      %1149 = vst [vmem:[#allocation3 + $0x48] sm:$0xff] %v1117
      %1150 = vst [vmem:[#allocation3 + $0x90] sm:$0xff] %v1118
      %1151 = vst [vmem:[#allocation3 + $0xd8] sm:$0xff] %v1119
      %1152 = vst [vmem:[#allocation3 + $0x120] sm:$0xff] %v1120
      %1153 = vst [vmem:[#allocation3 + $0x168] sm:$0xff] %v1121
      %1154 = vst [vmem:[#allocation3 + $0x1b0] sm:$0xff] %v1122
      %1155 = vst [vmem:[#allocation3 + $0x1f8] sm:$0xff] %v1123
      %1156 = vst [vmem:[#allocation3 + $0x240] sm:$0xff] %v1124
      %1157 = vst [vmem:[#allocation3 + $0x288] sm:$0xff] %v1125
      %1158 = vst [vmem:[#allocation3 + $0x2d0] sm:$0xff] %v1126
      %1159 = vst [vmem:[#allocation3 + $0x318] sm:$0xff] %v1127
      %1160 = vst [vmem:[#allocation3 + $0x360] sm:$0xff] %v1128
      %1161 = vst [vmem:[#allocation3 + $0x3a8] sm:$0xff] %v1129
      %1162 = vst [vmem:[#allocation3 + $0x3f0] sm:$0xff] %v1130
      %1163 = vst [vmem:[#allocation3 + $0x438] sm:$0xff] %v1131
      %v1164 = vld [vmem:[#allocation2] sm:$0xf]
      %v1165 = vld [vmem:[#allocation2 + $0x4] sm:$0xf]
      %v1166 = vld [vmem:[#allocation2 + $0x8] sm:$0x1]
      %v1167 = vld [vmem:[#allocation2 + $0xc] sm:$0xf]
      %v1168 = vld [vmem:[#allocation2 + $0x10] sm:$0xf]
      %v1169 = vld [vmem:[#allocation2 + $0x14] sm:$0x1]
      %v1170 = vld [vmem:[#allocation2 + $0x18] sm:$0xf]
      %v1171 = vld [vmem:[#allocation2 + $0x1c] sm:$0xf]
      %v1172 = vld [vmem:[#allocation2 + $0x20] sm:$0x1]
      %v1173 = vld [vmem:[#allocation2 + $0x24] sm:$0xf]
      %v1174 = vld [vmem:[#allocation2 + $0x28] sm:$0xf]
      %v1175 = vld [vmem:[#allocation2 + $0x2c] sm:$0x1]
      %v1176 = vld [vmem:[#allocation2 + $0x30] sm:$0xf]
      %v1177 = vld [vmem:[#allocation2 + $0x34] sm:$0xf]
      %v1178 = vld [vmem:[#allocation2 + $0x38] sm:$0x1]
      %v1179 = vld [vmem:[#allocation2 + $0x3c] sm:$0xf]
      %v1180 = vld [vmem:[#allocation2 + $0x40] sm:$0xf]
      %v1181 = vld [vmem:[#allocation2 + $0x44] sm:$0x1]
      %v1182 = vld [vmem:[#allocation2 + $0x48] sm:$0xf]
      %v1183 = vld [vmem:[#allocation2 + $0x4c] sm:$0xf]
      %v1184 = vld [vmem:[#allocation2 + $0x50] sm:$0x1]
      %v1185 = vld [vmem:[#allocation2 + $0x54] sm:$0xf]
      %v1186 = vld [vmem:[#allocation2 + $0x58] sm:$0xf]
      %v1187 = vld [vmem:[#allocation2 + $0x5c] sm:$0x1]
      %v1188 = vld [vmem:[#allocation2 + $0x60] sm:$0xf]
      %v1189 = vld [vmem:[#allocation2 + $0x64] sm:$0xf]
      %v1190 = vld [vmem:[#allocation2 + $0x68] sm:$0x1]
      %v1191 = vld [vmem:[#allocation2 + $0x6c] sm:$0xf]
      %v1192 = vld [vmem:[#allocation2 + $0x70] sm:$0xf]
      %v1193 = vld [vmem:[#allocation2 + $0x74] sm:$0x1]
      %v1194 = vld [vmem:[#allocation2 + $0x78] sm:$0xf]
      %v1195 = vld [vmem:[#allocation2 + $0x7c] sm:$0xf]
      %v1196 = vld [vmem:[#allocation2 + $0x80] sm:$0x1]
      %v1197 = vld [vmem:[#allocation2 + $0x84] sm:$0xf]
      %v1198 = vld [vmem:[#allocation2 + $0x88] sm:$0xf]
      %v1199 = vld [vmem:[#allocation2 + $0x8c] sm:$0x1]
      %v1200 = vld [vmem:[#allocation2 + $0x90] sm:$0xf]
      %v1201 = vld [vmem:[#allocation2 + $0x94] sm:$0xf]
      %v1202 = vld [vmem:[#allocation2 + $0x98] sm:$0x1]
      %v1203 = vld [vmem:[#allocation2 + $0x9c] sm:$0xf]
      %v1204 = vld [vmem:[#allocation2 + $0xa0] sm:$0xf]
      %v1205 = vld [vmem:[#allocation2 + $0xa4] sm:$0x1]
      %v1206 = vld [vmem:[#allocation2 + $0xa8] sm:$0xf]
      %v1207 = vld [vmem:[#allocation2 + $0xac] sm:$0xf]
      %v1208 = vld [vmem:[#allocation2 + $0xb0] sm:$0x1]
      %v1209 = vld [vmem:[#allocation2 + $0xb4] sm:$0xf]
      %v1210 = vld [vmem:[#allocation2 + $0xb8] sm:$0xf]
      %v1211 = vld [vmem:[#allocation2 + $0xbc] sm:$0x1]
      %vm1212 = vsmask.f32 3328
      %vm1213 = vsmask.f32 7440
      %vm1214 = vmor %vm1212, %vm1213
      %v1216 = vshrl.u32 %v1164, 16
      %v1218 = vrot.slane %v1216, 4
      %v1219 = vshll.u32 %v1164, 16
      %v1221 = vrot.slane %v1219, 5
      %v1222 = vor.u32 %v1218, %v1221
      %v1223 = vrot.slane %v1222, 4
      %v1225 = vshll.u32 %v1165, 16
      %v1227 = vrot.slane %v1225, 5
      %v1228 = vsel %vm1214, %v1223, %v1227
      %v1229 = vshrl.u32 %v1165, 16
      %v1231 = vrot.slane %v1229, 4
      %v1232 = vor.u32 %v1231, %v1227
      %v1233 = vrot.slane %v1232, 4
      %v1235 = vshll.u32 %v1166, 16
      %v1237 = vrot.slane %v1235, 5
      %v1238 = vsel %vm1214, %v1233, %v1237
      %v1240 = vshrl.u32 %v1167, 16
      %v1242 = vrot.slane %v1240, 4
      %v1243 = vshll.u32 %v1167, 16
      %v1245 = vrot.slane %v1243, 5
      %v1246 = vor.u32 %v1242, %v1245
      %v1247 = vrot.slane %v1246, 4
      %v1249 = vshll.u32 %v1168, 16
      %v1251 = vrot.slane %v1249, 5
      %v1252 = vsel %vm1214, %v1247, %v1251
      %v1253 = vshrl.u32 %v1168, 16
      %v1255 = vrot.slane %v1253, 4
      %v1256 = vor.u32 %v1255, %v1251
      %v1257 = vrot.slane %v1256, 4
      %v1259 = vshll.u32 %v1169, 16
      %v1261 = vrot.slane %v1259, 5
      %v1262 = vsel %vm1214, %v1257, %v1261
      %v1264 = vshrl.u32 %v1170, 16
      %v1266 = vrot.slane %v1264, 4
      %v1267 = vshll.u32 %v1170, 16
      %v1269 = vrot.slane %v1267, 5
      %v1270 = vor.u32 %v1266, %v1269
      %v1271 = vrot.slane %v1270, 4
      %v1273 = vshll.u32 %v1171, 16
      %v1275 = vrot.slane %v1273, 5
      %v1276 = vsel %vm1214, %v1271, %v1275
      %v1277 = vshrl.u32 %v1171, 16
      %v1279 = vrot.slane %v1277, 4
      %v1280 = vor.u32 %v1279, %v1275
      %v1281 = vrot.slane %v1280, 4
      %v1283 = vshll.u32 %v1172, 16
      %v1285 = vrot.slane %v1283, 5
      %v1286 = vsel %vm1214, %v1281, %v1285
      %v1288 = vshrl.u32 %v1173, 16
      %v1290 = vrot.slane %v1288, 4
      %v1291 = vshll.u32 %v1173, 16
      %v1293 = vrot.slane %v1291, 5
      %v1294 = vor.u32 %v1290, %v1293
      %v1295 = vrot.slane %v1294, 4
      %v1297 = vshll.u32 %v1174, 16
      %v1299 = vrot.slane %v1297, 5
      %v1300 = vsel %vm1214, %v1295, %v1299
      %v1301 = vshrl.u32 %v1174, 16
      %v1303 = vrot.slane %v1301, 4
      %v1304 = vor.u32 %v1303, %v1299
      %v1305 = vrot.slane %v1304, 4
      %v1307 = vshll.u32 %v1175, 16
      %v1309 = vrot.slane %v1307, 5
      %v1310 = vsel %vm1214, %v1305, %v1309
      %v1312 = vshrl.u32 %v1176, 16
      %v1314 = vrot.slane %v1312, 4
      %v1315 = vshll.u32 %v1176, 16
      %v1317 = vrot.slane %v1315, 5
      %v1318 = vor.u32 %v1314, %v1317
      %v1319 = vrot.slane %v1318, 4
      %v1321 = vshll.u32 %v1177, 16
      %v1323 = vrot.slane %v1321, 5
      %v1324 = vsel %vm1214, %v1319, %v1323
      %v1325 = vshrl.u32 %v1177, 16
      %v1327 = vrot.slane %v1325, 4
      %v1328 = vor.u32 %v1327, %v1323
      %v1329 = vrot.slane %v1328, 4
      %v1331 = vshll.u32 %v1178, 16
      %v1333 = vrot.slane %v1331, 5
      %v1334 = vsel %vm1214, %v1329, %v1333
      %v1336 = vshrl.u32 %v1179, 16
      %v1338 = vrot.slane %v1336, 4
      %v1339 = vshll.u32 %v1179, 16
      %v1341 = vrot.slane %v1339, 5
      %v1342 = vor.u32 %v1338, %v1341
      %v1343 = vrot.slane %v1342, 4
      %v1345 = vshll.u32 %v1180, 16
      %v1347 = vrot.slane %v1345, 5
      %v1348 = vsel %vm1214, %v1343, %v1347
      %v1349 = vshrl.u32 %v1180, 16
      %v1351 = vrot.slane %v1349, 4
      %v1352 = vor.u32 %v1351, %v1347
      %v1353 = vrot.slane %v1352, 4
      %v1355 = vshll.u32 %v1181, 16
      %v1357 = vrot.slane %v1355, 5
      %v1358 = vsel %vm1214, %v1353, %v1357
      %v1360 = vshrl.u32 %v1182, 16
      %v1362 = vrot.slane %v1360, 4
      %v1363 = vshll.u32 %v1182, 16
      %v1365 = vrot.slane %v1363, 5
      %v1366 = vor.u32 %v1362, %v1365
      %v1367 = vrot.slane %v1366, 4
      %v1369 = vshll.u32 %v1183, 16
      %v1371 = vrot.slane %v1369, 5
      %v1372 = vsel %vm1214, %v1367, %v1371
      %v1373 = vshrl.u32 %v1183, 16
      %v1375 = vrot.slane %v1373, 4
      %v1376 = vor.u32 %v1375, %v1371
      %v1377 = vrot.slane %v1376, 4
      %v1379 = vshll.u32 %v1184, 16
      %v1381 = vrot.slane %v1379, 5
      %v1382 = vsel %vm1214, %v1377, %v1381
      %v1384 = vshrl.u32 %v1185, 16
      %v1386 = vrot.slane %v1384, 4
      %v1387 = vshll.u32 %v1185, 16
      %v1389 = vrot.slane %v1387, 5
      %v1390 = vor.u32 %v1386, %v1389
      %v1391 = vrot.slane %v1390, 4
      %v1393 = vshll.u32 %v1186, 16
      %v1395 = vrot.slane %v1393, 5
      %v1396 = vsel %vm1214, %v1391, %v1395
      %v1397 = vshrl.u32 %v1186, 16
      %v1399 = vrot.slane %v1397, 4
      %v1400 = vor.u32 %v1399, %v1395
      %v1401 = vrot.slane %v1400, 4
      %v1403 = vshll.u32 %v1187, 16
      %v1405 = vrot.slane %v1403, 5
      %v1406 = vsel %vm1214, %v1401, %v1405
      %v1408 = vshrl.u32 %v1188, 16
      %v1410 = vrot.slane %v1408, 4
      %v1411 = vshll.u32 %v1188, 16
      %v1413 = vrot.slane %v1411, 5
      %v1414 = vor.u32 %v1410, %v1413
      %v1415 = vrot.slane %v1414, 4
      %v1417 = vshll.u32 %v1189, 16
      %v1419 = vrot.slane %v1417, 5
      %v1420 = vsel %vm1214, %v1415, %v1419
      %v1421 = vshrl.u32 %v1189, 16
      %v1423 = vrot.slane %v1421, 4
      %v1424 = vor.u32 %v1423, %v1419
      %v1425 = vrot.slane %v1424, 4
      %v1427 = vshll.u32 %v1190, 16
      %v1429 = vrot.slane %v1427, 5
      %v1430 = vsel %vm1214, %v1425, %v1429
      %v1432 = vshrl.u32 %v1191, 16
      %v1434 = vrot.slane %v1432, 4
      %v1435 = vshll.u32 %v1191, 16
      %v1437 = vrot.slane %v1435, 5
      %v1438 = vor.u32 %v1434, %v1437
      %v1439 = vrot.slane %v1438, 4
      %v1441 = vshll.u32 %v1192, 16
      %v1443 = vrot.slane %v1441, 5
      %v1444 = vsel %vm1214, %v1439, %v1443
      %v1445 = vshrl.u32 %v1192, 16
      %v1447 = vrot.slane %v1445, 4
      %v1448 = vor.u32 %v1447, %v1443
      %v1449 = vrot.slane %v1448, 4
      %v1451 = vshll.u32 %v1193, 16
      %v1453 = vrot.slane %v1451, 5
      %v1454 = vsel %vm1214, %v1449, %v1453
      %v1456 = vshrl.u32 %v1194, 16
      %v1458 = vrot.slane %v1456, 4
      %v1459 = vshll.u32 %v1194, 16
      %v1461 = vrot.slane %v1459, 5
      %v1462 = vor.u32 %v1458, %v1461
      %v1463 = vrot.slane %v1462, 4
      %v1465 = vshll.u32 %v1195, 16
      %v1467 = vrot.slane %v1465, 5
      %v1468 = vsel %vm1214, %v1463, %v1467
      %v1469 = vshrl.u32 %v1195, 16
      %v1471 = vrot.slane %v1469, 4
      %v1472 = vor.u32 %v1471, %v1467
      %v1473 = vrot.slane %v1472, 4
      %v1475 = vshll.u32 %v1196, 16
      %v1477 = vrot.slane %v1475, 5
      %v1478 = vsel %vm1214, %v1473, %v1477
      %v1480 = vshrl.u32 %v1197, 16
      %v1482 = vrot.slane %v1480, 4
      %v1483 = vshll.u32 %v1197, 16
      %v1485 = vrot.slane %v1483, 5
      %v1486 = vor.u32 %v1482, %v1485
      %v1487 = vrot.slane %v1486, 4
      %v1489 = vshll.u32 %v1198, 16
      %v1491 = vrot.slane %v1489, 5
      %v1492 = vsel %vm1214, %v1487, %v1491
      %v1493 = vshrl.u32 %v1198, 16
      %v1495 = vrot.slane %v1493, 4
      %v1496 = vor.u32 %v1495, %v1491
      %v1497 = vrot.slane %v1496, 4
      %v1499 = vshll.u32 %v1199, 16
      %v1501 = vrot.slane %v1499, 5
      %v1502 = vsel %vm1214, %v1497, %v1501
      %v1504 = vshrl.u32 %v1200, 16
      %v1506 = vrot.slane %v1504, 4
      %v1507 = vshll.u32 %v1200, 16
      %v1509 = vrot.slane %v1507, 5
      %v1510 = vor.u32 %v1506, %v1509
      %v1511 = vrot.slane %v1510, 4
      %v1513 = vshll.u32 %v1201, 16
      %v1515 = vrot.slane %v1513, 5
      %v1516 = vsel %vm1214, %v1511, %v1515
      %v1517 = vshrl.u32 %v1201, 16
      %v1519 = vrot.slane %v1517, 4
      %v1520 = vor.u32 %v1519, %v1515
      %v1521 = vrot.slane %v1520, 4
      %v1523 = vshll.u32 %v1202, 16
      %v1525 = vrot.slane %v1523, 5
      %v1526 = vsel %vm1214, %v1521, %v1525
      %v1528 = vshrl.u32 %v1203, 16
      %v1530 = vrot.slane %v1528, 4
      %v1531 = vshll.u32 %v1203, 16
      %v1533 = vrot.slane %v1531, 5
      %v1534 = vor.u32 %v1530, %v1533
      %v1535 = vrot.slane %v1534, 4
      %v1537 = vshll.u32 %v1204, 16
      %v1539 = vrot.slane %v1537, 5
      %v1540 = vsel %vm1214, %v1535, %v1539
      %v1541 = vshrl.u32 %v1204, 16
      %v1543 = vrot.slane %v1541, 4
      %v1544 = vor.u32 %v1543, %v1539
      %v1545 = vrot.slane %v1544, 4
      %v1547 = vshll.u32 %v1205, 16
      %v1549 = vrot.slane %v1547, 5
      %v1550 = vsel %vm1214, %v1545, %v1549
      %v1552 = vshrl.u32 %v1206, 16
      %v1554 = vrot.slane %v1552, 4
      %v1555 = vshll.u32 %v1206, 16
      %v1557 = vrot.slane %v1555, 5
      %v1558 = vor.u32 %v1554, %v1557
      %v1559 = vrot.slane %v1558, 4
      %v1561 = vshll.u32 %v1207, 16
      %v1563 = vrot.slane %v1561, 5
      %v1564 = vsel %vm1214, %v1559, %v1563
      %v1565 = vshrl.u32 %v1207, 16
      %v1567 = vrot.slane %v1565, 4
      %v1568 = vor.u32 %v1567, %v1563
      %v1569 = vrot.slane %v1568, 4
      %v1571 = vshll.u32 %v1208, 16
      %v1573 = vrot.slane %v1571, 5
      %v1574 = vsel %vm1214, %v1569, %v1573
      %v1576 = vshrl.u32 %v1209, 16
      %v1578 = vrot.slane %v1576, 4
      %v1579 = vshll.u32 %v1209, 16
      %v1581 = vrot.slane %v1579, 5
      %v1582 = vor.u32 %v1578, %v1581
      %v1583 = vrot.slane %v1582, 4
      %v1585 = vshll.u32 %v1210, 16
      %v1587 = vrot.slane %v1585, 5
      %v1588 = vsel %vm1214, %v1583, %v1587
      %v1589 = vshrl.u32 %v1210, 16
      %v1591 = vrot.slane %v1589, 4
      %v1592 = vor.u32 %v1591, %v1587
      %v1593 = vrot.slane %v1592, 4
      %v1595 = vshll.u32 %v1211, 16
      %v1597 = vrot.slane %v1595, 5
      %v1598 = vsel %vm1214, %v1593, %v1597
      %v1599 = vunpack.c.l.b16 %v1228
      %v1600 = vunpack.c.l.b16 %v1238
      %v1601 = vunpack.c.l.b16 %v1252
      %v1602 = vunpack.c.l.b16 %v1262
      %v1603 = vunpack.c.l.b16 %v1276
      %v1604 = vunpack.c.l.b16 %v1286
      %v1605 = vunpack.c.l.b16 %v1300
      %v1606 = vunpack.c.l.b16 %v1310
      %v1607 = vunpack.c.l.b16 %v1324
      %v1608 = vunpack.c.l.b16 %v1334
      %v1609 = vunpack.c.l.b16 %v1348
      %v1610 = vunpack.c.l.b16 %v1358
      %v1611 = vunpack.c.l.b16 %v1372
      %v1612 = vunpack.c.l.b16 %v1382
      %v1613 = vunpack.c.l.b16 %v1396
      %v1614 = vunpack.c.l.b16 %v1406
      %v1615 = vunpack.c.l.b16 %v1420
      %v1616 = vunpack.c.l.b16 %v1430
      %v1617 = vunpack.c.l.b16 %v1444
      %v1618 = vunpack.c.l.b16 %v1454
      %v1619 = vunpack.c.l.b16 %v1468
      %v1620 = vunpack.c.l.b16 %v1478
      %v1621 = vunpack.c.l.b16 %v1492
      %v1622 = vunpack.c.l.b16 %v1502
      %v1623 = vunpack.c.l.b16 %v1516
      %v1624 = vunpack.c.l.b16 %v1526
      %v1625 = vunpack.c.l.b16 %v1540
      %v1626 = vunpack.c.l.b16 %v1550
      %v1627 = vunpack.c.l.b16 %v1564
      %v1628 = vunpack.c.l.b16 %v1574
      %v1629 = vunpack.c.l.b16 %v1588
      %v1630 = vunpack.c.l.b16 %v1598
      %v1631 = vpack.c.b16 %v1600, %v1599
      %v1632 = vpack.c.b16 %v1602, %v1601
      %v1633 = vpack.c.b16 %v1604, %v1603
      %v1634 = vpack.c.b16 %v1606, %v1605
      %v1635 = vpack.c.b16 %v1608, %v1607
      %v1636 = vpack.c.b16 %v1610, %v1609
      %v1637 = vpack.c.b16 %v1612, %v1611
      %v1638 = vpack.c.b16 %v1614, %v1613
      %v1639 = vpack.c.b16 %v1616, %v1615
      %v1640 = vpack.c.b16 %v1618, %v1617
      %v1641 = vpack.c.b16 %v1620, %v1619
      %v1642 = vpack.c.b16 %v1622, %v1621
      %v1643 = vpack.c.b16 %v1624, %v1623
      %v1644 = vpack.c.b16 %v1626, %v1625
      %v1645 = vpack.c.b16 %v1628, %v1627
      %v1646 = vpack.c.b16 %v1630, %v1629
      %1663 = vst [vmem:[#allocation3 + $0x8] sm:$0xff] %v1631
      %1664 = vst [vmem:[#allocation3 + $0x50] sm:$0xff] %v1632
      %1665 = vst [vmem:[#allocation3 + $0x98] sm:$0xff] %v1633
      %1666 = vst [vmem:[#allocation3 + $0xe0] sm:$0xff] %v1634
      %1667 = vst [vmem:[#allocation3 + $0x128] sm:$0xff] %v1635
      %1668 = vst [vmem:[#allocation3 + $0x170] sm:$0xff] %v1636
      %1669 = vst [vmem:[#allocation3 + $0x1b8] sm:$0xff] %v1637
      %1670 = vst [vmem:[#allocation3 + $0x200] sm:$0xff] %v1638
      %1671 = vst [vmem:[#allocation3 + $0x248] sm:$0xff] %v1639
      %1672 = vst [vmem:[#allocation3 + $0x290] sm:$0xff] %v1640
      %1673 = vst [vmem:[#allocation3 + $0x2d8] sm:$0xff] %v1641
      %1674 = vst [vmem:[#allocation3 + $0x320] sm:$0xff] %v1642
      %1675 = vst [vmem:[#allocation3 + $0x368] sm:$0xff] %v1643
      %1676 = vst [vmem:[#allocation3 + $0x3b0] sm:$0xff] %v1644
      %1677 = vst [vmem:[#allocation3 + $0x3f8] sm:$0xff] %v1645
      %1678 = vst [vmem:[#allocation3 + $0x440] sm:$0xff] %v1646
      %v1679 = vld [vmem:[#allocation2] sm:$0xe]
      %v1680 = vld [vmem:[#allocation2 + $0x4] sm:$0xf]
      %v1681 = vld [vmem:[#allocation2 + $0x8] sm:$0x1]
      %v1682 = vld [vmem:[#allocation2 + $0xc] sm:$0xe]
      %v1683 = vld [vmem:[#allocation2 + $0x10] sm:$0xf]
      %v1684 = vld [vmem:[#allocation2 + $0x14] sm:$0x1]
      %v1685 = vld [vmem:[#allocation2 + $0x18] sm:$0xe]
      %v1686 = vld [vmem:[#allocation2 + $0x1c] sm:$0xf]
      %v1687 = vld [vmem:[#allocation2 + $0x20] sm:$0x1]
      %v1688 = vld [vmem:[#allocation2 + $0x24] sm:$0xe]
      %v1689 = vld [vmem:[#allocation2 + $0x28] sm:$0xf]
      %v1690 = vld [vmem:[#allocation2 + $0x2c] sm:$0x1]
      %v1691 = vld [vmem:[#allocation2 + $0x30] sm:$0xe]
      %v1692 = vld [vmem:[#allocation2 + $0x34] sm:$0xf]
      %v1693 = vld [vmem:[#allocation2 + $0x38] sm:$0x1]
      %v1694 = vld [vmem:[#allocation2 + $0x3c] sm:$0xe]
      %v1695 = vld [vmem:[#allocation2 + $0x40] sm:$0xf]
      %v1696 = vld [vmem:[#allocation2 + $0x44] sm:$0x1]
      %v1697 = vld [vmem:[#allocation2 + $0x48] sm:$0xe]
      %v1698 = vld [vmem:[#allocation2 + $0x4c] sm:$0xf]
      %v1699 = vld [vmem:[#allocation2 + $0x50] sm:$0x1]
      %v1700 = vld [vmem:[#allocation2 + $0x54] sm:$0xe]
      %v1701 = vld [vmem:[#allocation2 + $0x58] sm:$0xf]
      %v1702 = vld [vmem:[#allocation2 + $0x5c] sm:$0x1]
      %v1703 = vld [vmem:[#allocation2 + $0x60] sm:$0xe]
      %v1704 = vld [vmem:[#allocation2 + $0x64] sm:$0xf]
      %v1705 = vld [vmem:[#allocation2 + $0x68] sm:$0x1]
      %v1706 = vld [vmem:[#allocation2 + $0x6c] sm:$0xe]
      %v1707 = vld [vmem:[#allocation2 + $0x70] sm:$0xf]
      %v1708 = vld [vmem:[#allocation2 + $0x74] sm:$0x1]
      %v1709 = vld [vmem:[#allocation2 + $0x78] sm:$0xe]
      %v1710 = vld [vmem:[#allocation2 + $0x7c] sm:$0xf]
      %v1711 = vld [vmem:[#allocation2 + $0x80] sm:$0x1]
      %v1712 = vld [vmem:[#allocation2 + $0x84] sm:$0xe]
      %v1713 = vld [vmem:[#allocation2 + $0x88] sm:$0xf]
      %v1714 = vld [vmem:[#allocation2 + $0x8c] sm:$0x1]
      %v1715 = vld [vmem:[#allocation2 + $0x90] sm:$0xe]
      %v1716 = vld [vmem:[#allocation2 + $0x94] sm:$0xf]
      %v1717 = vld [vmem:[#allocation2 + $0x98] sm:$0x1]
      %v1718 = vld [vmem:[#allocation2 + $0x9c] sm:$0xe]
      %v1719 = vld [vmem:[#allocation2 + $0xa0] sm:$0xf]
      %v1720 = vld [vmem:[#allocation2 + $0xa4] sm:$0x1]
      %v1721 = vld [vmem:[#allocation2 + $0xa8] sm:$0xe]
      %v1722 = vld [vmem:[#allocation2 + $0xac] sm:$0xf]
      %v1723 = vld [vmem:[#allocation2 + $0xb0] sm:$0x1]
      %v1724 = vld [vmem:[#allocation2 + $0xb4] sm:$0xe]
      %v1725 = vld [vmem:[#allocation2 + $0xb8] sm:$0xf]
      %v1726 = vld [vmem:[#allocation2 + $0xbc] sm:$0x1]
      %vm1775 = vcmask 1042432
      %vm1776 = vcmask 1046532
      %vm1777 = vmor %vm1775, %vm1776
      %v1778 = vrot.slane %v1679, 5
      %v1779 = vrot.slane %v1778, 4
      %v1780 = vrot.slane %v1680, 5
      %v1781 = vsel %vm1777, %v1779, %v1780
      %v1782 = vrot.slane %v1780, 4
      %v1783 = vrot.slane %v1681, 5
      %v1784 = vsel %vm1777, %v1782, %v1783
      %v1785 = vrot.slane %v1682, 5
      %v1786 = vrot.slane %v1785, 4
      %v1787 = vrot.slane %v1683, 5
      %v1788 = vsel %vm1777, %v1786, %v1787
      %v1789 = vrot.slane %v1787, 4
      %v1790 = vrot.slane %v1684, 5
      %v1791 = vsel %vm1777, %v1789, %v1790
      %v1792 = vrot.slane %v1685, 5
      %v1793 = vrot.slane %v1792, 4
      %v1794 = vrot.slane %v1686, 5
      %v1795 = vsel %vm1777, %v1793, %v1794
      %v1796 = vrot.slane %v1794, 4
      %v1797 = vrot.slane %v1687, 5
      %v1798 = vsel %vm1777, %v1796, %v1797
      %v1799 = vrot.slane %v1688, 5
      %v1800 = vrot.slane %v1799, 4
      %v1801 = vrot.slane %v1689, 5
      %v1802 = vsel %vm1777, %v1800, %v1801
      %v1803 = vrot.slane %v1801, 4
      %v1804 = vrot.slane %v1690, 5
      %v1805 = vsel %vm1777, %v1803, %v1804
      %v1806 = vrot.slane %v1691, 5
      %v1807 = vrot.slane %v1806, 4
      %v1808 = vrot.slane %v1692, 5
      %v1809 = vsel %vm1777, %v1807, %v1808
      %v1810 = vrot.slane %v1808, 4
      %v1811 = vrot.slane %v1693, 5
      %v1812 = vsel %vm1777, %v1810, %v1811
      %v1813 = vrot.slane %v1694, 5
      %v1814 = vrot.slane %v1813, 4
      %v1815 = vrot.slane %v1695, 5
      %v1816 = vsel %vm1777, %v1814, %v1815
      %v1817 = vrot.slane %v1815, 4
      %v1818 = vrot.slane %v1696, 5
      %v1819 = vsel %vm1777, %v1817, %v1818
      %v1820 = vrot.slane %v1697, 5
      %v1821 = vrot.slane %v1820, 4
      %v1822 = vrot.slane %v1698, 5
      %v1823 = vsel %vm1777, %v1821, %v1822
      %v1824 = vrot.slane %v1822, 4
      %v1825 = vrot.slane %v1699, 5
      %v1826 = vsel %vm1777, %v1824, %v1825
      %v1827 = vrot.slane %v1700, 5
      %v1828 = vrot.slane %v1827, 4
      %v1829 = vrot.slane %v1701, 5
      %v1830 = vsel %vm1777, %v1828, %v1829
      %v1831 = vrot.slane %v1829, 4
      %v1832 = vrot.slane %v1702, 5
      %v1833 = vsel %vm1777, %v1831, %v1832
      %v1834 = vrot.slane %v1703, 5
      %v1835 = vrot.slane %v1834, 4
      %v1836 = vrot.slane %v1704, 5
      %v1837 = vsel %vm1777, %v1835, %v1836
      %v1838 = vrot.slane %v1836, 4
      %v1839 = vrot.slane %v1705, 5
      %v1840 = vsel %vm1777, %v1838, %v1839
      %v1841 = vrot.slane %v1706, 5
      %v1842 = vrot.slane %v1841, 4
      %v1843 = vrot.slane %v1707, 5
      %v1844 = vsel %vm1777, %v1842, %v1843
      %v1845 = vrot.slane %v1843, 4
      %v1846 = vrot.slane %v1708, 5
      %v1847 = vsel %vm1777, %v1845, %v1846
      %v1848 = vrot.slane %v1709, 5
      %v1849 = vrot.slane %v1848, 4
      %v1850 = vrot.slane %v1710, 5
      %v1851 = vsel %vm1777, %v1849, %v1850
      %v1852 = vrot.slane %v1850, 4
      %v1853 = vrot.slane %v1711, 5
      %v1854 = vsel %vm1777, %v1852, %v1853
      %v1855 = vrot.slane %v1712, 5
      %v1856 = vrot.slane %v1855, 4
      %v1857 = vrot.slane %v1713, 5
      %v1858 = vsel %vm1777, %v1856, %v1857
      %v1859 = vrot.slane %v1857, 4
      %v1860 = vrot.slane %v1714, 5
      %v1861 = vsel %vm1777, %v1859, %v1860
      %v1862 = vrot.slane %v1715, 5
      %v1863 = vrot.slane %v1862, 4
      %v1864 = vrot.slane %v1716, 5
      %v1865 = vsel %vm1777, %v1863, %v1864
      %v1866 = vrot.slane %v1864, 4
      %v1867 = vrot.slane %v1717, 5
      %v1868 = vsel %vm1777, %v1866, %v1867
      %v1869 = vrot.slane %v1718, 5
      %v1870 = vrot.slane %v1869, 4
      %v1871 = vrot.slane %v1719, 5
      %v1872 = vsel %vm1777, %v1870, %v1871
      %v1873 = vrot.slane %v1871, 4
      %v1874 = vrot.slane %v1720, 5
      %v1875 = vsel %vm1777, %v1873, %v1874
      %v1876 = vrot.slane %v1721, 5
      %v1877 = vrot.slane %v1876, 4
      %v1878 = vrot.slane %v1722, 5
      %v1879 = vsel %vm1777, %v1877, %v1878
      %v1880 = vrot.slane %v1878, 4
      %v1881 = vrot.slane %v1723, 5
      %v1882 = vsel %vm1777, %v1880, %v1881
      %v1883 = vrot.slane %v1724, 5
      %v1884 = vrot.slane %v1883, 4
      %v1885 = vrot.slane %v1725, 5
      %v1886 = vsel %vm1777, %v1884, %v1885
      %v1887 = vrot.slane %v1885, 4
      %v1888 = vrot.slane %v1726, 5
      %v1889 = vsel %vm1777, %v1887, %v1888
      %v1890 = vunpack.c.l.b16 %v1781
      %v1891 = vunpack.c.l.b16 %v1784
      %v1892 = vunpack.c.l.b16 %v1788
      %v1893 = vunpack.c.l.b16 %v1791
      %v1894 = vunpack.c.l.b16 %v1795
      %v1895 = vunpack.c.l.b16 %v1798
      %v1896 = vunpack.c.l.b16 %v1802
      %v1897 = vunpack.c.l.b16 %v1805
      %v1898 = vunpack.c.l.b16 %v1809
      %v1899 = vunpack.c.l.b16 %v1812
      %v1900 = vunpack.c.l.b16 %v1816
      %v1901 = vunpack.c.l.b16 %v1819
      %v1902 = vunpack.c.l.b16 %v1823
      %v1903 = vunpack.c.l.b16 %v1826
      %v1904 = vunpack.c.l.b16 %v1830
      %v1905 = vunpack.c.l.b16 %v1833
      %v1906 = vunpack.c.l.b16 %v1837
      %v1907 = vunpack.c.l.b16 %v1840
      %v1908 = vunpack.c.l.b16 %v1844
      %v1909 = vunpack.c.l.b16 %v1847
      %v1910 = vunpack.c.l.b16 %v1851
      %v1911 = vunpack.c.l.b16 %v1854
      %v1912 = vunpack.c.l.b16 %v1858
      %v1913 = vunpack.c.l.b16 %v1861
      %v1914 = vunpack.c.l.b16 %v1865
      %v1915 = vunpack.c.l.b16 %v1868
      %v1916 = vunpack.c.l.b16 %v1872
      %v1917 = vunpack.c.l.b16 %v1875
      %v1918 = vunpack.c.l.b16 %v1879
      %v1919 = vunpack.c.l.b16 %v1882
      %v1920 = vunpack.c.l.b16 %v1886
      %v1921 = vunpack.c.l.b16 %v1889
      %v1922 = vpack.c.b16 %v1891, %v1890
      %v1923 = vpack.c.b16 %v1893, %v1892
      %v1924 = vpack.c.b16 %v1895, %v1894
      %v1925 = vpack.c.b16 %v1897, %v1896
      %v1926 = vpack.c.b16 %v1899, %v1898
      %v1927 = vpack.c.b16 %v1901, %v1900
      %v1928 = vpack.c.b16 %v1903, %v1902
      %v1929 = vpack.c.b16 %v1905, %v1904
      %v1930 = vpack.c.b16 %v1907, %v1906
      %v1931 = vpack.c.b16 %v1909, %v1908
      %v1932 = vpack.c.b16 %v1911, %v1910
      %v1933 = vpack.c.b16 %v1913, %v1912
      %v1934 = vpack.c.b16 %v1915, %v1914
      %v1935 = vpack.c.b16 %v1917, %v1916
      %v1936 = vpack.c.b16 %v1919, %v1918
      %v1937 = vpack.c.b16 %v1921, %v1920
      %1954 = vst [vmem:[#allocation3 + $0x10] sm:$0xff] %v1922
      %1955 = vst [vmem:[#allocation3 + $0x58] sm:$0xff] %v1923
      %1956 = vst [vmem:[#allocation3 + $0xa0] sm:$0xff] %v1924
      %1957 = vst [vmem:[#allocation3 + $0xe8] sm:$0xff] %v1925
      %1958 = vst [vmem:[#allocation3 + $0x130] sm:$0xff] %v1926
      %1959 = vst [vmem:[#allocation3 + $0x178] sm:$0xff] %v1927
      %1960 = vst [vmem:[#allocation3 + $0x1c0] sm:$0xff] %v1928
      %1961 = vst [vmem:[#allocation3 + $0x208] sm:$0xff] %v1929
      %1962 = vst [vmem:[#allocation3 + $0x250] sm:$0xff] %v1930
      %1963 = vst [vmem:[#allocation3 + $0x298] sm:$0xff] %v1931
      %1964 = vst [vmem:[#allocation3 + $0x2e0] sm:$0xff] %v1932
      %1965 = vst [vmem:[#allocation3 + $0x328] sm:$0xff] %v1933
      %1966 = vst [vmem:[#allocation3 + $0x370] sm:$0xff] %v1934
      %1967 = vst [vmem:[#allocation3 + $0x3b8] sm:$0xff] %v1935
      %1968 = vst [vmem:[#allocation3 + $0x400] sm:$0xff] %v1936
      %1969 = vst [vmem:[#allocation3 + $0x448] sm:$0xff] %v1937
      %v1970 = vld [vmem:[%s402] sm:$0xf]
      %v1971 = vld [vmem:[%s402 + $0x4] sm:$0xf]
      %v1972 = vld [vmem:[%s402 + $0xc] sm:$0xf]
      %v1973 = vld [vmem:[%s402 + $0x10] sm:$0xf]
      %v1974 = vld [vmem:[%s402 + $0x18] sm:$0xf]
      %v1975 = vld [vmem:[%s402 + $0x1c] sm:$0xf]
      %v1976 = vld [vmem:[%s402 + $0x24] sm:$0xf]
      %v1977 = vld [vmem:[%s402 + $0x28] sm:$0xf]
      %v1978 = vld [vmem:[%s402 + $0x30] sm:$0xf]
      %v1979 = vld [vmem:[%s402 + $0x34] sm:$0xf]
      %v1980 = vld [vmem:[%s402 + $0x3c] sm:$0xf]
      %v1981 = vld [vmem:[%s402 + $0x40] sm:$0xf]
      %v1982 = vld [vmem:[%s402 + $0x48] sm:$0xf]
      %v1983 = vld [vmem:[%s402 + $0x4c] sm:$0xf]
      %v1984 = vld [vmem:[%s402 + $0x54] sm:$0xf]
      %v1985 = vld [vmem:[%s402 + $0x58] sm:$0xf]
      %v1986 = vld [vmem:[%s402 + $0x60] sm:$0xf]
      %v1987 = vld [vmem:[%s402 + $0x64] sm:$0xf]
      %v1988 = vld [vmem:[%s402 + $0x6c] sm:$0xf]
      %v1989 = vld [vmem:[%s402 + $0x70] sm:$0xf]
      %v1990 = vld [vmem:[%s402 + $0x78] sm:$0xf]
      %v1991 = vld [vmem:[%s402 + $0x7c] sm:$0xf]
      %v1992 = vld [vmem:[%s402 + $0x84] sm:$0xf]
      %v1993 = vld [vmem:[%s402 + $0x88] sm:$0xf]
      %v1994 = vld [vmem:[%s402 + $0x90] sm:$0xf]
      %v1995 = vld [vmem:[%s402 + $0x94] sm:$0xf]
      %v1996 = vld [vmem:[%s402 + $0x9c] sm:$0xf]
      %v1997 = vld [vmem:[%s402 + $0xa0] sm:$0xf]
      %v1998 = vld [vmem:[%s402 + $0xa8] sm:$0xf]
      %v1999 = vld [vmem:[%s402 + $0xac] sm:$0xf]
      %v2000 = vld [vmem:[%s402 + $0xb4] sm:$0xf]
      %v2001 = vld [vmem:[%s402 + $0xb8] sm:$0xf]
      %v2034 = vunpack.c.l.b16 %v1970
      %v2035 = vunpack.c.l.b16 %v1971
      %v2036 = vunpack.c.l.b16 %v1972
      %v2037 = vunpack.c.l.b16 %v1973
      %v2038 = vunpack.c.l.b16 %v1974
      %v2039 = vunpack.c.l.b16 %v1975
      %v2040 = vunpack.c.l.b16 %v1976
      %v2041 = vunpack.c.l.b16 %v1977
      %v2042 = vunpack.c.l.b16 %v1978
      %v2043 = vunpack.c.l.b16 %v1979
      %v2044 = vunpack.c.l.b16 %v1980
      %v2045 = vunpack.c.l.b16 %v1981
      %v2046 = vunpack.c.l.b16 %v1982
      %v2047 = vunpack.c.l.b16 %v1983
      %v2048 = vunpack.c.l.b16 %v1984
      %v2049 = vunpack.c.l.b16 %v1985
      %v2050 = vunpack.c.l.b16 %v1986
      %v2051 = vunpack.c.l.b16 %v1987
      %v2052 = vunpack.c.l.b16 %v1988
      %v2053 = vunpack.c.l.b16 %v1989
      %v2054 = vunpack.c.l.b16 %v1990
      %v2055 = vunpack.c.l.b16 %v1991
      %v2056 = vunpack.c.l.b16 %v1992
      %v2057 = vunpack.c.l.b16 %v1993
      %v2058 = vunpack.c.l.b16 %v1994
      %v2059 = vunpack.c.l.b16 %v1995
      %v2060 = vunpack.c.l.b16 %v1996
      %v2061 = vunpack.c.l.b16 %v1997
      %v2062 = vunpack.c.l.b16 %v1998
      %v2063 = vunpack.c.l.b16 %v1999
      %v2064 = vunpack.c.l.b16 %v2000
      %v2065 = vunpack.c.l.b16 %v2001
      %v2066 = vpack.c.b16 %v2035, %v2034
      %v2067 = vpack.c.b16 %v2037, %v2036
      %v2068 = vpack.c.b16 %v2039, %v2038
      %v2069 = vpack.c.b16 %v2041, %v2040
      %v2070 = vpack.c.b16 %v2043, %v2042
      %v2071 = vpack.c.b16 %v2045, %v2044
      %v2072 = vpack.c.b16 %v2047, %v2046
      %v2073 = vpack.c.b16 %v2049, %v2048
      %v2074 = vpack.c.b16 %v2051, %v2050
      %v2075 = vpack.c.b16 %v2053, %v2052
      %v2076 = vpack.c.b16 %v2055, %v2054
      %v2077 = vpack.c.b16 %v2057, %v2056
      %v2078 = vpack.c.b16 %v2059, %v2058
      %v2079 = vpack.c.b16 %v2061, %v2060
      %v2080 = vpack.c.b16 %v2063, %v2062
      %v2081 = vpack.c.b16 %v2065, %v2064
      %2098 = vst [vmem:[#allocation3 + $0x18] sm:$0xff] %v2066
      %2099 = vst [vmem:[#allocation3 + $0x60] sm:$0xff] %v2067
      %2100 = vst [vmem:[#allocation3 + $0xa8] sm:$0xff] %v2068
      %2101 = vst [vmem:[#allocation3 + $0xf0] sm:$0xff] %v2069
      %2102 = vst [vmem:[#allocation3 + $0x138] sm:$0xff] %v2070
      %2103 = vst [vmem:[#allocation3 + $0x180] sm:$0xff] %v2071
      %2104 = vst [vmem:[#allocation3 + $0x1c8] sm:$0xff] %v2072
      %2105 = vst [vmem:[#allocation3 + $0x210] sm:$0xff] %v2073
      %2106 = vst [vmem:[#allocation3 + $0x258] sm:$0xff] %v2074
      %2107 = vst [vmem:[#allocation3 + $0x2a0] sm:$0xff] %v2075
      %2108 = vst [vmem:[#allocation3 + $0x2e8] sm:$0xff] %v2076
      %2109 = vst [vmem:[#allocation3 + $0x330] sm:$0xff] %v2077
      %2110 = vst [vmem:[#allocation3 + $0x378] sm:$0xff] %v2078
      %2111 = vst [vmem:[#allocation3 + $0x3c0] sm:$0xff] %v2079
      %2112 = vst [vmem:[#allocation3 + $0x408] sm:$0xff] %v2080
      %2113 = vst [vmem:[#allocation3 + $0x450] sm:$0xff] %v2081
      %v2114 = vld [vmem:[%s402] sm:$0xf]
      %v2115 = vld [vmem:[%s402 + $0x4] sm:$0xf]
      %v2116 = vld [vmem:[%s402 + $0x8] sm:$0x1]
      %v2117 = vld [vmem:[%s402 + $0xc] sm:$0xf]
      %v2118 = vld [vmem:[%s402 + $0x10] sm:$0xf]
      %v2119 = vld [vmem:[%s402 + $0x14] sm:$0x1]
      %v2120 = vld [vmem:[%s402 + $0x18] sm:$0xf]
      %v2121 = vld [vmem:[%s402 + $0x1c] sm:$0xf]
      %v2122 = vld [vmem:[%s402 + $0x20] sm:$0x1]
      %v2123 = vld [vmem:[%s402 + $0x24] sm:$0xf]
      %v2124 = vld [vmem:[%s402 + $0x28] sm:$0xf]
      %v2125 = vld [vmem:[%s402 + $0x2c] sm:$0x1]
      %v2126 = vld [vmem:[%s402 + $0x30] sm:$0xf]
      %v2127 = vld [vmem:[%s402 + $0x34] sm:$0xf]
      %v2128 = vld [vmem:[%s402 + $0x38] sm:$0x1]
      %v2129 = vld [vmem:[%s402 + $0x3c] sm:$0xf]
      %v2130 = vld [vmem:[%s402 + $0x40] sm:$0xf]
      %v2131 = vld [vmem:[%s402 + $0x44] sm:$0x1]
      %v2132 = vld [vmem:[%s402 + $0x48] sm:$0xf]
      %v2133 = vld [vmem:[%s402 + $0x4c] sm:$0xf]
      %v2134 = vld [vmem:[%s402 + $0x50] sm:$0x1]
      %v2135 = vld [vmem:[%s402 + $0x54] sm:$0xf]
      %v2136 = vld [vmem:[%s402 + $0x58] sm:$0xf]
      %v2137 = vld [vmem:[%s402 + $0x5c] sm:$0x1]
      %v2138 = vld [vmem:[%s402 + $0x60] sm:$0xf]
      %v2139 = vld [vmem:[%s402 + $0x64] sm:$0xf]
      %v2140 = vld [vmem:[%s402 + $0x68] sm:$0x1]
      %v2141 = vld [vmem:[%s402 + $0x6c] sm:$0xf]
      %v2142 = vld [vmem:[%s402 + $0x70] sm:$0xf]
      %v2143 = vld [vmem:[%s402 + $0x74] sm:$0x1]
      %v2144 = vld [vmem:[%s402 + $0x78] sm:$0xf]
      %v2145 = vld [vmem:[%s402 + $0x7c] sm:$0xf]
      %v2146 = vld [vmem:[%s402 + $0x80] sm:$0x1]
      %v2147 = vld [vmem:[%s402 + $0x84] sm:$0xf]
      %v2148 = vld [vmem:[%s402 + $0x88] sm:$0xf]
      %v2149 = vld [vmem:[%s402 + $0x8c] sm:$0x1]
      %v2150 = vld [vmem:[%s402 + $0x90] sm:$0xf]
      %v2151 = vld [vmem:[%s402 + $0x94] sm:$0xf]
      %v2152 = vld [vmem:[%s402 + $0x98] sm:$0x1]
      %v2153 = vld [vmem:[%s402 + $0x9c] sm:$0xf]
      %v2154 = vld [vmem:[%s402 + $0xa0] sm:$0xf]
      %v2155 = vld [vmem:[%s402 + $0xa4] sm:$0x1]
      %v2156 = vld [vmem:[%s402 + $0xa8] sm:$0xf]
      %v2157 = vld [vmem:[%s402 + $0xac] sm:$0xf]
      %v2158 = vld [vmem:[%s402 + $0xb0] sm:$0x1]
      %v2159 = vld [vmem:[%s402 + $0xb4] sm:$0xf]
      %v2160 = vld [vmem:[%s402 + $0xb8] sm:$0xf]
      %v2161 = vld [vmem:[%s402 + $0xbc] sm:$0x1]
      %v2163 = vshrl.u32 %v2114, 16
      %v2165 = vrot.slane %v2163, 4
      %v2166 = vshll.u32 %v2114, 16
      %v2168 = vrot.slane %v2166, 5
      %v2169 = vor.u32 %v2165, %v2168
      %v2170 = vrot.slane %v2169, 4
      %v2172 = vshll.u32 %v2115, 16
      %v2174 = vrot.slane %v2172, 5
      %v2175 = vsel %vm1214, %v2170, %v2174
      %v2176 = vshrl.u32 %v2115, 16
      %v2178 = vrot.slane %v2176, 4
      %v2179 = vor.u32 %v2178, %v2174
      %v2180 = vrot.slane %v2179, 4
      %v2182 = vshll.u32 %v2116, 16
      %v2184 = vrot.slane %v2182, 5
      %v2185 = vsel %vm1214, %v2180, %v2184
      %v2187 = vshrl.u32 %v2117, 16
      %v2189 = vrot.slane %v2187, 4
      %v2190 = vshll.u32 %v2117, 16
      %v2192 = vrot.slane %v2190, 5
      %v2193 = vor.u32 %v2189, %v2192
      %v2194 = vrot.slane %v2193, 4
      %v2196 = vshll.u32 %v2118, 16
      %v2198 = vrot.slane %v2196, 5
      %v2199 = vsel %vm1214, %v2194, %v2198
      %v2200 = vshrl.u32 %v2118, 16
      %v2202 = vrot.slane %v2200, 4
      %v2203 = vor.u32 %v2202, %v2198
      %v2204 = vrot.slane %v2203, 4
      %v2206 = vshll.u32 %v2119, 16
      %v2208 = vrot.slane %v2206, 5
      %v2209 = vsel %vm1214, %v2204, %v2208
      %v2211 = vshrl.u32 %v2120, 16
      %v2213 = vrot.slane %v2211, 4
      %v2214 = vshll.u32 %v2120, 16
      %v2216 = vrot.slane %v2214, 5
      %v2217 = vor.u32 %v2213, %v2216
      %v2218 = vrot.slane %v2217, 4
      %v2220 = vshll.u32 %v2121, 16
      %v2222 = vrot.slane %v2220, 5
      %v2223 = vsel %vm1214, %v2218, %v2222
      %v2224 = vshrl.u32 %v2121, 16
      %v2226 = vrot.slane %v2224, 4
      %v2227 = vor.u32 %v2226, %v2222
      %v2228 = vrot.slane %v2227, 4
      %v2230 = vshll.u32 %v2122, 16
      %v2232 = vrot.slane %v2230, 5
      %v2233 = vsel %vm1214, %v2228, %v2232
      %v2235 = vshrl.u32 %v2123, 16
      %v2237 = vrot.slane %v2235, 4
      %v2238 = vshll.u32 %v2123, 16
      %v2240 = vrot.slane %v2238, 5
      %v2241 = vor.u32 %v2237, %v2240
      %v2242 = vrot.slane %v2241, 4
      %v2244 = vshll.u32 %v2124, 16
      %v2246 = vrot.slane %v2244, 5
      %v2247 = vsel %vm1214, %v2242, %v2246
      %v2248 = vshrl.u32 %v2124, 16
      %v2250 = vrot.slane %v2248, 4
      %v2251 = vor.u32 %v2250, %v2246
      %v2252 = vrot.slane %v2251, 4
      %v2254 = vshll.u32 %v2125, 16
      %v2256 = vrot.slane %v2254, 5
      %v2257 = vsel %vm1214, %v2252, %v2256
      %v2259 = vshrl.u32 %v2126, 16
      %v2261 = vrot.slane %v2259, 4
      %v2262 = vshll.u32 %v2126, 16
      %v2264 = vrot.slane %v2262, 5
      %v2265 = vor.u32 %v2261, %v2264
      %v2266 = vrot.slane %v2265, 4
      %v2268 = vshll.u32 %v2127, 16
      %v2270 = vrot.slane %v2268, 5
      %v2271 = vsel %vm1214, %v2266, %v2270
      %v2272 = vshrl.u32 %v2127, 16
      %v2274 = vrot.slane %v2272, 4
      %v2275 = vor.u32 %v2274, %v2270
      %v2276 = vrot.slane %v2275, 4
      %v2278 = vshll.u32 %v2128, 16
      %v2280 = vrot.slane %v2278, 5
      %v2281 = vsel %vm1214, %v2276, %v2280
      %v2283 = vshrl.u32 %v2129, 16
      %v2285 = vrot.slane %v2283, 4
      %v2286 = vshll.u32 %v2129, 16
      %v2288 = vrot.slane %v2286, 5
      %v2289 = vor.u32 %v2285, %v2288
      %v2290 = vrot.slane %v2289, 4
      %v2292 = vshll.u32 %v2130, 16
      %v2294 = vrot.slane %v2292, 5
      %v2295 = vsel %vm1214, %v2290, %v2294
      %v2296 = vshrl.u32 %v2130, 16
      %v2298 = vrot.slane %v2296, 4
      %v2299 = vor.u32 %v2298, %v2294
      %v2300 = vrot.slane %v2299, 4
      %v2302 = vshll.u32 %v2131, 16
      %v2304 = vrot.slane %v2302, 5
      %v2305 = vsel %vm1214, %v2300, %v2304
      %v2307 = vshrl.u32 %v2132, 16
      %v2309 = vrot.slane %v2307, 4
      %v2310 = vshll.u32 %v2132, 16
      %v2312 = vrot.slane %v2310, 5
      %v2313 = vor.u32 %v2309, %v2312
      %v2314 = vrot.slane %v2313, 4
      %v2316 = vshll.u32 %v2133, 16
      %v2318 = vrot.slane %v2316, 5
      %v2319 = vsel %vm1214, %v2314, %v2318
      %v2320 = vshrl.u32 %v2133, 16
      %v2322 = vrot.slane %v2320, 4
      %v2323 = vor.u32 %v2322, %v2318
      %v2324 = vrot.slane %v2323, 4
      %v2326 = vshll.u32 %v2134, 16
      %v2328 = vrot.slane %v2326, 5
      %v2329 = vsel %vm1214, %v2324, %v2328
      %v2331 = vshrl.u32 %v2135, 16
      %v2333 = vrot.slane %v2331, 4
      %v2334 = vshll.u32 %v2135, 16
      %v2336 = vrot.slane %v2334, 5
      %v2337 = vor.u32 %v2333, %v2336
      %v2338 = vrot.slane %v2337, 4
      %v2340 = vshll.u32 %v2136, 16
      %v2342 = vrot.slane %v2340, 5
      %v2343 = vsel %vm1214, %v2338, %v2342
      %v2344 = vshrl.u32 %v2136, 16
      %v2346 = vrot.slane %v2344, 4
      %v2347 = vor.u32 %v2346, %v2342
      %v2348 = vrot.slane %v2347, 4
      %v2350 = vshll.u32 %v2137, 16
      %v2352 = vrot.slane %v2350, 5
      %v2353 = vsel %vm1214, %v2348, %v2352
      %v2355 = vshrl.u32 %v2138, 16
      %v2357 = vrot.slane %v2355, 4
      %v2358 = vshll.u32 %v2138, 16
      %v2360 = vrot.slane %v2358, 5
      %v2361 = vor.u32 %v2357, %v2360
      %v2362 = vrot.slane %v2361, 4
      %v2364 = vshll.u32 %v2139, 16
      %v2366 = vrot.slane %v2364, 5
      %v2367 = vsel %vm1214, %v2362, %v2366
      %v2368 = vshrl.u32 %v2139, 16
      %v2370 = vrot.slane %v2368, 4
      %v2371 = vor.u32 %v2370, %v2366
      %v2372 = vrot.slane %v2371, 4
      %v2374 = vshll.u32 %v2140, 16
      %v2376 = vrot.slane %v2374, 5
      %v2377 = vsel %vm1214, %v2372, %v2376
      %v2379 = vshrl.u32 %v2141, 16
      %v2381 = vrot.slane %v2379, 4
      %v2382 = vshll.u32 %v2141, 16
      %v2384 = vrot.slane %v2382, 5
      %v2385 = vor.u32 %v2381, %v2384
      %v2386 = vrot.slane %v2385, 4
      %v2388 = vshll.u32 %v2142, 16
      %v2390 = vrot.slane %v2388, 5
      %v2391 = vsel %vm1214, %v2386, %v2390
      %v2392 = vshrl.u32 %v2142, 16
      %v2394 = vrot.slane %v2392, 4
      %v2395 = vor.u32 %v2394, %v2390
      %v2396 = vrot.slane %v2395, 4
      %v2398 = vshll.u32 %v2143, 16
      %v2400 = vrot.slane %v2398, 5
      %v2401 = vsel %vm1214, %v2396, %v2400
      %v2403 = vshrl.u32 %v2144, 16
      %v2405 = vrot.slane %v2403, 4
      %v2406 = vshll.u32 %v2144, 16
      %v2408 = vrot.slane %v2406, 5
      %v2409 = vor.u32 %v2405, %v2408
      %v2410 = vrot.slane %v2409, 4
      %v2412 = vshll.u32 %v2145, 16
      %v2414 = vrot.slane %v2412, 5
      %v2415 = vsel %vm1214, %v2410, %v2414
      %v2416 = vshrl.u32 %v2145, 16
      %v2418 = vrot.slane %v2416, 4
      %v2419 = vor.u32 %v2418, %v2414
      %v2420 = vrot.slane %v2419, 4
      %v2422 = vshll.u32 %v2146, 16
      %v2424 = vrot.slane %v2422, 5
      %v2425 = vsel %vm1214, %v2420, %v2424
      %v2427 = vshrl.u32 %v2147, 16
      %v2429 = vrot.slane %v2427, 4
      %v2430 = vshll.u32 %v2147, 16
      %v2432 = vrot.slane %v2430, 5
      %v2433 = vor.u32 %v2429, %v2432
      %v2434 = vrot.slane %v2433, 4
      %v2436 = vshll.u32 %v2148, 16
      %v2438 = vrot.slane %v2436, 5
      %v2439 = vsel %vm1214, %v2434, %v2438
      %v2440 = vshrl.u32 %v2148, 16
      %v2442 = vrot.slane %v2440, 4
      %v2443 = vor.u32 %v2442, %v2438
      %v2444 = vrot.slane %v2443, 4
      %v2446 = vshll.u32 %v2149, 16
      %v2448 = vrot.slane %v2446, 5
      %v2449 = vsel %vm1214, %v2444, %v2448
      %v2451 = vshrl.u32 %v2150, 16
      %v2453 = vrot.slane %v2451, 4
      %v2454 = vshll.u32 %v2150, 16
      %v2456 = vrot.slane %v2454, 5
      %v2457 = vor.u32 %v2453, %v2456
      %v2458 = vrot.slane %v2457, 4
      %v2460 = vshll.u32 %v2151, 16
      %v2462 = vrot.slane %v2460, 5
      %v2463 = vsel %vm1214, %v2458, %v2462
      %v2464 = vshrl.u32 %v2151, 16
      %v2466 = vrot.slane %v2464, 4
      %v2467 = vor.u32 %v2466, %v2462
      %v2468 = vrot.slane %v2467, 4
      %v2470 = vshll.u32 %v2152, 16
      %v2472 = vrot.slane %v2470, 5
      %v2473 = vsel %vm1214, %v2468, %v2472
      %v2475 = vshrl.u32 %v2153, 16
      %v2477 = vrot.slane %v2475, 4
      %v2478 = vshll.u32 %v2153, 16
      %v2480 = vrot.slane %v2478, 5
      %v2481 = vor.u32 %v2477, %v2480
      %v2482 = vrot.slane %v2481, 4
      %v2484 = vshll.u32 %v2154, 16
      %v2486 = vrot.slane %v2484, 5
      %v2487 = vsel %vm1214, %v2482, %v2486
      %v2488 = vshrl.u32 %v2154, 16
      %v2490 = vrot.slane %v2488, 4
      %v2491 = vor.u32 %v2490, %v2486
      %v2492 = vrot.slane %v2491, 4
      %v2494 = vshll.u32 %v2155, 16
      %v2496 = vrot.slane %v2494, 5
      %v2497 = vsel %vm1214, %v2492, %v2496
      %v2499 = vshrl.u32 %v2156, 16
      %v2501 = vrot.slane %v2499, 4
      %v2502 = vshll.u32 %v2156, 16
      %v2504 = vrot.slane %v2502, 5
      %v2505 = vor.u32 %v2501, %v2504
      %v2506 = vrot.slane %v2505, 4
      %v2508 = vshll.u32 %v2157, 16
      %v2510 = vrot.slane %v2508, 5
      %v2511 = vsel %vm1214, %v2506, %v2510
      %v2512 = vshrl.u32 %v2157, 16
      %v2514 = vrot.slane %v2512, 4
      %v2515 = vor.u32 %v2514, %v2510
      %v2516 = vrot.slane %v2515, 4
      %v2518 = vshll.u32 %v2158, 16
      %v2520 = vrot.slane %v2518, 5
      %v2521 = vsel %vm1214, %v2516, %v2520
      %v2523 = vshrl.u32 %v2159, 16
      %v2525 = vrot.slane %v2523, 4
      %v2526 = vshll.u32 %v2159, 16
      %v2528 = vrot.slane %v2526, 5
      %v2529 = vor.u32 %v2525, %v2528
      %v2530 = vrot.slane %v2529, 4
      %v2532 = vshll.u32 %v2160, 16
      %v2534 = vrot.slane %v2532, 5
      %v2535 = vsel %vm1214, %v2530, %v2534
      %v2536 = vshrl.u32 %v2160, 16
      %v2538 = vrot.slane %v2536, 4
      %v2539 = vor.u32 %v2538, %v2534
      %v2540 = vrot.slane %v2539, 4
      %v2542 = vshll.u32 %v2161, 16
      %v2544 = vrot.slane %v2542, 5
      %v2545 = vsel %vm1214, %v2540, %v2544
      %v2546 = vunpack.c.l.b16 %v2175
      %v2547 = vunpack.c.l.b16 %v2185
      %v2548 = vunpack.c.l.b16 %v2199
      %v2549 = vunpack.c.l.b16 %v2209
      %v2550 = vunpack.c.l.b16 %v2223
      %v2551 = vunpack.c.l.b16 %v2233
      %v2552 = vunpack.c.l.b16 %v2247
      %v2553 = vunpack.c.l.b16 %v2257
      %v2554 = vunpack.c.l.b16 %v2271
      %v2555 = vunpack.c.l.b16 %v2281
      %v2556 = vunpack.c.l.b16 %v2295
      %v2557 = vunpack.c.l.b16 %v2305
      %v2558 = vunpack.c.l.b16 %v2319
      %v2559 = vunpack.c.l.b16 %v2329
      %v2560 = vunpack.c.l.b16 %v2343
      %v2561 = vunpack.c.l.b16 %v2353
      %v2562 = vunpack.c.l.b16 %v2367
      %v2563 = vunpack.c.l.b16 %v2377
      %v2564 = vunpack.c.l.b16 %v2391
      %v2565 = vunpack.c.l.b16 %v2401
      %v2566 = vunpack.c.l.b16 %v2415
      %v2567 = vunpack.c.l.b16 %v2425
      %v2568 = vunpack.c.l.b16 %v2439
      %v2569 = vunpack.c.l.b16 %v2449
      %v2570 = vunpack.c.l.b16 %v2463
      %v2571 = vunpack.c.l.b16 %v2473
      %v2572 = vunpack.c.l.b16 %v2487
      %v2573 = vunpack.c.l.b16 %v2497
      %v2574 = vunpack.c.l.b16 %v2511
      %v2575 = vunpack.c.l.b16 %v2521
      %v2576 = vunpack.c.l.b16 %v2535
      %v2577 = vunpack.c.l.b16 %v2545
      %v2578 = vpack.c.b16 %v2547, %v2546
      %v2579 = vpack.c.b16 %v2549, %v2548
      %v2580 = vpack.c.b16 %v2551, %v2550
      %v2581 = vpack.c.b16 %v2553, %v2552
      %v2582 = vpack.c.b16 %v2555, %v2554
      %v2583 = vpack.c.b16 %v2557, %v2556
      %v2584 = vpack.c.b16 %v2559, %v2558
      %v2585 = vpack.c.b16 %v2561, %v2560
      %v2586 = vpack.c.b16 %v2563, %v2562
      %v2587 = vpack.c.b16 %v2565, %v2564
      %v2588 = vpack.c.b16 %v2567, %v2566
      %v2589 = vpack.c.b16 %v2569, %v2568
      %v2590 = vpack.c.b16 %v2571, %v2570
      %v2591 = vpack.c.b16 %v2573, %v2572
      %v2592 = vpack.c.b16 %v2575, %v2574
      %v2593 = vpack.c.b16 %v2577, %v2576
      %2610 = vst [vmem:[#allocation3 + $0x20] sm:$0xff] %v2578
      %2611 = vst [vmem:[#allocation3 + $0x68] sm:$0xff] %v2579
      %2612 = vst [vmem:[#allocation3 + $0xb0] sm:$0xff] %v2580
      %2613 = vst [vmem:[#allocation3 + $0xf8] sm:$0xff] %v2581
      %2614 = vst [vmem:[#allocation3 + $0x140] sm:$0xff] %v2582
      %2615 = vst [vmem:[#allocation3 + $0x188] sm:$0xff] %v2583
      %2616 = vst [vmem:[#allocation3 + $0x1d0] sm:$0xff] %v2584
      %2617 = vst [vmem:[#allocation3 + $0x218] sm:$0xff] %v2585
      %2618 = vst [vmem:[#allocation3 + $0x260] sm:$0xff] %v2586
      %2619 = vst [vmem:[#allocation3 + $0x2a8] sm:$0xff] %v2587
      %2620 = vst [vmem:[#allocation3 + $0x2f0] sm:$0xff] %v2588
      %2621 = vst [vmem:[#allocation3 + $0x338] sm:$0xff] %v2589
      %2622 = vst [vmem:[#allocation3 + $0x380] sm:$0xff] %v2590
      %2623 = vst [vmem:[#allocation3 + $0x3c8] sm:$0xff] %v2591
      %2624 = vst [vmem:[#allocation3 + $0x410] sm:$0xff] %v2592
      %2625 = vst [vmem:[#allocation3 + $0x458] sm:$0xff] %v2593
      %v2626 = vld [vmem:[%s402] sm:$0xe]
      %v2627 = vld [vmem:[%s402 + $0x4] sm:$0xf]
      %v2628 = vld [vmem:[%s402 + $0x8] sm:$0x1]
      %v2629 = vld [vmem:[%s402 + $0xc] sm:$0xe]
      %v2630 = vld [vmem:[%s402 + $0x10] sm:$0xf]
      %v2631 = vld [vmem:[%s402 + $0x14] sm:$0x1]
      %v2632 = vld [vmem:[%s402 + $0x18] sm:$0xe]
      %v2633 = vld [vmem:[%s402 + $0x1c] sm:$0xf]
      %v2634 = vld [vmem:[%s402 + $0x20] sm:$0x1]
      %v2635 = vld [vmem:[%s402 + $0x24] sm:$0xe]
      %v2636 = vld [vmem:[%s402 + $0x28] sm:$0xf]
      %v2637 = vld [vmem:[%s402 + $0x2c] sm:$0x1]
      %v2638 = vld [vmem:[%s402 + $0x30] sm:$0xe]
      %v2639 = vld [vmem:[%s402 + $0x34] sm:$0xf]
      %v2640 = vld [vmem:[%s402 + $0x38] sm:$0x1]
      %v2641 = vld [vmem:[%s402 + $0x3c] sm:$0xe]
      %v2642 = vld [vmem:[%s402 + $0x40] sm:$0xf]
      %v2643 = vld [vmem:[%s402 + $0x44] sm:$0x1]
      %v2644 = vld [vmem:[%s402 + $0x48] sm:$0xe]
      %v2645 = vld [vmem:[%s402 + $0x4c] sm:$0xf]
      %v2646 = vld [vmem:[%s402 + $0x50] sm:$0x1]
      %v2647 = vld [vmem:[%s402 + $0x54] sm:$0xe]
      %v2648 = vld [vmem:[%s402 + $0x58] sm:$0xf]
      %v2649 = vld [vmem:[%s402 + $0x5c] sm:$0x1]
      %v2650 = vld [vmem:[%s402 + $0x60] sm:$0xe]
      %v2651 = vld [vmem:[%s402 + $0x64] sm:$0xf]
      %v2652 = vld [vmem:[%s402 + $0x68] sm:$0x1]
      %v2653 = vld [vmem:[%s402 + $0x6c] sm:$0xe]
      %v2654 = vld [vmem:[%s402 + $0x70] sm:$0xf]
      %v2655 = vld [vmem:[%s402 + $0x74] sm:$0x1]
      %v2656 = vld [vmem:[%s402 + $0x78] sm:$0xe]
      %v2657 = vld [vmem:[%s402 + $0x7c] sm:$0xf]
      %v2658 = vld [vmem:[%s402 + $0x80] sm:$0x1]
      %v2659 = vld [vmem:[%s402 + $0x84] sm:$0xe]
      %v2660 = vld [vmem:[%s402 + $0x88] sm:$0xf]
      %v2661 = vld [vmem:[%s402 + $0x8c] sm:$0x1]
      %v2662 = vld [vmem:[%s402 + $0x90] sm:$0xe]
      %v2663 = vld [vmem:[%s402 + $0x94] sm:$0xf]
      %v2664 = vld [vmem:[%s402 + $0x98] sm:$0x1]
      %v2665 = vld [vmem:[%s402 + $0x9c] sm:$0xe]
      %v2666 = vld [vmem:[%s402 + $0xa0] sm:$0xf]
      %v2667 = vld [vmem:[%s402 + $0xa4] sm:$0x1]
      %v2668 = vld [vmem:[%s402 + $0xa8] sm:$0xe]
      %v2669 = vld [vmem:[%s402 + $0xac] sm:$0xf]
      %v2670 = vld [vmem:[%s402 + $0xb0] sm:$0x1]
      %v2671 = vld [vmem:[%s402 + $0xb4] sm:$0xe]
      %v2672 = vld [vmem:[%s402 + $0xb8] sm:$0xf]
      %v2673 = vld [vmem:[%s402 + $0xbc] sm:$0x1]
      %v2722 = vrot.slane %v2626, 5
      %v2723 = vrot.slane %v2722, 4
      %v2724 = vrot.slane %v2627, 5
      %v2725 = vsel %vm1777, %v2723, %v2724
      %v2726 = vrot.slane %v2724, 4
      %v2727 = vrot.slane %v2628, 5
      %v2728 = vsel %vm1777, %v2726, %v2727
      %v2729 = vrot.slane %v2629, 5
      %v2730 = vrot.slane %v2729, 4
      %v2731 = vrot.slane %v2630, 5
      %v2732 = vsel %vm1777, %v2730, %v2731
      %v2733 = vrot.slane %v2731, 4
      %v2734 = vrot.slane %v2631, 5
      %v2735 = vsel %vm1777, %v2733, %v2734
      %v2736 = vrot.slane %v2632, 5
      %v2737 = vrot.slane %v2736, 4
      %v2738 = vrot.slane %v2633, 5
      %v2739 = vsel %vm1777, %v2737, %v2738
      %v2740 = vrot.slane %v2738, 4
      %v2741 = vrot.slane %v2634, 5
      %v2742 = vsel %vm1777, %v2740, %v2741
      %v2743 = vrot.slane %v2635, 5
      %v2744 = vrot.slane %v2743, 4
      %v2745 = vrot.slane %v2636, 5
      %v2746 = vsel %vm1777, %v2744, %v2745
      %v2747 = vrot.slane %v2745, 4
      %v2748 = vrot.slane %v2637, 5
      %v2749 = vsel %vm1777, %v2747, %v2748
      %v2750 = vrot.slane %v2638, 5
      %v2751 = vrot.slane %v2750, 4
      %v2752 = vrot.slane %v2639, 5
      %v2753 = vsel %vm1777, %v2751, %v2752
      %v2754 = vrot.slane %v2752, 4
      %v2755 = vrot.slane %v2640, 5
      %v2756 = vsel %vm1777, %v2754, %v2755
      %v2757 = vrot.slane %v2641, 5
      %v2758 = vrot.slane %v2757, 4
      %v2759 = vrot.slane %v2642, 5
      %v2760 = vsel %vm1777, %v2758, %v2759
      %v2761 = vrot.slane %v2759, 4
      %v2762 = vrot.slane %v2643, 5
      %v2763 = vsel %vm1777, %v2761, %v2762
      %v2764 = vrot.slane %v2644, 5
      %v2765 = vrot.slane %v2764, 4
      %v2766 = vrot.slane %v2645, 5
      %v2767 = vsel %vm1777, %v2765, %v2766
      %v2768 = vrot.slane %v2766, 4
      %v2769 = vrot.slane %v2646, 5
      %v2770 = vsel %vm1777, %v2768, %v2769
      %v2771 = vrot.slane %v2647, 5
      %v2772 = vrot.slane %v2771, 4
      %v2773 = vrot.slane %v2648, 5
      %v2774 = vsel %vm1777, %v2772, %v2773
      %v2775 = vrot.slane %v2773, 4
      %v2776 = vrot.slane %v2649, 5
      %v2777 = vsel %vm1777, %v2775, %v2776
      %v2778 = vrot.slane %v2650, 5
      %v2779 = vrot.slane %v2778, 4
      %v2780 = vrot.slane %v2651, 5
      %v2781 = vsel %vm1777, %v2779, %v2780
      %v2782 = vrot.slane %v2780, 4
      %v2783 = vrot.slane %v2652, 5
      %v2784 = vsel %vm1777, %v2782, %v2783
      %v2785 = vrot.slane %v2653, 5
      %v2786 = vrot.slane %v2785, 4
      %v2787 = vrot.slane %v2654, 5
      %v2788 = vsel %vm1777, %v2786, %v2787
      %v2789 = vrot.slane %v2787, 4
      %v2790 = vrot.slane %v2655, 5
      %v2791 = vsel %vm1777, %v2789, %v2790
      %v2792 = vrot.slane %v2656, 5
      %v2793 = vrot.slane %v2792, 4
      %v2794 = vrot.slane %v2657, 5
      %v2795 = vsel %vm1777, %v2793, %v2794
      %v2796 = vrot.slane %v2794, 4
      %v2797 = vrot.slane %v2658, 5
      %v2798 = vsel %vm1777, %v2796, %v2797
      %v2799 = vrot.slane %v2659, 5
      %v2800 = vrot.slane %v2799, 4
      %v2801 = vrot.slane %v2660, 5
      %v2802 = vsel %vm1777, %v2800, %v2801
      %v2803 = vrot.slane %v2801, 4
      %v2804 = vrot.slane %v2661, 5
      %v2805 = vsel %vm1777, %v2803, %v2804
      %v2806 = vrot.slane %v2662, 5
      %v2807 = vrot.slane %v2806, 4
      %v2808 = vrot.slane %v2663, 5
      %v2809 = vsel %vm1777, %v2807, %v2808
      %v2810 = vrot.slane %v2808, 4
      %v2811 = vrot.slane %v2664, 5
      %v2812 = vsel %vm1777, %v2810, %v2811
      %v2813 = vrot.slane %v2665, 5
      %v2814 = vrot.slane %v2813, 4
      %v2815 = vrot.slane %v2666, 5
      %v2816 = vsel %vm1777, %v2814, %v2815
      %v2817 = vrot.slane %v2815, 4
      %v2818 = vrot.slane %v2667, 5
      %v2819 = vsel %vm1777, %v2817, %v2818
      %v2820 = vrot.slane %v2668, 5
      %v2821 = vrot.slane %v2820, 4
      %v2822 = vrot.slane %v2669, 5
      %v2823 = vsel %vm1777, %v2821, %v2822
      %v2824 = vrot.slane %v2822, 4
      %v2825 = vrot.slane %v2670, 5
      %v2826 = vsel %vm1777, %v2824, %v2825
      %v2827 = vrot.slane %v2671, 5
      %v2828 = vrot.slane %v2827, 4
      %v2829 = vrot.slane %v2672, 5
      %v2830 = vsel %vm1777, %v2828, %v2829
      %v2831 = vrot.slane %v2829, 4
      %v2832 = vrot.slane %v2673, 5
      %v2833 = vsel %vm1777, %v2831, %v2832
      %v2834 = vunpack.c.l.b16 %v2725
      %v2835 = vunpack.c.l.b16 %v2728
      %v2836 = vunpack.c.l.b16 %v2732
      %v2837 = vunpack.c.l.b16 %v2735
      %v2838 = vunpack.c.l.b16 %v2739
      %v2839 = vunpack.c.l.b16 %v2742
      %v2840 = vunpack.c.l.b16 %v2746
      %v2841 = vunpack.c.l.b16 %v2749
      %v2842 = vunpack.c.l.b16 %v2753
      %v2843 = vunpack.c.l.b16 %v2756
      %v2844 = vunpack.c.l.b16 %v2760
      %v2845 = vunpack.c.l.b16 %v2763
      %v2846 = vunpack.c.l.b16 %v2767
      %v2847 = vunpack.c.l.b16 %v2770
      %v2848 = vunpack.c.l.b16 %v2774
      %v2849 = vunpack.c.l.b16 %v2777
      %v2850 = vunpack.c.l.b16 %v2781
      %v2851 = vunpack.c.l.b16 %v2784
      %v2852 = vunpack.c.l.b16 %v2788
      %v2853 = vunpack.c.l.b16 %v2791
      %v2854 = vunpack.c.l.b16 %v2795
      %v2855 = vunpack.c.l.b16 %v2798
      %v2856 = vunpack.c.l.b16 %v2802
      %v2857 = vunpack.c.l.b16 %v2805
      %v2858 = vunpack.c.l.b16 %v2809
      %v2859 = vunpack.c.l.b16 %v2812
      %v2860 = vunpack.c.l.b16 %v2816
      %v2861 = vunpack.c.l.b16 %v2819
      %v2862 = vunpack.c.l.b16 %v2823
      %v2863 = vunpack.c.l.b16 %v2826
      %v2864 = vunpack.c.l.b16 %v2830
      %v2865 = vunpack.c.l.b16 %v2833
      %v2866 = vpack.c.b16 %v2835, %v2834
      %v2867 = vpack.c.b16 %v2837, %v2836
      %v2868 = vpack.c.b16 %v2839, %v2838
      %v2869 = vpack.c.b16 %v2841, %v2840
      %v2870 = vpack.c.b16 %v2843, %v2842
      %v2871 = vpack.c.b16 %v2845, %v2844
      %v2872 = vpack.c.b16 %v2847, %v2846
      %v2873 = vpack.c.b16 %v2849, %v2848
      %v2874 = vpack.c.b16 %v2851, %v2850
      %v2875 = vpack.c.b16 %v2853, %v2852
      %v2876 = vpack.c.b16 %v2855, %v2854
      %v2877 = vpack.c.b16 %v2857, %v2856
      %v2878 = vpack.c.b16 %v2859, %v2858
      %v2879 = vpack.c.b16 %v2861, %v2860
      %v2880 = vpack.c.b16 %v2863, %v2862
      %v2881 = vpack.c.b16 %v2865, %v2864
      %2898 = vst [vmem:[#allocation3 + $0x28] sm:$0xff] %v2866
      %2899 = vst [vmem:[#allocation3 + $0x70] sm:$0xff] %v2867
      %2900 = vst [vmem:[#allocation3 + $0xb8] sm:$0xff] %v2868
      %2901 = vst [vmem:[#allocation3 + $0x100] sm:$0xff] %v2869
      %2902 = vst [vmem:[#allocation3 + $0x148] sm:$0xff] %v2870
      %2903 = vst [vmem:[#allocation3 + $0x190] sm:$0xff] %v2871
      %2904 = vst [vmem:[#allocation3 + $0x1d8] sm:$0xff] %v2872
      %2905 = vst [vmem:[#allocation3 + $0x220] sm:$0xff] %v2873
      %2906 = vst [vmem:[#allocation3 + $0x268] sm:$0xff] %v2874
      %2907 = vst [vmem:[#allocation3 + $0x2b0] sm:$0xff] %v2875
      %2908 = vst [vmem:[#allocation3 + $0x2f8] sm:$0xff] %v2876
      %2909 = vst [vmem:[#allocation3 + $0x340] sm:$0xff] %v2877
      %2910 = vst [vmem:[#allocation3 + $0x388] sm:$0xff] %v2878
      %2911 = vst [vmem:[#allocation3 + $0x3d0] sm:$0xff] %v2879
      %2912 = vst [vmem:[#allocation3 + $0x418] sm:$0xff] %v2880
      %2913 = vst [vmem:[#allocation3 + $0x460] sm:$0xff] %v2881
      %s2914 = scalar_lea.vmem [#allocation2], 24
      %v2915 = vld [vmem:[%s2914] sm:$0xf]
      %v2916 = vld [vmem:[%s2914 + $0x4] sm:$0xf]
      %v2917 = vld [vmem:[%s2914 + $0xc] sm:$0xf]
      %v2918 = vld [vmem:[%s2914 + $0x10] sm:$0xf]
      %v2919 = vld [vmem:[%s2914 + $0x18] sm:$0xf]
      %v2920 = vld [vmem:[%s2914 + $0x1c] sm:$0xf]
      %v2921 = vld [vmem:[%s2914 + $0x24] sm:$0xf]
      %v2922 = vld [vmem:[%s2914 + $0x28] sm:$0xf]
      %v2923 = vld [vmem:[%s2914 + $0x30] sm:$0xf]
      %v2924 = vld [vmem:[%s2914 + $0x34] sm:$0xf]
      %v2925 = vld [vmem:[%s2914 + $0x3c] sm:$0xf]
      %v2926 = vld [vmem:[%s2914 + $0x40] sm:$0xf]
      %v2927 = vld [vmem:[%s2914 + $0x48] sm:$0xf]
      %v2928 = vld [vmem:[%s2914 + $0x4c] sm:$0xf]
      %v2929 = vld [vmem:[%s2914 + $0x54] sm:$0xf]
      %v2930 = vld [vmem:[%s2914 + $0x58] sm:$0xf]
      %v2931 = vld [vmem:[%s2914 + $0x60] sm:$0xf]
      %v2932 = vld [vmem:[%s2914 + $0x64] sm:$0xf]
      %v2933 = vld [vmem:[%s2914 + $0x6c] sm:$0xf]
      %v2934 = vld [vmem:[%s2914 + $0x70] sm:$0xf]
      %v2935 = vld [vmem:[%s2914 + $0x78] sm:$0xf]
      %v2936 = vld [vmem:[%s2914 + $0x7c] sm:$0xf]
      %v2937 = vld [vmem:[%s2914 + $0x84] sm:$0xf]
      %v2938 = vld [vmem:[%s2914 + $0x88] sm:$0xf]
      %v2939 = vld [vmem:[%s2914 + $0x90] sm:$0xf]
      %v2940 = vld [vmem:[%s2914 + $0x94] sm:$0xf]
      %v2941 = vld [vmem:[%s2914 + $0x9c] sm:$0xf]
      %v2942 = vld [vmem:[%s2914 + $0xa0] sm:$0xf]
      %v2943 = vld [vmem:[%s2914 + $0xa8] sm:$0xf]
      %v2944 = vld [vmem:[%s2914 + $0xac] sm:$0xf]
      %v2945 = vld [vmem:[%s2914 + $0xb4] sm:$0xf]
      %v2946 = vld [vmem:[%s2914 + $0xb8] sm:$0xf]
      %v2979 = vunpack.c.l.b16 %v2915
      %v2980 = vunpack.c.l.b16 %v2916
      %v2981 = vunpack.c.l.b16 %v2917
      %v2982 = vunpack.c.l.b16 %v2918
      %v2983 = vunpack.c.l.b16 %v2919
      %v2984 = vunpack.c.l.b16 %v2920
      %v2985 = vunpack.c.l.b16 %v2921
      %v2986 = vunpack.c.l.b16 %v2922
      %v2987 = vunpack.c.l.b16 %v2923
      %v2988 = vunpack.c.l.b16 %v2924
      %v2989 = vunpack.c.l.b16 %v2925
      %v2990 = vunpack.c.l.b16 %v2926
      %v2991 = vunpack.c.l.b16 %v2927
      %v2992 = vunpack.c.l.b16 %v2928
      %v2993 = vunpack.c.l.b16 %v2929
      %v2994 = vunpack.c.l.b16 %v2930
      %v2995 = vunpack.c.l.b16 %v2931
      %v2996 = vunpack.c.l.b16 %v2932
      %v2997 = vunpack.c.l.b16 %v2933
      %v2998 = vunpack.c.l.b16 %v2934
      %v2999 = vunpack.c.l.b16 %v2935
      %v3000 = vunpack.c.l.b16 %v2936
      %v3001 = vunpack.c.l.b16 %v2937
      %v3002 = vunpack.c.l.b16 %v2938
      %v3003 = vunpack.c.l.b16 %v2939
      %v3004 = vunpack.c.l.b16 %v2940
      %v3005 = vunpack.c.l.b16 %v2941
      %v3006 = vunpack.c.l.b16 %v2942
      %v3007 = vunpack.c.l.b16 %v2943
      %v3008 = vunpack.c.l.b16 %v2944
      %v3009 = vunpack.c.l.b16 %v2945
      %v3010 = vunpack.c.l.b16 %v2946
      %v3011 = vpack.c.b16 %v2980, %v2979
      %v3012 = vpack.c.b16 %v2982, %v2981
      %v3013 = vpack.c.b16 %v2984, %v2983
      %v3014 = vpack.c.b16 %v2986, %v2985
      %v3015 = vpack.c.b16 %v2988, %v2987
      %v3016 = vpack.c.b16 %v2990, %v2989
      %v3017 = vpack.c.b16 %v2992, %v2991
      %v3018 = vpack.c.b16 %v2994, %v2993
      %v3019 = vpack.c.b16 %v2996, %v2995
      %v3020 = vpack.c.b16 %v2998, %v2997
      %v3021 = vpack.c.b16 %v3000, %v2999
      %v3022 = vpack.c.b16 %v3002, %v3001
      %v3023 = vpack.c.b16 %v3004, %v3003
      %v3024 = vpack.c.b16 %v3006, %v3005
      %v3025 = vpack.c.b16 %v3008, %v3007
      %v3026 = vpack.c.b16 %v3010, %v3009
      %3043 = vst [vmem:[#allocation3 + $0x30] sm:$0xff] %v3011
      %3044 = vst [vmem:[#allocation3 + $0x78] sm:$0xff] %v3012
      %3045 = vst [vmem:[#allocation3 + $0xc0] sm:$0xff] %v3013
      %3046 = vst [vmem:[#allocation3 + $0x108] sm:$0xff] %v3014
      %3047 = vst [vmem:[#allocation3 + $0x150] sm:$0xff] %v3015
      %3048 = vst [vmem:[#allocation3 + $0x198] sm:$0xff] %v3016
      %3049 = vst [vmem:[#allocation3 + $0x1e0] sm:$0xff] %v3017
      %3050 = vst [vmem:[#allocation3 + $0x228] sm:$0xff] %v3018
      %3051 = vst [vmem:[#allocation3 + $0x270] sm:$0xff] %v3019
      %3052 = vst [vmem:[#allocation3 + $0x2b8] sm:$0xff] %v3020
      %3053 = vst [vmem:[#allocation3 + $0x300] sm:$0xff] %v3021
      %3054 = vst [vmem:[#allocation3 + $0x348] sm:$0xff] %v3022
      %3055 = vst [vmem:[#allocation3 + $0x390] sm:$0xff] %v3023
      %3056 = vst [vmem:[#allocation3 + $0x3d8] sm:$0xff] %v3024
      %3057 = vst [vmem:[#allocation3 + $0x420] sm:$0xff] %v3025
      %3058 = vst [vmem:[#allocation3 + $0x468] sm:$0xff] %v3026
      %v3059 = vld [vmem:[%s2914] sm:$0xf]
      %v3060 = vld [vmem:[%s2914 + $0x4] sm:$0xf]
      %v3061 = vld [vmem:[%s2914 + $0x8] sm:$0x1]
      %v3062 = vld [vmem:[%s2914 + $0xc] sm:$0xf]
      %v3063 = vld [vmem:[%s2914 + $0x10] sm:$0xf]
      %v3064 = vld [vmem:[%s2914 + $0x14] sm:$0x1]
      %v3065 = vld [vmem:[%s2914 + $0x18] sm:$0xf]
      %v3066 = vld [vmem:[%s2914 + $0x1c] sm:$0xf]
      %v3067 = vld [vmem:[%s2914 + $0x20] sm:$0x1]
      %v3068 = vld [vmem:[%s2914 + $0x24] sm:$0xf]
      %v3069 = vld [vmem:[%s2914 + $0x28] sm:$0xf]
      %v3070 = vld [vmem:[%s2914 + $0x2c] sm:$0x1]
      %v3071 = vld [vmem:[%s2914 + $0x30] sm:$0xf]
      %v3072 = vld [vmem:[%s2914 + $0x34] sm:$0xf]
      %v3073 = vld [vmem:[%s2914 + $0x38] sm:$0x1]
      %v3074 = vld [vmem:[%s2914 + $0x3c] sm:$0xf]
      %v3075 = vld [vmem:[%s2914 + $0x40] sm:$0xf]
      %v3076 = vld [vmem:[%s2914 + $0x44] sm:$0x1]
      %v3077 = vld [vmem:[%s2914 + $0x48] sm:$0xf]
      %v3078 = vld [vmem:[%s2914 + $0x4c] sm:$0xf]
      %v3079 = vld [vmem:[%s2914 + $0x50] sm:$0x1]
      %v3080 = vld [vmem:[%s2914 + $0x54] sm:$0xf]
      %v3081 = vld [vmem:[%s2914 + $0x58] sm:$0xf]
      %v3082 = vld [vmem:[%s2914 + $0x5c] sm:$0x1]
      %v3083 = vld [vmem:[%s2914 + $0x60] sm:$0xf]
      %v3084 = vld [vmem:[%s2914 + $0x64] sm:$0xf]
      %v3085 = vld [vmem:[%s2914 + $0x68] sm:$0x1]
      %v3086 = vld [vmem:[%s2914 + $0x6c] sm:$0xf]
      %v3087 = vld [vmem:[%s2914 + $0x70] sm:$0xf]
      %v3088 = vld [vmem:[%s2914 + $0x74] sm:$0x1]
      %v3089 = vld [vmem:[%s2914 + $0x78] sm:$0xf]
      %v3090 = vld [vmem:[%s2914 + $0x7c] sm:$0xf]
      %v3091 = vld [vmem:[%s2914 + $0x80] sm:$0x1]
      %v3092 = vld [vmem:[%s2914 + $0x84] sm:$0xf]
      %v3093 = vld [vmem:[%s2914 + $0x88] sm:$0xf]
      %v3094 = vld [vmem:[%s2914 + $0x8c] sm:$0x1]
      %v3095 = vld [vmem:[%s2914 + $0x90] sm:$0xf]
      %v3096 = vld [vmem:[%s2914 + $0x94] sm:$0xf]
      %v3097 = vld [vmem:[%s2914 + $0x98] sm:$0x1]
      %v3098 = vld [vmem:[%s2914 + $0x9c] sm:$0xf]
      %v3099 = vld [vmem:[%s2914 + $0xa0] sm:$0xf]
      %v3100 = vld [vmem:[%s2914 + $0xa4] sm:$0x1]
      %v3101 = vld [vmem:[%s2914 + $0xa8] sm:$0xf]
      %v3102 = vld [vmem:[%s2914 + $0xac] sm:$0xf]
      %v3103 = vld [vmem:[%s2914 + $0xb0] sm:$0x1]
      %v3104 = vld [vmem:[%s2914 + $0xb4] sm:$0xf]
      %v3105 = vld [vmem:[%s2914 + $0xb8] sm:$0xf]
      %v3106 = vld [vmem:[%s2914 + $0xbc] sm:$0x1]
      %v3108 = vshrl.u32 %v3059, 16
      %v3110 = vrot.slane %v3108, 4
      %v3111 = vshll.u32 %v3059, 16
      %v3113 = vrot.slane %v3111, 5
      %v3114 = vor.u32 %v3110, %v3113
      %v3115 = vrot.slane %v3114, 4
      %v3117 = vshll.u32 %v3060, 16
      %v3119 = vrot.slane %v3117, 5
      %v3120 = vsel %vm1214, %v3115, %v3119
      %v3121 = vshrl.u32 %v3060, 16
      %v3123 = vrot.slane %v3121, 4
      %v3124 = vor.u32 %v3123, %v3119
      %v3125 = vrot.slane %v3124, 4
      %v3127 = vshll.u32 %v3061, 16
      %v3129 = vrot.slane %v3127, 5
      %v3130 = vsel %vm1214, %v3125, %v3129
      %v3132 = vshrl.u32 %v3062, 16
      %v3134 = vrot.slane %v3132, 4
      %v3135 = vshll.u32 %v3062, 16
      %v3137 = vrot.slane %v3135, 5
      %v3138 = vor.u32 %v3134, %v3137
      %v3139 = vrot.slane %v3138, 4
      %v3141 = vshll.u32 %v3063, 16
      %v3143 = vrot.slane %v3141, 5
      %v3144 = vsel %vm1214, %v3139, %v3143
      %v3145 = vshrl.u32 %v3063, 16
      %v3147 = vrot.slane %v3145, 4
      %v3148 = vor.u32 %v3147, %v3143
      %v3149 = vrot.slane %v3148, 4
      %v3151 = vshll.u32 %v3064, 16
      %v3153 = vrot.slane %v3151, 5
      %v3154 = vsel %vm1214, %v3149, %v3153
      %v3156 = vshrl.u32 %v3065, 16
      %v3158 = vrot.slane %v3156, 4
      %v3159 = vshll.u32 %v3065, 16
      %v3161 = vrot.slane %v3159, 5
      %v3162 = vor.u32 %v3158, %v3161
      %v3163 = vrot.slane %v3162, 4
      %v3165 = vshll.u32 %v3066, 16
      %v3167 = vrot.slane %v3165, 5
      %v3168 = vsel %vm1214, %v3163, %v3167
      %v3169 = vshrl.u32 %v3066, 16
      %v3171 = vrot.slane %v3169, 4
      %v3172 = vor.u32 %v3171, %v3167
      %v3173 = vrot.slane %v3172, 4
      %v3175 = vshll.u32 %v3067, 16
      %v3177 = vrot.slane %v3175, 5
      %v3178 = vsel %vm1214, %v3173, %v3177
      %v3180 = vshrl.u32 %v3068, 16
      %v3182 = vrot.slane %v3180, 4
      %v3183 = vshll.u32 %v3068, 16
      %v3185 = vrot.slane %v3183, 5
      %v3186 = vor.u32 %v3182, %v3185
      %v3187 = vrot.slane %v3186, 4
      %v3189 = vshll.u32 %v3069, 16
      %v3191 = vrot.slane %v3189, 5
      %v3192 = vsel %vm1214, %v3187, %v3191
      %v3193 = vshrl.u32 %v3069, 16
      %v3195 = vrot.slane %v3193, 4
      %v3196 = vor.u32 %v3195, %v3191
      %v3197 = vrot.slane %v3196, 4
      %v3199 = vshll.u32 %v3070, 16
      %v3201 = vrot.slane %v3199, 5
      %v3202 = vsel %vm1214, %v3197, %v3201
      %v3204 = vshrl.u32 %v3071, 16
      %v3206 = vrot.slane %v3204, 4
      %v3207 = vshll.u32 %v3071, 16
      %v3209 = vrot.slane %v3207, 5
      %v3210 = vor.u32 %v3206, %v3209
      %v3211 = vrot.slane %v3210, 4
      %v3213 = vshll.u32 %v3072, 16
      %v3215 = vrot.slane %v3213, 5
      %v3216 = vsel %vm1214, %v3211, %v3215
      %v3217 = vshrl.u32 %v3072, 16
      %v3219 = vrot.slane %v3217, 4
      %v3220 = vor.u32 %v3219, %v3215
      %v3221 = vrot.slane %v3220, 4
      %v3223 = vshll.u32 %v3073, 16
      %v3225 = vrot.slane %v3223, 5
      %v3226 = vsel %vm1214, %v3221, %v3225
      %v3228 = vshrl.u32 %v3074, 16
      %v3230 = vrot.slane %v3228, 4
      %v3231 = vshll.u32 %v3074, 16
      %v3233 = vrot.slane %v3231, 5
      %v3234 = vor.u32 %v3230, %v3233
      %v3235 = vrot.slane %v3234, 4
      %v3237 = vshll.u32 %v3075, 16
      %v3239 = vrot.slane %v3237, 5
      %v3240 = vsel %vm1214, %v3235, %v3239
      %v3241 = vshrl.u32 %v3075, 16
      %v3243 = vrot.slane %v3241, 4
      %v3244 = vor.u32 %v3243, %v3239
      %v3245 = vrot.slane %v3244, 4
      %v3247 = vshll.u32 %v3076, 16
      %v3249 = vrot.slane %v3247, 5
      %v3250 = vsel %vm1214, %v3245, %v3249
      %v3252 = vshrl.u32 %v3077, 16
      %v3254 = vrot.slane %v3252, 4
      %v3255 = vshll.u32 %v3077, 16
      %v3257 = vrot.slane %v3255, 5
      %v3258 = vor.u32 %v3254, %v3257
      %v3259 = vrot.slane %v3258, 4
      %v3261 = vshll.u32 %v3078, 16
      %v3263 = vrot.slane %v3261, 5
      %v3264 = vsel %vm1214, %v3259, %v3263
      %v3265 = vshrl.u32 %v3078, 16
      %v3267 = vrot.slane %v3265, 4
      %v3268 = vor.u32 %v3267, %v3263
      %v3269 = vrot.slane %v3268, 4
      %v3271 = vshll.u32 %v3079, 16
      %v3273 = vrot.slane %v3271, 5
      %v3274 = vsel %vm1214, %v3269, %v3273
      %v3276 = vshrl.u32 %v3080, 16
      %v3278 = vrot.slane %v3276, 4
      %v3279 = vshll.u32 %v3080, 16
      %v3281 = vrot.slane %v3279, 5
      %v3282 = vor.u32 %v3278, %v3281
      %v3283 = vrot.slane %v3282, 4
      %v3285 = vshll.u32 %v3081, 16
      %v3287 = vrot.slane %v3285, 5
      %v3288 = vsel %vm1214, %v3283, %v3287
      %v3289 = vshrl.u32 %v3081, 16
      %v3291 = vrot.slane %v3289, 4
      %v3292 = vor.u32 %v3291, %v3287
      %v3293 = vrot.slane %v3292, 4
      %v3295 = vshll.u32 %v3082, 16
      %v3297 = vrot.slane %v3295, 5
      %v3298 = vsel %vm1214, %v3293, %v3297
      %v3300 = vshrl.u32 %v3083, 16
      %v3302 = vrot.slane %v3300, 4
      %v3303 = vshll.u32 %v3083, 16
      %v3305 = vrot.slane %v3303, 5
      %v3306 = vor.u32 %v3302, %v3305
      %v3307 = vrot.slane %v3306, 4
      %v3309 = vshll.u32 %v3084, 16
      %v3311 = vrot.slane %v3309, 5
      %v3312 = vsel %vm1214, %v3307, %v3311
      %v3313 = vshrl.u32 %v3084, 16
      %v3315 = vrot.slane %v3313, 4
      %v3316 = vor.u32 %v3315, %v3311
      %v3317 = vrot.slane %v3316, 4
      %v3319 = vshll.u32 %v3085, 16
      %v3321 = vrot.slane %v3319, 5
      %v3322 = vsel %vm1214, %v3317, %v3321
      %v3324 = vshrl.u32 %v3086, 16
      %v3326 = vrot.slane %v3324, 4
      %v3327 = vshll.u32 %v3086, 16
      %v3329 = vrot.slane %v3327, 5
      %v3330 = vor.u32 %v3326, %v3329
      %v3331 = vrot.slane %v3330, 4
      %v3333 = vshll.u32 %v3087, 16
      %v3335 = vrot.slane %v3333, 5
      %v3336 = vsel %vm1214, %v3331, %v3335
      %v3337 = vshrl.u32 %v3087, 16
      %v3339 = vrot.slane %v3337, 4
      %v3340 = vor.u32 %v3339, %v3335
      %v3341 = vrot.slane %v3340, 4
      %v3343 = vshll.u32 %v3088, 16
      %v3345 = vrot.slane %v3343, 5
      %v3346 = vsel %vm1214, %v3341, %v3345
      %v3348 = vshrl.u32 %v3089, 16
      %v3350 = vrot.slane %v3348, 4
      %v3351 = vshll.u32 %v3089, 16
      %v3353 = vrot.slane %v3351, 5
      %v3354 = vor.u32 %v3350, %v3353
      %v3355 = vrot.slane %v3354, 4
      %v3357 = vshll.u32 %v3090, 16
      %v3359 = vrot.slane %v3357, 5
      %v3360 = vsel %vm1214, %v3355, %v3359
      %v3361 = vshrl.u32 %v3090, 16
      %v3363 = vrot.slane %v3361, 4
      %v3364 = vor.u32 %v3363, %v3359
      %v3365 = vrot.slane %v3364, 4
      %v3367 = vshll.u32 %v3091, 16
      %v3369 = vrot.slane %v3367, 5
      %v3370 = vsel %vm1214, %v3365, %v3369
      %v3372 = vshrl.u32 %v3092, 16
      %v3374 = vrot.slane %v3372, 4
      %v3375 = vshll.u32 %v3092, 16
      %v3377 = vrot.slane %v3375, 5
      %v3378 = vor.u32 %v3374, %v3377
      %v3379 = vrot.slane %v3378, 4
      %v3381 = vshll.u32 %v3093, 16
      %v3383 = vrot.slane %v3381, 5
      %v3384 = vsel %vm1214, %v3379, %v3383
      %v3385 = vshrl.u32 %v3093, 16
      %v3387 = vrot.slane %v3385, 4
      %v3388 = vor.u32 %v3387, %v3383
      %v3389 = vrot.slane %v3388, 4
      %v3391 = vshll.u32 %v3094, 16
      %v3393 = vrot.slane %v3391, 5
      %v3394 = vsel %vm1214, %v3389, %v3393
      %v3396 = vshrl.u32 %v3095, 16
      %v3398 = vrot.slane %v3396, 4
      %v3399 = vshll.u32 %v3095, 16
      %v3401 = vrot.slane %v3399, 5
      %v3402 = vor.u32 %v3398, %v3401
      %v3403 = vrot.slane %v3402, 4
      %v3405 = vshll.u32 %v3096, 16
      %v3407 = vrot.slane %v3405, 5
      %v3408 = vsel %vm1214, %v3403, %v3407
      %v3409 = vshrl.u32 %v3096, 16
      %v3411 = vrot.slane %v3409, 4
      %v3412 = vor.u32 %v3411, %v3407
      %v3413 = vrot.slane %v3412, 4
      %v3415 = vshll.u32 %v3097, 16
      %v3417 = vrot.slane %v3415, 5
      %v3418 = vsel %vm1214, %v3413, %v3417
      %v3420 = vshrl.u32 %v3098, 16
      %v3422 = vrot.slane %v3420, 4
      %v3423 = vshll.u32 %v3098, 16
      %v3425 = vrot.slane %v3423, 5
      %v3426 = vor.u32 %v3422, %v3425
      %v3427 = vrot.slane %v3426, 4
      %v3429 = vshll.u32 %v3099, 16
      %v3431 = vrot.slane %v3429, 5
      %v3432 = vsel %vm1214, %v3427, %v3431
      %v3433 = vshrl.u32 %v3099, 16
      %v3435 = vrot.slane %v3433, 4
      %v3436 = vor.u32 %v3435, %v3431
      %v3437 = vrot.slane %v3436, 4
      %v3439 = vshll.u32 %v3100, 16
      %v3441 = vrot.slane %v3439, 5
      %v3442 = vsel %vm1214, %v3437, %v3441
      %v3444 = vshrl.u32 %v3101, 16
      %v3446 = vrot.slane %v3444, 4
      %v3447 = vshll.u32 %v3101, 16
      %v3449 = vrot.slane %v3447, 5
      %v3450 = vor.u32 %v3446, %v3449
      %v3451 = vrot.slane %v3450, 4
      %v3453 = vshll.u32 %v3102, 16
      %v3455 = vrot.slane %v3453, 5
      %v3456 = vsel %vm1214, %v3451, %v3455
      %v3457 = vshrl.u32 %v3102, 16
      %v3459 = vrot.slane %v3457, 4
      %v3460 = vor.u32 %v3459, %v3455
      %v3461 = vrot.slane %v3460, 4
      %v3463 = vshll.u32 %v3103, 16
      %v3465 = vrot.slane %v3463, 5
      %v3466 = vsel %vm1214, %v3461, %v3465
      %v3468 = vshrl.u32 %v3104, 16
      %v3470 = vrot.slane %v3468, 4
      %v3471 = vshll.u32 %v3104, 16
      %v3473 = vrot.slane %v3471, 5
      %v3474 = vor.u32 %v3470, %v3473
      %v3475 = vrot.slane %v3474, 4
      %v3477 = vshll.u32 %v3105, 16
      %v3479 = vrot.slane %v3477, 5
      %v3480 = vsel %vm1214, %v3475, %v3479
      %v3481 = vshrl.u32 %v3105, 16
      %v3483 = vrot.slane %v3481, 4
      %v3484 = vor.u32 %v3483, %v3479
      %v3485 = vrot.slane %v3484, 4
      %v3487 = vshll.u32 %v3106, 16
      %v3489 = vrot.slane %v3487, 5
      %v3490 = vsel %vm1214, %v3485, %v3489
      %v3491 = vunpack.c.l.b16 %v3120
      %v3492 = vunpack.c.l.b16 %v3130
      %v3493 = vunpack.c.l.b16 %v3144
      %v3494 = vunpack.c.l.b16 %v3154
      %v3495 = vunpack.c.l.b16 %v3168
      %v3496 = vunpack.c.l.b16 %v3178
      %v3497 = vunpack.c.l.b16 %v3192
      %v3498 = vunpack.c.l.b16 %v3202
      %v3499 = vunpack.c.l.b16 %v3216
      %v3500 = vunpack.c.l.b16 %v3226
      %v3501 = vunpack.c.l.b16 %v3240
      %v3502 = vunpack.c.l.b16 %v3250
      %v3503 = vunpack.c.l.b16 %v3264
      %v3504 = vunpack.c.l.b16 %v3274
      %v3505 = vunpack.c.l.b16 %v3288
      %v3506 = vunpack.c.l.b16 %v3298
      %v3507 = vunpack.c.l.b16 %v3312
      %v3508 = vunpack.c.l.b16 %v3322
      %v3509 = vunpack.c.l.b16 %v3336
      %v3510 = vunpack.c.l.b16 %v3346
      %v3511 = vunpack.c.l.b16 %v3360
      %v3512 = vunpack.c.l.b16 %v3370
      %v3513 = vunpack.c.l.b16 %v3384
      %v3514 = vunpack.c.l.b16 %v3394
      %v3515 = vunpack.c.l.b16 %v3408
      %v3516 = vunpack.c.l.b16 %v3418
      %v3517 = vunpack.c.l.b16 %v3432
      %v3518 = vunpack.c.l.b16 %v3442
      %v3519 = vunpack.c.l.b16 %v3456
      %v3520 = vunpack.c.l.b16 %v3466
      %v3521 = vunpack.c.l.b16 %v3480
      %v3522 = vunpack.c.l.b16 %v3490
      %v3523 = vpack.c.b16 %v3492, %v3491
      %v3524 = vpack.c.b16 %v3494, %v3493
      %v3525 = vpack.c.b16 %v3496, %v3495
      %v3526 = vpack.c.b16 %v3498, %v3497
      %v3527 = vpack.c.b16 %v3500, %v3499
      %v3528 = vpack.c.b16 %v3502, %v3501
      %v3529 = vpack.c.b16 %v3504, %v3503
      %v3530 = vpack.c.b16 %v3506, %v3505
      %v3531 = vpack.c.b16 %v3508, %v3507
      %v3532 = vpack.c.b16 %v3510, %v3509
      %v3533 = vpack.c.b16 %v3512, %v3511
      %v3534 = vpack.c.b16 %v3514, %v3513
      %v3535 = vpack.c.b16 %v3516, %v3515
      %v3536 = vpack.c.b16 %v3518, %v3517
      %v3537 = vpack.c.b16 %v3520, %v3519
      %v3538 = vpack.c.b16 %v3522, %v3521
      %3555 = vst [vmem:[#allocation3 + $0x38] sm:$0xff] %v3523
      %3556 = vst [vmem:[#allocation3 + $0x80] sm:$0xff] %v3524
      %3557 = vst [vmem:[#allocation3 + $0xc8] sm:$0xff] %v3525
      %3558 = vst [vmem:[#allocation3 + $0x110] sm:$0xff] %v3526
      %3559 = vst [vmem:[#allocation3 + $0x158] sm:$0xff] %v3527
      %3560 = vst [vmem:[#allocation3 + $0x1a0] sm:$0xff] %v3528
      %3561 = vst [vmem:[#allocation3 + $0x1e8] sm:$0xff] %v3529
      %3562 = vst [vmem:[#allocation3 + $0x230] sm:$0xff] %v3530
      %3563 = vst [vmem:[#allocation3 + $0x278] sm:$0xff] %v3531
      %3564 = vst [vmem:[#allocation3 + $0x2c0] sm:$0xff] %v3532
      %3565 = vst [vmem:[#allocation3 + $0x308] sm:$0xff] %v3533
      %3566 = vst [vmem:[#allocation3 + $0x350] sm:$0xff] %v3534
      %3567 = vst [vmem:[#allocation3 + $0x398] sm:$0xff] %v3535
      %3568 = vst [vmem:[#allocation3 + $0x3e0] sm:$0xff] %v3536
      %3569 = vst [vmem:[#allocation3 + $0x428] sm:$0xff] %v3537
      %3570 = vst [vmem:[#allocation3 + $0x470] sm:$0xff] %v3538
      %v3571 = vld [vmem:[%s2914] sm:$0xe]
      %v3572 = vld [vmem:[%s2914 + $0x4] sm:$0xf]
      %v3573 = vld [vmem:[%s2914 + $0x8] sm:$0x1]
      %v3574 = vld [vmem:[%s2914 + $0xc] sm:$0xe]
      %v3575 = vld [vmem:[%s2914 + $0x10] sm:$0xf]
      %v3576 = vld [vmem:[%s2914 + $0x14] sm:$0x1]
      %v3577 = vld [vmem:[%s2914 + $0x18] sm:$0xe]
      %v3578 = vld [vmem:[%s2914 + $0x1c] sm:$0xf]
      %v3579 = vld [vmem:[%s2914 + $0x20] sm:$0x1]
      %v3580 = vld [vmem:[%s2914 + $0x24] sm:$0xe]
      %v3581 = vld [vmem:[%s2914 + $0x28] sm:$0xf]
      %v3582 = vld [vmem:[%s2914 + $0x2c] sm:$0x1]
      %v3583 = vld [vmem:[%s2914 + $0x30] sm:$0xe]
      %v3584 = vld [vmem:[%s2914 + $0x34] sm:$0xf]
      %v3585 = vld [vmem:[%s2914 + $0x38] sm:$0x1]
      %v3586 = vld [vmem:[%s2914 + $0x3c] sm:$0xe]
      %v3587 = vld [vmem:[%s2914 + $0x40] sm:$0xf]
      %v3588 = vld [vmem:[%s2914 + $0x44] sm:$0x1]
      %v3589 = vld [vmem:[%s2914 + $0x48] sm:$0xe]
      %v3590 = vld [vmem:[%s2914 + $0x4c] sm:$0xf]
      %v3591 = vld [vmem:[%s2914 + $0x50] sm:$0x1]
      %v3592 = vld [vmem:[%s2914 + $0x54] sm:$0xe]
      %v3593 = vld [vmem:[%s2914 + $0x58] sm:$0xf]
      %v3594 = vld [vmem:[%s2914 + $0x5c] sm:$0x1]
      %v3595 = vld [vmem:[%s2914 + $0x60] sm:$0xe]
      %v3596 = vld [vmem:[%s2914 + $0x64] sm:$0xf]
      %v3597 = vld [vmem:[%s2914 + $0x68] sm:$0x1]
      %v3598 = vld [vmem:[%s2914 + $0x6c] sm:$0xe]
      %v3599 = vld [vmem:[%s2914 + $0x70] sm:$0xf]
      %v3600 = vld [vmem:[%s2914 + $0x74] sm:$0x1]
      %v3601 = vld [vmem:[%s2914 + $0x78] sm:$0xe]
      %v3602 = vld [vmem:[%s2914 + $0x7c] sm:$0xf]
      %v3603 = vld [vmem:[%s2914 + $0x80] sm:$0x1]
      %v3604 = vld [vmem:[%s2914 + $0x84] sm:$0xe]
      %v3605 = vld [vmem:[%s2914 + $0x88] sm:$0xf]
      %v3606 = vld [vmem:[%s2914 + $0x8c] sm:$0x1]
      %v3607 = vld [vmem:[%s2914 + $0x90] sm:$0xe]
      %v3608 = vld [vmem:[%s2914 + $0x94] sm:$0xf]
      %v3609 = vld [vmem:[%s2914 + $0x98] sm:$0x1]
      %v3610 = vld [vmem:[%s2914 + $0x9c] sm:$0xe]
      %v3611 = vld [vmem:[%s2914 + $0xa0] sm:$0xf]
      %v3612 = vld [vmem:[%s2914 + $0xa4] sm:$0x1]
      %v3613 = vld [vmem:[%s2914 + $0xa8] sm:$0xe]
      %v3614 = vld [vmem:[%s2914 + $0xac] sm:$0xf]
      %v3615 = vld [vmem:[%s2914 + $0xb0] sm:$0x1]
      %v3616 = vld [vmem:[%s2914 + $0xb4] sm:$0xe]
      %v3617 = vld [vmem:[%s2914 + $0xb8] sm:$0xf]
      %v3618 = vld [vmem:[%s2914 + $0xbc] sm:$0x1]
      %v3667 = vrot.slane %v3571, 5
      %v3668 = vrot.slane %v3667, 4
      %v3669 = vrot.slane %v3572, 5
      %v3670 = vsel %vm1777, %v3668, %v3669
      %v3671 = vrot.slane %v3669, 4
      %v3672 = vrot.slane %v3573, 5
      %v3673 = vsel %vm1777, %v3671, %v3672
      %v3674 = vrot.slane %v3574, 5
      %v3675 = vrot.slane %v3674, 4
      %v3676 = vrot.slane %v3575, 5
      %v3677 = vsel %vm1777, %v3675, %v3676
      %v3678 = vrot.slane %v3676, 4
      %v3679 = vrot.slane %v3576, 5
      %v3680 = vsel %vm1777, %v3678, %v3679
      %v3681 = vrot.slane %v3577, 5
      %v3682 = vrot.slane %v3681, 4
      %v3683 = vrot.slane %v3578, 5
      %v3684 = vsel %vm1777, %v3682, %v3683
      %v3685 = vrot.slane %v3683, 4
      %v3686 = vrot.slane %v3579, 5
      %v3687 = vsel %vm1777, %v3685, %v3686
      %v3688 = vrot.slane %v3580, 5
      %v3689 = vrot.slane %v3688, 4
      %v3690 = vrot.slane %v3581, 5
      %v3691 = vsel %vm1777, %v3689, %v3690
      %v3692 = vrot.slane %v3690, 4
      %v3693 = vrot.slane %v3582, 5
      %v3694 = vsel %vm1777, %v3692, %v3693
      %v3695 = vrot.slane %v3583, 5
      %v3696 = vrot.slane %v3695, 4
      %v3697 = vrot.slane %v3584, 5
      %v3698 = vsel %vm1777, %v3696, %v3697
      %v3699 = vrot.slane %v3697, 4
      %v3700 = vrot.slane %v3585, 5
      %v3701 = vsel %vm1777, %v3699, %v3700
      %v3702 = vrot.slane %v3586, 5
      %v3703 = vrot.slane %v3702, 4
      %v3704 = vrot.slane %v3587, 5
      %v3705 = vsel %vm1777, %v3703, %v3704
      %v3706 = vrot.slane %v3704, 4
      %v3707 = vrot.slane %v3588, 5
      %v3708 = vsel %vm1777, %v3706, %v3707
      %v3709 = vrot.slane %v3589, 5
      %v3710 = vrot.slane %v3709, 4
      %v3711 = vrot.slane %v3590, 5
      %v3712 = vsel %vm1777, %v3710, %v3711
      %v3713 = vrot.slane %v3711, 4
      %v3714 = vrot.slane %v3591, 5
      %v3715 = vsel %vm1777, %v3713, %v3714
      %v3716 = vrot.slane %v3592, 5
      %v3717 = vrot.slane %v3716, 4
      %v3718 = vrot.slane %v3593, 5
      %v3719 = vsel %vm1777, %v3717, %v3718
      %v3720 = vrot.slane %v3718, 4
      %v3721 = vrot.slane %v3594, 5
      %v3722 = vsel %vm1777, %v3720, %v3721
      %v3723 = vrot.slane %v3595, 5
      %v3724 = vrot.slane %v3723, 4
      %v3725 = vrot.slane %v3596, 5
      %v3726 = vsel %vm1777, %v3724, %v3725
      %v3727 = vrot.slane %v3725, 4
      %v3728 = vrot.slane %v3597, 5
      %v3729 = vsel %vm1777, %v3727, %v3728
      %v3730 = vrot.slane %v3598, 5
      %v3731 = vrot.slane %v3730, 4
      %v3732 = vrot.slane %v3599, 5
      %v3733 = vsel %vm1777, %v3731, %v3732
      %v3734 = vrot.slane %v3732, 4
      %v3735 = vrot.slane %v3600, 5
      %v3736 = vsel %vm1777, %v3734, %v3735
      %v3737 = vrot.slane %v3601, 5
      %v3738 = vrot.slane %v3737, 4
      %v3739 = vrot.slane %v3602, 5
      %v3740 = vsel %vm1777, %v3738, %v3739
      %v3741 = vrot.slane %v3739, 4
      %v3742 = vrot.slane %v3603, 5
      %v3743 = vsel %vm1777, %v3741, %v3742
      %v3744 = vrot.slane %v3604, 5
      %v3745 = vrot.slane %v3744, 4
      %v3746 = vrot.slane %v3605, 5
      %v3747 = vsel %vm1777, %v3745, %v3746
      %v3748 = vrot.slane %v3746, 4
      %v3749 = vrot.slane %v3606, 5
      %v3750 = vsel %vm1777, %v3748, %v3749
      %v3751 = vrot.slane %v3607, 5
      %v3752 = vrot.slane %v3751, 4
      %v3753 = vrot.slane %v3608, 5
      %v3754 = vsel %vm1777, %v3752, %v3753
      %v3755 = vrot.slane %v3753, 4
      %v3756 = vrot.slane %v3609, 5
      %v3757 = vsel %vm1777, %v3755, %v3756
      %v3758 = vrot.slane %v3610, 5
      %v3759 = vrot.slane %v3758, 4
      %v3760 = vrot.slane %v3611, 5
      %v3761 = vsel %vm1777, %v3759, %v3760
      %v3762 = vrot.slane %v3760, 4
      %v3763 = vrot.slane %v3612, 5
      %v3764 = vsel %vm1777, %v3762, %v3763
      %v3765 = vrot.slane %v3613, 5
      %v3766 = vrot.slane %v3765, 4
      %v3767 = vrot.slane %v3614, 5
      %v3768 = vsel %vm1777, %v3766, %v3767
      %v3769 = vrot.slane %v3767, 4
      %v3770 = vrot.slane %v3615, 5
      %v3771 = vsel %vm1777, %v3769, %v3770
      %v3772 = vrot.slane %v3616, 5
      %v3773 = vrot.slane %v3772, 4
      %v3774 = vrot.slane %v3617, 5
      %v3775 = vsel %vm1777, %v3773, %v3774
      %v3776 = vrot.slane %v3774, 4
      %v3777 = vrot.slane %v3618, 5
      %v3778 = vsel %vm1777, %v3776, %v3777
      %v3779 = vunpack.c.l.b16 %v3670
      %v3780 = vunpack.c.l.b16 %v3673
      %v3781 = vunpack.c.l.b16 %v3677
      %v3782 = vunpack.c.l.b16 %v3680
      %v3783 = vunpack.c.l.b16 %v3684
      %v3784 = vunpack.c.l.b16 %v3687
      %v3785 = vunpack.c.l.b16 %v3691
      %v3786 = vunpack.c.l.b16 %v3694
      %v3787 = vunpack.c.l.b16 %v3698
      %v3788 = vunpack.c.l.b16 %v3701
      %v3789 = vunpack.c.l.b16 %v3705
      %v3790 = vunpack.c.l.b16 %v3708
      %v3791 = vunpack.c.l.b16 %v3712
      %v3792 = vunpack.c.l.b16 %v3715
      %v3793 = vunpack.c.l.b16 %v3719
      %v3794 = vunpack.c.l.b16 %v3722
      %v3795 = vunpack.c.l.b16 %v3726
      %v3796 = vunpack.c.l.b16 %v3729
      %v3797 = vunpack.c.l.b16 %v3733
      %v3798 = vunpack.c.l.b16 %v3736
      %v3799 = vunpack.c.l.b16 %v3740
      %v3800 = vunpack.c.l.b16 %v3743
      %v3801 = vunpack.c.l.b16 %v3747
      %v3802 = vunpack.c.l.b16 %v3750
      %v3803 = vunpack.c.l.b16 %v3754
      %v3804 = vunpack.c.l.b16 %v3757
      %v3805 = vunpack.c.l.b16 %v3761
      %v3806 = vunpack.c.l.b16 %v3764
      %v3807 = vunpack.c.l.b16 %v3768
      %v3808 = vunpack.c.l.b16 %v3771
      %v3809 = vunpack.c.l.b16 %v3775
      %v3810 = vunpack.c.l.b16 %v3778
      %v3811 = vpack.c.b16 %v3780, %v3779
      %v3812 = vpack.c.b16 %v3782, %v3781
      %v3813 = vpack.c.b16 %v3784, %v3783
      %v3814 = vpack.c.b16 %v3786, %v3785
      %v3815 = vpack.c.b16 %v3788, %v3787
      %v3816 = vpack.c.b16 %v3790, %v3789
      %v3817 = vpack.c.b16 %v3792, %v3791
      %v3818 = vpack.c.b16 %v3794, %v3793
      %v3819 = vpack.c.b16 %v3796, %v3795
      %v3820 = vpack.c.b16 %v3798, %v3797
      %v3821 = vpack.c.b16 %v3800, %v3799
      %v3822 = vpack.c.b16 %v3802, %v3801
      %v3823 = vpack.c.b16 %v3804, %v3803
      %v3824 = vpack.c.b16 %v3806, %v3805
      %v3825 = vpack.c.b16 %v3808, %v3807
      %v3826 = vpack.c.b16 %v3810, %v3809
      %3843 = vst [vmem:[#allocation3 + $0x40] sm:$0xff] %v3811
      %3844 = vst [vmem:[#allocation3 + $0x88] sm:$0xff] %v3812
      %3845 = vst [vmem:[#allocation3 + $0xd0] sm:$0xff] %v3813
      %3846 = vst [vmem:[#allocation3 + $0x118] sm:$0xff] %v3814
      %3847 = vst [vmem:[#allocation3 + $0x160] sm:$0xff] %v3815
      %3848 = vst [vmem:[#allocation3 + $0x1a8] sm:$0xff] %v3816
      %3849 = vst [vmem:[#allocation3 + $0x1f0] sm:$0xff] %v3817
      %3850 = vst [vmem:[#allocation3 + $0x238] sm:$0xff] %v3818
      %3851 = vst [vmem:[#allocation3 + $0x280] sm:$0xff] %v3819
      %3852 = vst [vmem:[#allocation3 + $0x2c8] sm:$0xff] %v3820
      %3853 = vst [vmem:[#allocation3 + $0x310] sm:$0xff] %v3821
      %3854 = vst [vmem:[#allocation3 + $0x358] sm:$0xff] %v3822
      %3855 = vst [vmem:[#allocation3 + $0x3a0] sm:$0xff] %v3823
      %3856 = vst [vmem:[#allocation3 + $0x3e8] sm:$0xff] %v3824
      %3857 = vst [vmem:[#allocation3 + $0x430] sm:$0xff] %v3825
      %3858 = vst [vmem:[#allocation3 + $0x478] sm:$0xff] %v3826
      %v3859 = vld [vmem:[#allocation3] sm:$0xff]
      %v3860 = vld [vmem:[#allocation3 + $0x8] sm:$0xff]
      %v3861 = vld [vmem:[#allocation3 + $0x10] sm:$0xff]
      %v3862 = vld [vmem:[#allocation3 + $0x18] sm:$0xff]
      %v3863 = vld [vmem:[#allocation3 + $0x20] sm:$0xff]
      %v3864 = vld [vmem:[#allocation3 + $0x28] sm:$0xff]
      %v3865 = vld [vmem:[#allocation3 + $0x30] sm:$0xff]
      %v3866 = vld [vmem:[#allocation3 + $0x38] sm:$0xff]
      %v3867 = vld [vmem:[#allocation3 + $0x40] sm:$0xff]
      %v3868 = vld [vmem:[#allocation3 + $0x48] sm:$0xff]
      %v3869 = vld [vmem:[#allocation3 + $0x50] sm:$0xff]
      %v3870 = vld [vmem:[#allocation3 + $0x58] sm:$0xff]
      %v3871 = vld [vmem:[#allocation3 + $0x60] sm:$0xff]
      %v3872 = vld [vmem:[#allocation3 + $0x68] sm:$0xff]
      %v3873 = vld [vmem:[#allocation3 + $0x70] sm:$0xff]
      %v3874 = vld [vmem:[#allocation3 + $0x78] sm:$0xff]
      %v3875 = vld [vmem:[#allocation3 + $0x80] sm:$0xff]
      %v3876 = vld [vmem:[#allocation3 + $0x88] sm:$0xff]
      %v3877 = vld [vmem:[#allocation3 + $0x90] sm:$0xff]
      %v3878 = vld [vmem:[#allocation3 + $0x98] sm:$0xff]
      %v3879 = vld [vmem:[#allocation3 + $0xa0] sm:$0xff]
      %v3880 = vld [vmem:[#allocation3 + $0xa8] sm:$0xff]
      %v3881 = vld [vmem:[#allocation3 + $0xb0] sm:$0xff]
      %v3882 = vld [vmem:[#allocation3 + $0xb8] sm:$0xff]
      %v3883 = vld [vmem:[#allocation3 + $0xc0] sm:$0xff]
      %v3884 = vld [vmem:[#allocation3 + $0xc8] sm:$0xff]
      %v3885 = vld [vmem:[#allocation3 + $0xd0] sm:$0xff]
      %v3886 = vld [vmem:[#allocation3 + $0xd8] sm:$0xff]
      %v3887 = vld [vmem:[#allocation3 + $0xe0] sm:$0xff]
      %v3888 = vld [vmem:[#allocation3 + $0xe8] sm:$0xff]
      %v3889 = vld [vmem:[#allocation3 + $0xf0] sm:$0xff]
      %v3890 = vld [vmem:[#allocation3 + $0xf8] sm:$0xff]
      %v3891 = vld [vmem:[#allocation3 + $0x100] sm:$0xff]
      %v3892 = vld [vmem:[#allocation3 + $0x108] sm:$0xff]
      %v3893 = vld [vmem:[#allocation3 + $0x110] sm:$0xff]
      %v3894 = vld [vmem:[#allocation3 + $0x118] sm:$0xff]
      %v3895 = vld [vmem:[#allocation3 + $0x120] sm:$0xff]
      %v3896 = vld [vmem:[#allocation3 + $0x128] sm:$0xff]
      %v3897 = vld [vmem:[#allocation3 + $0x130] sm:$0xff]
      %v3898 = vld [vmem:[#allocation3 + $0x138] sm:$0xff]
      %v3899 = vld [vmem:[#allocation3 + $0x140] sm:$0xff]
      %v3900 = vld [vmem:[#allocation3 + $0x148] sm:$0xff]
      %v3901 = vld [vmem:[#allocation3 + $0x150] sm:$0xff]
      %v3902 = vld [vmem:[#allocation3 + $0x158] sm:$0xff]
      %v3903 = vld [vmem:[#allocation3 + $0x160] sm:$0xff]
      %v3904 = vld [vmem:[#allocation3 + $0x168] sm:$0xff]
      %v3905 = vld [vmem:[#allocation3 + $0x170] sm:$0xff]
      %v3906 = vld [vmem:[#allocation3 + $0x178] sm:$0xff]
      %v3907 = vld [vmem:[#allocation3 + $0x180] sm:$0xff]
      %v3908 = vld [vmem:[#allocation3 + $0x188] sm:$0xff]
      %v3909 = vld [vmem:[#allocation3 + $0x190] sm:$0xff]
      %v3910 = vld [vmem:[#allocation3 + $0x198] sm:$0xff]
      %v3911 = vld [vmem:[#allocation3 + $0x1a0] sm:$0xff]
      %v3912 = vld [vmem:[#allocation3 + $0x1a8] sm:$0xff]
      %v3913 = vld [vmem:[#allocation3 + $0x1b0] sm:$0xff]
      %v3914 = vld [vmem:[#allocation3 + $0x1b8] sm:$0xff]
      %v3915 = vld [vmem:[#allocation3 + $0x1c0] sm:$0xff]
      %v3916 = vld [vmem:[#allocation3 + $0x1c8] sm:$0xff]
      %v3917 = vld [vmem:[#allocation3 + $0x1d0] sm:$0xff]
      %v3918 = vld [vmem:[#allocation3 + $0x1d8] sm:$0xff]
      %v3919 = vld [vmem:[#allocation3 + $0x1e0] sm:$0xff]
      %v3920 = vld [vmem:[#allocation3 + $0x1e8] sm:$0xff]
      %v3921 = vld [vmem:[#allocation3 + $0x1f0] sm:$0xff]
      %v3922 = vld [vmem:[#allocation3 + $0x1f8] sm:$0xff]
      %v3923 = vld [vmem:[#allocation3 + $0x200] sm:$0xff]
      %v3924 = vld [vmem:[#allocation3 + $0x208] sm:$0xff]
      %v3925 = vld [vmem:[#allocation3 + $0x210] sm:$0xff]
      %v3926 = vld [vmem:[#allocation3 + $0x218] sm:$0xff]
      %v3927 = vld [vmem:[#allocation3 + $0x220] sm:$0xff]
      %v3928 = vld [vmem:[#allocation3 + $0x228] sm:$0xff]
      %v3929 = vld [vmem:[#allocation3 + $0x230] sm:$0xff]
      %v3930 = vld [vmem:[#allocation3 + $0x238] sm:$0xff]
      %v3931 = vld [vmem:[#allocation3 + $0x240] sm:$0xff]
      %v3932 = vld [vmem:[#allocation3 + $0x248] sm:$0xff]
      %v3933 = vld [vmem:[#allocation3 + $0x250] sm:$0xff]
      %v3934 = vld [vmem:[#allocation3 + $0x258] sm:$0xff]
      %v3935 = vld [vmem:[#allocation3 + $0x260] sm:$0xff]
      %v3936 = vld [vmem:[#allocation3 + $0x268] sm:$0xff]
      %v3937 = vld [vmem:[#allocation3 + $0x270] sm:$0xff]
      %v3938 = vld [vmem:[#allocation3 + $0x278] sm:$0xff]
      %v3939 = vld [vmem:[#allocation3 + $0x280] sm:$0xff]
      %v3940 = vld [vmem:[#allocation3 + $0x288] sm:$0xff]
      %v3941 = vld [vmem:[#allocation3 + $0x290] sm:$0xff]
      %v3942 = vld [vmem:[#allocation3 + $0x298] sm:$0xff]
      %v3943 = vld [vmem:[#allocation3 + $0x2a0] sm:$0xff]
      %v3944 = vld [vmem:[#allocation3 + $0x2a8] sm:$0xff]
      %v3945 = vld [vmem:[#allocation3 + $0x2b0] sm:$0xff]
      %v3946 = vld [vmem:[#allocation3 + $0x2b8] sm:$0xff]
      %v3947 = vld [vmem:[#allocation3 + $0x2c0] sm:$0xff]
      %v3948 = vld [vmem:[#allocation3 + $0x2c8] sm:$0xff]
      %v3949 = vld [vmem:[#allocation3 + $0x2d0] sm:$0xff]
      %v3950 = vld [vmem:[#allocation3 + $0x2d8] sm:$0xff]
      %v3951 = vld [vmem:[#allocation3 + $0x2e0] sm:$0xff]
      %v3952 = vld [vmem:[#allocation3 + $0x2e8] sm:$0xff]
      %v3953 = vld [vmem:[#allocation3 + $0x2f0] sm:$0xff]
      %v3954 = vld [vmem:[#allocation3 + $0x2f8] sm:$0xff]
      %v3955 = vld [vmem:[#allocation3 + $0x300] sm:$0xff]
      %v3956 = vld [vmem:[#allocation3 + $0x308] sm:$0xff]
      %v3957 = vld [vmem:[#allocation3 + $0x310] sm:$0xff]
      %v3958 = vld [vmem:[#allocation3 + $0x318] sm:$0xff]
      %v3959 = vld [vmem:[#allocation3 + $0x320] sm:$0xff]
      %v3960 = vld [vmem:[#allocation3 + $0x328] sm:$0xff]
      %v3961 = vld [vmem:[#allocation3 + $0x330] sm:$0xff]
      %v3962 = vld [vmem:[#allocation3 + $0x338] sm:$0xff]
      %v3963 = vld [vmem:[#allocation3 + $0x340] sm:$0xff]
      %v3964 = vld [vmem:[#allocation3 + $0x348] sm:$0xff]
      %v3965 = vld [vmem:[#allocation3 + $0x350] sm:$0xff]
      %v3966 = vld [vmem:[#allocation3 + $0x358] sm:$0xff]
      %v3967 = vld [vmem:[#allocation3 + $0x360] sm:$0xff]
      %v3968 = vld [vmem:[#allocation3 + $0x368] sm:$0xff]
      %v3969 = vld [vmem:[#allocation3 + $0x370] sm:$0xff]
      %v3970 = vld [vmem:[#allocation3 + $0x378] sm:$0xff]
      %v3971 = vld [vmem:[#allocation3 + $0x380] sm:$0xff]
      %v3972 = vld [vmem:[#allocation3 + $0x388] sm:$0xff]
      %v3973 = vld [vmem:[#allocation3 + $0x390] sm:$0xff]
      %v3974 = vld [vmem:[#allocation3 + $0x398] sm:$0xff]
      %v3975 = vld [vmem:[#allocation3 + $0x3a0] sm:$0xff]
      %v3976 = vld [vmem:[#allocation3 + $0x3a8] sm:$0xff]
      %v3977 = vld [vmem:[#allocation3 + $0x3b0] sm:$0xff]
      %v3978 = vld [vmem:[#allocation3 + $0x3b8] sm:$0xff]
      %v3979 = vld [vmem:[#allocation3 + $0x3c0] sm:$0xff]
      %v3980 = vld [vmem:[#allocation3 + $0x3c8] sm:$0xff]
      %v3981 = vld [vmem:[#allocation3 + $0x3d0] sm:$0xff]
      %v3982 = vld [vmem:[#allocation3 + $0x3d8] sm:$0xff]
      %v3983 = vld [vmem:[#allocation3 + $0x3e0] sm:$0xff]
      %v3984 = vld [vmem:[#allocation3 + $0x3e8] sm:$0xff]
      %v3985 = vld [vmem:[#allocation3 + $0x3f0] sm:$0xff]
      %v3986 = vld [vmem:[#allocation3 + $0x3f8] sm:$0xff]
      %v3987 = vld [vmem:[#allocation3 + $0x400] sm:$0xff]
      %v3988 = vld [vmem:[#allocation3 + $0x408] sm:$0xff]
      %v3989 = vld [vmem:[#allocation3 + $0x410] sm:$0xff]
      %v3990 = vld [vmem:[#allocation3 + $0x418] sm:$0xff]
      %v3991 = vld [vmem:[#allocation3 + $0x420] sm:$0xff]
      %v3992 = vld [vmem:[#allocation3 + $0x428] sm:$0xff]
      %v3993 = vld [vmem:[#allocation3 + $0x430] sm:$0xff]
      %v3994 = vld [vmem:[#allocation3 + $0x438] sm:$0xff]
      %v3995 = vld [vmem:[#allocation3 + $0x440] sm:$0xff]
      %v3996 = vld [vmem:[#allocation3 + $0x448] sm:$0xff]
      %v3997 = vld [vmem:[#allocation3 + $0x450] sm:$0xff]
      %v3998 = vld [vmem:[#allocation3 + $0x458] sm:$0xff]
      %v3999 = vld [vmem:[#allocation3 + $0x460] sm:$0xff]
      %v4000 = vld [vmem:[#allocation3 + $0x468] sm:$0xff]
      %v4001 = vld [vmem:[#allocation3 + $0x470] sm:$0xff]
      %v4002 = vld [vmem:[#allocation3 + $0x478] sm:$0xff]
      %v4003 = vld [vmem:[%s3] sm:$0xf]
      %v4004 = vld [vmem:[%s3 + $0x4] sm:$0xf]
      %v4005 = vld [vmem:[%s3 + $0x8] sm:$0xf]
      %v4006 = vld [vmem:[%s3 + $0xc] sm:$0xf]
      %v4007 = vld [vmem:[%s3 + $0x10] sm:$0xf]
      %v4008 = vld [vmem:[%s3 + $0x14] sm:$0xf]
      %v4009 = vld [vmem:[%s3 + $0x18] sm:$0xf]
      %v4010 = vld [vmem:[%s3 + $0x1c] sm:$0xf]
      %v4011 = vld [vmem:[%s3 + $0x20] sm:$0xf]
      %v4012 = vld [vmem:[%s3 + $0x24] sm:$0xf]
      %v4013 = vld [vmem:[%s3 + $0x28] sm:$0xf]
      %v4014 = vld [vmem:[%s3 + $0x2c] sm:$0xf]
      %v4015 = vld [vmem:[%s3 + $0x30] sm:$0xf]
      %v4016 = vld [vmem:[%s3 + $0x34] sm:$0xf]
      %v4017 = vld [vmem:[%s3 + $0x38] sm:$0xf]
      %v4018 = vld [vmem:[%s3 + $0x3c] sm:$0xf]
      %v4019 = vld [vmem:[%s3 + $0x40] sm:$0xf]
      %v4020 = vld [vmem:[%s3 + $0x44] sm:$0xf]
      %v4021 = vld [vmem:[%s3 + $0x48] sm:$0xf]
      %v4022 = vld [vmem:[%s3 + $0x4c] sm:$0xf]
      %v4023 = vld [vmem:[%s3 + $0x50] sm:$0xf]
      %v4024 = vld [vmem:[%s3 + $0x54] sm:$0xf]
      %v4025 = vld [vmem:[%s3 + $0x58] sm:$0xf]
      %v4026 = vld [vmem:[%s3 + $0x5c] sm:$0xf]
      %v4027 = vld [vmem:[%s3 + $0x60] sm:$0xf]
      %v4028 = vld [vmem:[%s3 + $0x64] sm:$0xf]
      %v4029 = vld [vmem:[%s3 + $0x68] sm:$0xf]
      %v4030 = vld [vmem:[%s3 + $0x6c] sm:$0xf]
      %v4031 = vld [vmem:[%s3 + $0x70] sm:$0xf]
      %v4032 = vld [vmem:[%s3 + $0x74] sm:$0xf]
      %v4033 = vld [vmem:[%s3 + $0x78] sm:$0xf]
      %v4034 = vld [vmem:[%s3 + $0x7c] sm:$0xf]
      %v4035 = vld [vmem:[%s3 + $0x80] sm:$0xf]
      %v4036 = vld [vmem:[%s3 + $0x84] sm:$0xf]
      %v4037 = vld [vmem:[%s3 + $0x88] sm:$0xf]
      %v4038 = vld [vmem:[%s3 + $0x8c] sm:$0xf]
      %v4039 = vld [vmem:[%s3 + $0x90] sm:$0xf]
      %v4040 = vld [vmem:[%s3 + $0x94] sm:$0xf]
      %v4041 = vld [vmem:[%s3 + $0x98] sm:$0xf]
      %v4042 = vld [vmem:[%s3 + $0x9c] sm:$0xf]
      %v4043 = vld [vmem:[%s3 + $0xa0] sm:$0xf]
      %v4044 = vld [vmem:[%s3 + $0xa4] sm:$0xf]
      %v4045 = vld [vmem:[%s3 + $0xa8] sm:$0xf]
      %v4046 = vld [vmem:[%s3 + $0xac] sm:$0xf]
      %v4047 = vld [vmem:[%s3 + $0xb0] sm:$0xf]
      %v4048 = vld [vmem:[%s3 + $0xb4] sm:$0xf]
      %v4049 = vld [vmem:[%s3 + $0xb8] sm:$0xf]
      %v4050 = vld [vmem:[%s3 + $0xbc] sm:$0xf]
      %v4051 = vld [vmem:[%s3 + $0xc0] sm:$0xf]
      %v4052 = vld [vmem:[%s3 + $0xc4] sm:$0xf]
      %v4053 = vld [vmem:[%s3 + $0xc8] sm:$0xf]
      %v4054 = vld [vmem:[%s3 + $0xcc] sm:$0xf]
      %v4055 = vld [vmem:[%s3 + $0xd0] sm:$0xf]
      %v4056 = vld [vmem:[%s3 + $0xd4] sm:$0xf]
      %v4057 = vld [vmem:[%s3 + $0xd8] sm:$0xf]
      %v4058 = vld [vmem:[%s3 + $0xdc] sm:$0xf]
      %v4059 = vld [vmem:[%s3 + $0xe0] sm:$0xf]
      %v4060 = vld [vmem:[%s3 + $0xe4] sm:$0xf]
      %v4061 = vld [vmem:[%s3 + $0xe8] sm:$0xf]
      %v4062 = vld [vmem:[%s3 + $0xec] sm:$0xf]
      %v4063 = vld [vmem:[%s3 + $0xf0] sm:$0xf]
      %v4064 = vld [vmem:[%s3 + $0xf4] sm:$0xf]
      %v4065 = vld [vmem:[%s3 + $0xf8] sm:$0xf]
      %v4066 = vld [vmem:[%s3 + $0xfc] sm:$0xf]
      %v4067 = vld [vmem:[%s3 + $0x100] sm:$0xf]
      %v4068 = vld [vmem:[%s3 + $0x104] sm:$0xf]
      %v4069 = vld [vmem:[%s3 + $0x108] sm:$0xf]
      %v4070 = vld [vmem:[%s3 + $0x10c] sm:$0xf]
      %v4071 = vld [vmem:[%s3 + $0x110] sm:$0xf]
      %v4072 = vld [vmem:[%s3 + $0x114] sm:$0xf]
      %v4073 = vld [vmem:[%s3 + $0x118] sm:$0xf]
      %v4074 = vld [vmem:[%s3 + $0x11c] sm:$0xf]
      %v4075 = vld [vmem:[%s3 + $0x120] sm:$0xf]
      %v4076 = vld [vmem:[%s3 + $0x124] sm:$0xf]
      %v4077 = vld [vmem:[%s3 + $0x128] sm:$0xf]
      %v4078 = vld [vmem:[%s3 + $0x12c] sm:$0xf]
      %v4079 = vld [vmem:[%s3 + $0x130] sm:$0xf]
      %v4080 = vld [vmem:[%s3 + $0x134] sm:$0xf]
      %v4081 = vld [vmem:[%s3 + $0x138] sm:$0xf]
      %v4082 = vld [vmem:[%s3 + $0x13c] sm:$0xf]
      %v4083 = vld [vmem:[%s3 + $0x140] sm:$0xf]
      %v4084 = vld [vmem:[%s3 + $0x144] sm:$0xf]
      %v4085 = vld [vmem:[%s3 + $0x148] sm:$0xf]
      %v4086 = vld [vmem:[%s3 + $0x14c] sm:$0xf]
      %v4087 = vld [vmem:[%s3 + $0x150] sm:$0xf]
      %v4088 = vld [vmem:[%s3 + $0x154] sm:$0xf]
      %v4089 = vld [vmem:[%s3 + $0x158] sm:$0xf]
      %v4090 = vld [vmem:[%s3 + $0x15c] sm:$0xf]
      %v4091 = vld [vmem:[%s3 + $0x160] sm:$0xf]
      %v4092 = vld [vmem:[%s3 + $0x164] sm:$0xf]
      %v4093 = vld [vmem:[%s3 + $0x168] sm:$0xf]
      %v4094 = vld [vmem:[%s3 + $0x16c] sm:$0xf]
      %v4095 = vld [vmem:[%s3 + $0x170] sm:$0xf]
      %v4096 = vld [vmem:[%s3 + $0x174] sm:$0xf]
      %v4097 = vld [vmem:[%s3 + $0x178] sm:$0xf]
      %v4098 = vld [vmem:[%s3 + $0x17c] sm:$0xf]
      %v4099 = vld [vmem:[%s3 + $0x180] sm:$0xf]
      %v4100 = vld [vmem:[%s3 + $0x184] sm:$0xf]
      %v4101 = vld [vmem:[%s3 + $0x188] sm:$0xf]
      %v4102 = vld [vmem:[%s3 + $0x18c] sm:$0xf]
      %v4103 = vld [vmem:[%s3 + $0x190] sm:$0xf]
      %v4104 = vld [vmem:[%s3 + $0x194] sm:$0xf]
      %v4105 = vld [vmem:[%s3 + $0x198] sm:$0xf]
      %v4106 = vld [vmem:[%s3 + $0x19c] sm:$0xf]
      %v4107 = vld [vmem:[%s3 + $0x1a0] sm:$0xf]
      %v4108 = vld [vmem:[%s3 + $0x1a4] sm:$0xf]
      %v4109 = vld [vmem:[%s3 + $0x1a8] sm:$0xf]
      %v4110 = vld [vmem:[%s3 + $0x1ac] sm:$0xf]
      %v4111 = vld [vmem:[%s3 + $0x1b0] sm:$0xf]
      %v4112 = vld [vmem:[%s3 + $0x1b4] sm:$0xf]
      %v4113 = vld [vmem:[%s3 + $0x1b8] sm:$0xf]
      %v4114 = vld [vmem:[%s3 + $0x1bc] sm:$0xf]
      %v4115 = vld [vmem:[%s3 + $0x1c0] sm:$0xf]
      %v4116 = vld [vmem:[%s3 + $0x1c4] sm:$0xf]
      %v4117 = vld [vmem:[%s3 + $0x1c8] sm:$0xf]
      %v4118 = vld [vmem:[%s3 + $0x1cc] sm:$0xf]
      %v4119 = vld [vmem:[%s3 + $0x1d0] sm:$0xf]
      %v4120 = vld [vmem:[%s3 + $0x1d4] sm:$0xf]
      %v4121 = vld [vmem:[%s3 + $0x1d8] sm:$0xf]
      %v4122 = vld [vmem:[%s3 + $0x1dc] sm:$0xf]
      %v4123 = vld [vmem:[%s3 + $0x1e0] sm:$0xf]
      %v4124 = vld [vmem:[%s3 + $0x1e4] sm:$0xf]
      %v4125 = vld [vmem:[%s3 + $0x1e8] sm:$0xf]
      %v4126 = vld [vmem:[%s3 + $0x1ec] sm:$0xf]
      %v4127 = vld [vmem:[%s3 + $0x1f0] sm:$0xf]
      %v4128 = vld [vmem:[%s3 + $0x1f4] sm:$0xf]
      %v4129 = vld [vmem:[%s3 + $0x1f8] sm:$0xf]
      %v4130 = vld [vmem:[%s3 + $0x1fc] sm:$0xf]
      %v4131 = vld [vmem:[%s3 + $0x200] sm:$0xf]
      %v4132 = vld [vmem:[%s3 + $0x204] sm:$0xf]
      %v4133 = vld [vmem:[%s3 + $0x208] sm:$0xf]
      %v4134 = vld [vmem:[%s3 + $0x20c] sm:$0xf]
      %v4135 = vld [vmem:[%s3 + $0x210] sm:$0xf]
      %v4136 = vld [vmem:[%s3 + $0x214] sm:$0xf]
      %v4137 = vld [vmem:[%s3 + $0x218] sm:$0xf]
      %v4138 = vld [vmem:[%s3 + $0x21c] sm:$0xf]
      %v4139 = vld [vmem:[%s3 + $0x220] sm:$0xf]
      %v4140 = vld [vmem:[%s3 + $0x224] sm:$0xf]
      %v4141 = vld [vmem:[%s3 + $0x228] sm:$0xf]
      %v4142 = vld [vmem:[%s3 + $0x22c] sm:$0xf]
      %v4143 = vld [vmem:[%s3 + $0x230] sm:$0xf]
      %v4144 = vld [vmem:[%s3 + $0x234] sm:$0xf]
      %v4145 = vld [vmem:[%s3 + $0x238] sm:$0xf]
      %v4146 = vld [vmem:[%s3 + $0x23c] sm:$0xf]
      %v4291 = vunpack.c.l.b16 %v4003
      %v4292 = vunpack.c.l.b16 %v4004
      %v4293 = vunpack.c.l.b16 %v4005
      %v4294 = vunpack.c.l.b16 %v4006
      %v4295 = vunpack.c.l.b16 %v4007
      %v4296 = vunpack.c.l.b16 %v4008
      %v4297 = vunpack.c.l.b16 %v4009
      %v4298 = vunpack.c.l.b16 %v4010
      %v4299 = vunpack.c.l.b16 %v4011
      %v4300 = vunpack.c.l.b16 %v4012
      %v4301 = vunpack.c.l.b16 %v4013
      %v4302 = vunpack.c.l.b16 %v4014
      %v4303 = vunpack.c.l.b16 %v4015
      %v4304 = vunpack.c.l.b16 %v4016
      %v4305 = vunpack.c.l.b16 %v4017
      %v4306 = vunpack.c.l.b16 %v4018
      %v4307 = vunpack.c.l.b16 %v4019
      %v4308 = vunpack.c.l.b16 %v4020
      %v4309 = vunpack.c.l.b16 %v4021
      %v4310 = vunpack.c.l.b16 %v4022
      %v4311 = vunpack.c.l.b16 %v4023
      %v4312 = vunpack.c.l.b16 %v4024
      %v4313 = vunpack.c.l.b16 %v4025
      %v4314 = vunpack.c.l.b16 %v4026
      %v4315 = vunpack.c.l.b16 %v4027
      %v4316 = vunpack.c.l.b16 %v4028
      %v4317 = vunpack.c.l.b16 %v4029
      %v4318 = vunpack.c.l.b16 %v4030
      %v4319 = vunpack.c.l.b16 %v4031
      %v4320 = vunpack.c.l.b16 %v4032
      %v4321 = vunpack.c.l.b16 %v4033
      %v4322 = vunpack.c.l.b16 %v4034
      %v4323 = vunpack.c.l.b16 %v4035
      %v4324 = vunpack.c.l.b16 %v4036
      %v4325 = vunpack.c.l.b16 %v4037
      %v4326 = vunpack.c.l.b16 %v4038
      %v4327 = vunpack.c.l.b16 %v4039
      %v4328 = vunpack.c.l.b16 %v4040
      %v4329 = vunpack.c.l.b16 %v4041
      %v4330 = vunpack.c.l.b16 %v4042
      %v4331 = vunpack.c.l.b16 %v4043
      %v4332 = vunpack.c.l.b16 %v4044
      %v4333 = vunpack.c.l.b16 %v4045
      %v4334 = vunpack.c.l.b16 %v4046
      %v4335 = vunpack.c.l.b16 %v4047
      %v4336 = vunpack.c.l.b16 %v4048
      %v4337 = vunpack.c.l.b16 %v4049
      %v4338 = vunpack.c.l.b16 %v4050
      %v4339 = vunpack.c.l.b16 %v4051
      %v4340 = vunpack.c.l.b16 %v4052
      %v4341 = vunpack.c.l.b16 %v4053
      %v4342 = vunpack.c.l.b16 %v4054
      %v4343 = vunpack.c.l.b16 %v4055
      %v4344 = vunpack.c.l.b16 %v4056
      %v4345 = vunpack.c.l.b16 %v4057
      %v4346 = vunpack.c.l.b16 %v4058
      %v4347 = vunpack.c.l.b16 %v4059
      %v4348 = vunpack.c.l.b16 %v4060
      %v4349 = vunpack.c.l.b16 %v4061
      %v4350 = vunpack.c.l.b16 %v4062
      %v4351 = vunpack.c.l.b16 %v4063
      %v4352 = vunpack.c.l.b16 %v4064
      %v4353 = vunpack.c.l.b16 %v4065
      %v4354 = vunpack.c.l.b16 %v4066
      %v4355 = vunpack.c.l.b16 %v4067
      %v4356 = vunpack.c.l.b16 %v4068
      %v4357 = vunpack.c.l.b16 %v4069
      %v4358 = vunpack.c.l.b16 %v4070
      %v4359 = vunpack.c.l.b16 %v4071
      %v4360 = vunpack.c.l.b16 %v4072
      %v4361 = vunpack.c.l.b16 %v4073
      %v4362 = vunpack.c.l.b16 %v4074
      %v4363 = vunpack.c.l.b16 %v4075
      %v4364 = vunpack.c.l.b16 %v4076
      %v4365 = vunpack.c.l.b16 %v4077
      %v4366 = vunpack.c.l.b16 %v4078
      %v4367 = vunpack.c.l.b16 %v4079
      %v4368 = vunpack.c.l.b16 %v4080
      %v4369 = vunpack.c.l.b16 %v4081
      %v4370 = vunpack.c.l.b16 %v4082
      %v4371 = vunpack.c.l.b16 %v4083
      %v4372 = vunpack.c.l.b16 %v4084
      %v4373 = vunpack.c.l.b16 %v4085
      %v4374 = vunpack.c.l.b16 %v4086
      %v4375 = vunpack.c.l.b16 %v4087
      %v4376 = vunpack.c.l.b16 %v4088
      %v4377 = vunpack.c.l.b16 %v4089
      %v4378 = vunpack.c.l.b16 %v4090
      %v4379 = vunpack.c.l.b16 %v4091
      %v4380 = vunpack.c.l.b16 %v4092
      %v4381 = vunpack.c.l.b16 %v4093
      %v4382 = vunpack.c.l.b16 %v4094
      %v4383 = vunpack.c.l.b16 %v4095
      %v4384 = vunpack.c.l.b16 %v4096
      %v4385 = vunpack.c.l.b16 %v4097
      %v4386 = vunpack.c.l.b16 %v4098
      %v4387 = vunpack.c.l.b16 %v4099
      %v4388 = vunpack.c.l.b16 %v4100
      %v4389 = vunpack.c.l.b16 %v4101
      %v4390 = vunpack.c.l.b16 %v4102
      %v4391 = vunpack.c.l.b16 %v4103
      %v4392 = vunpack.c.l.b16 %v4104
      %v4393 = vunpack.c.l.b16 %v4105
      %v4394 = vunpack.c.l.b16 %v4106
      %v4395 = vunpack.c.l.b16 %v4107
      %v4396 = vunpack.c.l.b16 %v4108
      %v4397 = vunpack.c.l.b16 %v4109
      %v4398 = vunpack.c.l.b16 %v4110
      %v4399 = vunpack.c.l.b16 %v4111
      %v4400 = vunpack.c.l.b16 %v4112
      %v4401 = vunpack.c.l.b16 %v4113
      %v4402 = vunpack.c.l.b16 %v4114
      %v4403 = vunpack.c.l.b16 %v4115
      %v4404 = vunpack.c.l.b16 %v4116
      %v4405 = vunpack.c.l.b16 %v4117
      %v4406 = vunpack.c.l.b16 %v4118
      %v4407 = vunpack.c.l.b16 %v4119
      %v4408 = vunpack.c.l.b16 %v4120
      %v4409 = vunpack.c.l.b16 %v4121
      %v4410 = vunpack.c.l.b16 %v4122
      %v4411 = vunpack.c.l.b16 %v4123
      %v4412 = vunpack.c.l.b16 %v4124
      %v4413 = vunpack.c.l.b16 %v4125
      %v4414 = vunpack.c.l.b16 %v4126
      %v4415 = vunpack.c.l.b16 %v4127
      %v4416 = vunpack.c.l.b16 %v4128
      %v4417 = vunpack.c.l.b16 %v4129
      %v4418 = vunpack.c.l.b16 %v4130
      %v4419 = vunpack.c.l.b16 %v4131
      %v4420 = vunpack.c.l.b16 %v4132
      %v4421 = vunpack.c.l.b16 %v4133
      %v4422 = vunpack.c.l.b16 %v4134
      %v4423 = vunpack.c.l.b16 %v4135
      %v4424 = vunpack.c.l.b16 %v4136
      %v4425 = vunpack.c.l.b16 %v4137
      %v4426 = vunpack.c.l.b16 %v4138
      %v4427 = vunpack.c.l.b16 %v4139
      %v4428 = vunpack.c.l.b16 %v4140
      %v4429 = vunpack.c.l.b16 %v4141
      %v4430 = vunpack.c.l.b16 %v4142
      %v4431 = vunpack.c.l.b16 %v4143
      %v4432 = vunpack.c.l.b16 %v4144
      %v4433 = vunpack.c.l.b16 %v4145
      %v4434 = vunpack.c.l.b16 %v4146
      %v4435 = vpack.c.b16 %v4292, %v4291
      %v4436 = vpack.c.b16 %v4294, %v4293
      %v4437 = vpack.c.b16 %v4296, %v4295
      %v4438 = vpack.c.b16 %v4298, %v4297
      %v4439 = vpack.c.b16 %v4300, %v4299
      %v4440 = vpack.c.b16 %v4302, %v4301
      %v4441 = vpack.c.b16 %v4304, %v4303
      %v4442 = vpack.c.b16 %v4306, %v4305
      %v4443 = vpack.c.b16 %v4308, %v4307
      %v4444 = vpack.c.b16 %v4310, %v4309
      %v4445 = vpack.c.b16 %v4312, %v4311
      %v4446 = vpack.c.b16 %v4314, %v4313
      %v4447 = vpack.c.b16 %v4316, %v4315
      %v4448 = vpack.c.b16 %v4318, %v4317
      %v4449 = vpack.c.b16 %v4320, %v4319
      %v4450 = vpack.c.b16 %v4322, %v4321
      %v4451 = vpack.c.b16 %v4324, %v4323
      %v4452 = vpack.c.b16 %v4326, %v4325
      %v4453 = vpack.c.b16 %v4328, %v4327
      %v4454 = vpack.c.b16 %v4330, %v4329
      %v4455 = vpack.c.b16 %v4332, %v4331
      %v4456 = vpack.c.b16 %v4334, %v4333
      %v4457 = vpack.c.b16 %v4336, %v4335
      %v4458 = vpack.c.b16 %v4338, %v4337
      %v4459 = vpack.c.b16 %v4340, %v4339
      %v4460 = vpack.c.b16 %v4342, %v4341
      %v4461 = vpack.c.b16 %v4344, %v4343
      %v4462 = vpack.c.b16 %v4346, %v4345
      %v4463 = vpack.c.b16 %v4348, %v4347
      %v4464 = vpack.c.b16 %v4350, %v4349
      %v4465 = vpack.c.b16 %v4352, %v4351
      %v4466 = vpack.c.b16 %v4354, %v4353
      %v4467 = vpack.c.b16 %v4356, %v4355
      %v4468 = vpack.c.b16 %v4358, %v4357
      %v4469 = vpack.c.b16 %v4360, %v4359
      %v4470 = vpack.c.b16 %v4362, %v4361
      %v4471 = vpack.c.b16 %v4364, %v4363
      %v4472 = vpack.c.b16 %v4366, %v4365
      %v4473 = vpack.c.b16 %v4368, %v4367
      %v4474 = vpack.c.b16 %v4370, %v4369
      %v4475 = vpack.c.b16 %v4372, %v4371
      %v4476 = vpack.c.b16 %v4374, %v4373
      %v4477 = vpack.c.b16 %v4376, %v4375
      %v4478 = vpack.c.b16 %v4378, %v4377
      %v4479 = vpack.c.b16 %v4380, %v4379
      %v4480 = vpack.c.b16 %v4382, %v4381
      %v4481 = vpack.c.b16 %v4384, %v4383
      %v4482 = vpack.c.b16 %v4386, %v4385
      %v4483 = vpack.c.b16 %v4388, %v4387
      %v4484 = vpack.c.b16 %v4390, %v4389
      %v4485 = vpack.c.b16 %v4392, %v4391
      %v4486 = vpack.c.b16 %v4394, %v4393
      %v4487 = vpack.c.b16 %v4396, %v4395
      %v4488 = vpack.c.b16 %v4398, %v4397
      %v4489 = vpack.c.b16 %v4400, %v4399
      %v4490 = vpack.c.b16 %v4402, %v4401
      %v4491 = vpack.c.b16 %v4404, %v4403
      %v4492 = vpack.c.b16 %v4406, %v4405
      %v4493 = vpack.c.b16 %v4408, %v4407
      %v4494 = vpack.c.b16 %v4410, %v4409
      %v4495 = vpack.c.b16 %v4412, %v4411
      %v4496 = vpack.c.b16 %v4414, %v4413
      %v4497 = vpack.c.b16 %v4416, %v4415
      %v4498 = vpack.c.b16 %v4418, %v4417
      %v4499 = vpack.c.b16 %v4420, %v4419
      %v4500 = vpack.c.b16 %v4422, %v4421
      %v4501 = vpack.c.b16 %v4424, %v4423
      %v4502 = vpack.c.b16 %v4426, %v4425
      %v4503 = vpack.c.b16 %v4428, %v4427
      %v4504 = vpack.c.b16 %v4430, %v4429
      %v4505 = vpack.c.b16 %v4432, %v4431
      %v4506 = vpack.c.b16 %v4434, %v4433
      %4579 = vmatprep.subr.bf16.mxu0 0
      %4580 = vmatpush1.bf16.msra.mxu0 %v4435
      %4581 = vmatprep.subr.bf16.mxu0 0
      %4582 = vmatpush1.bf16.msra.mxu0 %v4436
      %4583 = vmatprep.subr.bf16.mxu0 0
      %4584 = vmatpush1.bf16.msra.mxu0 %v4437
      %4585 = vmatprep.subr.bf16.mxu0 0
      %4586 = vmatpush1.bf16.msra.mxu0 %v4438
      %4587 = vmatprep.subr.bf16.mxu0 0
      %4588 = vmatpush1.bf16.msra.mxu0 %v4439
      %4589 = vmatprep.subr.bf16.mxu0 0
      %4590 = vmatpush1.bf16.msra.mxu0 %v4440
      %4591 = vmatprep.subr.bf16.mxu0 0
      %4592 = vmatpush1.bf16.msra.mxu0 %v4441
      %4593 = vmatprep.subr.bf16.mxu0 0
      %4594 = vmatpush1.bf16.msra.mxu0 %v4442
      %4595 = vmatprep.subr.bf16.mxu0 0
      %4596 = vmatpush1.bf16.msra.mxu0 %v4443
      %4597 = vmatprep.subr.bf16.mxu0 0
      %4598 = vmatpush1.bf16.msra.mxu0 %v4444
      %4599 = vmatprep.subr.bf16.mxu0 0
      %4600 = vmatpush1.bf16.msra.mxu0 %v4445
      %4601 = vmatprep.subr.bf16.mxu0 0
      %4602 = vmatpush1.bf16.msra.mxu0 %v4446
      %4603 = vmatprep.subr.bf16.mxu0 0
      %4604 = vmatpush1.bf16.msra.mxu0 %v4447
      %4605 = vmatprep.subr.bf16.mxu0 0
      %4606 = vmatpush1.bf16.msra.mxu0 %v4448
      %4607 = vmatprep.subr.bf16.mxu0 0
      %4608 = vmatpush1.bf16.msra.mxu0 %v4449
      %4609 = vmatprep.subr.bf16.mxu0 0
      %4610 = vmatpush1.bf16.msra.mxu0 %v4450
      %4611 = vmatprep.mubr.bf16.mxu0 %v3860
      %4612 = vmatmul.mubr.bf16.gmra.mrb[0].mxu0 %v3859
      %v4613 = vpop.f32.mrb[0].mxu0
      %v4614 = vadd.f32 0.0, %v4613
      %v4615 = vpop.f32.mrb[0].mxu0
      %v4616 = vpop.f32.mrb[0].mxu0
      %v4617 = vadd.f32 0.0, %v4616
      %v4618 = vpop.f32.mrb[0].mxu0
      %4619 = vmatprep.mubr.bf16.mxu0 %v3869
      %4620 = vmatmul.mubr.bf16.gmra.mrb[0].mxu0 %v3868
      %v4621 = vpop.f32.mrb[0].mxu0
      %v4622 = vadd.f32 0.0, %v4621
      %v4623 = vpop.f32.mrb[0].mxu0
      %v4624 = vpop.f32.mrb[0].mxu0
      %v4625 = vadd.f32 0.0, %v4624
      %v4626 = vpop.f32.mrb[0].mxu0
      %4627 = vmatprep.mubr.bf16.mxu0 %v3878
      %4628 = vmatmul.mubr.bf16.gmra.mrb[0].mxu0 %v3877
      %v4629 = vpop.f32.mrb[0].mxu0
      %v4630 = vadd.f32 0.0, %v4629
      %v4631 = vpop.f32.mrb[0].mxu0
      %v4632 = vpop.f32.mrb[0].mxu0
      %v4633 = vadd.f32 0.0, %v4632
      %v4634 = vpop.f32.mrb[0].mxu0
      %4635 = vmatprep.mubr.bf16.mxu0 %v3887
      %4636 = vmatmul.mubr.bf16.gmra.mrb[0].mxu0 %v3886
      %v4637 = vpop.f32.mrb[0].mxu0
      %v4638 = vadd.f32 0.0, %v4637
      %v4639 = vpop.f32.mrb[0].mxu0
      %v4640 = vpop.f32.mrb[0].mxu0
      %v4641 = vadd.f32 0.0, %v4640
      %v4642 = vpop.f32.mrb[0].mxu0
      %4643 = vmatprep.mubr.bf16.mxu0 %v3896
      %4644 = vmatmul.mubr.bf16.gmra.mrb[0].mxu0 %v3895
      %v4645 = vpop.f32.mrb[0].mxu0
      %v4646 = vadd.f32 0.0, %v4645
      %v4647 = vpop.f32.mrb[0].mxu0
      %v4648 = vpop.f32.mrb[0].mxu0
      %v4649 = vadd.f32 0.0, %v4648
      %v4650 = vpop.f32.mrb[0].mxu0
      %4651 = vmatprep.mubr.bf16.mxu0 %v3905
      %4652 = vmatmul.mubr.bf16.gmra.mrb[0].mxu0 %v3904
      %v4653 = vpop.f32.mrb[0].mxu0
      %v4654 = vadd.f32 0.0, %v4653
      %v4655 = vpop.f32.mrb[0].mxu0
      %v4656 = vpop.f32.mrb[0].mxu0
      %v4657 = vadd.f32 0.0, %v4656
      %v4658 = vpop.f32.mrb[0].mxu0
      %4659 = vmatprep.mubr.bf16.mxu0 %v3914
      %4660 = vmatmul.mubr.bf16.gmra.mrb[0].mxu0 %v3913
      %v4661 = vpop.f32.mrb[0].mxu0
      %v4662 = vadd.f32 0.0, %v4661
      %v4663 = vpop.f32.mrb[0].mxu0
      %v4664 = vpop.f32.mrb[0].mxu0
      %v4665 = vadd.f32 0.0, %v4664
      %v4666 = vpop.f32.mrb[0].mxu0
      %4667 = vmatprep.mubr.bf16.mxu0 %v3923
      %4668 = vmatmul.mubr.bf16.gmra.mrb[0].mxu0 %v3922
      %v4669 = vpop.f32.mrb[0].mxu0
      %v4670 = vadd.f32 0.0, %v4669
      %v4671 = vpop.f32.mrb[0].mxu0
      %v4672 = vpop.f32.mrb[0].mxu0
      %v4673 = vadd.f32 0.0, %v4672
      %v4674 = vpop.f32.mrb[0].mxu0
      %4675 = vmatprep.mubr.bf16.mxu0 %v3932
      %4676 = vmatmul.mubr.bf16.gmra.mrb[0].mxu0 %v3931
      %v4677 = vpop.f32.mrb[0].mxu0
      %v4678 = vadd.f32 0.0, %v4677
      %v4679 = vpop.f32.mrb[0].mxu0
      %v4680 = vpop.f32.mrb[0].mxu0
      %v4681 = vadd.f32 0.0, %v4680
      %v4682 = vpop.f32.mrb[0].mxu0
      %4683 = vmatprep.mubr.bf16.mxu0 %v3941
      %4684 = vmatmul.mubr.bf16.gmra.mrb[0].mxu0 %v3940
      %v4685 = vpop.f32.mrb[0].mxu0
      %v4686 = vadd.f32 0.0, %v4685
      %v4687 = vpop.f32.mrb[0].mxu0
      %v4688 = vpop.f32.mrb[0].mxu0
      %v4689 = vadd.f32 0.0, %v4688
      %v4690 = vpop.f32.mrb[0].mxu0
      %4691 = vmatprep.mubr.bf16.mxu0 %v3950
      %4692 = vmatmul.mubr.bf16.gmra.mrb[0].mxu0 %v3949
      %v4693 = vpop.f32.mrb[0].mxu0
      %v4694 = vadd.f32 0.0, %v4693
      %v4695 = vpop.f32.mrb[0].mxu0
      %v4696 = vpop.f32.mrb[0].mxu0
      %v4697 = vadd.f32 0.0, %v4696
      %v4698 = vpop.f32.mrb[0].mxu0
      %4699 = vmatprep.mubr.bf16.mxu0 %v3959
      %4700 = vmatmul.mubr.bf16.gmra.mrb[0].mxu0 %v3958
      %v4701 = vpop.f32.mrb[0].mxu0
      %v4702 = vadd.f32 0.0, %v4701
      %v4703 = vpop.f32.mrb[0].mxu0
      %v4704 = vpop.f32.mrb[0].mxu0
      %v4705 = vadd.f32 0.0, %v4704
      %v4706 = vpop.f32.mrb[0].mxu0
      %4707 = vmatprep.mubr.bf16.mxu0 %v3968
      %4708 = vmatmul.mubr.bf16.gmra.mrb[0].mxu0 %v3967
      %v4709 = vpop.f32.mrb[0].mxu0
      %v4710 = vadd.f32 0.0, %v4709
      %v4711 = vpop.f32.mrb[0].mxu0
      %v4712 = vpop.f32.mrb[0].mxu0
      %v4713 = vadd.f32 0.0, %v4712
      %v4714 = vpop.f32.mrb[0].mxu0
      %4715 = vmatprep.mubr.bf16.mxu0 %v3977
      %4716 = vmatmul.mubr.bf16.gmra.mrb[0].mxu0 %v3976
      %v4717 = vpop.f32.mrb[0].mxu0
      %v4718 = vadd.f32 0.0, %v4717
      %v4719 = vpop.f32.mrb[0].mxu0
      %v4720 = vpop.f32.mrb[0].mxu0
      %v4721 = vadd.f32 0.0, %v4720
      %v4722 = vpop.f32.mrb[0].mxu0
      %4723 = vmatprep.mubr.bf16.mxu0 %v3986
      %4724 = vmatmul.mubr.bf16.gmra.mrb[0].mxu0 %v3985
      %v4725 = vpop.f32.mrb[0].mxu0
      %v4726 = vadd.f32 0.0, %v4725
      %v4727 = vpop.f32.mrb[0].mxu0
      %v4728 = vpop.f32.mrb[0].mxu0
      %v4729 = vadd.f32 0.0, %v4728
      %v4730 = vpop.f32.mrb[0].mxu0
      %4731 = vmatprep.mubr.bf16.mxu0 %v3995
      %4732 = vmatmul.mubr.bf16.gmra.mrb[0].mxu0 %v3994
      %v4733 = vpop.f32.mrb[0].mxu0
      %v4734 = vadd.f32 0.0, %v4733
      %v4735 = vpop.f32.mrb[0].mxu0
      %v4736 = vpop.f32.mrb[0].mxu0
      %v4737 = vadd.f32 0.0, %v4736
      %v4738 = vpop.f32.mrb[0].mxu0
      %4739 = vdwg.mxu0
      %4740 = vmatprep.subr.bf16.mxu0 0
      %4741 = vmatpush1.bf16.msra.mxu0 %v4451
      %4742 = vmatprep.subr.bf16.mxu0 0
      %4743 = vmatpush1.bf16.msra.mxu0 %v4452
      %4744 = vmatprep.subr.bf16.mxu0 0
      %4745 = vmatpush1.bf16.msra.mxu0 %v4453
      %4746 = vmatprep.subr.bf16.mxu0 0
      %4747 = vmatpush1.bf16.msra.mxu0 %v4454
      %4748 = vmatprep.subr.bf16.mxu0 0
      %4749 = vmatpush1.bf16.msra.mxu0 %v4455
      %4750 = vmatprep.subr.bf16.mxu0 0
      %4751 = vmatpush1.bf16.msra.mxu0 %v4456
      %4752 = vmatprep.subr.bf16.mxu0 0
      %4753 = vmatpush1.bf16.msra.mxu0 %v4457
      %4754 = vmatprep.subr.bf16.mxu0 0
      %4755 = vmatpush1.bf16.msra.mxu0 %v4458
      %4756 = vmatprep.subr.bf16.mxu0 0
      %4757 = vmatpush1.bf16.msra.mxu0 %v4459
      %4758 = vmatprep.subr.bf16.mxu0 0
      %4759 = vmatpush1.bf16.msra.mxu0 %v4460
      %4760 = vmatprep.subr.bf16.mxu0 0
      %4761 = vmatpush1.bf16.msra.mxu0 %v4461
      %4762 = vmatprep.subr.bf16.mxu0 0
      %4763 = vmatpush1.bf16.msra.mxu0 %v4462
      %4764 = vmatprep.subr.bf16.mxu0 0
      %4765 = vmatpush1.bf16.msra.mxu0 %v4463
      %4766 = vmatprep.subr.bf16.mxu0 0
      %4767 = vmatpush1.bf16.msra.mxu0 %v4464
      %4768 = vmatprep.subr.bf16.mxu0 0
      %4769 = vmatpush1.bf16.msra.mxu0 %v4465
      %4770 = vmatprep.subr.bf16.mxu0 0
      %4771 = vmatpush1.bf16.msra.mxu0 %v4466
      %4772 = vmatprep.mubr.bf16.mxu0 %v3862
      %4773 = vmatmul.mubr.bf16.gmra.mrb[0].mxu0 %v3861
      %v4774 = vpop.f32.mrb[0].mxu0
      %v4775 = vadd.f32 %v4614, %v4774
      %v4776 = vpop.f32.mrb[0].mxu0
      %v4777 = vpop.f32.mrb[0].mxu0
      %v4778 = vadd.f32 %v4617, %v4777
      %v4779 = vpop.f32.mrb[0].mxu0
      %4780 = vmatprep.mubr.bf16.mxu0 %v3871
      %4781 = vmatmul.mubr.bf16.gmra.mrb[0].mxu0 %v3870
      %v4782 = vpop.f32.mrb[0].mxu0
      %v4783 = vadd.f32 %v4622, %v4782
      %v4784 = vpop.f32.mrb[0].mxu0
      %v4785 = vpop.f32.mrb[0].mxu0
      %v4786 = vadd.f32 %v4625, %v4785
      %v4787 = vpop.f32.mrb[0].mxu0
      %4788 = vmatprep.mubr.bf16.mxu0 %v3880
      %4789 = vmatmul.mubr.bf16.gmra.mrb[0].mxu0 %v3879
      %v4790 = vpop.f32.mrb[0].mxu0
      %v4791 = vadd.f32 %v4630, %v4790
      %v4792 = vpop.f32.mrb[0].mxu0
      %v4793 = vpop.f32.mrb[0].mxu0
      %v4794 = vadd.f32 %v4633, %v4793
      %v4795 = vpop.f32.mrb[0].mxu0
      %4796 = vmatprep.mubr.bf16.mxu0 %v3889
      %4797 = vmatmul.mubr.bf16.gmra.mrb[0].mxu0 %v3888
      %v4798 = vpop.f32.mrb[0].mxu0
      %v4799 = vadd.f32 %v4638, %v4798
      %v4800 = vpop.f32.mrb[0].mxu0
      %v4801 = vpop.f32.mrb[0].mxu0
      %v4802 = vadd.f32 %v4641, %v4801
      %v4803 = vpop.f32.mrb[0].mxu0
      %4804 = vmatprep.mubr.bf16.mxu0 %v3898
      %4805 = vmatmul.mubr.bf16.gmra.mrb[0].mxu0 %v3897
      %v4806 = vpop.f32.mrb[0].mxu0
      %v4807 = vadd.f32 %v4646, %v4806
      %v4808 = vpop.f32.mrb[0].mxu0
      %v4809 = vpop.f32.mrb[0].mxu0
      %v4810 = vadd.f32 %v4649, %v4809
      %v4811 = vpop.f32.mrb[0].mxu0
      %4812 = vmatprep.mubr.bf16.mxu0 %v3907
      %4813 = vmatmul.mubr.bf16.gmra.mrb[0].mxu0 %v3906
      %v4814 = vpop.f32.mrb[0].mxu0
      %v4815 = vadd.f32 %v4654, %v4814
      %v4816 = vpop.f32.mrb[0].mxu0
      %v4817 = vpop.f32.mrb[0].mxu0
      %v4818 = vadd.f32 %v4657, %v4817
      %v4819 = vpop.f32.mrb[0].mxu0
      %4820 = vmatprep.mubr.bf16.mxu0 %v3916
      %4821 = vmatmul.mubr.bf16.gmra.mrb[0].mxu0 %v3915
      %v4822 = vpop.f32.mrb[0].mxu0
      %v4823 = vadd.f32 %v4662, %v4822
      %v4824 = vpop.f32.mrb[0].mxu0
      %v4825 = vpop.f32.mrb[0].mxu0
      %v4826 = vadd.f32 %v4665, %v4825
      %v4827 = vpop.f32.mrb[0].mxu0
      %4828 = vmatprep.mubr.bf16.mxu0 %v3925
      %4829 = vmatmul.mubr.bf16.gmra.mrb[0].mxu0 %v3924
      %v4830 = vpop.f32.mrb[0].mxu0
      %v4831 = vadd.f32 %v4670, %v4830
      %v4832 = vpop.f32.mrb[0].mxu0
      %v4833 = vpop.f32.mrb[0].mxu0
      %v4834 = vadd.f32 %v4673, %v4833
      %v4835 = vpop.f32.mrb[0].mxu0
      %4836 = vmatprep.mubr.bf16.mxu0 %v3934
      %4837 = vmatmul.mubr.bf16.gmra.mrb[0].mxu0 %v3933
      %v4838 = vpop.f32.mrb[0].mxu0
      %v4839 = vadd.f32 %v4678, %v4838
      %v4840 = vpop.f32.mrb[0].mxu0
      %v4841 = vpop.f32.mrb[0].mxu0
      %v4842 = vadd.f32 %v4681, %v4841
      %v4843 = vpop.f32.mrb[0].mxu0
      %4844 = vmatprep.mubr.bf16.mxu0 %v3943
      %4845 = vmatmul.mubr.bf16.gmra.mrb[0].mxu0 %v3942
      %v4846 = vpop.f32.mrb[0].mxu0
      %v4847 = vadd.f32 %v4686, %v4846
      %v4848 = vpop.f32.mrb[0].mxu0
      %v4849 = vpop.f32.mrb[0].mxu0
      %v4850 = vadd.f32 %v4689, %v4849
      %v4851 = vpop.f32.mrb[0].mxu0
      %4852 = vmatprep.mubr.bf16.mxu0 %v3952
      %4853 = vmatmul.mubr.bf16.gmra.mrb[0].mxu0 %v3951
      %v4854 = vpop.f32.mrb[0].mxu0
      %v4855 = vadd.f32 %v4694, %v4854
      %v4856 = vpop.f32.mrb[0].mxu0
      %v4857 = vpop.f32.mrb[0].mxu0
      %v4858 = vadd.f32 %v4697, %v4857
      %v4859 = vpop.f32.mrb[0].mxu0
      %4860 = vmatprep.mubr.bf16.mxu0 %v3961
      %4861 = vmatmul.mubr.bf16.gmra.mrb[0].mxu0 %v3960
      %v4862 = vpop.f32.mrb[0].mxu0
      %v4863 = vadd.f32 %v4702, %v4862
      %v4864 = vpop.f32.mrb[0].mxu0
      %v4865 = vpop.f32.mrb[0].mxu0
      %v4866 = vadd.f32 %v4705, %v4865
      %v4867 = vpop.f32.mrb[0].mxu0
      %4868 = vmatprep.mubr.bf16.mxu0 %v3970
      %4869 = vmatmul.mubr.bf16.gmra.mrb[0].mxu0 %v3969
      %v4870 = vpop.f32.mrb[0].mxu0
      %v4871 = vadd.f32 %v4710, %v4870
      %v4872 = vpop.f32.mrb[0].mxu0
      %v4873 = vpop.f32.mrb[0].mxu0
      %v4874 = vadd.f32 %v4713, %v4873
      %v4875 = vpop.f32.mrb[0].mxu0
      %4876 = vmatprep.mubr.bf16.mxu0 %v3979
      %4877 = vmatmul.mubr.bf16.gmra.mrb[0].mxu0 %v3978
      %v4878 = vpop.f32.mrb[0].mxu0
      %v4879 = vadd.f32 %v4718, %v4878
      %v4880 = vpop.f32.mrb[0].mxu0
      %v4881 = vpop.f32.mrb[0].mxu0
      %v4882 = vadd.f32 %v4721, %v4881
      %v4883 = vpop.f32.mrb[0].mxu0
      %4884 = vmatprep.mubr.bf16.mxu0 %v3988
      %4885 = vmatmul.mubr.bf16.gmra.mrb[0].mxu0 %v3987
      %v4886 = vpop.f32.mrb[0].mxu0
      %v4887 = vadd.f32 %v4726, %v4886
      %v4888 = vpop.f32.mrb[0].mxu0
      %v4889 = vpop.f32.mrb[0].mxu0
      %v4890 = vadd.f32 %v4729, %v4889
      %v4891 = vpop.f32.mrb[0].mxu0
      %4892 = vmatprep.mubr.bf16.mxu0 %v3997
      %4893 = vmatmul.mubr.bf16.gmra.mrb[0].mxu0 %v3996
      %v4894 = vpop.f32.mrb[0].mxu0
      %v4895 = vadd.f32 %v4734, %v4894
      %v4896 = vpop.f32.mrb[0].mxu0
      %v4897 = vpop.f32.mrb[0].mxu0
      %v4898 = vadd.f32 %v4737, %v4897
      %v4899 = vpop.f32.mrb[0].mxu0
      %4900 = vdwg.mxu0
      %4901 = vmatprep.subr.bf16.mxu0 0
      %4902 = vmatpush1.bf16.msra.mxu0 %v4467
      %4903 = vmatprep.subr.bf16.mxu0 0
      %4904 = vmatpush1.bf16.msra.mxu0 %v4468
      %4905 = vmatprep.subr.bf16.mxu0 0
      %4906 = vmatpush1.bf16.msra.mxu0 %v4469
      %4907 = vmatprep.subr.bf16.mxu0 0
      %4908 = vmatpush1.bf16.msra.mxu0 %v4470
      %4909 = vmatprep.subr.bf16.mxu0 0
      %4910 = vmatpush1.bf16.msra.mxu0 %v4471
      %4911 = vmatprep.subr.bf16.mxu0 0
      %4912 = vmatpush1.bf16.msra.mxu0 %v4472
      %4913 = vmatprep.subr.bf16.mxu0 0
      %4914 = vmatpush1.bf16.msra.mxu0 %v4473
      %4915 = vmatprep.subr.bf16.mxu0 0
      %4916 = vmatpush1.bf16.msra.mxu0 %v4474
      %4917 = vmatprep.subr.bf16.mxu0 0
      %4918 = vmatpush1.bf16.msra.mxu0 %v4475
      %4919 = vmatprep.subr.bf16.mxu0 0
      %4920 = vmatpush1.bf16.msra.mxu0 %v4476
      %4921 = vmatprep.subr.bf16.mxu0 0
      %4922 = vmatpush1.bf16.msra.mxu0 %v4477
      %4923 = vmatprep.subr.bf16.mxu0 0
      %4924 = vmatpush1.bf16.msra.mxu0 %v4478
      %4925 = vmatprep.subr.bf16.mxu0 0
      %4926 = vmatpush1.bf16.msra.mxu0 %v4479
      %4927 = vmatprep.subr.bf16.mxu0 0
      %4928 = vmatpush1.bf16.msra.mxu0 %v4480
      %4929 = vmatprep.subr.bf16.mxu0 0
      %4930 = vmatpush1.bf16.msra.mxu0 %v4481
      %4931 = vmatprep.subr.bf16.mxu0 0
      %4932 = vmatpush1.bf16.msra.mxu0 %v4482
      %4933 = vmatprep.mubr.bf16.mxu0 %v3864
      %4934 = vmatmul.mubr.bf16.gmra.mrb[0].mxu0 %v3863
      %v4935 = vpop.f32.mrb[0].mxu0
      %v4936 = vadd.f32 %v4775, %v4935
      %v4937 = vpop.f32.mrb[0].mxu0
      %v4938 = vpop.f32.mrb[0].mxu0
      %v4939 = vadd.f32 %v4778, %v4938
      %v4940 = vpop.f32.mrb[0].mxu0
      %4941 = vmatprep.mubr.bf16.mxu0 %v3873
      %4942 = vmatmul.mubr.bf16.gmra.mrb[0].mxu0 %v3872
      %v4943 = vpop.f32.mrb[0].mxu0
      %v4944 = vadd.f32 %v4783, %v4943
      %v4945 = vpop.f32.mrb[0].mxu0
      %v4946 = vpop.f32.mrb[0].mxu0
      %v4947 = vadd.f32 %v4786, %v4946
      %v4948 = vpop.f32.mrb[0].mxu0
      %4949 = vmatprep.mubr.bf16.mxu0 %v3882
      %4950 = vmatmul.mubr.bf16.gmra.mrb[0].mxu0 %v3881
      %v4951 = vpop.f32.mrb[0].mxu0
      %v4952 = vadd.f32 %v4791, %v4951
      %v4953 = vpop.f32.mrb[0].mxu0
      %v4954 = vpop.f32.mrb[0].mxu0
      %v4955 = vadd.f32 %v4794, %v4954
      %v4956 = vpop.f32.mrb[0].mxu0
      %4957 = vmatprep.mubr.bf16.mxu0 %v3891
      %4958 = vmatmul.mubr.bf16.gmra.mrb[0].mxu0 %v3890
      %v4959 = vpop.f32.mrb[0].mxu0
      %v4960 = vadd.f32 %v4799, %v4959
      %v4961 = vpop.f32.mrb[0].mxu0
      %v4962 = vpop.f32.mrb[0].mxu0
      %v4963 = vadd.f32 %v4802, %v4962
      %v4964 = vpop.f32.mrb[0].mxu0
      %4965 = vmatprep.mubr.bf16.mxu0 %v3900
      %4966 = vmatmul.mubr.bf16.gmra.mrb[0].mxu0 %v3899
      %v4967 = vpop.f32.mrb[0].mxu0
      %v4968 = vadd.f32 %v4807, %v4967
      %v4969 = vpop.f32.mrb[0].mxu0
      %v4970 = vpop.f32.mrb[0].mxu0
      %v4971 = vadd.f32 %v4810, %v4970
      %v4972 = vpop.f32.mrb[0].mxu0
      %4973 = vmatprep.mubr.bf16.mxu0 %v3909
      %4974 = vmatmul.mubr.bf16.gmra.mrb[0].mxu0 %v3908
      %v4975 = vpop.f32.mrb[0].mxu0
      %v4976 = vadd.f32 %v4815, %v4975
      %v4977 = vpop.f32.mrb[0].mxu0
      %v4978 = vpop.f32.mrb[0].mxu0
      %v4979 = vadd.f32 %v4818, %v4978
      %v4980 = vpop.f32.mrb[0].mxu0
      %4981 = vmatprep.mubr.bf16.mxu0 %v3918
      %4982 = vmatmul.mubr.bf16.gmra.mrb[0].mxu0 %v3917
      %v4983 = vpop.f32.mrb[0].mxu0
      %v4984 = vadd.f32 %v4823, %v4983
      %v4985 = vpop.f32.mrb[0].mxu0
      %v4986 = vpop.f32.mrb[0].mxu0
      %v4987 = vadd.f32 %v4826, %v4986
      %v4988 = vpop.f32.mrb[0].mxu0
      %4989 = vmatprep.mubr.bf16.mxu0 %v3927
      %4990 = vmatmul.mubr.bf16.gmra.mrb[0].mxu0 %v3926
      %v4991 = vpop.f32.mrb[0].mxu0
      %v4992 = vadd.f32 %v4831, %v4991
      %v4993 = vpop.f32.mrb[0].mxu0
      %v4994 = vpop.f32.mrb[0].mxu0
      %v4995 = vadd.f32 %v4834, %v4994
      %v4996 = vpop.f32.mrb[0].mxu0
      %4997 = vmatprep.mubr.bf16.mxu0 %v3936
      %4998 = vmatmul.mubr.bf16.gmra.mrb[0].mxu0 %v3935
      %v4999 = vpop.f32.mrb[0].mxu0
      %v5000 = vadd.f32 %v4839, %v4999
      %v5001 = vpop.f32.mrb[0].mxu0
      %v5002 = vpop.f32.mrb[0].mxu0
      %v5003 = vadd.f32 %v4842, %v5002
      %v5004 = vpop.f32.mrb[0].mxu0
      %5005 = vmatprep.mubr.bf16.mxu0 %v3945
      %5006 = vmatmul.mubr.bf16.gmra.mrb[0].mxu0 %v3944
      %v5007 = vpop.f32.mrb[0].mxu0
      %v5008 = vadd.f32 %v4847, %v5007
      %v5009 = vpop.f32.mrb[0].mxu0
      %v5010 = vpop.f32.mrb[0].mxu0
      %v5011 = vadd.f32 %v4850, %v5010
      %v5012 = vpop.f32.mrb[0].mxu0
      %5013 = vmatprep.mubr.bf16.mxu0 %v3954
      %5014 = vmatmul.mubr.bf16.gmra.mrb[0].mxu0 %v3953
      %v5015 = vpop.f32.mrb[0].mxu0
      %v5016 = vadd.f32 %v4855, %v5015
      %v5017 = vpop.f32.mrb[0].mxu0
      %v5018 = vpop.f32.mrb[0].mxu0
      %v5019 = vadd.f32 %v4858, %v5018
      %v5020 = vpop.f32.mrb[0].mxu0
      %5021 = vmatprep.mubr.bf16.mxu0 %v3963
      %5022 = vmatmul.mubr.bf16.gmra.mrb[0].mxu0 %v3962
      %v5023 = vpop.f32.mrb[0].mxu0
      %v5024 = vadd.f32 %v4863, %v5023
      %v5025 = vpop.f32.mrb[0].mxu0
      %v5026 = vpop.f32.mrb[0].mxu0
      %v5027 = vadd.f32 %v4866, %v5026
      %v5028 = vpop.f32.mrb[0].mxu0
      %5029 = vmatprep.mubr.bf16.mxu0 %v3972
      %5030 = vmatmul.mubr.bf16.gmra.mrb[0].mxu0 %v3971
      %v5031 = vpop.f32.mrb[0].mxu0
      %v5032 = vadd.f32 %v4871, %v5031
      %v5033 = vpop.f32.mrb[0].mxu0
      %v5034 = vpop.f32.mrb[0].mxu0
      %v5035 = vadd.f32 %v4874, %v5034
      %v5036 = vpop.f32.mrb[0].mxu0
      %5037 = vmatprep.mubr.bf16.mxu0 %v3981
      %5038 = vmatmul.mubr.bf16.gmra.mrb[0].mxu0 %v3980
      %v5039 = vpop.f32.mrb[0].mxu0
      %v5040 = vadd.f32 %v4879, %v5039
      %v5041 = vpop.f32.mrb[0].mxu0
      %v5042 = vpop.f32.mrb[0].mxu0
      %v5043 = vadd.f32 %v4882, %v5042
      %v5044 = vpop.f32.mrb[0].mxu0
      %5045 = vmatprep.mubr.bf16.mxu0 %v3990
      %5046 = vmatmul.mubr.bf16.gmra.mrb[0].mxu0 %v3989
      %v5047 = vpop.f32.mrb[0].mxu0
      %v5048 = vadd.f32 %v4887, %v5047
      %v5049 = vpop.f32.mrb[0].mxu0
      %v5050 = vpop.f32.mrb[0].mxu0
      %v5051 = vadd.f32 %v4890, %v5050
      %v5052 = vpop.f32.mrb[0].mxu0
      %5053 = vmatprep.mubr.bf16.mxu0 %v3999
      %5054 = vmatmul.mubr.bf16.gmra.mrb[0].mxu0 %v3998
      %v5055 = vpop.f32.mrb[0].mxu0
      %v5056 = vadd.f32 %v4895, %v5055
      %v5057 = vpop.f32.mrb[0].mxu0
      %v5058 = vpop.f32.mrb[0].mxu0
      %v5059 = vadd.f32 %v4898, %v5058
      %v5060 = vpop.f32.mrb[0].mxu0
      %5061 = vdwg.mxu0
      %5062 = vmatprep.subr.bf16.mxu0 0
      %5063 = vmatpush1.bf16.msra.mxu0 %v4483
      %5064 = vmatprep.subr.bf16.mxu0 0
      %5065 = vmatpush1.bf16.msra.mxu0 %v4484
      %5066 = vmatprep.subr.bf16.mxu0 0
      %5067 = vmatpush1.bf16.msra.mxu0 %v4485
      %5068 = vmatprep.subr.bf16.mxu0 0
      %5069 = vmatpush1.bf16.msra.mxu0 %v4486
      %5070 = vmatprep.subr.bf16.mxu0 0
      %5071 = vmatpush1.bf16.msra.mxu0 %v4487
      %5072 = vmatprep.subr.bf16.mxu0 0
      %5073 = vmatpush1.bf16.msra.mxu0 %v4488
      %5074 = vmatprep.subr.bf16.mxu0 0
      %5075 = vmatpush1.bf16.msra.mxu0 %v4489
      %5076 = vmatprep.subr.bf16.mxu0 0
      %5077 = vmatpush1.bf16.msra.mxu0 %v4490
      %5078 = vmatprep.subr.bf16.mxu0 0
      %5079 = vmatpush1.bf16.msra.mxu0 %v4491
      %5080 = vmatprep.subr.bf16.mxu0 0
      %5081 = vmatpush1.bf16.msra.mxu0 %v4492
      %5082 = vmatprep.subr.bf16.mxu0 0
      %5083 = vmatpush1.bf16.msra.mxu0 %v4493
      %5084 = vmatprep.subr.bf16.mxu0 0
      %5085 = vmatpush1.bf16.msra.mxu0 %v4494
      %5086 = vmatprep.subr.bf16.mxu0 0
      %5087 = vmatpush1.bf16.msra.mxu0 %v4495
      %5088 = vmatprep.subr.bf16.mxu0 0
      %5089 = vmatpush1.bf16.msra.mxu0 %v4496
      %5090 = vmatprep.subr.bf16.mxu0 0
      %5091 = vmatpush1.bf16.msra.mxu0 %v4497
      %5092 = vmatprep.subr.bf16.mxu0 0
      %5093 = vmatpush1.bf16.msra.mxu0 %v4498
      %5094 = vmatprep.mubr.bf16.mxu0 %v3866
      %5095 = vmatmul.mubr.bf16.gmra.mrb[0].mxu0 %v3865
      %v5096 = vpop.f32.mrb[0].mxu0
      %v5097 = vadd.f32 %v4936, %v5096
      %v5098 = vpop.f32.mrb[0].mxu0
      %v5099 = vpop.f32.mrb[0].mxu0
      %v5100 = vadd.f32 %v4939, %v5099
      %v5101 = vpop.f32.mrb[0].mxu0
      %5102 = vmatprep.mubr.bf16.mxu0 %v3875
      %5103 = vmatmul.mubr.bf16.gmra.mrb[0].mxu0 %v3874
      %v5104 = vpop.f32.mrb[0].mxu0
      %v5105 = vadd.f32 %v4944, %v5104
      %v5106 = vpop.f32.mrb[0].mxu0
      %v5107 = vpop.f32.mrb[0].mxu0
      %v5108 = vadd.f32 %v4947, %v5107
      %v5109 = vpop.f32.mrb[0].mxu0
      %5110 = vmatprep.mubr.bf16.mxu0 %v3884
      %5111 = vmatmul.mubr.bf16.gmra.mrb[0].mxu0 %v3883
      %v5112 = vpop.f32.mrb[0].mxu0
      %v5113 = vadd.f32 %v4952, %v5112
      %v5114 = vpop.f32.mrb[0].mxu0
      %v5115 = vpop.f32.mrb[0].mxu0
      %v5116 = vadd.f32 %v4955, %v5115
      %v5117 = vpop.f32.mrb[0].mxu0
      %5118 = vmatprep.mubr.bf16.mxu0 %v3893
      %5119 = vmatmul.mubr.bf16.gmra.mrb[0].mxu0 %v3892
      %v5120 = vpop.f32.mrb[0].mxu0
      %v5121 = vadd.f32 %v4960, %v5120
      %v5122 = vpop.f32.mrb[0].mxu0
      %v5123 = vpop.f32.mrb[0].mxu0
      %v5124 = vadd.f32 %v4963, %v5123
      %v5125 = vpop.f32.mrb[0].mxu0
      %5126 = vmatprep.mubr.bf16.mxu0 %v3902
      %5127 = vmatmul.mubr.bf16.gmra.mrb[0].mxu0 %v3901
      %v5128 = vpop.f32.mrb[0].mxu0
      %v5129 = vadd.f32 %v4968, %v5128
      %v5130 = vpop.f32.mrb[0].mxu0
      %v5131 = vpop.f32.mrb[0].mxu0
      %v5132 = vadd.f32 %v4971, %v5131
      %v5133 = vpop.f32.mrb[0].mxu0
      %5134 = vmatprep.mubr.bf16.mxu0 %v3911
      %5135 = vmatmul.mubr.bf16.gmra.mrb[0].mxu0 %v3910
      %v5136 = vpop.f32.mrb[0].mxu0
      %v5137 = vadd.f32 %v4976, %v5136
      %v5138 = vpop.f32.mrb[0].mxu0
      %v5139 = vpop.f32.mrb[0].mxu0
      %v5140 = vadd.f32 %v4979, %v5139
      %v5141 = vpop.f32.mrb[0].mxu0
      %5142 = vmatprep.mubr.bf16.mxu0 %v3920
      %5143 = vmatmul.mubr.bf16.gmra.mrb[0].mxu0 %v3919
      %v5144 = vpop.f32.mrb[0].mxu0
      %v5145 = vadd.f32 %v4984, %v5144
      %v5146 = vpop.f32.mrb[0].mxu0
      %v5147 = vpop.f32.mrb[0].mxu0
      %v5148 = vadd.f32 %v4987, %v5147
      %v5149 = vpop.f32.mrb[0].mxu0
      %5150 = vmatprep.mubr.bf16.mxu0 %v3929
      %5151 = vmatmul.mubr.bf16.gmra.mrb[0].mxu0 %v3928
      %v5152 = vpop.f32.mrb[0].mxu0
      %v5153 = vadd.f32 %v4992, %v5152
      %v5154 = vpop.f32.mrb[0].mxu0
      %v5155 = vpop.f32.mrb[0].mxu0
      %v5156 = vadd.f32 %v4995, %v5155
      %v5157 = vpop.f32.mrb[0].mxu0
      %5158 = vmatprep.mubr.bf16.mxu0 %v3938
      %5159 = vmatmul.mubr.bf16.gmra.mrb[0].mxu0 %v3937
      %v5160 = vpop.f32.mrb[0].mxu0
      %v5161 = vadd.f32 %v5000, %v5160
      %v5162 = vpop.f32.mrb[0].mxu0
      %v5163 = vpop.f32.mrb[0].mxu0
      %v5164 = vadd.f32 %v5003, %v5163
      %v5165 = vpop.f32.mrb[0].mxu0
      %5166 = vmatprep.mubr.bf16.mxu0 %v3947
      %5167 = vmatmul.mubr.bf16.gmra.mrb[0].mxu0 %v3946
      %v5168 = vpop.f32.mrb[0].mxu0
      %v5169 = vadd.f32 %v5008, %v5168
      %v5170 = vpop.f32.mrb[0].mxu0
      %v5171 = vpop.f32.mrb[0].mxu0
      %v5172 = vadd.f32 %v5011, %v5171
      %v5173 = vpop.f32.mrb[0].mxu0
      %5174 = vmatprep.mubr.bf16.mxu0 %v3956
      %5175 = vmatmul.mubr.bf16.gmra.mrb[0].mxu0 %v3955
      %v5176 = vpop.f32.mrb[0].mxu0
      %v5177 = vadd.f32 %v5016, %v5176
      %v5178 = vpop.f32.mrb[0].mxu0
      %v5179 = vpop.f32.mrb[0].mxu0
      %v5180 = vadd.f32 %v5019, %v5179
      %v5181 = vpop.f32.mrb[0].mxu0
      %5182 = vmatprep.mubr.bf16.mxu0 %v3965
      %5183 = vmatmul.mubr.bf16.gmra.mrb[0].mxu0 %v3964
      %v5184 = vpop.f32.mrb[0].mxu0
      %v5185 = vadd.f32 %v5024, %v5184
      %v5186 = vpop.f32.mrb[0].mxu0
      %v5187 = vpop.f32.mrb[0].mxu0
      %v5188 = vadd.f32 %v5027, %v5187
      %v5189 = vpop.f32.mrb[0].mxu0
      %5190 = vmatprep.mubr.bf16.mxu0 %v3974
      %5191 = vmatmul.mubr.bf16.gmra.mrb[0].mxu0 %v3973
      %v5192 = vpop.f32.mrb[0].mxu0
      %v5193 = vadd.f32 %v5032, %v5192
      %v5194 = vpop.f32.mrb[0].mxu0
      %v5195 = vpop.f32.mrb[0].mxu0
      %v5196 = vadd.f32 %v5035, %v5195
      %v5197 = vpop.f32.mrb[0].mxu0
      %5198 = vmatprep.mubr.bf16.mxu0 %v3983
      %5199 = vmatmul.mubr.bf16.gmra.mrb[0].mxu0 %v3982
      %v5200 = vpop.f32.mrb[0].mxu0
      %v5201 = vadd.f32 %v5040, %v5200
      %v5202 = vpop.f32.mrb[0].mxu0
      %v5203 = vpop.f32.mrb[0].mxu0
      %v5204 = vadd.f32 %v5043, %v5203
      %v5205 = vpop.f32.mrb[0].mxu0
      %5206 = vmatprep.mubr.bf16.mxu0 %v3992
      %5207 = vmatmul.mubr.bf16.gmra.mrb[0].mxu0 %v3991
      %v5208 = vpop.f32.mrb[0].mxu0
      %v5209 = vadd.f32 %v5048, %v5208
      %v5210 = vpop.f32.mrb[0].mxu0
      %v5211 = vpop.f32.mrb[0].mxu0
      %v5212 = vadd.f32 %v5051, %v5211
      %v5213 = vpop.f32.mrb[0].mxu0
      %5214 = vmatprep.mubr.bf16.mxu0 %v4001
      %5215 = vmatmul.mubr.bf16.gmra.mrb[0].mxu0 %v4000
      %v5216 = vpop.f32.mrb[0].mxu0
      %v5217 = vadd.f32 %v5056, %v5216
      %v5218 = vpop.f32.mrb[0].mxu0
      %v5219 = vpop.f32.mrb[0].mxu0
      %v5220 = vadd.f32 %v5059, %v5219
      %v5221 = vpop.f32.mrb[0].mxu0
      %5222 = vdwg.mxu0
      %5223 = vmatprep.subr.bf16.mxu0 0
      %5224 = vmatpush1.bf16.msra.mxu0 %v4499
      %5225 = vmatprep.subr.bf16.mxu0 0
      %5226 = vmatpush1.bf16.msra.mxu0 %v4500
      %5227 = vmatprep.subr.bf16.mxu0 0
      %5228 = vmatpush1.bf16.msra.mxu0 %v4501
      %5229 = vmatprep.subr.bf16.mxu0 0
      %5230 = vmatpush1.bf16.msra.mxu0 %v4502
      %5231 = vmatprep.subr.bf16.mxu0 0
      %5232 = vmatpush1.bf16.msra.mxu0 %v4503
      %5233 = vmatprep.subr.bf16.mxu0 0
      %5234 = vmatpush1.bf16.msra.mxu0 %v4504
      %5235 = vmatprep.subr.bf16.mxu0 0
      %5236 = vmatpush1.bf16.msra.mxu0 %v4505
      %5237 = vmatprep.subr.bf16.mxu0 0
      %5238 = vmatpush1.bf16.msra.mxu0 %v4506
      %5239 = vmatprep.subr.bf16.mxu0 0
      %5240 = vmatpush1.bf16.msra.mxu0 0
      %5241 = vmatprep.subr.bf16.mxu0 0
      %5242 = vmatpush1.bf16.msra.mxu0 0
      %5243 = vmatprep.subr.bf16.mxu0 0
      %5244 = vmatpush1.bf16.msra.mxu0 0
      %5245 = vmatprep.subr.bf16.mxu0 0
      %5246 = vmatpush1.bf16.msra.mxu0 0
      %5247 = vmatprep.subr.bf16.mxu0 0
      %5248 = vmatpush1.bf16.msra.mxu0 0
      %5249 = vmatprep.subr.bf16.mxu0 0
      %5250 = vmatpush1.bf16.msra.mxu0 0
      %5251 = vmatprep.subr.bf16.mxu0 0
      %5252 = vmatpush1.bf16.msra.mxu0 0
      %5253 = vmatprep.subr.bf16.mxu0 0
      %5254 = vmatpush1.bf16.msra.mxu0 0
      %5255 = vmatprep.mubr.bf16.mxu0 0
      %5256 = vmatmul.mubr.bf16.gmra.mrb[0].mxu0 %v3867
      %v5257 = vpop.f32.mrb[0].mxu0
      %v5258 = vadd.f32 %v5097, %v5257
      %v5259 = vpop.f32.mrb[0].mxu0
      %v5260 = vpop.f32.mrb[0].mxu0
      %v5261 = vadd.f32 %v5100, %v5260
      %v5262 = vpop.f32.mrb[0].mxu0
      %5263 = vmatprep.mubr.bf16.mxu0 0
      %5264 = vmatmul.mubr.bf16.gmra.mrb[0].mxu0 %v3876
      %v5265 = vpop.f32.mrb[0].mxu0
      %v5266 = vadd.f32 %v5105, %v5265
      %v5267 = vpop.f32.mrb[0].mxu0
      %v5268 = vpop.f32.mrb[0].mxu0
      %v5269 = vadd.f32 %v5108, %v5268
      %v5270 = vpop.f32.mrb[0].mxu0
      %5271 = vmatprep.mubr.bf16.mxu0 0
      %5272 = vmatmul.mubr.bf16.gmra.mrb[0].mxu0 %v3885
      %v5273 = vpop.f32.mrb[0].mxu0
      %v5274 = vadd.f32 %v5113, %v5273
      %v5275 = vpop.f32.mrb[0].mxu0
      %v5276 = vpop.f32.mrb[0].mxu0
      %v5277 = vadd.f32 %v5116, %v5276
      %v5278 = vpop.f32.mrb[0].mxu0
      %5279 = vmatprep.mubr.bf16.mxu0 0
      %5280 = vmatmul.mubr.bf16.gmra.mrb[0].mxu0 %v3894
      %v5281 = vpop.f32.mrb[0].mxu0
      %v5282 = vadd.f32 %v5121, %v5281
      %v5283 = vpop.f32.mrb[0].mxu0
      %v5284 = vpop.f32.mrb[0].mxu0
      %v5285 = vadd.f32 %v5124, %v5284
      %v5286 = vpop.f32.mrb[0].mxu0
      %5287 = vmatprep.mubr.bf16.mxu0 0
      %5288 = vmatmul.mubr.bf16.gmra.mrb[0].mxu0 %v3903
      %v5289 = vpop.f32.mrb[0].mxu0
      %v5290 = vadd.f32 %v5129, %v5289
      %v5291 = vpop.f32.mrb[0].mxu0
      %v5292 = vpop.f32.mrb[0].mxu0
      %v5293 = vadd.f32 %v5132, %v5292
      %v5294 = vpop.f32.mrb[0].mxu0
      %5295 = vmatprep.mubr.bf16.mxu0 0
      %5296 = vmatmul.mubr.bf16.gmra.mrb[0].mxu0 %v3912
      %v5297 = vpop.f32.mrb[0].mxu0
      %v5298 = vadd.f32 %v5137, %v5297
      %v5299 = vpop.f32.mrb[0].mxu0
      %v5300 = vpop.f32.mrb[0].mxu0
      %v5301 = vadd.f32 %v5140, %v5300
      %v5302 = vpop.f32.mrb[0].mxu0
      %5303 = vmatprep.mubr.bf16.mxu0 0
      %5304 = vmatmul.mubr.bf16.gmra.mrb[0].mxu0 %v3921
      %v5305 = vpop.f32.mrb[0].mxu0
      %v5306 = vadd.f32 %v5145, %v5305
      %v5307 = vpop.f32.mrb[0].mxu0
      %v5308 = vpop.f32.mrb[0].mxu0
      %v5309 = vadd.f32 %v5148, %v5308
      %v5310 = vpop.f32.mrb[0].mxu0
      %5311 = vmatprep.mubr.bf16.mxu0 0
      %5312 = vmatmul.mubr.bf16.gmra.mrb[0].mxu0 %v3930
      %v5313 = vpop.f32.mrb[0].mxu0
      %v5314 = vadd.f32 %v5153, %v5313
      %v5315 = vpop.f32.mrb[0].mxu0
      %v5316 = vpop.f32.mrb[0].mxu0
      %v5317 = vadd.f32 %v5156, %v5316
      %v5318 = vpop.f32.mrb[0].mxu0
      %5319 = vmatprep.mubr.bf16.mxu0 0
      %5320 = vmatmul.mubr.bf16.gmra.mrb[0].mxu0 %v3939
      %v5321 = vpop.f32.mrb[0].mxu0
      %v5322 = vadd.f32 %v5161, %v5321
      %v5323 = vpop.f32.mrb[0].mxu0
      %v5324 = vpop.f32.mrb[0].mxu0
      %v5325 = vadd.f32 %v5164, %v5324
      %v5326 = vpop.f32.mrb[0].mxu0
      %5327 = vmatprep.mubr.bf16.mxu0 0
      %5328 = vmatmul.mubr.bf16.gmra.mrb[0].mxu0 %v3948
      %v5329 = vpop.f32.mrb[0].mxu0
      %v5330 = vadd.f32 %v5169, %v5329
      %v5331 = vpop.f32.mrb[0].mxu0
      %v5332 = vpop.f32.mrb[0].mxu0
      %v5333 = vadd.f32 %v5172, %v5332
      %v5334 = vpop.f32.mrb[0].mxu0
      %5335 = vmatprep.mubr.bf16.mxu0 0
      %5336 = vmatmul.mubr.bf16.gmra.mrb[0].mxu0 %v3957
      %v5337 = vpop.f32.mrb[0].mxu0
      %v5338 = vadd.f32 %v5177, %v5337
      %v5339 = vpop.f32.mrb[0].mxu0
      %v5340 = vpop.f32.mrb[0].mxu0
      %v5341 = vadd.f32 %v5180, %v5340
      %v5342 = vpop.f32.mrb[0].mxu0
      %5343 = vmatprep.mubr.bf16.mxu0 0
      %5344 = vmatmul.mubr.bf16.gmra.mrb[0].mxu0 %v3966
      %v5345 = vpop.f32.mrb[0].mxu0
      %v5346 = vadd.f32 %v5185, %v5345
      %v5347 = vpop.f32.mrb[0].mxu0
      %v5348 = vpop.f32.mrb[0].mxu0
      %v5349 = vadd.f32 %v5188, %v5348
      %v5350 = vpop.f32.mrb[0].mxu0
      %5351 = vmatprep.mubr.bf16.mxu0 0
      %5352 = vmatmul.mubr.bf16.gmra.mrb[0].mxu0 %v3975
      %v5353 = vpop.f32.mrb[0].mxu0
      %v5354 = vadd.f32 %v5193, %v5353
      %v5355 = vpop.f32.mrb[0].mxu0
      %v5356 = vpop.f32.mrb[0].mxu0
      %v5357 = vadd.f32 %v5196, %v5356
      %v5358 = vpop.f32.mrb[0].mxu0
      %5359 = vmatprep.mubr.bf16.mxu0 0
      %5360 = vmatmul.mubr.bf16.gmra.mrb[0].mxu0 %v3984
      %v5361 = vpop.f32.mrb[0].mxu0
      %v5362 = vadd.f32 %v5201, %v5361
      %v5363 = vpop.f32.mrb[0].mxu0
      %v5364 = vpop.f32.mrb[0].mxu0
      %v5365 = vadd.f32 %v5204, %v5364
      %v5366 = vpop.f32.mrb[0].mxu0
      %5367 = vmatprep.mubr.bf16.mxu0 0
      %5368 = vmatmul.mubr.bf16.gmra.mrb[0].mxu0 %v3993
      %v5369 = vpop.f32.mrb[0].mxu0
      %v5370 = vadd.f32 %v5209, %v5369
      %v5371 = vpop.f32.mrb[0].mxu0
      %v5372 = vpop.f32.mrb[0].mxu0
      %v5373 = vadd.f32 %v5212, %v5372
      %v5374 = vpop.f32.mrb[0].mxu0
      %5375 = vmatprep.mubr.bf16.mxu0 0
      %5376 = vmatmul.mubr.bf16.gmra.mrb[0].mxu0 %v4002
      %v5377 = vpop.f32.mrb[0].mxu0
      %v5378 = vadd.f32 %v5217, %v5377
      %v5379 = vpop.f32.mrb[0].mxu0
      %v5380 = vpop.f32.mrb[0].mxu0
      %v5381 = vadd.f32 %v5220, %v5380
      %v5382 = vpop.f32.mrb[0].mxu0
      %5383 = vdwg.mxu0
      %5384 = vst [vmem:[%s231] sm:$0xff] %v5258
      %5385 = vst [vmem:[%s231 + $0x8] sm:$0xff] %v5261
      %5386 = vst [vmem:[%s231 + $0x10] sm:$0xff] %v5266
      %5387 = vst [vmem:[%s231 + $0x18] sm:$0xff] %v5269
      %5388 = vst [vmem:[%s231 + $0x20] sm:$0xff] %v5274
      %5389 = vst [vmem:[%s231 + $0x28] sm:$0xff] %v5277
      %5390 = vst [vmem:[%s231 + $0x30] sm:$0xff] %v5282
      %5391 = vst [vmem:[%s231 + $0x38] sm:$0xff] %v5285
      %5392 = vst [vmem:[%s231 + $0x40] sm:$0xff] %v5290
      %5393 = vst [vmem:[%s231 + $0x48] sm:$0xff] %v5293
      %5394 = vst [vmem:[%s231 + $0x50] sm:$0xff] %v5298
      %5395 = vst [vmem:[%s231 + $0x58] sm:$0xff] %v5301
      %5396 = vst [vmem:[%s231 + $0x60] sm:$0xff] %v5306
      %5397 = vst [vmem:[%s231 + $0x68] sm:$0xff] %v5309
      %5398 = vst [vmem:[%s231 + $0x70] sm:$0xff] %v5314
      %5399 = vst [vmem:[%s231 + $0x78] sm:$0xff] %v5317
      %5400 = vst [vmem:[%s231 + $0x80] sm:$0xff] %v5322
      %5401 = vst [vmem:[%s231 + $0x88] sm:$0xff] %v5325
      %5402 = vst [vmem:[%s231 + $0x90] sm:$0xff] %v5330
      %5403 = vst [vmem:[%s231 + $0x98] sm:$0xff] %v5333
      %5404 = vst [vmem:[%s231 + $0xa0] sm:$0xff] %v5338
      %5405 = vst [vmem:[%s231 + $0xa8] sm:$0xff] %v5341
      %5406 = vst [vmem:[%s231 + $0xb0] sm:$0xff] %v5346
      %5407 = vst [vmem:[%s231 + $0xb8] sm:$0xff] %v5349
      %5408 = vst [vmem:[%s231 + $0xc0] sm:$0xff] %v5354
      %5409 = vst [vmem:[%s231 + $0xc8] sm:$0xff] %v5357
      %5410 = vst [vmem:[%s231 + $0xd0] sm:$0xff] %v5362
      %5411 = vst [vmem:[%s231 + $0xd8] sm:$0xff] %v5365
      %5412 = vst [vmem:[%s231 + $0xe0] sm:$0xff] %v5370
      %5413 = vst [vmem:[%s231 + $0xe8] sm:$0xff] %v5373
      %5414 = vst [vmem:[%s231 + $0xf0] sm:$0xff] %v5378
      %5415 = vst [vmem:[%s231 + $0xf8] sm:$0xff] %v5381
      %5416 = vst [vmem:[%s235] sm:$0xff] 0.0
      %v5417 = vadd.f32 %v5258, %v5261
      %v5418 = vadd.f32 %v5417, %v5266
      %v5419 = vadd.f32 %v5418, %v5269
      %v5420 = vadd.f32 %v5419, %v5274
      %v5421 = vadd.f32 %v5420, %v5277
      %v5422 = vadd.f32 %v5421, %v5282
      %v5423 = vadd.f32 %v5422, %v5285
      %v5424 = vadd.f32 %v5423, %v5290
      %v5425 = vadd.f32 %v5424, %v5293
      %v5426 = vadd.f32 %v5425, %v5298
      %v5427 = vadd.f32 %v5426, %v5301
      %v5428 = vadd.f32 %v5427, %v5306
      %v5429 = vadd.f32 %v5428, %v5309
      %v5430 = vadd.f32 %v5429, %v5314
      %v5431 = vadd.f32 %v5430, %v5317
      %v5432 = vadd.f32 %v5431, %v5322
      %v5433 = vadd.f32 %v5432, %v5325
      %v5434 = vadd.f32 %v5433, %v5330
      %v5435 = vadd.f32 %v5434, %v5333
      %v5436 = vadd.f32 %v5435, %v5338
      %v5437 = vadd.f32 %v5436, %v5341
      %v5438 = vadd.f32 %v5437, %v5346
      %v5439 = vadd.f32 %v5438, %v5349
      %v5440 = vadd.f32 %v5439, %v5354
      %v5441 = vadd.f32 %v5440, %v5357
      %v5442 = vadd.f32 %v5441, %v5362
      %v5443 = vadd.f32 %v5442, %v5365
      %v5444 = vadd.f32 %v5443, %v5370
      %v5445 = vadd.f32 %v5444, %v5373
      %v5446 = vadd.f32 %v5445, %v5378
      %v5447 = vadd.f32 %v5446, %v5381
      %v5448 = vrot.slane %v5447, 4
      %v5449 = vadd.f32 %v5447, %v5448
      %v5450 = vrot.slane %v5449, 2
      %v5451 = vadd.f32 %v5449, %v5450
      %v5452 = vrot.slane %v5451, 1
      %v5453 = vadd.f32 %v5451, %v5452
      %5454 = vst [vmem:[%s235] sm:$0x1] %v5453
      %v5455 = vmul.f32 %v5258, %v5258
      %v5456 = vmul.f32 %v5261, %v5261
      %v5457 = vmul.f32 %v5266, %v5266
      %v5458 = vmul.f32 %v5269, %v5269
      %v5459 = vmul.f32 %v5274, %v5274
      %v5460 = vmul.f32 %v5277, %v5277
      %v5461 = vmul.f32 %v5282, %v5282
      %v5462 = vmul.f32 %v5285, %v5285
      %v5463 = vmul.f32 %v5290, %v5290
      %v5464 = vmul.f32 %v5293, %v5293
      %v5465 = vmul.f32 %v5298, %v5298
      %v5466 = vmul.f32 %v5301, %v5301
      %v5467 = vmul.f32 %v5306, %v5306
      %v5468 = vmul.f32 %v5309, %v5309
      %v5469 = vmul.f32 %v5314, %v5314
      %v5470 = vmul.f32 %v5317, %v5317
      %v5471 = vmul.f32 %v5322, %v5322
      %v5472 = vmul.f32 %v5325, %v5325
      %v5473 = vmul.f32 %v5330, %v5330
      %v5474 = vmul.f32 %v5333, %v5333
      %v5475 = vmul.f32 %v5338, %v5338
      %v5476 = vmul.f32 %v5341, %v5341
      %v5477 = vmul.f32 %v5346, %v5346
      %v5478 = vmul.f32 %v5349, %v5349
      %v5479 = vmul.f32 %v5354, %v5354
      %v5480 = vmul.f32 %v5357, %v5357
      %v5481 = vmul.f32 %v5362, %v5362
      %v5482 = vmul.f32 %v5365, %v5365
      %v5483 = vmul.f32 %v5370, %v5370
      %v5484 = vmul.f32 %v5373, %v5373
      %v5485 = vmul.f32 %v5378, %v5378
      %v5486 = vmul.f32 %v5381, %v5381
      %v5487 = vadd.f32 %v5455, %v5456
      %v5488 = vadd.f32 %v5487, %v5457
      %v5489 = vadd.f32 %v5488, %v5458
      %v5490 = vadd.f32 %v5489, %v5459
      %v5491 = vadd.f32 %v5490, %v5460
      %v5492 = vadd.f32 %v5491, %v5461
      %v5493 = vadd.f32 %v5492, %v5462
      %v5494 = vadd.f32 %v5493, %v5463
      %v5495 = vadd.f32 %v5494, %v5464
      %v5496 = vadd.f32 %v5495, %v5465
      %v5497 = vadd.f32 %v5496, %v5466
      %v5498 = vadd.f32 %v5497, %v5467
      %v5499 = vadd.f32 %v5498, %v5468
      %v5500 = vadd.f32 %v5499, %v5469
      %v5501 = vadd.f32 %v5500, %v5470
      %v5502 = vadd.f32 %v5501, %v5471
      %v5503 = vadd.f32 %v5502, %v5472
      %v5504 = vadd.f32 %v5503, %v5473
      %v5505 = vadd.f32 %v5504, %v5474
      %v5506 = vadd.f32 %v5505, %v5475
      %v5507 = vadd.f32 %v5506, %v5476
      %v5508 = vadd.f32 %v5507, %v5477
      %v5509 = vadd.f32 %v5508, %v5478
      %v5510 = vadd.f32 %v5509, %v5479
      %v5511 = vadd.f32 %v5510, %v5480
      %v5512 = vadd.f32 %v5511, %v5481
      %v5513 = vadd.f32 %v5512, %v5482
      %v5514 = vadd.f32 %v5513, %v5483
      %v5515 = vadd.f32 %v5514, %v5484
      %v5516 = vadd.f32 %v5515, %v5485
      %v5517 = vadd.f32 %v5516, %v5486
      %v5518 = vrot.slane %v5517, 4
      %v5519 = vadd.f32 %v5517, %v5518
      %v5520 = vrot.slane %v5519, 2
      %v5521 = vadd.f32 %v5519, %v5520
      %v5522 = vrot.slane %v5521, 1
      %v5523 = vadd.f32 %v5521, %v5522
      %5524 = vst [vmem:[%s235 + $0x1] sm:$0x1] %v5523
      %p5525 = scmp.lt.s32.totalorder %s17, 1
      %s5526 = scalar_select %p5525, %s17, 1
      %s5527 = smul.addr %s5526, 32
      %s5528 = smul.addr %s5527, 8
      %s5529 = scalar_lea.vmem %s4, %s5528
      %p5530 = scmp.lt.s32.totalorder %s17, 1
      %s5531 = scalar_select %p5530, %s17, 1
      %s5532 = smul.addr %s5531, 8
      %s5533 = scalar_lea.vmem %s5, %s5532
      // Predicated region
      $region37: #{basic_block_forward.4} parent=35 // pred_check
        %p5534 = pneg %p124
      $region38: #{basic_block_forward.4} parent=35 // pred_check_branch
        %5536 = sbr.rel (%p5534) target = $region40
      $region39: #{basic_block_forward.4} parent=35 // pred_region
        _
      $region40: #{basic_block_forward.4} parent=35 // pred_fallthru
        _
      // Predicated region
      $region41: #{basic_block_forward.4} parent=35 // pred_check
        %p5537 = pneg %p150
      $region42: #{basic_block_forward.4} parent=35 // pred_check_branch
        %5539 = sbr.rel (%p5537) target = $region44
      $region43: #{basic_block_forward.4} parent=35 // pred_region
        _
      $region44: #{basic_block_forward.4} parent=35 // pred_fallthru
        _
    $region36: #{basic_block_forward.4} parent=5 // pred_fallthru
      _
    %p5540 = scmp.le.s32.totalorder 2, %s12
    // Predicated region
    $region45: #{basic_block_forward.4} parent=5 // pred_check
      %p5541 = pneg %p5540
    $region46: #{basic_block_forward.4} parent=5 // pred_check_branch
      %5543 = sbr.rel (%p5541) target = $region48
    $region47: #{basic_block_forward.4} parent=5 // pred_region
      %s5544 = ssub.s32 %s12, 2
      // Predicated region
      $region49: #{basic_block_forward.4} parent=47 // pred_check
        %p5545 = pneg %p130
      $region50: #{basic_block_forward.4} parent=47 // pred_check_branch
        %5547 = sbr.rel (%p5545) target = $region52
      $region51: #{basic_block_forward.4} parent=47 // pred_region
        %p5548 = scmp.lt.s32.totalorder %s18, 1
        %s5549 = scalar_select %p5548, %s18, 1
        %s5550 = smul.addr %s5549, 32
        %s5551 = smul.addr %s5550, 8
        %s5552 = scalar_lea.vmem %s4, %s5551
      $region52: #{basic_block_forward.4} parent=47 // pred_fallthru
        _
      // Predicated region
      $region53: #{basic_block_forward.4} parent=47 // pred_check
        %p5553 = pneg %p156
      $region54: #{basic_block_forward.4} parent=47 // pred_check_branch
        %5555 = sbr.rel (%p5553) target = $region56
      $region55: #{basic_block_forward.4} parent=47 // pred_region
        %p5556 = scmp.lt.s32.totalorder %s18, 1
        %s5557 = scalar_select %p5556, %s18, 1
        %s5558 = smul.addr %s5557, 8
        %s5559 = scalar_lea.vmem %s5, %s5558
      $region56: #{basic_block_forward.4} parent=47 // pred_fallthru
        _
    $region48: #{basic_block_forward.4} parent=5 // pred_fallthru
      _
  $region6: #{basic_block_forward.4} parent=0 // loop_footer
    %s16 = sadd.s32 1, %s12
  $region7: #{basic_block_forward.4} parent=0 // loop_footer_branch
    %11 = sbr.rel target = $region3
  $region8: #{basic_block_forward.4} parent=0 // loop_exit
    _

</llo_original>
